<compile_context>
chip_gen: v7x
topology: tpu7x:2x2x1
jax: 0.10.0
libtpu: 0.0.40
codegen_flags: <defaults>
</compile_context>

<pallas_src>
import functools
import math

import jax
import jax.numpy as jnp
from jax.experimental import pallas as pl
from jax.experimental.pallas import tpu as pltpu

BOTTLENECK = 256  # bottleneck_size (kept small for the synthetic example)
CONV_DIMS = [3, 64, 64, 64, 128, BOTTLENECK]                # PointNetFeatures conv1..conv5
FC_DIMS = [2 * BOTTLENECK, 1024, 1024, 512, 512, 256, 7]    # fc1..fc6 (fixed in module)


def _ipcrnet_kernel(x_ref,
                    cw1, cb1, cw2, cb2, cw3, cb3, cw4, cb4, cw5, cb5,
                    fw1, fb1, fw2, fb2, fw3, fb3, fw4, fb4, fw5, fb5, fw6, fb6,
                    out_ref, feat_acc):
    n = pl.program_id(0)

    @pl.when(n == 0)
    def _init():
        feat_acc[...] = jnp.full(feat_acc.shape, -jnp.inf, dtype=feat_acc.dtype)

    # ---- PointNet conv stack on this N-tile (both clouds stacked along batch) ----
    x = x_ref[...]                               # (2B, tile_n, 3) f32
    two_b, tn, _ = x.shape
    h = x.reshape(two_b * tn, 3)                 # tile-preserving merge (tile_n % 8 == 0)

    # conv1 (3 -> 64): K=3 would be <3% MXU fill, so do 3 broadcast FMAs on the VPU.
    w1 = cw1[...].astype(jnp.float32)            # (3, 64)
    b1 = cb1[...].astype(jnp.float32)            # (1, 64)
    h = (h[:, 0:1] * w1[0:1, :]
         + h[:, 1:2] * w1[1:2, :]
         + h[:, 2:3] * w1[2:3, :]
         + b1)
    h = jnp.maximum(h, 0.0)

    # conv2..conv5: one large bf16 MXU matmul per layer, f32 accumulate + ReLU.
    for w_ref, b_ref in ((cw2, cb2), (cw3, cb3), (cw4, cb4), (cw5, cb5)):
        h = jnp.dot(h.astype(jnp.bfloat16), w_ref[...],
                    preferred_element_type=jnp.float32)
        h = jnp.maximum(h + b_ref[...].astype(jnp.float32), 0.0)

    # Running global max-pool over the points of this tile.
    h = h.reshape(two_b, tn, h.shape[-1])        # (2B, tile_n, bottleneck)
    feat_acc[...] = jnp.maximum(feat_acc[...], jnp.max(h, axis=1))

    # ---- Regression MLP + quaternion normalization: only on the last grid step ----
    @pl.when(n == pl.num_programs(0) - 1)
    def _finalize():
        feat = feat_acc[...]                     # (2B, bottleneck) f32, >= 0
        b = two_b // 2
        bs = feat.shape[-1]
        y0 = feat[0:b].astype(jnp.bfloat16)      # template features (B, bottleneck)
        y1 = feat[b:].astype(jnp.bfloat16)       # source features   (B, bottleneck)

        # fc1 without materializing concat([y0, y1], axis=1): split fw1 by rows.
        y = (jnp.dot(y0, fw1[0:bs, :], preferred_element_type=jnp.float32)
             + jnp.dot(y1, fw1[bs:2 * bs, :], preferred_element_type=jnp.float32)
             + fb1[...].astype(jnp.float32))
        y = jnp.maximum(y, 0.0)

        for w_ref, b_ref in ((fw2, fb2), (fw3, fb3), (fw4, fb4), (fw5, fb5)):
            y = jnp.dot(y.astype(jnp.bfloat16), w_ref[...],
                        preferred_element_type=jnp.float32)
            y = jnp.maximum(y + b_ref[...].astype(jnp.float32), 0.0)

        y = (jnp.dot(y.astype(jnp.bfloat16), fw6[...],
                     preferred_element_type=jnp.float32)
             + fb6[...].astype(jnp.float32))     # (B, 7)

        pre_quat = y[:, 0:4]
        # F.normalize(p=2, dim=1, eps=1e-12) == q / clamp_min(||q||_2, eps)
        norm = jnp.sqrt(jnp.sum(pre_quat * pre_quat, axis=1, keepdims=True))
        normalized_quat = pre_quat / jnp.maximum(norm, 1e-12)
        trans = y[:, 4:7]

        # Single fused (B, 11) output: [normalized_quat | trans | pre_quat]
        out_ref[...] = jnp.concatenate([normalized_quat, trans, pre_quat], axis=1)


def init_params(key):
    """Deterministic PyTorch-style init U(-1/sqrt(fan_in), 1/sqrt(fan_in)), stored bf16."""
    params = []
    dims = list(zip(CONV_DIMS[:-1], CONV_DIMS[1:])) + list(zip(FC_DIMS[:-1], FC_DIMS[1:]))
    for cin, cout in dims:
        key, kw, kb = jax.random.split(key, 3)
        bound = 1.0 / math.sqrt(cin)
        w = jax.random.uniform(kw, (cin, cout), jnp.float32, -bound, bound)
        b = jax.random.uniform(kb, (1, cout), jnp.float32, -bound, bound)
        params += [w.astype(jnp.bfloat16), b.astype(jnp.bfloat16)]
    return params


@functools.partial(jax.jit, static_argnames=("tile_n",))
def ipcrnet_forward(x0, x1, params, *, tile_n=512):
    B, N, _ = x0.shape
    tile_n = min(tile_n, N)
    if N % tile_n != 0 or tile_n % 8 != 0:
        raise ValueError("tile_n must divide N and be a multiple of 8")
    grid_n = N // tile_n

    # Stack the two clouds -> single PointNet pass over (2B, N, 3).
    x = jnp.concatenate([x0, x1], axis=0)

    const2 = lambda n: (0, 0)                      # weights: VMEM-resident across steps
    x_spec = pl.BlockSpec((2 * B, tile_n, 3), lambda n: (0, n, 0))
    w_specs = [pl.BlockSpec(p.shape, const2) for p in params]
    out_spec = pl.BlockSpec((B, 11), const2)

    out11 = pl.pallas_call(
        _ipcrnet_kernel,
        out_shape=jax.ShapeDtypeStruct((B, 11), jnp.float32),
        grid_spec=pltpu.PrefetchScalarGridSpec(
            num_scalar_prefetch=0,
            grid=(grid_n,),
            in_specs=[x_spec] + w_specs,
            out_specs=out_spec,
            scratch_shapes=[pltpu.VMEM((2 * B, BOTTLENECK), jnp.float32)],
        ),
        compiler_params=pltpu.CompilerParams(
            dimension_semantics=("arbitrary",),
            vmem_limit_bytes=32 * 1024 * 1024,
        ),
    )(x, *params)

    y = out11[:, :7]          # [normalized_quat | trans]
    pre_quat = out11[:, 7:]   # pre-normalized quaternion
    return y, pre_quat


if __name__ == "__main__":
    key = jax.random.PRNGKey(0)
    kx0, kx1, kp = jax.random.split(key, 3)
    B, N = 2, 64
    x0 = jax.random.normal(kx0, (B, N, 3), jnp.float32)  # template point cloud (bnc)
    x1 = jax.random.normal(kx1, (B, N, 3), jnp.float32)  # source point cloud (bnc)
    params = init_params(kp)

    # tile_n=32 -> 2 grid steps, exercising the running-max accumulator path.
    y, pre_quat = ipcrnet_forward(x0, x1, params, tile_n=32)
    jax.block_until_ready((y, pre_quat))

    assert y.shape == (B, 7) and pre_quat.shape == (B, 4)
    qn = jnp.linalg.norm(y[:, :4], axis=1)
    assert bool(jnp.all(jnp.abs(qn - 1.0) < 1e-4))
    print("KERNEL_OK")
</pallas_src>

<mosaic_0001>
module attributes {stable_mosaic.version = 11 : i64} {
  func.func @_ipcrnet_kernel(%arg0: i32, %arg1: memref<4x32x3xf32, #tpu.memory_space<vmem>>, %arg2: memref<3x64xbf16, #tpu.memory_space<vmem>>, %arg3: memref<1x64xbf16, #tpu.memory_space<vmem>>, %arg4: memref<64x64xbf16, #tpu.memory_space<vmem>>, %arg5: memref<1x64xbf16, #tpu.memory_space<vmem>>, %arg6: memref<64x64xbf16, #tpu.memory_space<vmem>>, %arg7: memref<1x64xbf16, #tpu.memory_space<vmem>>, %arg8: memref<64x128xbf16, #tpu.memory_space<vmem>>, %arg9: memref<1x128xbf16, #tpu.memory_space<vmem>>, %arg10: memref<128x256xbf16, #tpu.memory_space<vmem>>, %arg11: memref<1x256xbf16, #tpu.memory_space<vmem>>, %arg12: memref<512x1024xbf16, #tpu.memory_space<vmem>>, %arg13: memref<1x1024xbf16, #tpu.memory_space<vmem>>, %arg14: memref<1024x1024xbf16, #tpu.memory_space<vmem>>, %arg15: memref<1x1024xbf16, #tpu.memory_space<vmem>>, %arg16: memref<1024x512xbf16, #tpu.memory_space<vmem>>, %arg17: memref<1x512xbf16, #tpu.memory_space<vmem>>, %arg18: memref<512x512xbf16, #tpu.memory_space<vmem>>, %arg19: memref<1x512xbf16, #tpu.memory_space<vmem>>, %arg20: memref<512x256xbf16, #tpu.memory_space<vmem>>, %arg21: memref<1x256xbf16, #tpu.memory_space<vmem>>, %arg22: memref<256x7xbf16, #tpu.memory_space<vmem>>, %arg23: memref<1x7xbf16, #tpu.memory_space<vmem>>, %arg24: memref<2x11xf32, #tpu.memory_space<vmem>>, %arg25: memref<4x256xf32, #tpu.memory_space<vmem>>) attributes {dimension_semantics = [#tpu.dimension_semantics<arbitrary>], iteration_bounds = array<i64: 2>, scalar_prefetch = 0 : i64, scratch_operands = 1 : i64, tpu.core_type = #tpu.core_type<tc>, window_params = [{transform_indices = @transform_0, window_bounds = array<i64: 4, 32, 3>}, {pipeline_mode = #tpu.pipeline_mode<synchronous>, transform_indices = @transform_1, window_bounds = array<i64: 3, 64>}, {pipeline_mode = #tpu.pipeline_mode<synchronous>, transform_indices = @transform_2, window_bounds = array<i64: 1, 64>}, {pipeline_mode = #tpu.pipeline_mode<synchronous>, transform_indices = @transform_3, window_bounds = array<i64: 64, 64>}, {pipeline_mode = #tpu.pipeline_mode<synchronous>, transform_indices = @transform_4, window_bounds = array<i64: 1, 64>}, {pipeline_mode = #tpu.pipeline_mode<synchronous>, transform_indices = @transform_5, window_bounds = array<i64: 64, 64>}, {pipeline_mode = #tpu.pipeline_mode<synchronous>, transform_indices = @transform_6, window_bounds = array<i64: 1, 64>}, {pipeline_mode = #tpu.pipeline_mode<synchronous>, transform_indices = @transform_7, window_bounds = array<i64: 64, 128>}, {pipeline_mode = #tpu.pipeline_mode<synchronous>, transform_indices = @transform_8, window_bounds = array<i64: 1, 128>}, {pipeline_mode = #tpu.pipeline_mode<synchronous>, transform_indices = @transform_9, window_bounds = array<i64: 128, 256>}, {pipeline_mode = #tpu.pipeline_mode<synchronous>, transform_indices = @transform_10, window_bounds = array<i64: 1, 256>}, {pipeline_mode = #tpu.pipeline_mode<synchronous>, transform_indices = @transform_11, window_bounds = array<i64: 512, 1024>}, {pipeline_mode = #tpu.pipeline_mode<synchronous>, transform_indices = @transform_12, window_bounds = array<i64: 1, 1024>}, {pipeline_mode = #tpu.pipeline_mode<synchronous>, transform_indices = @transform_13, window_bounds = array<i64: 1024, 1024>}, {pipeline_mode = #tpu.pipeline_mode<synchronous>, transform_indices = @transform_14, window_bounds = array<i64: 1, 1024>}, {pipeline_mode = #tpu.pipeline_mode<synchronous>, transform_indices = @transform_15, window_bounds = array<i64: 1024, 512>}, {pipeline_mode = #tpu.pipeline_mode<synchronous>, transform_indices = @transform_16, window_bounds = array<i64: 1, 512>}, {pipeline_mode = #tpu.pipeline_mode<synchronous>, transform_indices = @transform_17, window_bounds = array<i64: 512, 512>}, {pipeline_mode = #tpu.pipeline_mode<synchronous>, transform_indices = @transform_18, window_bounds = array<i64: 1, 512>}, {pipeline_mode = #tpu.pipeline_mode<synchronous>, transform_indices = @transform_19, window_bounds = array<i64: 512, 256>}, {pipeline_mode = #tpu.pipeline_mode<synchronous>, transform_indices = @transform_20, window_bounds = array<i64: 1, 256>}, {pipeline_mode = #tpu.pipeline_mode<synchronous>, transform_indices = @transform_21, window_bounds = array<i64: 256, 7>}, {pipeline_mode = #tpu.pipeline_mode<synchronous>, transform_indices = @transform_22, window_bounds = array<i64: 1, 7>}, {pipeline_mode = #tpu.pipeline_mode<synchronous>, transform_indices = @transform_23, window_bounds = array<i64: 2, 11>}]} {
    %c0_i32 = arith.constant 0 : i32
    %0 = arith.cmpi eq, %arg0, %c0_i32 : i32
    %1 = arith.extui %0 : i1 to i32
    %c0_i32_0 = arith.constant 0 : i32
    %2 = arith.cmpi ne, %1, %c0_i32_0 : i32
    scf.if %2 {
      %cst_37 = arith.constant 0xFF800000 : f32
      %74 = vector.broadcast %cst_37 : f32 to vector<4x256xf32>
      %c0_38 = arith.constant 0 : index
      %c0_39 = arith.constant 0 : index
      %75 = vector.load %arg25[%c0_38, %c0_39] : memref<4x256xf32, #tpu.memory_space<vmem>>, vector<4x256xf32>
      tpu.vector_store %arg25[%c0_38, %c0_39], %74 {strides = array<i32>} : memref<4x256xf32, #tpu.memory_space<vmem>>, vector<4x256xf32>,
    } else {
    }
    %c0 = arith.constant 0 : index
    %c0_1 = arith.constant 0 : index
    %c0_2 = arith.constant 0 : index
    %3 = vector.load %arg1[%c0, %c0_1, %c0_2] : memref<4x32x3xf32, #tpu.memory_space<vmem>>, vector<4x32x3xf32>
    %4 = vector.shape_cast %3 : vector<4x32x3xf32> to vector<128x3xf32>
    %c0_3 = arith.constant 0 : index
    %c0_4 = arith.constant 0 : index
    %5 = vector.load %arg2[%c0_3, %c0_4] : memref<3x64xbf16, #tpu.memory_space<vmem>>, vector<3x64xbf16>
    %6 = arith.extf %5 : vector<3x64xbf16> to vector<3x64xf32>
    %c0_5 = arith.constant 0 : index
    %c0_6 = arith.constant 0 : index
    %7 = vector.load %arg3[%c0_5, %c0_6] : memref<1x64xbf16, #tpu.memory_space<vmem>>, vector<1x64xbf16>
    %8 = arith.extf %7 : vector<1x64xbf16> to vector<1x64xf32>
    %9 = vector.extract_strided_slice %4 {offsets = [0, 0], sizes = [128, 1], strides = [1, 1]} : vector<128x3xf32> to vector<128x1xf32>
    %10 = vector.extract_strided_slice %6 {offsets = [0, 0], sizes = [1, 64], strides = [1, 1]} : vector<3x64xf32> to vector<1x64xf32>
    %11 = vector.broadcast %9 : vector<128x1xf32> to vector<128x64xf32>
    %12 = vector.broadcast %10 : vector<1x64xf32> to vector<128x64xf32>
    %13 = arith.mulf %11, %12 : vector<128x64xf32>
    %14 = vector.extract_strided_slice %4 {offsets = [0, 1], sizes = [128, 1], strides = [1, 1]} : vector<128x3xf32> to vector<128x1xf32>
    %15 = vector.extract_strided_slice %6 {offsets = [1, 0], sizes = [1, 64], strides = [1, 1]} : vector<3x64xf32> to vector<1x64xf32>
    %16 = vector.broadcast %14 : vector<128x1xf32> to vector<128x64xf32>
    %17 = vector.broadcast %15 : vector<1x64xf32> to vector<128x64xf32>
    %18 = arith.mulf %16, %17 : vector<128x64xf32>
    %19 = arith.addf %13, %18 : vector<128x64xf32>
    %20 = vector.extract_strided_slice %4 {offsets = [0, 2], sizes = [128, 1], strides = [1, 1]} : vector<128x3xf32> to vector<128x1xf32>
    %21 = vector.extract_strided_slice %6 {offsets = [2, 0], sizes = [1, 64], strides = [1, 1]} : vector<3x64xf32> to vector<1x64xf32>
    %22 = vector.broadcast %20 : vector<128x1xf32> to vector<128x64xf32>
    %23 = vector.broadcast %21 : vector<1x64xf32> to vector<128x64xf32>
    %24 = arith.mulf %22, %23 : vector<128x64xf32>
    %25 = arith.addf %19, %24 : vector<128x64xf32>
    %26 = vector.broadcast %8 : vector<1x64xf32> to vector<128x64xf32>
    %27 = arith.addf %25, %26 : vector<128x64xf32>
    %cst = arith.constant 0.000000e+00 : f32
    %28 = vector.broadcast %cst : f32 to vector<128x64xf32>
    %29 = arith.maximumf %27, %28 : vector<128x64xf32>
    %30 = arith.truncf %29 : vector<128x64xf32> to vector<128x64xbf16>
    %c0_7 = arith.constant 0 : index
    %c0_8 = arith.constant 0 : index
    %31 = vector.load %arg4[%c0_7, %c0_8] : memref<64x64xbf16, #tpu.memory_space<vmem>>, vector<64x64xbf16>
    %cst_9 = arith.constant dense<0.000000e+00> : vector<128x64xf32>
    %32 = tpu.matmul %30, %31, %cst_9 {dimension_numbers = #tpu.dot_dimension_numbers<[1], [0], [0], [1], [0, 0, 1, 1], [], []>} : vector<128x64xbf16>, vector<64x64xbf16>, vector<128x64xf32> -> vector<128x64xf32>
    %c0_10 = arith.constant 0 : index
    %c0_11 = arith.constant 0 : index
    %33 = vector.load %arg5[%c0_10, %c0_11] : memref<1x64xbf16, #tpu.memory_space<vmem>>, vector<1x64xbf16>
    %34 = arith.extf %33 : vector<1x64xbf16> to vector<1x64xf32>
    %35 = vector.broadcast %34 : vector<1x64xf32> to vector<128x64xf32>
    %36 = arith.addf %32, %35 : vector<128x64xf32>
    %cst_12 = arith.constant 0.000000e+00 : f32
    %37 = vector.broadcast %cst_12 : f32 to vector<128x64xf32>
    %38 = arith.maximumf %36, %37 : vector<128x64xf32>
    %39 = arith.truncf %38 : vector<128x64xf32> to vector<128x64xbf16>
    %c0_13 = arith.constant 0 : index
    %c0_14 = arith.constant 0 : index
    %40 = vector.load %arg6[%c0_13, %c0_14] : memref<64x64xbf16, #tpu.memory_space<vmem>>, vector<64x64xbf16>
    %cst_15 = arith.constant dense<0.000000e+00> : vector<128x64xf32>
    %41 = tpu.matmul %39, %40, %cst_15 {dimension_numbers = #tpu.dot_dimension_numbers<[1], [0], [0], [1], [0, 0, 1, 1], [], []>} : vector<128x64xbf16>, vector<64x64xbf16>, vector<128x64xf32> -> vector<128x64xf32>
    %c0_16 = arith.constant 0 : index
    %c0_17 = arith.constant 0 : index
    %42 = vector.load %arg7[%c0_16, %c0_17] : memref<1x64xbf16, #tpu.memory_space<vmem>>, vector<1x64xbf16>
    %43 = arith.extf %42 : vector<1x64xbf16> to vector<1x64xf32>
    %44 = vector.broadcast %43 : vector<1x64xf32> to vector<128x64xf32>
    %45 = arith.addf %41, %44 : vector<128x64xf32>
    %cst_18 = arith.constant 0.000000e+00 : f32
    %46 = vector.broadcast %cst_18 : f32 to vector<128x64xf32>
    %47 = arith.maximumf %45, %46 : vector<128x64xf32>
    %48 = arith.truncf %47 : vector<128x64xf32> to vector<128x64xbf16>
    %c0_19 = arith.constant 0 : index
    %c0_20 = arith.constant 0 : index
    %49 = vector.load %arg8[%c0_19, %c0_20] : memref<64x128xbf16, #tpu.memory_space<vmem>>, vector<64x128xbf16>
    %cst_21 = arith.constant dense<0.000000e+00> : vector<128x128xf32>
    %50 = tpu.matmul %48, %49, %cst_21 {dimension_numbers = #tpu.dot_dimension_numbers<[1], [0], [0], [1], [0, 0, 1, 1], [], []>} : vector<128x64xbf16>, vector<64x128xbf16>, vector<128x128xf32> -> vector<128x128xf32>
    %c0_22 = arith.constant 0 : index
    %c0_23 = arith.constant 0 : index
    %51 = vector.load %arg9[%c0_22, %c0_23] : memref<1x128xbf16, #tpu.memory_space<vmem>>, vector<1x128xbf16>
    %52 = arith.extf %51 : vector<1x128xbf16> to vector<1x128xf32>
    %53 = vector.broadcast %52 : vector<1x128xf32> to vector<128x128xf32>
    %54 = arith.addf %50, %53 : vector<128x128xf32>
    %cst_24 = arith.constant 0.000000e+00 : f32
    %55 = vector.broadcast %cst_24 : f32 to vector<128x128xf32>
    %56 = arith.maximumf %54, %55 : vector<128x128xf32>
    %57 = arith.truncf %56 : vector<128x128xf32> to vector<128x128xbf16>
    %c0_25 = arith.constant 0 : index
    %c0_26 = arith.constant 0 : index
    %58 = vector.load %arg10[%c0_25, %c0_26] : memref<128x256xbf16, #tpu.memory_space<vmem>>, vector<128x256xbf16>
    %cst_27 = arith.constant dense<0.000000e+00> : vector<128x256xf32>
    %59 = tpu.matmul %57, %58, %cst_27 {dimension_numbers = #tpu.dot_dimension_numbers<[1], [0], [0], [1], [0, 0, 1, 1], [], []>} : vector<128x128xbf16>, vector<128x256xbf16>, vector<128x256xf32> -> vector<128x256xf32>
    %c0_28 = arith.constant 0 : index
    %c0_29 = arith.constant 0 : index
    %60 = vector.load %arg11[%c0_28, %c0_29] : memref<1x256xbf16, #tpu.memory_space<vmem>>, vector<1x256xbf16>
    %61 = arith.extf %60 : vector<1x256xbf16> to vector<1x256xf32>
    %62 = vector.broadcast %61 : vector<1x256xf32> to vector<128x256xf32>
    %63 = arith.addf %59, %62 : vector<128x256xf32>
    %cst_30 = arith.constant 0.000000e+00 : f32
    %64 = vector.broadcast %cst_30 : f32 to vector<128x256xf32>
    %65 = arith.maximumf %63, %64 : vector<128x256xf32>
    %66 = vector.shape_cast %65 : vector<128x256xf32> to vector<4x32x256xf32>
    %c0_31 = arith.constant 0 : index
    %c0_32 = arith.constant 0 : index
    %67 = vector.load %arg25[%c0_31, %c0_32] : memref<4x256xf32, #tpu.memory_space<vmem>>, vector<4x256xf32>
    %cst_33 = arith.constant dense<0xFF800000> : vector<4x256xf32>
    %68 = vector.multi_reduction <maximumf>, %66, %cst_33 [1] : vector<4x32x256xf32> to vector<4x256xf32>
    %69 = arith.maximumf %67, %68 : vector<4x256xf32>
    %c0_34 = arith.constant 0 : index
    %c0_35 = arith.constant 0 : index
    %70 = vector.load %arg25[%c0_34, %c0_35] : memref<4x256xf32, #tpu.memory_space<vmem>>, vector<4x256xf32>
    tpu.vector_store %arg25[%c0_34, %c0_35], %69 {strides = array<i32>} : memref<4x256xf32, #tpu.memory_space<vmem>>, vector<4x256xf32>,
    %c1_i32 = arith.constant 1 : i32
    %71 = arith.cmpi eq, %arg0, %c1_i32 : i32
    %72 = arith.extui %71 : i1 to i32
    %c0_i32_36 = arith.constant 0 : i32
    %73 = arith.cmpi ne, %72, %c0_i32_36 : i32
    scf.if %73 {
      %c0_37 = arith.constant 0 : index
      %c0_38 = arith.constant 0 : index
      %74 = vector.load %arg25[%c0_37, %c0_38] : memref<4x256xf32, #tpu.memory_space<vmem>>, vector<4x256xf32>
      %75 = vector.extract_strided_slice %74 {offsets = [0, 0], sizes = [2, 256], strides = [1, 1]} : vector<4x256xf32> to vector<2x256xf32>
      %76 = arith.truncf %75 : vector<2x256xf32> to vector<2x256xbf16>
      %77 = vector.extract_strided_slice %74 {offsets = [2, 0], sizes = [2, 256], strides = [1, 1]} : vector<4x256xf32> to vector<2x256xf32>
      %78 = arith.truncf %77 : vector<2x256xf32> to vector<2x256xbf16>
      %c0_39 = arith.constant 0 : index
      %c0_40 = arith.constant 0 : index
      %79 = vector.load %arg12[%c0_39, %c0_40] : memref<512x1024xbf16, #tpu.memory_space<vmem>>, vector<256x1024xbf16>
      %cst_41 = arith.constant dense<0.000000e+00> : vector<2x1024xf32>
      %80 = tpu.matmul %76, %79, %cst_41 {dimension_numbers = #tpu.dot_dimension_numbers<[1], [0], [0], [1], [0, 0, 1, 1], [], []>} : vector<2x256xbf16>, vector<256x1024xbf16>, vector<2x1024xf32> -> vector<2x1024xf32>
      %c256 = arith.constant 256 : index
      %c0_42 = arith.constant 0 : index
      %81 = vector.load %arg12[%c256, %c0_42] : memref<512x1024xbf16, #tpu.memory_space<vmem>>, vector<256x1024xbf16>
      %cst_43 = arith.constant dense<0.000000e+00> : vector<2x1024xf32>
      %82 = tpu.matmul %78, %81, %cst_43 {dimension_numbers = #tpu.dot_dimension_numbers<[1], [0], [0], [1], [0, 0, 1, 1], [], []>} : vector<2x256xbf16>, vector<256x1024xbf16>, vector<2x1024xf32> -> vector<2x1024xf32>
      %83 = arith.addf %80, %82 : vector<2x1024xf32>
      %c0_44 = arith.constant 0 : index
      %c0_45 = arith.constant 0 : index
      %84 = vector.load %arg13[%c0_44, %c0_45] : memref<1x1024xbf16, #tpu.memory_space<vmem>>, vector<1x1024xbf16>
      %85 = arith.extf %84 : vector<1x1024xbf16> to vector<1x1024xf32>
      %86 = vector.broadcast %85 : vector<1x1024xf32> to vector<2x1024xf32>
      %87 = arith.addf %83, %86 : vector<2x1024xf32>
      %cst_46 = arith.constant 0.000000e+00 : f32
      %88 = vector.broadcast %cst_46 : f32 to vector<2x1024xf32>
      %89 = arith.maximumf %87, %88 : vector<2x1024xf32>
      %90 = arith.truncf %89 : vector<2x1024xf32> to vector<2x1024xbf16>
      %c0_47 = arith.constant 0 : index
      %c0_48 = arith.constant 0 : index
      %91 = vector.load %arg14[%c0_47, %c0_48] : memref<1024x1024xbf16, #tpu.memory_space<vmem>>, vector<1024x1024xbf16>
      %cst_49 = arith.constant dense<0.000000e+00> : vector<2x1024xf32>
      %92 = tpu.matmul %90, %91, %cst_49 {dimension_numbers = #tpu.dot_dimension_numbers<[1], [0], [0], [1], [0, 0, 1, 1], [], []>} : vector<2x1024xbf16>, vector<1024x1024xbf16>, vector<2x1024xf32> -> vector<2x1024xf32>
      %c0_50 = arith.constant 0 : index
      %c0_51 = arith.constant 0 : index
      %93 = vector.load %arg15[%c0_50, %c0_51] : memref<1x1024xbf16, #tpu.memory_space<vmem>>, vector<1x1024xbf16>
      %94 = arith.extf %93 : vector<1x1024xbf16> to vector<1x1024xf32>
      %95 = vector.broadcast %94 : vector<1x1024xf32> to vector<2x1024xf32>
      %96 = arith.addf %92, %95 : vector<2x1024xf32>
      %cst_52 = arith.constant 0.000000e+00 : f32
      %97 = vector.broadcast %cst_52 : f32 to vector<2x1024xf32>
      %98 = arith.maximumf %96, %97 : vector<2x1024xf32>
      %99 = arith.truncf %98 : vector<2x1024xf32> to vector<2x1024xbf16>
      %c0_53 = arith.constant 0 : index
      %c0_54 = arith.constant 0 : index
      %100 = vector.load %arg16[%c0_53, %c0_54] : memref<1024x512xbf16, #tpu.memory_space<vmem>>, vector<1024x512xbf16>
      %cst_55 = arith.constant dense<0.000000e+00> : vector<2x512xf32>
      %101 = tpu.matmul %99, %100, %cst_55 {dimension_numbers = #tpu.dot_dimension_numbers<[1], [0], [0], [1], [0, 0, 1, 1], [], []>} : vector<2x1024xbf16>, vector<1024x512xbf16>, vector<2x512xf32> -> vector<2x512xf32>
      %c0_56 = arith.constant 0 : index
      %c0_57 = arith.constant 0 : index
      %102 = vector.load %arg17[%c0_56, %c0_57] : memref<1x512xbf16, #tpu.memory_space<vmem>>, vector<1x512xbf16>
      %103 = arith.extf %102 : vector<1x512xbf16> to vector<1x512xf32>
      %104 = vector.broadcast %103 : vector<1x512xf32> to vector<2x512xf32>
      %105 = arith.addf %101, %104 : vector<2x512xf32>
      %cst_58 = arith.constant 0.000000e+00 : f32
      %106 = vector.broadcast %cst_58 : f32 to vector<2x512xf32>
      %107 = arith.maximumf %105, %106 : vector<2x512xf32>
      %108 = arith.truncf %107 : vector<2x512xf32> to vector<2x512xbf16>
      %c0_59 = arith.constant 0 : index
      %c0_60 = arith.constant 0 : index
      %109 = vector.load %arg18[%c0_59, %c0_60] : memref<512x512xbf16, #tpu.memory_space<vmem>>, vector<512x512xbf16>
      %cst_61 = arith.constant dense<0.000000e+00> : vector<2x512xf32>
      %110 = tpu.matmul %108, %109, %cst_61 {dimension_numbers = #tpu.dot_dimension_numbers<[1], [0], [0], [1], [0, 0, 1, 1], [], []>} : vector<2x512xbf16>, vector<512x512xbf16>, vector<2x512xf32> -> vector<2x512xf32>
      %c0_62 = arith.constant 0 : index
      %c0_63 = arith.constant 0 : index
      %111 = vector.load %arg19[%c0_62, %c0_63] : memref<1x512xbf16, #tpu.memory_space<vmem>>, vector<1x512xbf16>
      %112 = arith.extf %111 : vector<1x512xbf16> to vector<1x512xf32>
      %113 = vector.broadcast %112 : vector<1x512xf32> to vector<2x512xf32>
      %114 = arith.addf %110, %113 : vector<2x512xf32>
      %cst_64 = arith.constant 0.000000e+00 : f32
      %115 = vector.broadcast %cst_64 : f32 to vector<2x512xf32>
      %116 = arith.maximumf %114, %115 : vector<2x512xf32>
      %117 = arith.truncf %116 : vector<2x512xf32> to vector<2x512xbf16>
      %c0_65 = arith.constant 0 : index
      %c0_66 = arith.constant 0 : index
      %118 = vector.load %arg20[%c0_65, %c0_66] : memref<512x256xbf16, #tpu.memory_space<vmem>>, vector<512x256xbf16>
      %cst_67 = arith.constant dense<0.000000e+00> : vector<2x256xf32>
      %119 = tpu.matmul %117, %118, %cst_67 {dimension_numbers = #tpu.dot_dimension_numbers<[1], [0], [0], [1], [0, 0, 1, 1], [], []>} : vector<2x512xbf16>, vector<512x256xbf16>, vector<2x256xf32> -> vector<2x256xf32>
      %c0_68 = arith.constant 0 : index
      %c0_69 = arith.constant 0 : index
      %120 = vector.load %arg21[%c0_68, %c0_69] : memref<1x256xbf16, #tpu.memory_space<vmem>>, vector<1x256xbf16>
      %121 = arith.extf %120 : vector<1x256xbf16> to vector<1x256xf32>
      %122 = vector.broadcast %121 : vector<1x256xf32> to vector<2x256xf32>
      %123 = arith.addf %119, %122 : vector<2x256xf32>
      %cst_70 = arith.constant 0.000000e+00 : f32
      %124 = vector.broadcast %cst_70 : f32 to vector<2x256xf32>
      %125 = arith.maximumf %123, %124 : vector<2x256xf32>
      %126 = arith.truncf %125 : vector<2x256xf32> to vector<2x256xbf16>
      %c0_71 = arith.constant 0 : index
      %c0_72 = arith.constant 0 : index
      %127 = vector.load %arg22[%c0_71, %c0_72] : memref<256x7xbf16, #tpu.memory_space<vmem>>, vector<256x7xbf16>
      %cst_73 = arith.constant dense<0.000000e+00> : vector<2x7xf32>
      %128 = tpu.matmul %126, %127, %cst_73 {dimension_numbers = #tpu.dot_dimension_numbers<[1], [0], [0], [1], [0, 0, 1, 1], [], []>} : vector<2x256xbf16>, vector<256x7xbf16>, vector<2x7xf32> -> vector<2x7xf32>
      %c0_74 = arith.constant 0 : index
      %c0_75 = arith.constant 0 : index
      %129 = vector.load %arg23[%c0_74, %c0_75] : memref<1x7xbf16, #tpu.memory_space<vmem>>, vector<1x7xbf16>
      %130 = arith.extf %129 : vector<1x7xbf16> to vector<1x7xf32>
      %131 = vector.broadcast %130 : vector<1x7xf32> to vector<2x7xf32>
      %132 = arith.addf %128, %131 : vector<2x7xf32>
      %133 = vector.extract_strided_slice %132 {offsets = [0, 0], sizes = [2, 4], strides = [1, 1]} : vector<2x7xf32> to vector<2x4xf32>
      %134 = arith.mulf %133, %133 : vector<2x4xf32>
      %cst_76 = arith.constant dense<0.000000e+00> : vector<2xf32>
      %135 = vector.multi_reduction <add>, %134, %cst_76 [1] : vector<2x4xf32> to vector<2xf32>
      %136 = vector.shape_cast %135 : vector<2xf32> to vector<2x1xf32>
      %137 = math.sqrt %136 : vector<2x1xf32>
      %cst_77 = arith.constant 9.99999996E-13 : f32
      %138 = vector.broadcast %cst_77 : f32 to vector<2x1xf32>
      %139 = arith.maximumf %137, %138 : vector<2x1xf32>
      %140 = vector.broadcast %139 : vector<2x1xf32> to vector<2x4xf32>
      %141 = arith.divf %133, %140 : vector<2x4xf32>
      %142 = vector.extract_strided_slice %132 {offsets = [0, 4], sizes = [2, 3], strides = [1, 1]} : vector<2x7xf32> to vector<2x3xf32>
      %143 = tpu.concatenate %141, %142, %133 in 1 : vector<2x4xf32>, vector<2x3xf32>, vector<2x4xf32> -> vector<2x11xf32>
      %c0_78 = arith.constant 0 : index
      %c0_79 = arith.constant 0 : index
      %144 = vector.load %arg24[%c0_78, %c0_79] : memref<2x11xf32, #tpu.memory_space<vmem>>, vector<2x11xf32>
      tpu.vector_store %arg24[%c0_78, %c0_79], %143 {strides = array<i32>} : memref<2x11xf32, #tpu.memory_space<vmem>>, vector<2x11xf32>,
    } else {
    }
    return
  }
  func.func @transform_0(%arg0: i32) -> (i32, i32, i32) {
    %c0_i32 = arith.constant 0 : i32
    %c0_i32_0 = arith.constant 0 : i32
    %c0_i32_1 = arith.constant 0 : i32
    return %c0_i32, %arg0, %c0_i32_0 : i32, i32, i32
  }
  func.func @transform_1(%arg0: i32) -> (i32, i32) {
    %c0_i32 = arith.constant 0 : i32
    %c0_i32_0 = arith.constant 0 : i32
    %c0_i32_1 = arith.constant 0 : i32
    return %c0_i32, %c0_i32_0 : i32, i32
  }
  func.func @transform_2(%arg0: i32) -> (i32, i32) {
    %c0_i32 = arith.constant 0 : i32
    %c0_i32_0 = arith.constant 0 : i32
    %c0_i32_1 = arith.constant 0 : i32
    return %c0_i32, %c0_i32_0 : i32, i32
  }
  func.func @transform_3(%arg0: i32) -> (i32, i32) {
    %c0_i32 = arith.constant 0 : i32
    %c0_i32_0 = arith.constant 0 : i32
    %c0_i32_1 = arith.constant 0 : i32
    return %c0_i32, %c0_i32_0 : i32, i32
  }
  func.func @transform_4(%arg0: i32) -> (i32, i32) {
    %c0_i32 = arith.constant 0 : i32
    %c0_i32_0 = arith.constant 0 : i32
    %c0_i32_1 = arith.constant 0 : i32
    return %c0_i32, %c0_i32_0 : i32, i32
  }
  func.func @transform_5(%arg0: i32) -> (i32, i32) {
    %c0_i32 = arith.constant 0 : i32
    %c0_i32_0 = arith.constant 0 : i32
    %c0_i32_1 = arith.constant 0 : i32
    return %c0_i32, %c0_i32_0 : i32, i32
  }
  func.func @transform_6(%arg0: i32) -> (i32, i32) {
    %c0_i32 = arith.constant 0 : i32
    %c0_i32_0 = arith.constant 0 : i32
    %c0_i32_1 = arith.constant 0 : i32
    return %c0_i32, %c0_i32_0 : i32, i32
  }
  func.func @transform_7(%arg0: i32) -> (i32, i32) {
    %c0_i32 = arith.constant 0 : i32
    %c0_i32_0 = arith.constant 0 : i32
    %c0_i32_1 = arith.constant 0 : i32
    return %c0_i32, %c0_i32_0 : i32, i32
  }
  func.func @transform_8(%arg0: i32) -> (i32, i32) {
    %c0_i32 = arith.constant 0 : i32
    %c0_i32_0 = arith.constant 0 : i32
    %c0_i32_1 = arith.constant 0 : i32
    return %c0_i32, %c0_i32_0 : i32, i32
  }
  func.func @transform_9(%arg0: i32) -> (i32, i32) {
    %c0_i32 = arith.constant 0 : i32
    %c0_i32_0 = arith.constant 0 : i32
    %c0_i32_1 = arith.constant 0 : i32
    return %c0_i32, %c0_i32_0 : i32, i32
  }
  func.func @transform_10(%arg0: i32) -> (i32, i32) {
    %c0_i32 = arith.constant 0 : i32
    %c0_i32_0 = arith.constant 0 : i32
    %c0_i32_1 = arith.constant 0 : i32
    return %c0_i32, %c0_i32_0 : i32, i32
  }
  func.func @transform_11(%arg0: i32) -> (i32, i32) {
    %c0_i32 = arith.constant 0 : i32
    %c0_i32_0 = arith.constant 0 : i32
    %c0_i32_1 = arith.constant 0 : i32
    return %c0_i32, %c0_i32_0 : i32, i32
  }
  func.func @transform_12(%arg0: i32) -> (i32, i32) {
    %c0_i32 = arith.constant 0 : i32
    %c0_i32_0 = arith.constant 0 : i32
    %c0_i32_1 = arith.constant 0 : i32
    return %c0_i32, %c0_i32_0 : i32, i32
  }
  func.func @transform_13(%arg0: i32) -> (i32, i32) {
    %c0_i32 = arith.constant 0 : i32
    %c0_i32_0 = arith.constant 0 : i32
    %c0_i32_1 = arith.constant 0 : i32
    return %c0_i32, %c0_i32_0 : i32, i32
  }
  func.func @transform_14(%arg0: i32) -> (i32, i32) {
    %c0_i32 = arith.constant 0 : i32
    %c0_i32_0 = arith.constant 0 : i32
    %c0_i32_1 = arith.constant 0 : i32
    return %c0_i32, %c0_i32_0 : i32, i32
  }
  func.func @transform_15(%arg0: i32) -> (i32, i32) {
    %c0_i32 = arith.constant 0 : i32
    %c0_i32_0 = arith.constant 0 : i32
    %c0_i32_1 = arith.constant 0 : i32
    return %c0_i32, %c0_i32_0 : i32, i32
  }
  func.func @transform_16(%arg0: i32) -> (i32, i32) {
    %c0_i32 = arith.constant 0 : i32
    %c0_i32_0 = arith.constant 0 : i32
    %c0_i32_1 = arith.constant 0 : i32
    return %c0_i32, %c0_i32_0 : i32, i32
  }
  func.func @transform_17(%arg0: i32) -> (i32, i32) {
    %c0_i32 = arith.constant 0 : i32
    %c0_i32_0 = arith.constant 0 : i32
    %c0_i32_1 = arith.constant 0 : i32
    return %c0_i32, %c0_i32_0 : i32, i32
  }
  func.func @transform_18(%arg0: i32) -> (i32, i32) {
    %c0_i32 = arith.constant 0 : i32
    %c0_i32_0 = arith.constant 0 : i32
    %c0_i32_1 = arith.constant 0 : i32
    return %c0_i32, %c0_i32_0 : i32, i32
  }
  func.func @transform_19(%arg0: i32) -> (i32, i32) {
    %c0_i32 = arith.constant 0 : i32
    %c0_i32_0 = arith.constant 0 : i32
    %c0_i32_1 = arith.constant 0 : i32
    return %c0_i32, %c0_i32_0 : i32, i32
  }
  func.func @transform_20(%arg0: i32) -> (i32, i32) {
    %c0_i32 = arith.constant 0 : i32
    %c0_i32_0 = arith.constant 0 : i32
    %c0_i32_1 = arith.constant 0 : i32
    return %c0_i32, %c0_i32_0 : i32, i32
  }
  func.func @transform_21(%arg0: i32) -> (i32, i32) {
    %c0_i32 = arith.constant 0 : i32
    %c0_i32_0 = arith.constant 0 : i32
    %c0_i32_1 = arith.constant 0 : i32
    return %c0_i32, %c0_i32_0 : i32, i32
  }
  func.func @transform_22(%arg0: i32) -> (i32, i32) {
    %c0_i32 = arith.constant 0 : i32
    %c0_i32_0 = arith.constant 0 : i32
    %c0_i32_1 = arith.constant 0 : i32
    return %c0_i32, %c0_i32_0 : i32, i32
  }
  func.func @transform_23(%arg0: i32) -> (i32, i32) {
    %c0_i32 = arith.constant 0 : i32
    %c0_i32_0 = arith.constant 0 : i32
    %c0_i32_1 = arith.constant 0 : i32
    return %c0_i32, %c0_i32_0 : i32, i32
  }
}

</mosaic_0001>

<llo_original>
// kernel: ipcrnet_forward.1
$region0: #{ipcrnet_forward.1}
  #allocation0 [shape = 'u32[]', space=smem, size = 0x4, offset = 0x4, fixed_abs, tag = 'smem constant byte address 0x4 - core index']
  #allocation1 [shape = 'u32[144,128]{1,0:T(1,128)}', space=vmem, size = 0x12000, scoped, tag = 'internal scratch']
  #allocation2 [shape = 'f32[4,256]{1,0:T(4,128)}', space=vmem, size = 0x1000, scoped, tag = 'scratch operand']
  %s0 = inlined_call_operand.vmem [shape: f32[4,64,3], index: 0, kind: input, shape index: {}]
  %s1 = inlined_call_operand.hbm [shape: bf16[3,64], index: 1, kind: input, shape index: {}]
  %s2 = inlined_call_operand.hbm [shape: bf16[1,64], index: 2, kind: input, shape index: {}]
  %s3 = inlined_call_operand.hbm [shape: bf16[64,64], index: 3, kind: input, shape index: {}]
  %s4 = inlined_call_operand.hbm [shape: bf16[1,64], index: 4, kind: input, shape index: {}]
  %s5 = inlined_call_operand.hbm [shape: bf16[64,64], index: 5, kind: input, shape index: {}]
  %s6 = inlined_call_operand.hbm [shape: bf16[1,64], index: 6, kind: input, shape index: {}]
  %s7 = inlined_call_operand.hbm [shape: bf16[64,128], index: 7, kind: input, shape index: {}]
  %s8 = inlined_call_operand.hbm [shape: bf16[1,128], index: 8, kind: input, shape index: {}]
  %s9 = inlined_call_operand.hbm [shape: bf16[128,256], index: 9, kind: input, shape index: {}]
  %s10 = inlined_call_operand.hbm [shape: bf16[1,256], index: 10, kind: input, shape index: {}]
  %s11 = inlined_call_operand.hbm [shape: bf16[512,1024], index: 11, kind: input, shape index: {}]
  %s12 = inlined_call_operand.hbm [shape: bf16[1,1024], index: 12, kind: input, shape index: {}]
  %s13 = inlined_call_operand.hbm [shape: bf16[1024,1024], index: 13, kind: input, shape index: {}]
  %s14 = inlined_call_operand.hbm [shape: bf16[1,1024], index: 14, kind: input, shape index: {}]
  %s15 = inlined_call_operand.hbm [shape: bf16[1024,512], index: 15, kind: input, shape index: {}]
  %s16 = inlined_call_operand.hbm [shape: bf16[1,512], index: 16, kind: input, shape index: {}]
  %s17 = inlined_call_operand.hbm [shape: bf16[512,512], index: 17, kind: input, shape index: {}]
  %s18 = inlined_call_operand.hbm [shape: bf16[1,512], index: 18, kind: input, shape index: {}]
  %s19 = inlined_call_operand.hbm [shape: bf16[512,256], index: 19, kind: input, shape index: {}]
  %s20 = inlined_call_operand.hbm [shape: bf16[1,256], index: 20, kind: input, shape index: {}]
  %s21 = inlined_call_operand.vmem [shape: bf16[256,7], index: 21, kind: input, shape index: {}]
  %s22 = inlined_call_operand.hbm [shape: bf16[1,7], index: 22, kind: input, shape index: {}]
  %s23 = inlined_call_operand.vmem [shape: f32[2,11], index: 23, kind: output, shape index: {}]
  %s24 = sld [smem:[#allocation0]]
  $region255: #{ipcrnet_forward.1} parent=0
    _
  %s26 = ssub.s32 1, %s24
  %s27 = scalar_select 0, %s26, %s24
  $region1: #{ipcrnet_forward.1} parent=0
    #allocation3 [shape = 'u8[131072]{0}', space=vmem, size = 0x20000, scoped, tag = 'input window, operand 0']
    #allocation4 [shape = 'u8[1024]{0}', space=vmem, size = 0x400, scoped, tag = 'input window, operand 1, single buffered']
    #allocation5 [shape = 's32[2]{0}', space=sflag, size = 0x8, scoped, tag = 'scoped memory for ipcrnet_forward.1']
    #allocation6 [shape = 'u8[512]{0}', space=vmem, size = 0x400, scoped, tag = 'input window, operand 2, single buffered']
    #allocation7 [shape = 's32[1]{0}', space=sflag, size = 0x4, scoped, tag = 'scoped memory for ipcrnet_forward.1']
    #allocation8 [shape = 'u8[16384]{0}', space=vmem, size = 0x4000, scoped, tag = 'input window, operand 3, single buffered']
    #allocation9 [shape = 'u8[512]{0}', space=vmem, size = 0x400, scoped, tag = 'input window, operand 4, single buffered']
    #allocation10 [shape = 's32[1]{0}', space=sflag, size = 0x4, scoped, tag = 'scoped memory for ipcrnet_forward.1']
    #allocation11 [shape = 'u8[16384]{0}', space=vmem, size = 0x4000, scoped, tag = 'input window, operand 5, single buffered']
    #allocation12 [shape = 'u8[512]{0}', space=vmem, size = 0x400, scoped, tag = 'input window, operand 6, single buffered']
    #allocation13 [shape = 's32[1]{0}', space=sflag, size = 0x4, scoped, tag = 'scoped memory for ipcrnet_forward.1']
    #allocation14 [shape = 'u8[16384]{0}', space=vmem, size = 0x4000, scoped, tag = 'input window, operand 7, single buffered']
    #allocation15 [shape = 'u8[512]{0}', space=vmem, size = 0x400, scoped, tag = 'input window, operand 8, single buffered']
    #allocation16 [shape = 's32[1]{0}', space=sflag, size = 0x4, scoped, tag = 'scoped memory for ipcrnet_forward.1']
    #allocation17 [shape = 'u8[65536]{0}', space=vmem, size = 0x10000, scoped, tag = 'input window, operand 9, single buffered']
    #allocation18 [shape = 'u8[1024]{0}', space=vmem, size = 0x400, scoped, tag = 'input window, operand 10, single buffered']
    #allocation19 [shape = 's32[1]{0}', space=sflag, size = 0x4, scoped, tag = 'scoped memory for ipcrnet_forward.1']
    #allocation20 [shape = 'u8[1048576]{0}', space=vmem, size = 0x100000, scoped, tag = 'input window, operand 11, single buffered']
    #allocation21 [shape = 'u8[4096]{0}', space=vmem, size = 0x1000, scoped, tag = 'input window, operand 12, single buffered']
    #allocation22 [shape = 's32[1]{0}', space=sflag, size = 0x4, scoped, tag = 'scoped memory for ipcrnet_forward.1']
    #allocation23 [shape = 'u8[2097152]{0}', space=vmem, size = 0x200000, scoped, tag = 'input window, operand 13, single buffered']
    #allocation24 [shape = 'u8[4096]{0}', space=vmem, size = 0x1000, scoped, tag = 'input window, operand 14, single buffered']
    #allocation25 [shape = 's32[1]{0}', space=sflag, size = 0x4, scoped, tag = 'scoped memory for ipcrnet_forward.1']
    #allocation26 [shape = 'u8[1048576]{0}', space=vmem, size = 0x100000, scoped, tag = 'input window, operand 15, single buffered']
    #allocation27 [shape = 'u8[2048]{0}', space=vmem, size = 0x800, scoped, tag = 'input window, operand 16, single buffered']
    #allocation28 [shape = 's32[1]{0}', space=sflag, size = 0x4, scoped, tag = 'scoped memory for ipcrnet_forward.1']
    #allocation29 [shape = 'u8[524288]{0}', space=vmem, size = 0x80000, scoped, tag = 'input window, operand 17, single buffered']
    #allocation30 [shape = 'u8[2048]{0}', space=vmem, size = 0x800, scoped, tag = 'input window, operand 18, single buffered']
    #allocation31 [shape = 's32[1]{0}', space=sflag, size = 0x4, scoped, tag = 'scoped memory for ipcrnet_forward.1']
    #allocation32 [shape = 'u8[262144]{0}', space=vmem, size = 0x40000, scoped, tag = 'input window, operand 19, single buffered']
    #allocation33 [shape = 'u8[1024]{0}', space=vmem, size = 0x400, scoped, tag = 'input window, operand 20, single buffered']
    #allocation34 [shape = 's32[1]{0}', space=sflag, size = 0x4, scoped, tag = 'scoped memory for ipcrnet_forward.1']
    #allocation35 [shape = 'u8[512]{0}', space=vmem, size = 0x400, scoped, tag = 'input window, operand 22, single buffered']
    %28 = vsyncpa [#allocation5], 0
    %29 = vsyncpa [#allocation7], 0
    %30 = vsyncpa [#allocation10], 0
    %31 = vsyncpa [#allocation13], 0
    %32 = vsyncpa [#allocation16], 0
    %33 = vsyncpa [#allocation19], 0
    %34 = vsyncpa [#allocation22], 0
    %35 = vsyncpa [#allocation25], 0
    %36 = vsyncpa [#allocation28], 0
    %37 = vsyncpa [#allocation31], 0
    %38 = vsyncpa [#allocation34], 0
    loop: start=0, step=1, limit=4
    $region2: #{ipcrnet_forward.1} parent=1 // loop_pre_header
      _
    $region3: #{ipcrnet_forward.1} parent=1 // loop_header
      %s40 = sphi 0, %s44
      %p41 = scmp.ge.s32.totalorder %s40, 4
      %s50 = sphi 0, %s52
      %s53 = sphi 0, %s50
      %s54 = sphi 0, %s53
      %s70 = sphi 0, %s54
      %s74 = sphi 0, %s74
      %s76 = sphi 0, %s74
      %s77 = sphi 0, %s76
      %s91 = sphi 0, %s77
      %s95 = sphi 0, %s95
      %s97 = sphi 0, %s95
      %s98 = sphi 0, %s97
      %s112 = sphi 0, %s98
      %s116 = sphi 0, %s116
      %s118 = sphi 0, %s116
      %s119 = sphi 0, %s118
      %s133 = sphi 0, %s119
      %s137 = sphi 0, %s137
      %s139 = sphi 0, %s137
      %s140 = sphi 0, %s139
      %s154 = sphi 0, %s140
      %s158 = sphi 0, %s158
      %s160 = sphi 0, %s158
      %s161 = sphi 0, %s160
      %s175 = sphi 0, %s161
      %s179 = sphi 0, %s179
      %s181 = sphi 0, %s179
      %s182 = sphi 0, %s181
      %s196 = sphi 0, %s182
      %s200 = sphi 0, %s200
      %s202 = sphi 0, %s200
      %s203 = sphi 0, %s202
      %s217 = sphi 0, %s203
      %s221 = sphi 0, %s221
      %s223 = sphi 0, %s221
      %s224 = sphi 0, %s223
      %s238 = sphi 0, %s224
      %s242 = sphi 0, %s242
      %s244 = sphi 0, %s242
      %s245 = sphi 0, %s244
      %s259 = sphi 0, %s245
      %s263 = sphi 0, %s263
      %s265 = sphi 0, %s263
      %s266 = sphi 0, %s265
      %s280 = sphi 0, %s266
      %s284 = sphi 0, %s284
      %s286 = sphi 0, %s284
      %s287 = sphi 0, %s286
      %s301 = sphi 0, %s287
      %s305 = sphi 0, %s305
      %s307 = sphi 0, %s305
      %s308 = sphi 0, %s307
      %s322 = sphi 0, %s308
      %s326 = sphi 0, %s326
      %s328 = sphi 0, %s326
      %s329 = sphi 0, %s328
      %s343 = sphi 0, %s329
      %s347 = sphi 0, %s347
      %s349 = sphi 0, %s347
      %s350 = sphi 0, %s349
      %s364 = sphi 0, %s350
      %s368 = sphi 0, %s368
      %s370 = sphi 0, %s368
      %s371 = sphi 0, %s370
      %s385 = sphi 0, %s371
      %s389 = sphi 0, %s389
      %s391 = sphi 0, %s389
      %s392 = sphi 0, %s391
      %s406 = sphi 0, %s392
      %s410 = sphi 0, %s410
      %s412 = sphi 0, %s410
      %s413 = sphi 0, %s412
      %s427 = sphi 0, %s413
      %s431 = sphi 0, %s431
      %s433 = sphi 0, %s431
      %s434 = sphi 0, %s433
      %s448 = sphi 0, %s434
      %s452 = sphi 0, %s452
      %s454 = sphi 0, %s452
      %s455 = sphi 0, %s454
      %s469 = sphi 0, %s455
      %s473 = sphi 0, %s473
      %s475 = sphi 0, %s473
      %s476 = sphi 0, %s475
      %s490 = sphi 0, %s476
      %s494 = sphi 0, %s494
      %s496 = sphi 0, %s494
      %s497 = sphi 0, %s496
      %s511 = sphi 0, %s497
      %s515 = sphi 0, %s515
      %s517 = sphi 0, %s515
      %s518 = sphi 0, %s517
      %s532 = sphi 0, %s518
      %s536 = sphi 0, %s536
      %s538 = sphi 0, %s536
      %s539 = sphi 0, %s538
      %s553 = sphi 0, %s539
    $region4: #{ipcrnet_forward.1} parent=1 // loop_header_branch
      %43 = sbr.rel (%p41) target = $region8
    $region5: #{ipcrnet_forward.1} parent=1 // loop_body
      %s45 = ssub.s32 %s40, 1
      %s46 = ssub.s32 %s40, 2
      %s47 = sadd.s32 %s40, 1
      %s48 = ssub.s32 %s40, %s47
      %p49 = scmp.eq.s32.totalorder %s48, 0
      %s51 = sadd.s32 %s50, 1
      %s52 = scalar_select %p49, %s50, %s51
      %p55 = pneg %p49
      %p56 = scmp.eq.s32.totalorder %s40, 1
      %p57 = por %p55, %p56
      %p58 = scmp.ne.s32.totalorder %s50, %s53
      %p59 = scmp.eq.s32.totalorder %s40, 0
      %p60 = por %p58, %p59
      %p61 = scmp.ne.s32.totalorder %s50, %s53
      %p62 = scmp.eq.s32.totalorder %s45, 1
      %p63 = por %p61, %p62
      %p64 = scmp.ne.s32.totalorder %s53, %s54
      %p65 = scmp.eq.s32.totalorder %s45, 0
      %p66 = por %p64, %p65
      %p67 = scmp.ne.s32.totalorder %s53, %s54
      %p68 = scmp.eq.s32.totalorder %s46, 1
      %p69 = por %p67, %p68
      %p71 = scmp.ne.s32.totalorder %s54, %s70
      %p72 = scmp.eq.s32.totalorder %s46, 0
      %p73 = por %p71, %p72
      %s75 = sadd.s32 %s74, 1
      %p78 = scmp.eq.s32.totalorder %s40, 1
      %p79 = scmp.ne.s32.totalorder %s74, %s76
      %p80 = scmp.eq.s32.totalorder %s40, 0
      %p81 = por %p79, %p80
      %p82 = scmp.ne.s32.totalorder %s74, %s76
      %p83 = scmp.eq.s32.totalorder %s45, 1
      %p84 = por %p82, %p83
      %p85 = scmp.ne.s32.totalorder %s76, %s77
      %p86 = scmp.eq.s32.totalorder %s45, 0
      %p87 = por %p85, %p86
      %p88 = scmp.ne.s32.totalorder %s76, %s77
      %p89 = scmp.eq.s32.totalorder %s46, 1
      %p90 = por %p88, %p89
      %p92 = scmp.ne.s32.totalorder %s77, %s91
      %p93 = scmp.eq.s32.totalorder %s46, 0
      %p94 = por %p92, %p93
      %s96 = sadd.s32 %s95, 1
      %p99 = scmp.eq.s32.totalorder %s40, 1
      %p100 = scmp.ne.s32.totalorder %s95, %s97
      %p101 = scmp.eq.s32.totalorder %s40, 0
      %p102 = por %p100, %p101
      %p103 = scmp.ne.s32.totalorder %s95, %s97
      %p104 = scmp.eq.s32.totalorder %s45, 1
      %p105 = por %p103, %p104
      %p106 = scmp.ne.s32.totalorder %s97, %s98
      %p107 = scmp.eq.s32.totalorder %s45, 0
      %p108 = por %p106, %p107
      %p109 = scmp.ne.s32.totalorder %s97, %s98
      %p110 = scmp.eq.s32.totalorder %s46, 1
      %p111 = por %p109, %p110
      %p113 = scmp.ne.s32.totalorder %s98, %s112
      %p114 = scmp.eq.s32.totalorder %s46, 0
      %p115 = por %p113, %p114
      %s117 = sadd.s32 %s116, 1
      %p120 = scmp.eq.s32.totalorder %s40, 1
      %p121 = scmp.ne.s32.totalorder %s116, %s118
      %p122 = scmp.eq.s32.totalorder %s40, 0
      %p123 = por %p121, %p122
      %p124 = scmp.ne.s32.totalorder %s116, %s118
      %p125 = scmp.eq.s32.totalorder %s45, 1
      %p126 = por %p124, %p125
      %p127 = scmp.ne.s32.totalorder %s118, %s119
      %p128 = scmp.eq.s32.totalorder %s45, 0
      %p129 = por %p127, %p128
      %p130 = scmp.ne.s32.totalorder %s118, %s119
      %p131 = scmp.eq.s32.totalorder %s46, 1
      %p132 = por %p130, %p131
      %p134 = scmp.ne.s32.totalorder %s119, %s133
      %p135 = scmp.eq.s32.totalorder %s46, 0
      %p136 = por %p134, %p135
      %s138 = sadd.s32 %s137, 1
      %p141 = scmp.eq.s32.totalorder %s40, 1
      %p142 = scmp.ne.s32.totalorder %s137, %s139
      %p143 = scmp.eq.s32.totalorder %s40, 0
      %p144 = por %p142, %p143
      %p145 = scmp.ne.s32.totalorder %s137, %s139
      %p146 = scmp.eq.s32.totalorder %s45, 1
      %p147 = por %p145, %p146
      %p148 = scmp.ne.s32.totalorder %s139, %s140
      %p149 = scmp.eq.s32.totalorder %s45, 0
      %p150 = por %p148, %p149
      %p151 = scmp.ne.s32.totalorder %s139, %s140
      %p152 = scmp.eq.s32.totalorder %s46, 1
      %p153 = por %p151, %p152
      %p155 = scmp.ne.s32.totalorder %s140, %s154
      %p156 = scmp.eq.s32.totalorder %s46, 0
      %p157 = por %p155, %p156
      %s159 = sadd.s32 %s158, 1
      %p162 = scmp.eq.s32.totalorder %s40, 1
      %p163 = scmp.ne.s32.totalorder %s158, %s160
      %p164 = scmp.eq.s32.totalorder %s40, 0
      %p165 = por %p163, %p164
      %p166 = scmp.ne.s32.totalorder %s158, %s160
      %p167 = scmp.eq.s32.totalorder %s45, 1
      %p168 = por %p166, %p167
      %p169 = scmp.ne.s32.totalorder %s160, %s161
      %p170 = scmp.eq.s32.totalorder %s45, 0
      %p171 = por %p169, %p170
      %p172 = scmp.ne.s32.totalorder %s160, %s161
      %p173 = scmp.eq.s32.totalorder %s46, 1
      %p174 = por %p172, %p173
      %p176 = scmp.ne.s32.totalorder %s161, %s175
      %p177 = scmp.eq.s32.totalorder %s46, 0
      %p178 = por %p176, %p177
      %s180 = sadd.s32 %s179, 1
      %p183 = scmp.eq.s32.totalorder %s40, 1
      %p184 = scmp.ne.s32.totalorder %s179, %s181
      %p185 = scmp.eq.s32.totalorder %s40, 0
      %p186 = por %p184, %p185
      %p187 = scmp.ne.s32.totalorder %s179, %s181
      %p188 = scmp.eq.s32.totalorder %s45, 1
      %p189 = por %p187, %p188
      %p190 = scmp.ne.s32.totalorder %s181, %s182
      %p191 = scmp.eq.s32.totalorder %s45, 0
      %p192 = por %p190, %p191
      %p193 = scmp.ne.s32.totalorder %s181, %s182
      %p194 = scmp.eq.s32.totalorder %s46, 1
      %p195 = por %p193, %p194
      %p197 = scmp.ne.s32.totalorder %s182, %s196
      %p198 = scmp.eq.s32.totalorder %s46, 0
      %p199 = por %p197, %p198
      %s201 = sadd.s32 %s200, 1
      %p204 = scmp.eq.s32.totalorder %s40, 1
      %p205 = scmp.ne.s32.totalorder %s200, %s202
      %p206 = scmp.eq.s32.totalorder %s40, 0
      %p207 = por %p205, %p206
      %p208 = scmp.ne.s32.totalorder %s200, %s202
      %p209 = scmp.eq.s32.totalorder %s45, 1
      %p210 = por %p208, %p209
      %p211 = scmp.ne.s32.totalorder %s202, %s203
      %p212 = scmp.eq.s32.totalorder %s45, 0
      %p213 = por %p211, %p212
      %p214 = scmp.ne.s32.totalorder %s202, %s203
      %p215 = scmp.eq.s32.totalorder %s46, 1
      %p216 = por %p214, %p215
      %p218 = scmp.ne.s32.totalorder %s203, %s217
      %p219 = scmp.eq.s32.totalorder %s46, 0
      %p220 = por %p218, %p219
      %s222 = sadd.s32 %s221, 1
      %p225 = scmp.eq.s32.totalorder %s40, 1
      %p226 = scmp.ne.s32.totalorder %s221, %s223
      %p227 = scmp.eq.s32.totalorder %s40, 0
      %p228 = por %p226, %p227
      %p229 = scmp.ne.s32.totalorder %s221, %s223
      %p230 = scmp.eq.s32.totalorder %s45, 1
      %p231 = por %p229, %p230
      %p232 = scmp.ne.s32.totalorder %s223, %s224
      %p233 = scmp.eq.s32.totalorder %s45, 0
      %p234 = por %p232, %p233
      %p235 = scmp.ne.s32.totalorder %s223, %s224
      %p236 = scmp.eq.s32.totalorder %s46, 1
      %p237 = por %p235, %p236
      %p239 = scmp.ne.s32.totalorder %s224, %s238
      %p240 = scmp.eq.s32.totalorder %s46, 0
      %p241 = por %p239, %p240
      %s243 = sadd.s32 %s242, 1
      %p246 = scmp.eq.s32.totalorder %s40, 1
      %p247 = scmp.ne.s32.totalorder %s242, %s244
      %p248 = scmp.eq.s32.totalorder %s40, 0
      %p249 = por %p247, %p248
      %p250 = scmp.ne.s32.totalorder %s242, %s244
      %p251 = scmp.eq.s32.totalorder %s45, 1
      %p252 = por %p250, %p251
      %p253 = scmp.ne.s32.totalorder %s244, %s245
      %p254 = scmp.eq.s32.totalorder %s45, 0
      %p255 = por %p253, %p254
      %p256 = scmp.ne.s32.totalorder %s244, %s245
      %p257 = scmp.eq.s32.totalorder %s46, 1
      %p258 = por %p256, %p257
      %p260 = scmp.ne.s32.totalorder %s245, %s259
      %p261 = scmp.eq.s32.totalorder %s46, 0
      %p262 = por %p260, %p261
      %s264 = sadd.s32 %s263, 1
      %p267 = scmp.eq.s32.totalorder %s40, 1
      %p268 = scmp.ne.s32.totalorder %s263, %s265
      %p269 = scmp.eq.s32.totalorder %s40, 0
      %p270 = por %p268, %p269
      %p271 = scmp.ne.s32.totalorder %s263, %s265
      %p272 = scmp.eq.s32.totalorder %s45, 1
      %p273 = por %p271, %p272
      %p274 = scmp.ne.s32.totalorder %s265, %s266
      %p275 = scmp.eq.s32.totalorder %s45, 0
      %p276 = por %p274, %p275
      %p277 = scmp.ne.s32.totalorder %s265, %s266
      %p278 = scmp.eq.s32.totalorder %s46, 1
      %p279 = por %p277, %p278
      %p281 = scmp.ne.s32.totalorder %s266, %s280
      %p282 = scmp.eq.s32.totalorder %s46, 0
      %p283 = por %p281, %p282
      %s285 = sadd.s32 %s284, 1
      %p288 = scmp.eq.s32.totalorder %s40, 1
      %p289 = scmp.ne.s32.totalorder %s284, %s286
      %p290 = scmp.eq.s32.totalorder %s40, 0
      %p291 = por %p289, %p290
      %p292 = scmp.ne.s32.totalorder %s284, %s286
      %p293 = scmp.eq.s32.totalorder %s45, 1
      %p294 = por %p292, %p293
      %p295 = scmp.ne.s32.totalorder %s286, %s287
      %p296 = scmp.eq.s32.totalorder %s45, 0
      %p297 = por %p295, %p296
      %p298 = scmp.ne.s32.totalorder %s286, %s287
      %p299 = scmp.eq.s32.totalorder %s46, 1
      %p300 = por %p298, %p299
      %p302 = scmp.ne.s32.totalorder %s287, %s301
      %p303 = scmp.eq.s32.totalorder %s46, 0
      %p304 = por %p302, %p303
      %s306 = sadd.s32 %s305, 1
      %p309 = scmp.eq.s32.totalorder %s40, 1
      %p310 = scmp.ne.s32.totalorder %s305, %s307
      %p311 = scmp.eq.s32.totalorder %s40, 0
      %p312 = por %p310, %p311
      %p313 = scmp.ne.s32.totalorder %s305, %s307
      %p314 = scmp.eq.s32.totalorder %s45, 1
      %p315 = por %p313, %p314
      %p316 = scmp.ne.s32.totalorder %s307, %s308
      %p317 = scmp.eq.s32.totalorder %s45, 0
      %p318 = por %p316, %p317
      %p319 = scmp.ne.s32.totalorder %s307, %s308
      %p320 = scmp.eq.s32.totalorder %s46, 1
      %p321 = por %p319, %p320
      %p323 = scmp.ne.s32.totalorder %s308, %s322
      %p324 = scmp.eq.s32.totalorder %s46, 0
      %p325 = por %p323, %p324
      %s327 = sadd.s32 %s326, 1
      %p330 = scmp.eq.s32.totalorder %s40, 1
      %p331 = scmp.ne.s32.totalorder %s326, %s328
      %p332 = scmp.eq.s32.totalorder %s40, 0
      %p333 = por %p331, %p332
      %p334 = scmp.ne.s32.totalorder %s326, %s328
      %p335 = scmp.eq.s32.totalorder %s45, 1
      %p336 = por %p334, %p335
      %p337 = scmp.ne.s32.totalorder %s328, %s329
      %p338 = scmp.eq.s32.totalorder %s45, 0
      %p339 = por %p337, %p338
      %p340 = scmp.ne.s32.totalorder %s328, %s329
      %p341 = scmp.eq.s32.totalorder %s46, 1
      %p342 = por %p340, %p341
      %p344 = scmp.ne.s32.totalorder %s329, %s343
      %p345 = scmp.eq.s32.totalorder %s46, 0
      %p346 = por %p344, %p345
      %s348 = sadd.s32 %s347, 1
      %p351 = scmp.eq.s32.totalorder %s40, 1
      %p352 = scmp.ne.s32.totalorder %s347, %s349
      %p353 = scmp.eq.s32.totalorder %s40, 0
      %p354 = por %p352, %p353
      %p355 = scmp.ne.s32.totalorder %s347, %s349
      %p356 = scmp.eq.s32.totalorder %s45, 1
      %p357 = por %p355, %p356
      %p358 = scmp.ne.s32.totalorder %s349, %s350
      %p359 = scmp.eq.s32.totalorder %s45, 0
      %p360 = por %p358, %p359
      %p361 = scmp.ne.s32.totalorder %s349, %s350
      %p362 = scmp.eq.s32.totalorder %s46, 1
      %p363 = por %p361, %p362
      %p365 = scmp.ne.s32.totalorder %s350, %s364
      %p366 = scmp.eq.s32.totalorder %s46, 0
      %p367 = por %p365, %p366
      %s369 = sadd.s32 %s368, 1
      %p372 = scmp.eq.s32.totalorder %s40, 1
      %p373 = scmp.ne.s32.totalorder %s368, %s370
      %p374 = scmp.eq.s32.totalorder %s40, 0
      %p375 = por %p373, %p374
      %p376 = scmp.ne.s32.totalorder %s368, %s370
      %p377 = scmp.eq.s32.totalorder %s45, 1
      %p378 = por %p376, %p377
      %p379 = scmp.ne.s32.totalorder %s370, %s371
      %p380 = scmp.eq.s32.totalorder %s45, 0
      %p381 = por %p379, %p380
      %p382 = scmp.ne.s32.totalorder %s370, %s371
      %p383 = scmp.eq.s32.totalorder %s46, 1
      %p384 = por %p382, %p383
      %p386 = scmp.ne.s32.totalorder %s371, %s385
      %p387 = scmp.eq.s32.totalorder %s46, 0
      %p388 = por %p386, %p387
      %s390 = sadd.s32 %s389, 1
      %p393 = scmp.eq.s32.totalorder %s40, 1
      %p394 = scmp.ne.s32.totalorder %s389, %s391
      %p395 = scmp.eq.s32.totalorder %s40, 0
      %p396 = por %p394, %p395
      %p397 = scmp.ne.s32.totalorder %s389, %s391
      %p398 = scmp.eq.s32.totalorder %s45, 1
      %p399 = por %p397, %p398
      %p400 = scmp.ne.s32.totalorder %s391, %s392
      %p401 = scmp.eq.s32.totalorder %s45, 0
      %p402 = por %p400, %p401
      %p403 = scmp.ne.s32.totalorder %s391, %s392
      %p404 = scmp.eq.s32.totalorder %s46, 1
      %p405 = por %p403, %p404
      %p407 = scmp.ne.s32.totalorder %s392, %s406
      %p408 = scmp.eq.s32.totalorder %s46, 0
      %p409 = por %p407, %p408
      %s411 = sadd.s32 %s410, 1
      %p414 = scmp.eq.s32.totalorder %s40, 1
      %p415 = scmp.ne.s32.totalorder %s410, %s412
      %p416 = scmp.eq.s32.totalorder %s40, 0
      %p417 = por %p415, %p416
      %p418 = scmp.ne.s32.totalorder %s410, %s412
      %p419 = scmp.eq.s32.totalorder %s45, 1
      %p420 = por %p418, %p419
      %p421 = scmp.ne.s32.totalorder %s412, %s413
      %p422 = scmp.eq.s32.totalorder %s45, 0
      %p423 = por %p421, %p422
      %p424 = scmp.ne.s32.totalorder %s412, %s413
      %p425 = scmp.eq.s32.totalorder %s46, 1
      %p426 = por %p424, %p425
      %p428 = scmp.ne.s32.totalorder %s413, %s427
      %p429 = scmp.eq.s32.totalorder %s46, 0
      %p430 = por %p428, %p429
      %s432 = sadd.s32 %s431, 1
      %p435 = scmp.eq.s32.totalorder %s40, 1
      %p436 = scmp.ne.s32.totalorder %s431, %s433
      %p437 = scmp.eq.s32.totalorder %s40, 0
      %p438 = por %p436, %p437
      %p439 = scmp.ne.s32.totalorder %s431, %s433
      %p440 = scmp.eq.s32.totalorder %s45, 1
      %p441 = por %p439, %p440
      %p442 = scmp.ne.s32.totalorder %s433, %s434
      %p443 = scmp.eq.s32.totalorder %s45, 0
      %p444 = por %p442, %p443
      %p445 = scmp.ne.s32.totalorder %s433, %s434
      %p446 = scmp.eq.s32.totalorder %s46, 1
      %p447 = por %p445, %p446
      %p449 = scmp.ne.s32.totalorder %s434, %s448
      %p450 = scmp.eq.s32.totalorder %s46, 0
      %p451 = por %p449, %p450
      %s453 = sadd.s32 %s452, 1
      %p456 = scmp.eq.s32.totalorder %s40, 1
      %p457 = scmp.ne.s32.totalorder %s452, %s454
      %p458 = scmp.eq.s32.totalorder %s40, 0
      %p459 = por %p457, %p458
      %p460 = scmp.ne.s32.totalorder %s452, %s454
      %p461 = scmp.eq.s32.totalorder %s45, 1
      %p462 = por %p460, %p461
      %p463 = scmp.ne.s32.totalorder %s454, %s455
      %p464 = scmp.eq.s32.totalorder %s45, 0
      %p465 = por %p463, %p464
      %p466 = scmp.ne.s32.totalorder %s454, %s455
      %p467 = scmp.eq.s32.totalorder %s46, 1
      %p468 = por %p466, %p467
      %p470 = scmp.ne.s32.totalorder %s455, %s469
      %p471 = scmp.eq.s32.totalorder %s46, 0
      %p472 = por %p470, %p471
      %s474 = sadd.s32 %s473, 1
      %p477 = scmp.eq.s32.totalorder %s40, 1
      %p478 = scmp.ne.s32.totalorder %s473, %s475
      %p479 = scmp.eq.s32.totalorder %s40, 0
      %p480 = por %p478, %p479
      %p481 = scmp.ne.s32.totalorder %s473, %s475
      %p482 = scmp.eq.s32.totalorder %s45, 1
      %p483 = por %p481, %p482
      %p484 = scmp.ne.s32.totalorder %s475, %s476
      %p485 = scmp.eq.s32.totalorder %s45, 0
      %p486 = por %p484, %p485
      %p487 = scmp.ne.s32.totalorder %s475, %s476
      %p488 = scmp.eq.s32.totalorder %s46, 1
      %p489 = por %p487, %p488
      %p491 = scmp.ne.s32.totalorder %s476, %s490
      %p492 = scmp.eq.s32.totalorder %s46, 0
      %p493 = por %p491, %p492
      %s495 = sadd.s32 %s494, 1
      %p498 = scmp.eq.s32.totalorder %s40, 1
      %p499 = scmp.ne.s32.totalorder %s494, %s496
      %p500 = scmp.eq.s32.totalorder %s40, 0
      %p501 = por %p499, %p500
      %p502 = scmp.ne.s32.totalorder %s494, %s496
      %p503 = scmp.eq.s32.totalorder %s45, 1
      %p504 = por %p502, %p503
      %p505 = scmp.ne.s32.totalorder %s496, %s497
      %p506 = scmp.eq.s32.totalorder %s45, 0
      %p507 = por %p505, %p506
      %p508 = scmp.ne.s32.totalorder %s496, %s497
      %p509 = scmp.eq.s32.totalorder %s46, 1
      %p510 = por %p508, %p509
      %p512 = scmp.ne.s32.totalorder %s497, %s511
      %p513 = scmp.eq.s32.totalorder %s46, 0
      %p514 = por %p512, %p513
      %s516 = sadd.s32 %s515, 1
      %p519 = scmp.eq.s32.totalorder %s40, 1
      %p520 = scmp.ne.s32.totalorder %s515, %s517
      %p521 = scmp.eq.s32.totalorder %s40, 0
      %p522 = por %p520, %p521
      %p523 = scmp.ne.s32.totalorder %s515, %s517
      %p524 = scmp.eq.s32.totalorder %s45, 1
      %p525 = por %p523, %p524
      %p526 = scmp.ne.s32.totalorder %s517, %s518
      %p527 = scmp.eq.s32.totalorder %s45, 0
      %p528 = por %p526, %p527
      %p529 = scmp.ne.s32.totalorder %s517, %s518
      %p530 = scmp.eq.s32.totalorder %s46, 1
      %p531 = por %p529, %p530
      %p533 = scmp.ne.s32.totalorder %s518, %s532
      %p534 = scmp.eq.s32.totalorder %s46, 0
      %p535 = por %p533, %p534
      %s537 = sadd.s32 %s536, 1
      %p540 = scmp.eq.s32.totalorder %s40, 1
      %p541 = scmp.ne.s32.totalorder %s536, %s538
      %p542 = scmp.eq.s32.totalorder %s40, 0
      %p543 = por %p541, %p542
      %p544 = scmp.ne.s32.totalorder %s536, %s538
      %p545 = scmp.eq.s32.totalorder %s45, 1
      %p546 = por %p544, %p545
      %p547 = scmp.ne.s32.totalorder %s538, %s539
      %p548 = scmp.eq.s32.totalorder %s45, 0
      %p549 = por %p547, %p548
      %p550 = scmp.ne.s32.totalorder %s538, %s539
      %p551 = scmp.eq.s32.totalorder %s46, 1
      %p552 = por %p550, %p551
      %p554 = scmp.ne.s32.totalorder %s539, %s553
      %p555 = scmp.eq.s32.totalorder %s46, 0
      %p556 = por %p554, %p555
      %p557 = scmp.le.s32.totalorder 1, %s40
      %p558 = scmp.lt.s32.totalorder %s40, 3
      %p559 = pnand %p557, %p558
      %p560 = pneg %p559
      // Predicated region
      $region9: #{ipcrnet_forward.1} parent=5 // pred_check
        _
      $region10: #{ipcrnet_forward.1} parent=5 // pred_check_branch
        %562 = sbr.rel (%p559) target = $region12
      $region11: #{ipcrnet_forward.1} parent=5 // pred_region
        %s563 = ssub.s32 %s40, 1
        // Predicated region
        $region13: #{ipcrnet_forward.1} parent=11 // pred_check
          %p564 = pneg %p87
        $region14: #{ipcrnet_forward.1} parent=11 // pred_check_branch
          %566 = sbr.rel (%p564) target = $region16
        $region15: #{ipcrnet_forward.1} parent=11 // pred_region
          %s568 = ssub.s32 32, 32
          %569 = vsyncadd [#allocation5], %s568
          %s571 = sshll.u32 [#allocation4], 4
          %s572 = int_to_ptr.vmem [resolvable:$true] %s571
          %574 = dma.hbm_to_vmem [thread:$0]  %s1, 32, %s572, [#allocation5]
        $region16: #{ipcrnet_forward.1} parent=11 // pred_fallthru
          _
        // Predicated region
        $region17: #{ipcrnet_forward.1} parent=11 // pred_check
          %p575 = pneg %p108
        $region18: #{ipcrnet_forward.1} parent=11 // pred_check_branch
          %577 = sbr.rel (%p575) target = $region20
        $region19: #{ipcrnet_forward.1} parent=11 // pred_region
          %s579 = ssub.s32 16, 16
          %580 = vsyncadd [#allocation7], %s579
          %s582 = sshll.u32 [#allocation6], 4
          %s583 = int_to_ptr.vmem [resolvable:$true] %s582
          %585 = dma.hbm_to_vmem [thread:$0]  %s2, 16, %s583, [#allocation7]
        $region20: #{ipcrnet_forward.1} parent=11 // pred_fallthru
          _
        // Predicated region
        $region21: #{ipcrnet_forward.1} parent=11 // pred_check
          %p586 = pneg %p129
        $region22: #{ipcrnet_forward.1} parent=11 // pred_check_branch
          %588 = sbr.rel (%p586) target = $region24
        $region23: #{ipcrnet_forward.1} parent=11 // pred_region
          %s590 = ssub.s32 512, 512
          %591 = vsyncadd [#allocation7], %s590
          %s592 = sshll.u32 [#allocation8], 4
          %s593 = int_to_ptr.vmem [resolvable:$true] %s592
          %598 = dma.hbm_to_vmem [thread:$0]  %s3, 512, %s593, [#allocation7], 64, 64, 4
        $region24: #{ipcrnet_forward.1} parent=11 // pred_fallthru
          _
        // Predicated region
        $region25: #{ipcrnet_forward.1} parent=11 // pred_check
          %p599 = pneg %p150
        $region26: #{ipcrnet_forward.1} parent=11 // pred_check_branch
          %601 = sbr.rel (%p599) target = $region28
        $region27: #{ipcrnet_forward.1} parent=11 // pred_region
          %s603 = ssub.s32 16, 16
          %604 = vsyncadd [#allocation10], %s603
          %s606 = sshll.u32 [#allocation9], 4
          %s607 = int_to_ptr.vmem [resolvable:$true] %s606
          %609 = dma.hbm_to_vmem [thread:$0]  %s4, 16, %s607, [#allocation10]
        $region28: #{ipcrnet_forward.1} parent=11 // pred_fallthru
          _
        // Predicated region
        $region29: #{ipcrnet_forward.1} parent=11 // pred_check
          %p610 = pneg %p171
        $region30: #{ipcrnet_forward.1} parent=11 // pred_check_branch
          %612 = sbr.rel (%p610) target = $region32
        $region31: #{ipcrnet_forward.1} parent=11 // pred_region
          %s614 = ssub.s32 512, 512
          %615 = vsyncadd [#allocation10], %s614
          %s616 = sshll.u32 [#allocation11], 4
          %s617 = int_to_ptr.vmem [resolvable:$true] %s616
          %622 = dma.hbm_to_vmem [thread:$0]  %s5, 512, %s617, [#allocation10], 64, 64, 4
        $region32: #{ipcrnet_forward.1} parent=11 // pred_fallthru
          _
        // Predicated region
        $region33: #{ipcrnet_forward.1} parent=11 // pred_check
          %p623 = pneg %p192
        $region34: #{ipcrnet_forward.1} parent=11 // pred_check_branch
          %625 = sbr.rel (%p623) target = $region36
        $region35: #{ipcrnet_forward.1} parent=11 // pred_region
          %s627 = ssub.s32 16, 16
          %628 = vsyncadd [#allocation13], %s627
          %s630 = sshll.u32 [#allocation12], 4
          %s631 = int_to_ptr.vmem [resolvable:$true] %s630
          %633 = dma.hbm_to_vmem [thread:$0]  %s6, 16, %s631, [#allocation13]
        $region36: #{ipcrnet_forward.1} parent=11 // pred_fallthru
          _
        // Predicated region
        $region37: #{ipcrnet_forward.1} parent=11 // pred_check
          %p634 = pneg %p213
        $region38: #{ipcrnet_forward.1} parent=11 // pred_check_branch
          %636 = sbr.rel (%p634) target = $region40
        $region39: #{ipcrnet_forward.1} parent=11 // pred_region
          %s638 = ssub.s32 512, 512
          %639 = vsyncadd [#allocation13], %s638
          %s640 = sshll.u32 [#allocation14], 4
          %s641 = int_to_ptr.vmem [resolvable:$true] %s640
          %646 = dma.hbm_to_vmem [thread:$0]  %s7, 512, %s641, [#allocation13], 64, 64, 4
        $region40: #{ipcrnet_forward.1} parent=11 // pred_fallthru
          _
        // Predicated region
        $region41: #{ipcrnet_forward.1} parent=11 // pred_check
          %p647 = pneg %p234
        $region42: #{ipcrnet_forward.1} parent=11 // pred_check_branch
          %649 = sbr.rel (%p647) target = $region44
        $region43: #{ipcrnet_forward.1} parent=11 // pred_region
          %s651 = ssub.s32 16, 16
          %652 = vsyncadd [#allocation16], %s651
          %s654 = sshll.u32 [#allocation15], 4
          %s655 = int_to_ptr.vmem [resolvable:$true] %s654
          %657 = dma.hbm_to_vmem [thread:$0]  %s8, 16, %s655, [#allocation16]
        $region44: #{ipcrnet_forward.1} parent=11 // pred_fallthru
          _
        // Predicated region
        $region45: #{ipcrnet_forward.1} parent=11 // pred_check
          %p658 = pneg %p255
        $region46: #{ipcrnet_forward.1} parent=11 // pred_check_branch
          %660 = sbr.rel (%p658) target = $region48
        $region47: #{ipcrnet_forward.1} parent=11 // pred_region
          %s662 = ssub.s32 2048, 2048
          %663 = vsyncadd [#allocation16], %s662
          %s664 = sshll.u32 [#allocation17], 4
          %s665 = int_to_ptr.vmem [resolvable:$true] %s664
          %670 = dma.hbm_to_vmem [thread:$0]  %s9, 2048, %s665, [#allocation16], 128, 128, 8
        $region48: #{ipcrnet_forward.1} parent=11 // pred_fallthru
          _
        // Predicated region
        $region49: #{ipcrnet_forward.1} parent=11 // pred_check
          %p671 = pneg %p276
        $region50: #{ipcrnet_forward.1} parent=11 // pred_check_branch
          %673 = sbr.rel (%p671) target = $region52
        $region51: #{ipcrnet_forward.1} parent=11 // pred_region
          %s675 = ssub.s32 32, 32
          %676 = vsyncadd [#allocation19], %s675
          %s678 = sshll.u32 [#allocation18], 4
          %s679 = int_to_ptr.vmem [resolvable:$true] %s678
          %681 = dma.hbm_to_vmem [thread:$0]  %s10, 32, %s679, [#allocation19]
        $region52: #{ipcrnet_forward.1} parent=11 // pred_fallthru
          _
        // Predicated region
        $region53: #{ipcrnet_forward.1} parent=11 // pred_check
          %p682 = pneg %p297
        $region54: #{ipcrnet_forward.1} parent=11 // pred_check_branch
          %684 = sbr.rel (%p682) target = $region56
        $region55: #{ipcrnet_forward.1} parent=11 // pred_region
          %s686 = ssub.s32 32768, 32768
          %687 = vsyncadd [#allocation19], %s686
          %s688 = sshll.u32 [#allocation20], 4
          %s689 = int_to_ptr.vmem [resolvable:$true] %s688
          %694 = dma.hbm_to_vmem [thread:$0]  %s11, 32768, %s689, [#allocation19], 512, 512, 32
        $region56: #{ipcrnet_forward.1} parent=11 // pred_fallthru
          _
        // Predicated region
        $region57: #{ipcrnet_forward.1} parent=11 // pred_check
          %p695 = pneg %p318
        $region58: #{ipcrnet_forward.1} parent=11 // pred_check_branch
          %697 = sbr.rel (%p695) target = $region60
        $region59: #{ipcrnet_forward.1} parent=11 // pred_region
          %s699 = ssub.s32 128, 128
          %700 = vsyncadd [#allocation22], %s699
          %s702 = sshll.u32 [#allocation21], 4
          %s703 = int_to_ptr.vmem [resolvable:$true] %s702
          %705 = dma.hbm_to_vmem [thread:$0]  %s12, 128, %s703, [#allocation22]
        $region60: #{ipcrnet_forward.1} parent=11 // pred_fallthru
          _
        // Predicated region
        $region61: #{ipcrnet_forward.1} parent=11 // pred_check
          %p706 = pneg %p339
        $region62: #{ipcrnet_forward.1} parent=11 // pred_check_branch
          %708 = sbr.rel (%p706) target = $region64
        $region63: #{ipcrnet_forward.1} parent=11 // pred_region
          %s710 = ssub.s32 65536, 65536
          %711 = vsyncadd [#allocation22], %s710
          %s712 = sshll.u32 [#allocation23], 4
          %s713 = int_to_ptr.vmem [resolvable:$true] %s712
          %718 = dma.hbm_to_vmem [thread:$0]  %s13, 65536, %s713, [#allocation22], 512, 512, 32
        $region64: #{ipcrnet_forward.1} parent=11 // pred_fallthru
          _
        // Predicated region
        $region65: #{ipcrnet_forward.1} parent=11 // pred_check
          %p719 = pneg %p360
        $region66: #{ipcrnet_forward.1} parent=11 // pred_check_branch
          %721 = sbr.rel (%p719) target = $region68
        $region67: #{ipcrnet_forward.1} parent=11 // pred_region
          %s723 = ssub.s32 128, 128
          %724 = vsyncadd [#allocation25], %s723
          %s726 = sshll.u32 [#allocation24], 4
          %s727 = int_to_ptr.vmem [resolvable:$true] %s726
          %729 = dma.hbm_to_vmem [thread:$0]  %s14, 128, %s727, [#allocation25]
        $region68: #{ipcrnet_forward.1} parent=11 // pred_fallthru
          _
        // Predicated region
        $region69: #{ipcrnet_forward.1} parent=11 // pred_check
          %p730 = pneg %p381
        $region70: #{ipcrnet_forward.1} parent=11 // pred_check_branch
          %732 = sbr.rel (%p730) target = $region72
        $region71: #{ipcrnet_forward.1} parent=11 // pred_region
          %s734 = ssub.s32 32768, 32768
          %735 = vsyncadd [#allocation25], %s734
          %s736 = sshll.u32 [#allocation26], 4
          %s737 = int_to_ptr.vmem [resolvable:$true] %s736
          %742 = dma.hbm_to_vmem [thread:$0]  %s15, 32768, %s737, [#allocation25], 256, 256, 16
        $region72: #{ipcrnet_forward.1} parent=11 // pred_fallthru
          _
        // Predicated region
        $region73: #{ipcrnet_forward.1} parent=11 // pred_check
          %p743 = pneg %p402
        $region74: #{ipcrnet_forward.1} parent=11 // pred_check_branch
          %745 = sbr.rel (%p743) target = $region76
        $region75: #{ipcrnet_forward.1} parent=11 // pred_region
          %s747 = ssub.s32 64, 64
          %748 = vsyncadd [#allocation28], %s747
          %s750 = sshll.u32 [#allocation27], 4
          %s751 = int_to_ptr.vmem [resolvable:$true] %s750
          %753 = dma.hbm_to_vmem [thread:$0]  %s16, 64, %s751, [#allocation28]
        $region76: #{ipcrnet_forward.1} parent=11 // pred_fallthru
          _
        // Predicated region
        $region77: #{ipcrnet_forward.1} parent=11 // pred_check
          %p754 = pneg %p423
        $region78: #{ipcrnet_forward.1} parent=11 // pred_check_branch
          %756 = sbr.rel (%p754) target = $region80
        $region79: #{ipcrnet_forward.1} parent=11 // pred_region
          %s758 = ssub.s32 16384, 16384
          %759 = vsyncadd [#allocation28], %s758
          %s760 = sshll.u32 [#allocation29], 4
          %s761 = int_to_ptr.vmem [resolvable:$true] %s760
          %766 = dma.hbm_to_vmem [thread:$0]  %s17, 16384, %s761, [#allocation28], 256, 256, 16
        $region80: #{ipcrnet_forward.1} parent=11 // pred_fallthru
          _
        // Predicated region
        $region81: #{ipcrnet_forward.1} parent=11 // pred_check
          %p767 = pneg %p444
        $region82: #{ipcrnet_forward.1} parent=11 // pred_check_branch
          %769 = sbr.rel (%p767) target = $region84
        $region83: #{ipcrnet_forward.1} parent=11 // pred_region
          %s771 = ssub.s32 64, 64
          %772 = vsyncadd [#allocation31], %s771
          %s774 = sshll.u32 [#allocation30], 4
          %s775 = int_to_ptr.vmem [resolvable:$true] %s774
          %777 = dma.hbm_to_vmem [thread:$0]  %s18, 64, %s775, [#allocation31]
        $region84: #{ipcrnet_forward.1} parent=11 // pred_fallthru
          _
        // Predicated region
        $region85: #{ipcrnet_forward.1} parent=11 // pred_check
          %p778 = pneg %p465
        $region86: #{ipcrnet_forward.1} parent=11 // pred_check_branch
          %780 = sbr.rel (%p778) target = $region88
        $region87: #{ipcrnet_forward.1} parent=11 // pred_region
          %s782 = ssub.s32 8192, 8192
          %783 = vsyncadd [#allocation31], %s782
          %s784 = sshll.u32 [#allocation32], 4
          %s785 = int_to_ptr.vmem [resolvable:$true] %s784
          %790 = dma.hbm_to_vmem [thread:$0]  %s19, 8192, %s785, [#allocation31], 128, 128, 8
        $region88: #{ipcrnet_forward.1} parent=11 // pred_fallthru
          _
        // Predicated region
        $region89: #{ipcrnet_forward.1} parent=11 // pred_check
          %p791 = pneg %p486
        $region90: #{ipcrnet_forward.1} parent=11 // pred_check_branch
          %793 = sbr.rel (%p791) target = $region92
        $region91: #{ipcrnet_forward.1} parent=11 // pred_region
          %s795 = ssub.s32 32, 32
          %796 = vsyncadd [#allocation34], %s795
          %s798 = sshll.u32 [#allocation33], 4
          %s799 = int_to_ptr.vmem [resolvable:$true] %s798
          %801 = dma.hbm_to_vmem [thread:$0]  %s20, 32, %s799, [#allocation34]
        $region92: #{ipcrnet_forward.1} parent=11 // pred_fallthru
          _
        // Predicated region
        $region93: #{ipcrnet_forward.1} parent=11 // pred_check
          %p802 = pneg %p507
        $region94: #{ipcrnet_forward.1} parent=11 // pred_check_branch
          %804 = sbr.rel (%p802) target = $region96
        $region95: #{ipcrnet_forward.1} parent=11 // pred_region
          _
        $region96: #{ipcrnet_forward.1} parent=11 // pred_fallthru
          _
        // Predicated region
        $region97: #{ipcrnet_forward.1} parent=11 // pred_check
          %p805 = pneg %p528
        $region98: #{ipcrnet_forward.1} parent=11 // pred_check_branch
          %807 = sbr.rel (%p805) target = $region100
        $region99: #{ipcrnet_forward.1} parent=11 // pred_region
          %s809 = ssub.s32 16, 16
          %810 = vsyncadd [#allocation34], %s809
          %s812 = sshll.u32 [#allocation35], 4
          %s813 = int_to_ptr.vmem [resolvable:$true] %s812
          %815 = dma.hbm_to_vmem [thread:$0]  %s22, 16, %s813, [#allocation34]
        $region100: #{ipcrnet_forward.1} parent=11 // pred_fallthru
          _
      $region12: #{ipcrnet_forward.1} parent=5 // pred_fallthru
        _
      %p816 = scmp.lt.s32.totalorder %s40, 2
      // Predicated region
      $region101: #{ipcrnet_forward.1} parent=5 // pred_check
        %p817 = pneg %p816
      $region102: #{ipcrnet_forward.1} parent=5 // pred_check_branch
        %819 = sbr.rel (%p817) target = $region104
      $region103: #{ipcrnet_forward.1} parent=5 // pred_region
        // Predicated region
        $region105: #{ipcrnet_forward.1} parent=103 // pred_check
          %p820 = pneg %p60
        $region106: #{ipcrnet_forward.1} parent=103 // pred_check_branch
          %822 = sbr.rel (%p820) target = $region108
        $region107: #{ipcrnet_forward.1} parent=103 // pred_region
          %s823 = sand.u32 %s50, 1
          %s824 = sand.u32 %s50, 1
          %s825 = smul.addr %s824, 128
          %s826 = scalar_lea.vmem [#allocation3], %s825
          %s827 = smul.u32 4, %s40
          %s828 = smul.addr %s827, 8
          %s829 = scalar_lea.vmem %s0, %s828
          // Predicated region
          $region109: #{ipcrnet_forward.1} parent=107 // pred_check
            _
          $region110: #{ipcrnet_forward.1} parent=107 // pred_check_branch
            %831 = sbr.rel (0) target = $region112
          $region111: #{ipcrnet_forward.1} parent=107 // pred_region
            // Predicated region
            $region113: #{ipcrnet_forward.1} parent=111 // pred_check
              _
            $region114: #{ipcrnet_forward.1} parent=111 // pred_check_branch
              %833 = sbr.rel (0) target = $region116
            $region115: #{ipcrnet_forward.1} parent=111 // pred_region
              // Predicated region
              $region128: #{ipcrnet_forward.1} parent=115 // pred_check
                _
              $region129: #{ipcrnet_forward.1} parent=115 // pred_check_branch
                %878 = sbr.rel (0) target = $region131
              $region130: #{ipcrnet_forward.1} parent=115 // pred_region
                loop: start=0, step=1, limit=1
                $region132: #{ipcrnet_forward.1} parent=130 // loop_pre_header
                  _
                $region133: #{ipcrnet_forward.1} parent=130 // loop_header
                  %s880 = sphi 0, %s884
                  %p881 = scmp.ge.s32.totalorder %s880, 1
                  %s885 = sphi %s829, %s829
                  %s886 = sphi %s826, %s826
                $region134: #{ipcrnet_forward.1} parent=130 // loop_header_branch
                  %883 = sbr.rel (%p881) target = $region138
                $region135: #{ipcrnet_forward.1} parent=130 // loop_body
                  %v887 = vld [vmem:[%s885] sm:$0xff]
                  %888 = vst [vmem:[%s886] sm:$0xff] %v887
                  %v889 = vld [vmem:[%s885 + $0x8] sm:$0xff]
                  %890 = vst [vmem:[%s886 + $0x8] sm:$0xff] %v889
                  %v891 = vld [vmem:[%s885 + $0x10] sm:$0xff]
                  %892 = vst [vmem:[%s886 + $0x10] sm:$0xff] %v891
                  %v893 = vld [vmem:[%s885 + $0x18] sm:$0xff]
                  %894 = vst [vmem:[%s886 + $0x18] sm:$0xff] %v893
                  %v895 = vld [vmem:[%s885 + $0x40] sm:$0xff]
                  %896 = vst [vmem:[%s886 + $0x20] sm:$0xff] %v895
                  %v897 = vld [vmem:[%s885 + $0x48] sm:$0xff]
                  %898 = vst [vmem:[%s886 + $0x28] sm:$0xff] %v897
                  %v899 = vld [vmem:[%s885 + $0x50] sm:$0xff]
                  %900 = vst [vmem:[%s886 + $0x30] sm:$0xff] %v899
                  %v901 = vld [vmem:[%s885 + $0x58] sm:$0xff]
                  %902 = vst [vmem:[%s886 + $0x38] sm:$0xff] %v901
                  %v903 = vld [vmem:[%s885 + $0x80] sm:$0xff]
                  %904 = vst [vmem:[%s886 + $0x40] sm:$0xff] %v903
                  %v905 = vld [vmem:[%s885 + $0x88] sm:$0xff]
                  %906 = vst [vmem:[%s886 + $0x48] sm:$0xff] %v905
                  %v907 = vld [vmem:[%s885 + $0x90] sm:$0xff]
                  %908 = vst [vmem:[%s886 + $0x50] sm:$0xff] %v907
                  %v909 = vld [vmem:[%s885 + $0x98] sm:$0xff]
                  %910 = vst [vmem:[%s886 + $0x58] sm:$0xff] %v909
                  %v911 = vld [vmem:[%s885 + $0xc0] sm:$0xff]
                  %912 = vst [vmem:[%s886 + $0x60] sm:$0xff] %v911
                  %v913 = vld [vmem:[%s885 + $0xc8] sm:$0xff]
                  %914 = vst [vmem:[%s886 + $0x68] sm:$0xff] %v913
                  %v915 = vld [vmem:[%s885 + $0xd0] sm:$0xff]
                  %916 = vst [vmem:[%s886 + $0x70] sm:$0xff] %v915
                  %v917 = vld [vmem:[%s885 + $0xd8] sm:$0xff]
                  %918 = vst [vmem:[%s886 + $0x78] sm:$0xff] %v917
                $region136: #{ipcrnet_forward.1} parent=130 // loop_footer
                  %s884 = sadd.s32 1, %s880
                $region137: #{ipcrnet_forward.1} parent=130 // loop_footer_branch
                  %879 = sbr.rel target = $region133
                $region138: #{ipcrnet_forward.1} parent=130 // loop_exit
                  _
              $region131: #{ipcrnet_forward.1} parent=115 // pred_fallthru
                _
              // Predicated region
              $region139: #{ipcrnet_forward.1} parent=115 // pred_check
                _
              $region140: #{ipcrnet_forward.1} parent=115 // pred_check_branch
                %920 = sbr.rel target = $region142
              $region141: #{ipcrnet_forward.1} parent=115 // pred_region
                _
              $region142: #{ipcrnet_forward.1} parent=115 // pred_fallthru
                _
            $region116: #{ipcrnet_forward.1} parent=111 // pred_fallthru
              _
            // Predicated region
            $region117: #{ipcrnet_forward.1} parent=111 // pred_check
              _
            $region118: #{ipcrnet_forward.1} parent=111 // pred_check_branch
              %835 = sbr.rel target = $region120
            $region119: #{ipcrnet_forward.1} parent=111 // pred_region
              loop: start=0, step=1, limit=1
              $region121: #{ipcrnet_forward.1} parent=119 // loop_pre_header
                _
              $region122: #{ipcrnet_forward.1} parent=119 // loop_header
                %s838 = sphi 0, %s842
                %p839 = scmp.ge.s32.totalorder %s838, 1
                %s843 = sphi %s829, %s829
                %s844 = sphi %s826, %s826
              $region123: #{ipcrnet_forward.1} parent=119 // loop_header_branch
                %841 = sbr.rel (%p839) target = $region127
              $region124: #{ipcrnet_forward.1} parent=119 // loop_body
                %v845 = vld [vmem:[%s843] sm:$0xff]
                %846 = vst [vmem:[%s844] sm:$0xff] %v845
                %v847 = vld [vmem:[%s843 + $0x8] sm:$0xff]
                %848 = vst [vmem:[%s844 + $0x8] sm:$0xff] %v847
                %v849 = vld [vmem:[%s843 + $0x10] sm:$0xff]
                %850 = vst [vmem:[%s844 + $0x10] sm:$0xff] %v849
                %v851 = vld [vmem:[%s843 + $0x18] sm:$0xff]
                %852 = vst [vmem:[%s844 + $0x18] sm:$0xff] %v851
                %v853 = vld [vmem:[%s843 + $0x40] sm:$0xff]
                %854 = vst [vmem:[%s844 + $0x20] sm:$0xff] %v853
                %v855 = vld [vmem:[%s843 + $0x48] sm:$0xff]
                %856 = vst [vmem:[%s844 + $0x28] sm:$0xff] %v855
                %v857 = vld [vmem:[%s843 + $0x50] sm:$0xff]
                %858 = vst [vmem:[%s844 + $0x30] sm:$0xff] %v857
                %v859 = vld [vmem:[%s843 + $0x58] sm:$0xff]
                %860 = vst [vmem:[%s844 + $0x38] sm:$0xff] %v859
                %v861 = vld [vmem:[%s843 + $0x80] sm:$0xff]
                %862 = vst [vmem:[%s844 + $0x40] sm:$0xff] %v861
                %v863 = vld [vmem:[%s843 + $0x88] sm:$0xff]
                %864 = vst [vmem:[%s844 + $0x48] sm:$0xff] %v863
                %v865 = vld [vmem:[%s843 + $0x90] sm:$0xff]
                %866 = vst [vmem:[%s844 + $0x50] sm:$0xff] %v865
                %v867 = vld [vmem:[%s843 + $0x98] sm:$0xff]
                %868 = vst [vmem:[%s844 + $0x58] sm:$0xff] %v867
                %v869 = vld [vmem:[%s843 + $0xc0] sm:$0xff]
                %870 = vst [vmem:[%s844 + $0x60] sm:$0xff] %v869
                %v871 = vld [vmem:[%s843 + $0xc8] sm:$0xff]
                %872 = vst [vmem:[%s844 + $0x68] sm:$0xff] %v871
                %v873 = vld [vmem:[%s843 + $0xd0] sm:$0xff]
                %874 = vst [vmem:[%s844 + $0x70] sm:$0xff] %v873
                %v875 = vld [vmem:[%s843 + $0xd8] sm:$0xff]
                %876 = vst [vmem:[%s844 + $0x78] sm:$0xff] %v875
              $region125: #{ipcrnet_forward.1} parent=119 // loop_footer
                %s842 = sadd.s32 1, %s838
              $region126: #{ipcrnet_forward.1} parent=119 // loop_footer_branch
                %837 = sbr.rel target = $region122
              $region127: #{ipcrnet_forward.1} parent=119 // loop_exit
                _
            $region120: #{ipcrnet_forward.1} parent=111 // pred_fallthru
              _
          $region112: #{ipcrnet_forward.1} parent=107 // pred_fallthru
            _
          %921 = vnop
        $region108: #{ipcrnet_forward.1} parent=103 // pred_fallthru
          _
      $region104: #{ipcrnet_forward.1} parent=5 // pred_fallthru
        _
      %p922 = scmp.le.s32.totalorder 1, %s40
      %p923 = scmp.lt.s32.totalorder %s40, 3
      %p924 = pnand %p922, %p923
      %p925 = pneg %p924
      // Predicated region
      $region143: #{ipcrnet_forward.1} parent=5 // pred_check
        _
      $region144: #{ipcrnet_forward.1} parent=5 // pred_check_branch
        %927 = sbr.rel (%p924) target = $region146
      $region145: #{ipcrnet_forward.1} parent=5 // pred_region
        %s928 = ssub.s32 %s40, 1
        %s929 = sand.u32 %s53, 1
        %s930 = sand.u32 %s53, 1
        %s931 = smul.addr %s930, 128
        %s932 = scalar_lea.vmem [#allocation3], %s931
        // Predicated region
        $region147: #{ipcrnet_forward.1} parent=145 // pred_check
          %p933 = pneg %p66
        $region148: #{ipcrnet_forward.1} parent=145 // pred_check_branch
          %935 = sbr.rel (%p933) target = $region150
        $region149: #{ipcrnet_forward.1} parent=145 // pred_region
          _
        $region150: #{ipcrnet_forward.1} parent=145 // pred_fallthru
          _
        // Predicated region
        $region151: #{ipcrnet_forward.1} parent=145 // pred_check
          %p936 = pneg %p87
        $region152: #{ipcrnet_forward.1} parent=145 // pred_check_branch
          %938 = sbr.rel (%p936) target = $region154
        $region153: #{ipcrnet_forward.1} parent=145 // pred_region
          %939 = dma.done [#allocation5], 32
        $region154: #{ipcrnet_forward.1} parent=145 // pred_fallthru
          _
        // Predicated region
        $region155: #{ipcrnet_forward.1} parent=145 // pred_check
          %p940 = pneg %p108
        $region156: #{ipcrnet_forward.1} parent=145 // pred_check_branch
          %942 = sbr.rel (%p940) target = $region158
        $region157: #{ipcrnet_forward.1} parent=145 // pred_region
          %943 = dma.done [#allocation7], 16
        $region158: #{ipcrnet_forward.1} parent=145 // pred_fallthru
          _
        // Predicated region
        $region159: #{ipcrnet_forward.1} parent=145 // pred_check
          %p944 = pneg %p129
        $region160: #{ipcrnet_forward.1} parent=145 // pred_check_branch
          %946 = sbr.rel (%p944) target = $region162
        $region161: #{ipcrnet_forward.1} parent=145 // pred_region
          %947 = dma.done [#allocation7], 512
        $region162: #{ipcrnet_forward.1} parent=145 // pred_fallthru
          _
        // Predicated region
        $region163: #{ipcrnet_forward.1} parent=145 // pred_check
          %p948 = pneg %p150
        $region164: #{ipcrnet_forward.1} parent=145 // pred_check_branch
          %950 = sbr.rel (%p948) target = $region166
        $region165: #{ipcrnet_forward.1} parent=145 // pred_region
          %951 = dma.done [#allocation10], 16
        $region166: #{ipcrnet_forward.1} parent=145 // pred_fallthru
          _
        // Predicated region
        $region167: #{ipcrnet_forward.1} parent=145 // pred_check
          %p952 = pneg %p171
        $region168: #{ipcrnet_forward.1} parent=145 // pred_check_branch
          %954 = sbr.rel (%p952) target = $region170
        $region169: #{ipcrnet_forward.1} parent=145 // pred_region
          %955 = dma.done [#allocation10], 512
        $region170: #{ipcrnet_forward.1} parent=145 // pred_fallthru
          _
        // Predicated region
        $region171: #{ipcrnet_forward.1} parent=145 // pred_check
          %p956 = pneg %p192
        $region172: #{ipcrnet_forward.1} parent=145 // pred_check_branch
          %958 = sbr.rel (%p956) target = $region174
        $region173: #{ipcrnet_forward.1} parent=145 // pred_region
          %959 = dma.done [#allocation13], 16
        $region174: #{ipcrnet_forward.1} parent=145 // pred_fallthru
          _
        // Predicated region
        $region175: #{ipcrnet_forward.1} parent=145 // pred_check
          %p960 = pneg %p213
        $region176: #{ipcrnet_forward.1} parent=145 // pred_check_branch
          %962 = sbr.rel (%p960) target = $region178
        $region177: #{ipcrnet_forward.1} parent=145 // pred_region
          %963 = dma.done [#allocation13], 512
        $region178: #{ipcrnet_forward.1} parent=145 // pred_fallthru
          _
        // Predicated region
        $region179: #{ipcrnet_forward.1} parent=145 // pred_check
          %p964 = pneg %p234
        $region180: #{ipcrnet_forward.1} parent=145 // pred_check_branch
          %966 = sbr.rel (%p964) target = $region182
        $region181: #{ipcrnet_forward.1} parent=145 // pred_region
          %967 = dma.done [#allocation16], 16
        $region182: #{ipcrnet_forward.1} parent=145 // pred_fallthru
          _
        // Predicated region
        $region183: #{ipcrnet_forward.1} parent=145 // pred_check
          %p968 = pneg %p255
        $region184: #{ipcrnet_forward.1} parent=145 // pred_check_branch
          %970 = sbr.rel (%p968) target = $region186
        $region185: #{ipcrnet_forward.1} parent=145 // pred_region
          %971 = dma.done [#allocation16], 2048
        $region186: #{ipcrnet_forward.1} parent=145 // pred_fallthru
          _
        // Predicated region
        $region187: #{ipcrnet_forward.1} parent=145 // pred_check
          %p972 = pneg %p276
        $region188: #{ipcrnet_forward.1} parent=145 // pred_check_branch
          %974 = sbr.rel (%p972) target = $region190
        $region189: #{ipcrnet_forward.1} parent=145 // pred_region
          %975 = dma.done [#allocation19], 32
        $region190: #{ipcrnet_forward.1} parent=145 // pred_fallthru
          _
        // Predicated region
        $region191: #{ipcrnet_forward.1} parent=145 // pred_check
          %p976 = pneg %p297
        $region192: #{ipcrnet_forward.1} parent=145 // pred_check_branch
          %978 = sbr.rel (%p976) target = $region194
        $region193: #{ipcrnet_forward.1} parent=145 // pred_region
          %979 = dma.done [#allocation19], 32768
        $region194: #{ipcrnet_forward.1} parent=145 // pred_fallthru
          _
        // Predicated region
        $region195: #{ipcrnet_forward.1} parent=145 // pred_check
          %p980 = pneg %p318
        $region196: #{ipcrnet_forward.1} parent=145 // pred_check_branch
          %982 = sbr.rel (%p980) target = $region198
        $region197: #{ipcrnet_forward.1} parent=145 // pred_region
          %983 = dma.done [#allocation22], 128
        $region198: #{ipcrnet_forward.1} parent=145 // pred_fallthru
          _
        // Predicated region
        $region199: #{ipcrnet_forward.1} parent=145 // pred_check
          %p984 = pneg %p339
        $region200: #{ipcrnet_forward.1} parent=145 // pred_check_branch
          %986 = sbr.rel (%p984) target = $region202
        $region201: #{ipcrnet_forward.1} parent=145 // pred_region
          %987 = dma.done [#allocation22], 65536
        $region202: #{ipcrnet_forward.1} parent=145 // pred_fallthru
          _
        // Predicated region
        $region203: #{ipcrnet_forward.1} parent=145 // pred_check
          %p988 = pneg %p360
        $region204: #{ipcrnet_forward.1} parent=145 // pred_check_branch
          %990 = sbr.rel (%p988) target = $region206
        $region205: #{ipcrnet_forward.1} parent=145 // pred_region
          %991 = dma.done [#allocation25], 128
        $region206: #{ipcrnet_forward.1} parent=145 // pred_fallthru
          _
        // Predicated region
        $region207: #{ipcrnet_forward.1} parent=145 // pred_check
          %p992 = pneg %p381
        $region208: #{ipcrnet_forward.1} parent=145 // pred_check_branch
          %994 = sbr.rel (%p992) target = $region210
        $region209: #{ipcrnet_forward.1} parent=145 // pred_region
          %995 = dma.done [#allocation25], 32768
        $region210: #{ipcrnet_forward.1} parent=145 // pred_fallthru
          _
        // Predicated region
        $region211: #{ipcrnet_forward.1} parent=145 // pred_check
          %p996 = pneg %p402
        $region212: #{ipcrnet_forward.1} parent=145 // pred_check_branch
          %998 = sbr.rel (%p996) target = $region214
        $region213: #{ipcrnet_forward.1} parent=145 // pred_region
          %999 = dma.done [#allocation28], 64
        $region214: #{ipcrnet_forward.1} parent=145 // pred_fallthru
          _
        // Predicated region
        $region215: #{ipcrnet_forward.1} parent=145 // pred_check
          %p1000 = pneg %p423
        $region216: #{ipcrnet_forward.1} parent=145 // pred_check_branch
          %1002 = sbr.rel (%p1000) target = $region218
        $region217: #{ipcrnet_forward.1} parent=145 // pred_region
          %1003 = dma.done [#allocation28], 16384
        $region218: #{ipcrnet_forward.1} parent=145 // pred_fallthru
          _
        // Predicated region
        $region219: #{ipcrnet_forward.1} parent=145 // pred_check
          %p1004 = pneg %p444
        $region220: #{ipcrnet_forward.1} parent=145 // pred_check_branch
          %1006 = sbr.rel (%p1004) target = $region222
        $region221: #{ipcrnet_forward.1} parent=145 // pred_region
          %1007 = dma.done [#allocation31], 64
        $region222: #{ipcrnet_forward.1} parent=145 // pred_fallthru
          _
        // Predicated region
        $region223: #{ipcrnet_forward.1} parent=145 // pred_check
          %p1008 = pneg %p465
        $region224: #{ipcrnet_forward.1} parent=145 // pred_check_branch
          %1010 = sbr.rel (%p1008) target = $region226
        $region225: #{ipcrnet_forward.1} parent=145 // pred_region
          %1011 = dma.done [#allocation31], 8192
        $region226: #{ipcrnet_forward.1} parent=145 // pred_fallthru
          _
        // Predicated region
        $region227: #{ipcrnet_forward.1} parent=145 // pred_check
          %p1012 = pneg %p486
        $region228: #{ipcrnet_forward.1} parent=145 // pred_check_branch
          %1014 = sbr.rel (%p1012) target = $region230
        $region229: #{ipcrnet_forward.1} parent=145 // pred_region
          %1015 = dma.done [#allocation34], 32
        $region230: #{ipcrnet_forward.1} parent=145 // pred_fallthru
          _
        // Predicated region
        $region231: #{ipcrnet_forward.1} parent=145 // pred_check
          %p1016 = pneg %p528
        $region232: #{ipcrnet_forward.1} parent=145 // pred_check_branch
          %1018 = sbr.rel (%p1016) target = $region234
        $region233: #{ipcrnet_forward.1} parent=145 // pred_region
          %1019 = dma.done [#allocation34], 16
        $region234: #{ipcrnet_forward.1} parent=145 // pred_fallthru
          _
        %s1020 = sand.u32 %s53, 1
        %s1021 = sand.u32 %s53, 1
        %s1022 = smul.addr %s1021, 128
        %s1023 = scalar_lea.vmem [#allocation3], %s1022
        %p1024 = pneg %p66
        %p1025 = pneg %p63
        %p1026 = pneg %p87
        %p1027 = pneg %p84
        %p1028 = pneg %p108
        %p1029 = pneg %p105
        %p1030 = pneg %p129
        %p1031 = pneg %p126
        %p1032 = pneg %p150
        %p1033 = pneg %p147
        %p1034 = pneg %p171
        %p1035 = pneg %p168
        %p1036 = pneg %p192
        %p1037 = pneg %p189
        %p1038 = pneg %p213
        %p1039 = pneg %p210
        %p1040 = pneg %p234
        %p1041 = pneg %p231
        %p1042 = pneg %p255
        %p1043 = pneg %p252
        %p1044 = pneg %p276
        %p1045 = pneg %p273
        %p1046 = pneg %p297
        %p1047 = pneg %p294
        %p1048 = pneg %p318
        %p1049 = pneg %p315
        %p1050 = pneg %p339
        %p1051 = pneg %p336
        %p1052 = pneg %p360
        %p1053 = pneg %p357
        %p1054 = pneg %p381
        %p1055 = pneg %p378
        %p1056 = pneg %p402
        %p1057 = pneg %p399
        %p1058 = pneg %p423
        %p1059 = pneg %p420
        %p1060 = pneg %p444
        %p1061 = pneg %p441
        %p1062 = pneg %p465
        %p1063 = pneg %p462
        %p1064 = pneg %p486
        %p1065 = pneg %p483
        %p1066 = pneg %p507
        %p1067 = pneg %p504
        %p1068 = pneg %p528
        %p1069 = pneg %p525
        %p1070 = pneg %p549
        %p1071 = pneg %p546
        %s1072 = smul.u32 4, %s45
        %p1074 = scmp.eq.s32.totalorder %s45, 0
        // Predicated region
        $region235: #{ipcrnet_forward.1} parent=145 // pred_check
          %p1075 = pneg %p1074
        $region236: #{ipcrnet_forward.1} parent=145 // pred_check_branch
          %1077 = sbr.rel (%p1075) target = $region238
        $region237: #{ipcrnet_forward.1} parent=145 // pred_region
          %1078 = vst [vmem:[#allocation2] sm:$0xff] -inf
        $region238: #{ipcrnet_forward.1} parent=145 // pred_fallthru
          _
        %v1079 = vld [vmem:[%s932] sm:$0xff]
        %v1080 = vld [vmem:[%s932 + $0x8] sm:$0xff]
        %v1081 = vld [vmem:[%s932 + $0x10] sm:$0xff]
        %v1082 = vld [vmem:[%s932 + $0x18] sm:$0xff]
        %v1083 = vld [vmem:[%s932 + $0x20] sm:$0xff]
        %v1084 = vld [vmem:[%s932 + $0x28] sm:$0xff]
        %v1085 = vld [vmem:[%s932 + $0x30] sm:$0xff]
        %v1086 = vld [vmem:[%s932 + $0x38] sm:$0xff]
        %v1087 = vld [vmem:[%s932 + $0x40] sm:$0xff]
        %v1088 = vld [vmem:[%s932 + $0x48] sm:$0xff]
        %v1089 = vld [vmem:[%s932 + $0x50] sm:$0xff]
        %v1090 = vld [vmem:[%s932 + $0x58] sm:$0xff]
        %v1091 = vld [vmem:[%s932 + $0x60] sm:$0xff]
        %v1092 = vld [vmem:[%s932 + $0x68] sm:$0xff]
        %v1093 = vld [vmem:[%s932 + $0x70] sm:$0xff]
        %v1094 = vld [vmem:[%s932 + $0x78] sm:$0xff]
        %v1095 = vld [vmem:[#allocation4] sm:$0x3]
        %v1096 = vunpack.c.l.bf16 %v1095
        %v1097 = vld [vmem:[#allocation6] sm:$0x1]
        %v1098 = vunpack.c.l.bf16 %v1097
        %1100 = vset.pattern.permute.xlu0 0
        %1101 = vperm.xlu0 %1100, %v1079
        %v1102 = vpop.permute.xlu0 %1101
        %1105 = vset.pattern.permute.xlu0 0
        %1106 = vperm.xlu0 %1105, %v1080
        %v1107 = vpop.permute.xlu0 %1106
        %1110 = vset.pattern.permute.xlu0 0
        %1111 = vperm.xlu0 %1110, %v1081
        %v1112 = vpop.permute.xlu0 %1111
        %1115 = vset.pattern.permute.xlu0 0
        %1116 = vperm.xlu0 %1115, %v1082
        %v1117 = vpop.permute.xlu0 %1116
        %1120 = vset.pattern.permute.xlu0 0
        %1121 = vperm.xlu0 %1120, %v1083
        %v1122 = vpop.permute.xlu0 %1121
        %1125 = vset.pattern.permute.xlu0 0
        %1126 = vperm.xlu0 %1125, %v1084
        %v1127 = vpop.permute.xlu0 %1126
        %1130 = vset.pattern.permute.xlu0 0
        %1131 = vperm.xlu0 %1130, %v1085
        %v1132 = vpop.permute.xlu0 %1131
        %1135 = vset.pattern.permute.xlu0 0
        %1136 = vperm.xlu0 %1135, %v1086
        %v1137 = vpop.permute.xlu0 %1136
        %1140 = vset.pattern.permute.xlu0 0
        %1141 = vperm.xlu0 %1140, %v1087
        %v1142 = vpop.permute.xlu0 %1141
        %1145 = vset.pattern.permute.xlu0 0
        %1146 = vperm.xlu0 %1145, %v1088
        %v1147 = vpop.permute.xlu0 %1146
        %1150 = vset.pattern.permute.xlu0 0
        %1151 = vperm.xlu0 %1150, %v1089
        %v1152 = vpop.permute.xlu0 %1151
        %1155 = vset.pattern.permute.xlu0 0
        %1156 = vperm.xlu0 %1155, %v1090
        %v1157 = vpop.permute.xlu0 %1156
        %1160 = vset.pattern.permute.xlu0 0
        %1161 = vperm.xlu0 %1160, %v1091
        %v1162 = vpop.permute.xlu0 %1161
        %1165 = vset.pattern.permute.xlu0 0
        %1166 = vperm.xlu0 %1165, %v1092
        %v1167 = vpop.permute.xlu0 %1166
        %1170 = vset.pattern.permute.xlu0 0
        %1171 = vperm.xlu0 %1170, %v1093
        %v1172 = vpop.permute.xlu0 %1171
        %1175 = vset.pattern.permute.xlu0 0
        %1176 = vperm.xlu0 %1175, %v1094
        %v1177 = vpop.permute.xlu0 %1176
        %v1179 = vlaneseq
        %v1180 = vshrl.u32 %v1179, 7
        %v1181 = vsub.s32 0, %v1180
        %v1182 = vrot.slane %v1096, %v1181
        %v1183 = vmul.f32 %v1102, %v1182
        %v1184 = vmul.f32 %v1107, %v1182
        %v1185 = vmul.f32 %v1112, %v1182
        %v1186 = vmul.f32 %v1117, %v1182
        %v1187 = vmul.f32 %v1122, %v1182
        %v1188 = vmul.f32 %v1127, %v1182
        %v1189 = vmul.f32 %v1132, %v1182
        %v1190 = vmul.f32 %v1137, %v1182
        %v1191 = vmul.f32 %v1142, %v1182
        %v1192 = vmul.f32 %v1147, %v1182
        %v1193 = vmul.f32 %v1152, %v1182
        %v1194 = vmul.f32 %v1157, %v1182
        %v1195 = vmul.f32 %v1162, %v1182
        %v1196 = vmul.f32 %v1167, %v1182
        %v1197 = vmul.f32 %v1172, %v1182
        %v1198 = vmul.f32 %v1177, %v1182
        %1199 = vset.pattern.permute.xlu0 1
        %1200 = vperm.xlu0 %1199, %v1079
        %v1201 = vpop.permute.xlu0 %1200
        %1203 = vset.pattern.permute.xlu0 1
        %1204 = vperm.xlu0 %1203, %v1080
        %v1205 = vpop.permute.xlu0 %1204
        %1207 = vset.pattern.permute.xlu0 1
        %1208 = vperm.xlu0 %1207, %v1081
        %v1209 = vpop.permute.xlu0 %1208
        %1211 = vset.pattern.permute.xlu0 1
        %1212 = vperm.xlu0 %1211, %v1082
        %v1213 = vpop.permute.xlu0 %1212
        %1215 = vset.pattern.permute.xlu0 1
        %1216 = vperm.xlu0 %1215, %v1083
        %v1217 = vpop.permute.xlu0 %1216
        %1219 = vset.pattern.permute.xlu0 1
        %1220 = vperm.xlu0 %1219, %v1084
        %v1221 = vpop.permute.xlu0 %1220
        %1223 = vset.pattern.permute.xlu0 1
        %1224 = vperm.xlu0 %1223, %v1085
        %v1225 = vpop.permute.xlu0 %1224
        %1227 = vset.pattern.permute.xlu0 1
        %1228 = vperm.xlu0 %1227, %v1086
        %v1229 = vpop.permute.xlu0 %1228
        %1231 = vset.pattern.permute.xlu0 1
        %1232 = vperm.xlu0 %1231, %v1087
        %v1233 = vpop.permute.xlu0 %1232
        %1235 = vset.pattern.permute.xlu0 1
        %1236 = vperm.xlu0 %1235, %v1088
        %v1237 = vpop.permute.xlu0 %1236
        %1239 = vset.pattern.permute.xlu0 1
        %1240 = vperm.xlu0 %1239, %v1089
        %v1241 = vpop.permute.xlu0 %1240
        %1243 = vset.pattern.permute.xlu0 1
        %1244 = vperm.xlu0 %1243, %v1090
        %v1245 = vpop.permute.xlu0 %1244
        %1247 = vset.pattern.permute.xlu0 1
        %1248 = vperm.xlu0 %1247, %v1091
        %v1249 = vpop.permute.xlu0 %1248
        %1251 = vset.pattern.permute.xlu0 1
        %1252 = vperm.xlu0 %1251, %v1092
        %v1253 = vpop.permute.xlu0 %1252
        %1255 = vset.pattern.permute.xlu0 1
        %1256 = vperm.xlu0 %1255, %v1093
        %v1257 = vpop.permute.xlu0 %1256
        %1259 = vset.pattern.permute.xlu0 1
        %1260 = vperm.xlu0 %1259, %v1094
        %v1261 = vpop.permute.xlu0 %1260
        %v1263 = vlaneseq
        %v1264 = vshrl.u32 %v1263, 7
        %v1265 = vsub.s32 1, %v1264
        %v1266 = vrot.slane %v1096, %v1265
        %v1267 = vmul.f32 %v1201, %v1266
        %v1268 = vmul.f32 %v1205, %v1266
        %v1269 = vmul.f32 %v1209, %v1266
        %v1270 = vmul.f32 %v1213, %v1266
        %v1271 = vmul.f32 %v1217, %v1266
        %v1272 = vmul.f32 %v1221, %v1266
        %v1273 = vmul.f32 %v1225, %v1266
        %v1274 = vmul.f32 %v1229, %v1266
        %v1275 = vmul.f32 %v1233, %v1266
        %v1276 = vmul.f32 %v1237, %v1266
        %v1277 = vmul.f32 %v1241, %v1266
        %v1278 = vmul.f32 %v1245, %v1266
        %v1279 = vmul.f32 %v1249, %v1266
        %v1280 = vmul.f32 %v1253, %v1266
        %v1281 = vmul.f32 %v1257, %v1266
        %v1282 = vmul.f32 %v1261, %v1266
        %v1283 = vadd.f32 %v1183, %v1267
        %v1284 = vadd.f32 %v1184, %v1268
        %v1285 = vadd.f32 %v1185, %v1269
        %v1286 = vadd.f32 %v1186, %v1270
        %v1287 = vadd.f32 %v1187, %v1271
        %v1288 = vadd.f32 %v1188, %v1272
        %v1289 = vadd.f32 %v1189, %v1273
        %v1290 = vadd.f32 %v1190, %v1274
        %v1291 = vadd.f32 %v1191, %v1275
        %v1292 = vadd.f32 %v1192, %v1276
        %v1293 = vadd.f32 %v1193, %v1277
        %v1294 = vadd.f32 %v1194, %v1278
        %v1295 = vadd.f32 %v1195, %v1279
        %v1296 = vadd.f32 %v1196, %v1280
        %v1297 = vadd.f32 %v1197, %v1281
        %v1298 = vadd.f32 %v1198, %v1282
        %1299 = vset.pattern.permute.xlu0 2
        %1300 = vperm.xlu0 %1299, %v1079
        %v1301 = vpop.permute.xlu0 %1300
        %1303 = vset.pattern.permute.xlu0 2
        %1304 = vperm.xlu0 %1303, %v1080
        %v1305 = vpop.permute.xlu0 %1304
        %1307 = vset.pattern.permute.xlu0 2
        %1308 = vperm.xlu0 %1307, %v1081
        %v1309 = vpop.permute.xlu0 %1308
        %1311 = vset.pattern.permute.xlu0 2
        %1312 = vperm.xlu0 %1311, %v1082
        %v1313 = vpop.permute.xlu0 %1312
        %1315 = vset.pattern.permute.xlu0 2
        %1316 = vperm.xlu0 %1315, %v1083
        %v1317 = vpop.permute.xlu0 %1316
        %1319 = vset.pattern.permute.xlu0 2
        %1320 = vperm.xlu0 %1319, %v1084
        %v1321 = vpop.permute.xlu0 %1320
        %1323 = vset.pattern.permute.xlu0 2
        %1324 = vperm.xlu0 %1323, %v1085
        %v1325 = vpop.permute.xlu0 %1324
        %1327 = vset.pattern.permute.xlu0 2
        %1328 = vperm.xlu0 %1327, %v1086
        %v1329 = vpop.permute.xlu0 %1328
        %1331 = vset.pattern.permute.xlu0 2
        %1332 = vperm.xlu0 %1331, %v1087
        %v1333 = vpop.permute.xlu0 %1332
        %1335 = vset.pattern.permute.xlu0 2
        %1336 = vperm.xlu0 %1335, %v1088
        %v1337 = vpop.permute.xlu0 %1336
        %1339 = vset.pattern.permute.xlu0 2
        %1340 = vperm.xlu0 %1339, %v1089
        %v1341 = vpop.permute.xlu0 %1340
        %1343 = vset.pattern.permute.xlu0 2
        %1344 = vperm.xlu0 %1343, %v1090
        %v1345 = vpop.permute.xlu0 %1344
        %1347 = vset.pattern.permute.xlu0 2
        %1348 = vperm.xlu0 %1347, %v1091
        %v1349 = vpop.permute.xlu0 %1348
        %1351 = vset.pattern.permute.xlu0 2
        %1352 = vperm.xlu0 %1351, %v1092
        %v1353 = vpop.permute.xlu0 %1352
        %1355 = vset.pattern.permute.xlu0 2
        %1356 = vperm.xlu0 %1355, %v1093
        %v1357 = vpop.permute.xlu0 %1356
        %1359 = vset.pattern.permute.xlu0 2
        %1360 = vperm.xlu0 %1359, %v1094
        %v1361 = vpop.permute.xlu0 %1360
        %v1363 = vlaneseq
        %v1364 = vshrl.u32 %v1363, 7
        %v1365 = vsub.s32 2, %v1364
        %v1366 = vrot.slane %v1096, %v1365
        %v1367 = vmul.f32 %v1301, %v1366
        %v1368 = vmul.f32 %v1305, %v1366
        %v1369 = vmul.f32 %v1309, %v1366
        %v1370 = vmul.f32 %v1313, %v1366
        %v1371 = vmul.f32 %v1317, %v1366
        %v1372 = vmul.f32 %v1321, %v1366
        %v1373 = vmul.f32 %v1325, %v1366
        %v1374 = vmul.f32 %v1329, %v1366
        %v1375 = vmul.f32 %v1333, %v1366
        %v1376 = vmul.f32 %v1337, %v1366
        %v1377 = vmul.f32 %v1341, %v1366
        %v1378 = vmul.f32 %v1345, %v1366
        %v1379 = vmul.f32 %v1349, %v1366
        %v1380 = vmul.f32 %v1353, %v1366
        %v1381 = vmul.f32 %v1357, %v1366
        %v1382 = vmul.f32 %v1361, %v1366
        %v1383 = vadd.f32 %v1283, %v1367
        %v1384 = vadd.f32 %v1284, %v1368
        %v1385 = vadd.f32 %v1285, %v1369
        %v1386 = vadd.f32 %v1286, %v1370
        %v1387 = vadd.f32 %v1287, %v1371
        %v1388 = vadd.f32 %v1288, %v1372
        %v1389 = vadd.f32 %v1289, %v1373
        %v1390 = vadd.f32 %v1290, %v1374
        %v1391 = vadd.f32 %v1291, %v1375
        %v1392 = vadd.f32 %v1292, %v1376
        %v1393 = vadd.f32 %v1293, %v1377
        %v1394 = vadd.f32 %v1294, %v1378
        %v1395 = vadd.f32 %v1295, %v1379
        %v1396 = vadd.f32 %v1296, %v1380
        %v1397 = vadd.f32 %v1297, %v1381
        %v1398 = vadd.f32 %v1298, %v1382
        %v1399 = vlaneseq
        %v1400 = vshrl.u32 %v1399, 7
        %v1401 = vsub.s32 0, %v1400
        %v1402 = vrot.slane %v1098, %v1401
        %v1403 = vadd.f32 %v1383, %v1402
        %v1404 = vadd.f32 %v1384, %v1402
        %v1405 = vadd.f32 %v1385, %v1402
        %v1406 = vadd.f32 %v1386, %v1402
        %v1407 = vadd.f32 %v1387, %v1402
        %v1408 = vadd.f32 %v1388, %v1402
        %v1409 = vadd.f32 %v1389, %v1402
        %v1410 = vadd.f32 %v1390, %v1402
        %v1411 = vadd.f32 %v1391, %v1402
        %v1412 = vadd.f32 %v1392, %v1402
        %v1413 = vadd.f32 %v1393, %v1402
        %v1414 = vadd.f32 %v1394, %v1402
        %v1415 = vadd.f32 %v1395, %v1402
        %v1416 = vadd.f32 %v1396, %v1402
        %v1417 = vadd.f32 %v1397, %v1402
        %v1418 = vadd.f32 %v1398, %v1402
        %v1419 = vmax.f32 %v1403, 0.0
        %v1420 = vmax.f32 %v1404, 0.0
        %v1421 = vmax.f32 %v1405, 0.0
        %v1422 = vmax.f32 %v1406, 0.0
        %v1423 = vmax.f32 %v1407, 0.0
        %v1424 = vmax.f32 %v1408, 0.0
        %v1425 = vmax.f32 %v1409, 0.0
        %v1426 = vmax.f32 %v1410, 0.0
        %v1427 = vmax.f32 %v1411, 0.0
        %v1428 = vmax.f32 %v1412, 0.0
        %v1429 = vmax.f32 %v1413, 0.0
        %v1430 = vmax.f32 %v1414, 0.0
        %v1431 = vmax.f32 %v1415, 0.0
        %v1432 = vmax.f32 %v1416, 0.0
        %v1433 = vmax.f32 %v1417, 0.0
        %v1434 = vmax.f32 %v1418, 0.0
        %v1435 = vpack.c.bf16 %v1420, %v1419
        %v1436 = vpack.c.bf16 %v1422, %v1421
        %v1437 = vpack.c.bf16 %v1424, %v1423
        %v1438 = vpack.c.bf16 %v1426, %v1425
        %v1439 = vpack.c.bf16 %v1428, %v1427
        %v1440 = vpack.c.bf16 %v1430, %v1429
        %v1441 = vpack.c.bf16 %v1432, %v1431
        %v1442 = vpack.c.bf16 %v1434, %v1433
        %v1443 = vld [vmem:[#allocation8] sm:$0xf]
        %v1444 = vld [vmem:[#allocation8 + $0x4] sm:$0xf]
        %v1445 = vld [vmem:[#allocation8 + $0x8] sm:$0xf]
        %v1446 = vld [vmem:[#allocation8 + $0xc] sm:$0xf]
        %v1447 = vld [vmem:[#allocation8 + $0x10] sm:$0xf]
        %v1448 = vld [vmem:[#allocation8 + $0x14] sm:$0xf]
        %v1449 = vld [vmem:[#allocation8 + $0x18] sm:$0xf]
        %v1450 = vld [vmem:[#allocation8 + $0x1c] sm:$0xf]
        %v1451 = vld [vmem:[#allocation9] sm:$0x1]
        %v1452 = vunpack.c.l.bf16 %v1451
        %v1453 = vlaneseq
        %v1454 = vshrl.u32 %v1453, 7
        %v1455 = vsub.s32 0, %v1454
        %v1456 = vrot.slane %v1452, %v1455
        %v1465 = vunpack.c.l.b16 %v1443
        %v1466 = vunpack.c.l.b16 %v1444
        %v1467 = vunpack.c.l.b16 %v1445
        %v1468 = vunpack.c.l.b16 %v1446
        %v1469 = vunpack.c.l.b16 %v1447
        %v1470 = vunpack.c.l.b16 %v1448
        %v1471 = vunpack.c.l.b16 %v1449
        %v1472 = vunpack.c.l.b16 %v1450
        %v1473 = vpack.c.b16 %v1466, %v1465
        %v1474 = vpack.c.b16 %v1468, %v1467
        %v1475 = vpack.c.b16 %v1470, %v1469
        %v1476 = vpack.c.b16 %v1472, %v1471
        %vm1481 = vcmask 523264
        %v1483 = vsel %vm1481, %v1435, 0
        %v1486 = vsel %vm1481, %v1436, 0
        %v1489 = vsel %vm1481, %v1437, 0
        %v1492 = vsel %vm1481, %v1438, 0
        %v1495 = vsel %vm1481, %v1439, 0
        %v1498 = vsel %vm1481, %v1440, 0
        %v1501 = vsel %vm1481, %v1441, 0
        %v1504 = vsel %vm1481, %v1442, 0
        %1506 = vmatprep.subr.bf16.mxu0 0
        %1507 = vmatpush1.bf16.msra.mxu0 %v1473
        %1508 = vmatprep.subr.bf16.mxu0 0
        %1509 = vmatpush1.bf16.msra.mxu0 %v1474
        %1510 = vmatprep.subr.bf16.mxu0 0
        %1511 = vmatpush1.bf16.msra.mxu0 %v1475
        %1512 = vmatprep.subr.bf16.mxu0 0
        %1513 = vmatpush1.bf16.msra.mxu0 %v1476
        %1514 = vmatprep.subr.bf16.mxu0 0
        %1515 = vmatpush1.bf16.msra.mxu0 0
        %1516 = vmatprep.subr.bf16.mxu0 0
        %1517 = vmatpush1.bf16.msra.mxu0 0
        %1518 = vmatprep.subr.bf16.mxu0 0
        %1519 = vmatpush1.bf16.msra.mxu0 0
        %1520 = vmatprep.subr.bf16.mxu0 0
        %1521 = vmatpush1.bf16.msra.mxu0 0
        %1522 = vmatprep.subr.bf16.mxu0 0
        %1523 = vmatpush1.bf16.msra.mxu0 0
        %1524 = vmatprep.subr.bf16.mxu0 0
        %1525 = vmatpush1.bf16.msra.mxu0 0
        %1526 = vmatprep.subr.bf16.mxu0 0
        %1527 = vmatpush1.bf16.msra.mxu0 0
        %1528 = vmatprep.subr.bf16.mxu0 0
        %1529 = vmatpush1.bf16.msra.mxu0 0
        %1530 = vmatprep.subr.bf16.mxu0 0
        %1531 = vmatpush1.bf16.msra.mxu0 0
        %1532 = vmatprep.subr.bf16.mxu0 0
        %1533 = vmatpush1.bf16.msra.mxu0 0
        %1534 = vmatprep.subr.bf16.mxu0 0
        %1535 = vmatpush1.bf16.msra.mxu0 0
        %1536 = vmatprep.subr.bf16.mxu0 0
        %1537 = vmatpush1.bf16.msra.mxu0 0
        %1538 = vmatprep.mubr.bf16.mxu0 0
        %1539 = vmatmul.mubr.bf16.gmra.mrb[0].mxu0 %v1483
        %v1540 = vpop.f32.mrb[0].mxu0
        %v1541 = vadd.f32 %v1456, %v1540
        %v1542 = vpop.f32.mrb[0].mxu0
        %v1543 = vpop.f32.mrb[0].mxu0
        %v1544 = vadd.f32 %v1456, %v1543
        %v1545 = vpop.f32.mrb[0].mxu0
        %1546 = vmatprep.mubr.bf16.mxu0 0
        %1547 = vmatmul.mubr.bf16.gmra.mrb[0].mxu0 %v1486
        %v1548 = vpop.f32.mrb[0].mxu0
        %v1549 = vadd.f32 %v1456, %v1548
        %v1550 = vpop.f32.mrb[0].mxu0
        %v1551 = vpop.f32.mrb[0].mxu0
        %v1552 = vadd.f32 %v1456, %v1551
        %v1553 = vpop.f32.mrb[0].mxu0
        %1554 = vmatprep.mubr.bf16.mxu0 0
        %1555 = vmatmul.mubr.bf16.gmra.mrb[0].mxu0 %v1489
        %v1556 = vpop.f32.mrb[0].mxu0
        %v1557 = vadd.f32 %v1456, %v1556
        %v1558 = vpop.f32.mrb[0].mxu0
        %v1559 = vpop.f32.mrb[0].mxu0
        %v1560 = vadd.f32 %v1456, %v1559
        %v1561 = vpop.f32.mrb[0].mxu0
        %1562 = vmatprep.mubr.bf16.mxu0 0
        %1563 = vmatmul.mubr.bf16.gmra.mrb[0].mxu0 %v1492
        %v1564 = vpop.f32.mrb[0].mxu0
        %v1565 = vadd.f32 %v1456, %v1564
        %v1566 = vpop.f32.mrb[0].mxu0
        %v1567 = vpop.f32.mrb[0].mxu0
        %v1568 = vadd.f32 %v1456, %v1567
        %v1569 = vpop.f32.mrb[0].mxu0
        %1570 = vmatprep.mubr.bf16.mxu0 0
        %1571 = vmatmul.mubr.bf16.gmra.mrb[0].mxu0 %v1495
        %v1572 = vpop.f32.mrb[0].mxu0
        %v1573 = vadd.f32 %v1456, %v1572
        %v1574 = vpop.f32.mrb[0].mxu0
        %v1575 = vpop.f32.mrb[0].mxu0
        %v1576 = vadd.f32 %v1456, %v1575
        %v1577 = vpop.f32.mrb[0].mxu0
        %1578 = vmatprep.mubr.bf16.mxu0 0
        %1579 = vmatmul.mubr.bf16.gmra.mrb[0].mxu0 %v1498
        %v1580 = vpop.f32.mrb[0].mxu0
        %v1581 = vadd.f32 %v1456, %v1580
        %v1582 = vpop.f32.mrb[0].mxu0
        %v1583 = vpop.f32.mrb[0].mxu0
        %v1584 = vadd.f32 %v1456, %v1583
        %v1585 = vpop.f32.mrb[0].mxu0
        %1586 = vmatprep.mubr.bf16.mxu0 0
        %1587 = vmatmul.mubr.bf16.gmra.mrb[0].mxu0 %v1501
        %v1588 = vpop.f32.mrb[0].mxu0
        %v1589 = vadd.f32 %v1456, %v1588
        %v1590 = vpop.f32.mrb[0].mxu0
        %v1591 = vpop.f32.mrb[0].mxu0
        %v1592 = vadd.f32 %v1456, %v1591
        %v1593 = vpop.f32.mrb[0].mxu0
        %1594 = vmatprep.mubr.bf16.mxu0 0
        %1595 = vmatmul.mubr.bf16.gmra.mrb[0].mxu0 %v1504
        %v1596 = vpop.f32.mrb[0].mxu0
        %v1597 = vadd.f32 %v1456, %v1596
        %v1598 = vpop.f32.mrb[0].mxu0
        %v1599 = vpop.f32.mrb[0].mxu0
        %v1600 = vadd.f32 %v1456, %v1599
        %v1601 = vpop.f32.mrb[0].mxu0
        %1602 = vdwg.mxu0
        %v1603 = vmax.f32 %v1541, 0.0
        %v1604 = vmax.f32 %v1544, 0.0
        %v1605 = vmax.f32 %v1549, 0.0
        %v1606 = vmax.f32 %v1552, 0.0
        %v1607 = vmax.f32 %v1557, 0.0
        %v1608 = vmax.f32 %v1560, 0.0
        %v1609 = vmax.f32 %v1565, 0.0
        %v1610 = vmax.f32 %v1568, 0.0
        %v1611 = vmax.f32 %v1573, 0.0
        %v1612 = vmax.f32 %v1576, 0.0
        %v1613 = vmax.f32 %v1581, 0.0
        %v1614 = vmax.f32 %v1584, 0.0
        %v1615 = vmax.f32 %v1589, 0.0
        %v1616 = vmax.f32 %v1592, 0.0
        %v1617 = vmax.f32 %v1597, 0.0
        %v1618 = vmax.f32 %v1600, 0.0
        %v1619 = vpack.c.bf16 %v1604, %v1603
        %v1620 = vpack.c.bf16 %v1606, %v1605
        %v1621 = vpack.c.bf16 %v1608, %v1607
        %v1622 = vpack.c.bf16 %v1610, %v1609
        %v1623 = vpack.c.bf16 %v1612, %v1611
        %v1624 = vpack.c.bf16 %v1614, %v1613
        %v1625 = vpack.c.bf16 %v1616, %v1615
        %v1626 = vpack.c.bf16 %v1618, %v1617
        %v1627 = vld [vmem:[#allocation11] sm:$0xf]
        %v1628 = vld [vmem:[#allocation11 + $0x4] sm:$0xf]
        %v1629 = vld [vmem:[#allocation11 + $0x8] sm:$0xf]
        %v1630 = vld [vmem:[#allocation11 + $0xc] sm:$0xf]
        %v1631 = vld [vmem:[#allocation11 + $0x10] sm:$0xf]
        %v1632 = vld [vmem:[#allocation11 + $0x14] sm:$0xf]
        %v1633 = vld [vmem:[#allocation11 + $0x18] sm:$0xf]
        %v1634 = vld [vmem:[#allocation11 + $0x1c] sm:$0xf]
        %v1635 = vld [vmem:[#allocation12] sm:$0x1]
        %v1636 = vunpack.c.l.bf16 %v1635
        %v1637 = vlaneseq
        %v1638 = vshrl.u32 %v1637, 7
        %v1639 = vsub.s32 0, %v1638
        %v1640 = vrot.slane %v1636, %v1639
        %v1649 = vunpack.c.l.b16 %v1627
        %v1650 = vunpack.c.l.b16 %v1628
        %v1651 = vunpack.c.l.b16 %v1629
        %v1652 = vunpack.c.l.b16 %v1630
        %v1653 = vunpack.c.l.b16 %v1631
        %v1654 = vunpack.c.l.b16 %v1632
        %v1655 = vunpack.c.l.b16 %v1633
        %v1656 = vunpack.c.l.b16 %v1634
        %v1657 = vpack.c.b16 %v1650, %v1649
        %v1658 = vpack.c.b16 %v1652, %v1651
        %v1659 = vpack.c.b16 %v1654, %v1653
        %v1660 = vpack.c.b16 %v1656, %v1655
        %v1666 = vsel %vm1481, %v1619, 0
        %v1669 = vsel %vm1481, %v1620, 0
        %v1672 = vsel %vm1481, %v1621, 0
        %v1675 = vsel %vm1481, %v1622, 0
        %v1678 = vsel %vm1481, %v1623, 0
        %v1681 = vsel %vm1481, %v1624, 0
        %v1684 = vsel %vm1481, %v1625, 0
        %v1687 = vsel %vm1481, %v1626, 0
        %1689 = vmatprep.subr.bf16.mxu0 0
        %1690 = vmatpush1.bf16.msra.mxu0 %v1657
        %1691 = vmatprep.subr.bf16.mxu0 0
        %1692 = vmatpush1.bf16.msra.mxu0 %v1658
        %1693 = vmatprep.subr.bf16.mxu0 0
        %1694 = vmatpush1.bf16.msra.mxu0 %v1659
        %1695 = vmatprep.subr.bf16.mxu0 0
        %1696 = vmatpush1.bf16.msra.mxu0 %v1660
        %1697 = vmatprep.subr.bf16.mxu0 0
        %1698 = vmatpush1.bf16.msra.mxu0 0
        %1699 = vmatprep.subr.bf16.mxu0 0
        %1700 = vmatpush1.bf16.msra.mxu0 0
        %1701 = vmatprep.subr.bf16.mxu0 0
        %1702 = vmatpush1.bf16.msra.mxu0 0
        %1703 = vmatprep.subr.bf16.mxu0 0
        %1704 = vmatpush1.bf16.msra.mxu0 0
        %1705 = vmatprep.subr.bf16.mxu0 0
        %1706 = vmatpush1.bf16.msra.mxu0 0
        %1707 = vmatprep.subr.bf16.mxu0 0
        %1708 = vmatpush1.bf16.msra.mxu0 0
        %1709 = vmatprep.subr.bf16.mxu0 0
        %1710 = vmatpush1.bf16.msra.mxu0 0
        %1711 = vmatprep.subr.bf16.mxu0 0
        %1712 = vmatpush1.bf16.msra.mxu0 0
        %1713 = vmatprep.subr.bf16.mxu0 0
        %1714 = vmatpush1.bf16.msra.mxu0 0
        %1715 = vmatprep.subr.bf16.mxu0 0
        %1716 = vmatpush1.bf16.msra.mxu0 0
        %1717 = vmatprep.subr.bf16.mxu0 0
        %1718 = vmatpush1.bf16.msra.mxu0 0
        %1719 = vmatprep.subr.bf16.mxu0 0
        %1720 = vmatpush1.bf16.msra.mxu0 0
        %1721 = vmatprep.mubr.bf16.mxu0 0
        %1722 = vmatmul.mubr.bf16.gmra.mrb[0].mxu0 %v1666
        %v1723 = vpop.f32.mrb[0].mxu0
        %v1724 = vadd.f32 %v1640, %v1723
        %v1725 = vpop.f32.mrb[0].mxu0
        %v1726 = vpop.f32.mrb[0].mxu0
        %v1727 = vadd.f32 %v1640, %v1726
        %v1728 = vpop.f32.mrb[0].mxu0
        %1729 = vmatprep.mubr.bf16.mxu0 0
        %1730 = vmatmul.mubr.bf16.gmra.mrb[0].mxu0 %v1669
        %v1731 = vpop.f32.mrb[0].mxu0
        %v1732 = vadd.f32 %v1640, %v1731
        %v1733 = vpop.f32.mrb[0].mxu0
        %v1734 = vpop.f32.mrb[0].mxu0
        %v1735 = vadd.f32 %v1640, %v1734
        %v1736 = vpop.f32.mrb[0].mxu0
        %1737 = vmatprep.mubr.bf16.mxu0 0
        %1738 = vmatmul.mubr.bf16.gmra.mrb[0].mxu0 %v1672
        %v1739 = vpop.f32.mrb[0].mxu0
        %v1740 = vadd.f32 %v1640, %v1739
        %v1741 = vpop.f32.mrb[0].mxu0
        %v1742 = vpop.f32.mrb[0].mxu0
        %v1743 = vadd.f32 %v1640, %v1742
        %v1744 = vpop.f32.mrb[0].mxu0
        %1745 = vmatprep.mubr.bf16.mxu0 0
        %1746 = vmatmul.mubr.bf16.gmra.mrb[0].mxu0 %v1675
        %v1747 = vpop.f32.mrb[0].mxu0
        %v1748 = vadd.f32 %v1640, %v1747
        %v1749 = vpop.f32.mrb[0].mxu0
        %v1750 = vpop.f32.mrb[0].mxu0
        %v1751 = vadd.f32 %v1640, %v1750
        %v1752 = vpop.f32.mrb[0].mxu0
        %1753 = vmatprep.mubr.bf16.mxu0 0
        %1754 = vmatmul.mubr.bf16.gmra.mrb[0].mxu0 %v1678
        %v1755 = vpop.f32.mrb[0].mxu0
        %v1756 = vadd.f32 %v1640, %v1755
        %v1757 = vpop.f32.mrb[0].mxu0
        %v1758 = vpop.f32.mrb[0].mxu0
        %v1759 = vadd.f32 %v1640, %v1758
        %v1760 = vpop.f32.mrb[0].mxu0
        %1761 = vmatprep.mubr.bf16.mxu0 0
        %1762 = vmatmul.mubr.bf16.gmra.mrb[0].mxu0 %v1681
        %v1763 = vpop.f32.mrb[0].mxu0
        %v1764 = vadd.f32 %v1640, %v1763
        %v1765 = vpop.f32.mrb[0].mxu0
        %v1766 = vpop.f32.mrb[0].mxu0
        %v1767 = vadd.f32 %v1640, %v1766
        %v1768 = vpop.f32.mrb[0].mxu0
        %1769 = vmatprep.mubr.bf16.mxu0 0
        %1770 = vmatmul.mubr.bf16.gmra.mrb[0].mxu0 %v1684
        %v1771 = vpop.f32.mrb[0].mxu0
        %v1772 = vadd.f32 %v1640, %v1771
        %v1773 = vpop.f32.mrb[0].mxu0
        %v1774 = vpop.f32.mrb[0].mxu0
        %v1775 = vadd.f32 %v1640, %v1774
        %v1776 = vpop.f32.mrb[0].mxu0
        %1777 = vmatprep.mubr.bf16.mxu0 0
        %1778 = vmatmul.mubr.bf16.gmra.mrb[0].mxu0 %v1687
        %v1779 = vpop.f32.mrb[0].mxu0
        %v1780 = vadd.f32 %v1640, %v1779
        %v1781 = vpop.f32.mrb[0].mxu0
        %v1782 = vpop.f32.mrb[0].mxu0
        %v1783 = vadd.f32 %v1640, %v1782
        %v1784 = vpop.f32.mrb[0].mxu0
        %1785 = vdwg.mxu0
        %v1786 = vmax.f32 %v1724, 0.0
        %v1787 = vmax.f32 %v1727, 0.0
        %v1788 = vmax.f32 %v1732, 0.0
        %v1789 = vmax.f32 %v1735, 0.0
        %v1790 = vmax.f32 %v1740, 0.0
        %v1791 = vmax.f32 %v1743, 0.0
        %v1792 = vmax.f32 %v1748, 0.0
        %v1793 = vmax.f32 %v1751, 0.0
        %v1794 = vmax.f32 %v1756, 0.0
        %v1795 = vmax.f32 %v1759, 0.0
        %v1796 = vmax.f32 %v1764, 0.0
        %v1797 = vmax.f32 %v1767, 0.0
        %v1798 = vmax.f32 %v1772, 0.0
        %v1799 = vmax.f32 %v1775, 0.0
        %v1800 = vmax.f32 %v1780, 0.0
        %v1801 = vmax.f32 %v1783, 0.0
        %v1802 = vpack.c.bf16 %v1787, %v1786
        %v1803 = vpack.c.bf16 %v1789, %v1788
        %v1804 = vpack.c.bf16 %v1791, %v1790
        %v1805 = vpack.c.bf16 %v1793, %v1792
        %v1806 = vpack.c.bf16 %v1795, %v1794
        %v1807 = vpack.c.bf16 %v1797, %v1796
        %v1808 = vpack.c.bf16 %v1799, %v1798
        %v1809 = vpack.c.bf16 %v1801, %v1800
        %v1810 = vld [vmem:[#allocation14] sm:$0xf]
        %v1811 = vld [vmem:[#allocation14 + $0x4] sm:$0xf]
        %v1812 = vld [vmem:[#allocation14 + $0x8] sm:$0xf]
        %v1813 = vld [vmem:[#allocation14 + $0xc] sm:$0xf]
        %v1814 = vld [vmem:[#allocation14 + $0x10] sm:$0xf]
        %v1815 = vld [vmem:[#allocation14 + $0x14] sm:$0xf]
        %v1816 = vld [vmem:[#allocation14 + $0x18] sm:$0xf]
        %v1817 = vld [vmem:[#allocation14 + $0x1c] sm:$0xf]
        %v1818 = vld [vmem:[#allocation15] sm:$0x1]
        %v1819 = vunpack.c.l.bf16 %v1818
        %v1820 = vlaneseq
        %v1821 = vshrl.u32 %v1820, 7
        %v1822 = vsub.s32 0, %v1821
        %v1823 = vrot.slane %v1819, %v1822
        %v1832 = vunpack.c.l.b16 %v1810
        %v1833 = vunpack.c.l.b16 %v1811
        %v1834 = vunpack.c.l.b16 %v1812
        %v1835 = vunpack.c.l.b16 %v1813
        %v1836 = vunpack.c.l.b16 %v1814
        %v1837 = vunpack.c.l.b16 %v1815
        %v1838 = vunpack.c.l.b16 %v1816
        %v1839 = vunpack.c.l.b16 %v1817
        %v1840 = vpack.c.b16 %v1833, %v1832
        %v1841 = vpack.c.b16 %v1835, %v1834
        %v1842 = vpack.c.b16 %v1837, %v1836
        %v1843 = vpack.c.b16 %v1839, %v1838
        %v1849 = vsel %vm1481, %v1802, 0
        %v1852 = vsel %vm1481, %v1803, 0
        %v1855 = vsel %vm1481, %v1804, 0
        %v1858 = vsel %vm1481, %v1805, 0
        %v1861 = vsel %vm1481, %v1806, 0
        %v1864 = vsel %vm1481, %v1807, 0
        %v1867 = vsel %vm1481, %v1808, 0
        %v1870 = vsel %vm1481, %v1809, 0
        %1872 = vmatprep.subr.bf16.mxu0 0
        %1873 = vmatpush1.bf16.msra.mxu0 %v1840
        %1874 = vmatprep.subr.bf16.mxu0 0
        %1875 = vmatpush1.bf16.msra.mxu0 %v1841
        %1876 = vmatprep.subr.bf16.mxu0 0
        %1877 = vmatpush1.bf16.msra.mxu0 %v1842
        %1878 = vmatprep.subr.bf16.mxu0 0
        %1879 = vmatpush1.bf16.msra.mxu0 %v1843
        %1880 = vmatprep.subr.bf16.mxu0 0
        %1881 = vmatpush1.bf16.msra.mxu0 0
        %1882 = vmatprep.subr.bf16.mxu0 0
        %1883 = vmatpush1.bf16.msra.mxu0 0
        %1884 = vmatprep.subr.bf16.mxu0 0
        %1885 = vmatpush1.bf16.msra.mxu0 0
        %1886 = vmatprep.subr.bf16.mxu0 0
        %1887 = vmatpush1.bf16.msra.mxu0 0
        %1888 = vmatprep.subr.bf16.mxu0 0
        %1889 = vmatpush1.bf16.msra.mxu0 0
        %1890 = vmatprep.subr.bf16.mxu0 0
        %1891 = vmatpush1.bf16.msra.mxu0 0
        %1892 = vmatprep.subr.bf16.mxu0 0
        %1893 = vmatpush1.bf16.msra.mxu0 0
        %1894 = vmatprep.subr.bf16.mxu0 0
        %1895 = vmatpush1.bf16.msra.mxu0 0
        %1896 = vmatprep.subr.bf16.mxu0 0
        %1897 = vmatpush1.bf16.msra.mxu0 0
        %1898 = vmatprep.subr.bf16.mxu0 0
        %1899 = vmatpush1.bf16.msra.mxu0 0
        %1900 = vmatprep.subr.bf16.mxu0 0
        %1901 = vmatpush1.bf16.msra.mxu0 0
        %1902 = vmatprep.subr.bf16.mxu0 0
        %1903 = vmatpush1.bf16.msra.mxu0 0
        %1904 = vmatprep.mubr.bf16.mxu0 0
        %1905 = vmatmul.mubr.bf16.gmra.mrb[0].mxu0 %v1849
        %v1906 = vpop.f32.mrb[0].mxu0
        %v1907 = vadd.f32 %v1823, %v1906
        %v1908 = vpop.f32.mrb[0].mxu0
        %v1909 = vpop.f32.mrb[0].mxu0
        %v1910 = vadd.f32 %v1823, %v1909
        %v1911 = vpop.f32.mrb[0].mxu0
        %1912 = vmatprep.mubr.bf16.mxu0 0
        %1913 = vmatmul.mubr.bf16.gmra.mrb[0].mxu0 %v1852
        %v1914 = vpop.f32.mrb[0].mxu0
        %v1915 = vadd.f32 %v1823, %v1914
        %v1916 = vpop.f32.mrb[0].mxu0
        %v1917 = vpop.f32.mrb[0].mxu0
        %v1918 = vadd.f32 %v1823, %v1917
        %v1919 = vpop.f32.mrb[0].mxu0
        %1920 = vmatprep.mubr.bf16.mxu0 0
        %1921 = vmatmul.mubr.bf16.gmra.mrb[0].mxu0 %v1855
        %v1922 = vpop.f32.mrb[0].mxu0
        %v1923 = vadd.f32 %v1823, %v1922
        %v1924 = vpop.f32.mrb[0].mxu0
        %v1925 = vpop.f32.mrb[0].mxu0
        %v1926 = vadd.f32 %v1823, %v1925
        %v1927 = vpop.f32.mrb[0].mxu0
        %1928 = vmatprep.mubr.bf16.mxu0 0
        %1929 = vmatmul.mubr.bf16.gmra.mrb[0].mxu0 %v1858
        %v1930 = vpop.f32.mrb[0].mxu0
        %v1931 = vadd.f32 %v1823, %v1930
        %v1932 = vpop.f32.mrb[0].mxu0
        %v1933 = vpop.f32.mrb[0].mxu0
        %v1934 = vadd.f32 %v1823, %v1933
        %v1935 = vpop.f32.mrb[0].mxu0
        %1936 = vmatprep.mubr.bf16.mxu0 0
        %1937 = vmatmul.mubr.bf16.gmra.mrb[0].mxu0 %v1861
        %v1938 = vpop.f32.mrb[0].mxu0
        %v1939 = vadd.f32 %v1823, %v1938
        %v1940 = vpop.f32.mrb[0].mxu0
        %v1941 = vpop.f32.mrb[0].mxu0
        %v1942 = vadd.f32 %v1823, %v1941
        %v1943 = vpop.f32.mrb[0].mxu0
        %1944 = vmatprep.mubr.bf16.mxu0 0
        %1945 = vmatmul.mubr.bf16.gmra.mrb[0].mxu0 %v1864
        %v1946 = vpop.f32.mrb[0].mxu0
        %v1947 = vadd.f32 %v1823, %v1946
        %v1948 = vpop.f32.mrb[0].mxu0
        %v1949 = vpop.f32.mrb[0].mxu0
        %v1950 = vadd.f32 %v1823, %v1949
        %v1951 = vpop.f32.mrb[0].mxu0
        %1952 = vmatprep.mubr.bf16.mxu0 0
        %1953 = vmatmul.mubr.bf16.gmra.mrb[0].mxu0 %v1867
        %v1954 = vpop.f32.mrb[0].mxu0
        %v1955 = vadd.f32 %v1823, %v1954
        %v1956 = vpop.f32.mrb[0].mxu0
        %v1957 = vpop.f32.mrb[0].mxu0
        %v1958 = vadd.f32 %v1823, %v1957
        %v1959 = vpop.f32.mrb[0].mxu0
        %1960 = vmatprep.mubr.bf16.mxu0 0
        %1961 = vmatmul.mubr.bf16.gmra.mrb[0].mxu0 %v1870
        %v1962 = vpop.f32.mrb[0].mxu0
        %v1963 = vadd.f32 %v1823, %v1962
        %v1964 = vpop.f32.mrb[0].mxu0
        %v1965 = vpop.f32.mrb[0].mxu0
        %v1966 = vadd.f32 %v1823, %v1965
        %v1967 = vpop.f32.mrb[0].mxu0
        %1968 = vdwg.mxu0
        %v1969 = vmax.f32 %v1907, 0.0
        %v1970 = vmax.f32 %v1910, 0.0
        %v1971 = vmax.f32 %v1915, 0.0
        %v1972 = vmax.f32 %v1918, 0.0
        %v1973 = vmax.f32 %v1923, 0.0
        %v1974 = vmax.f32 %v1926, 0.0
        %v1975 = vmax.f32 %v1931, 0.0
        %v1976 = vmax.f32 %v1934, 0.0
        %v1977 = vmax.f32 %v1939, 0.0
        %v1978 = vmax.f32 %v1942, 0.0
        %v1979 = vmax.f32 %v1947, 0.0
        %v1980 = vmax.f32 %v1950, 0.0
        %v1981 = vmax.f32 %v1955, 0.0
        %v1982 = vmax.f32 %v1958, 0.0
        %v1983 = vmax.f32 %v1963, 0.0
        %v1984 = vmax.f32 %v1966, 0.0
        %v1985 = vpack.c.bf16 %v1970, %v1969
        %v1986 = vpack.c.bf16 %v1972, %v1971
        %v1987 = vpack.c.bf16 %v1974, %v1973
        %v1988 = vpack.c.bf16 %v1976, %v1975
        %v1989 = vpack.c.bf16 %v1978, %v1977
        %v1990 = vpack.c.bf16 %v1980, %v1979
        %v1991 = vpack.c.bf16 %v1982, %v1981
        %v1992 = vpack.c.bf16 %v1984, %v1983
        %v1993 = vld [vmem:[#allocation17] sm:$0xff]
        %v1994 = vld [vmem:[#allocation17 + $0x8] sm:$0xff]
        %v1995 = vld [vmem:[#allocation17 + $0x10] sm:$0xff]
        %v1996 = vld [vmem:[#allocation17 + $0x18] sm:$0xff]
        %v1997 = vld [vmem:[#allocation17 + $0x20] sm:$0xff]
        %v1998 = vld [vmem:[#allocation17 + $0x28] sm:$0xff]
        %v1999 = vld [vmem:[#allocation17 + $0x30] sm:$0xff]
        %v2000 = vld [vmem:[#allocation17 + $0x38] sm:$0xff]
        %v2001 = vld [vmem:[#allocation17 + $0x40] sm:$0xff]
        %v2002 = vld [vmem:[#allocation17 + $0x48] sm:$0xff]
        %v2003 = vld [vmem:[#allocation17 + $0x50] sm:$0xff]
        %v2004 = vld [vmem:[#allocation17 + $0x58] sm:$0xff]
        %v2005 = vld [vmem:[#allocation17 + $0x60] sm:$0xff]
        %v2006 = vld [vmem:[#allocation17 + $0x68] sm:$0xff]
        %v2007 = vld [vmem:[#allocation17 + $0x70] sm:$0xff]
        %v2008 = vld [vmem:[#allocation17 + $0x78] sm:$0xff]
        %v2009 = vld [vmem:[#allocation18] sm:$0x3]
        %v2010 = vunpack.c.l.bf16 %v2009
        %v2012 = vlaneseq
        %v2013 = vshrl.u32 %v2012, 7
        %v2014 = vsub.s32 0, %v2013
        %v2015 = vrot.slane %v2010, %v2014
        %v2016 = vlaneseq
        %v2017 = vshrl.u32 %v2016, 7
        %v2018 = vsub.s32 2, %v2017
        %v2019 = vrot.slane %v2010, %v2018
        %v2022 = vlaneseq
        %v2023 = vshrl.u32 %v2022, 7
        %v2024 = vsub.s32 0, %v2023
        %v2025 = vrot.slane %v2015, %v2024
        %v2026 = vlaneseq
        %v2027 = vshrl.u32 %v2026, 7
        %v2028 = vsub.s32 0, %v2027
        %v2029 = vrot.slane %v2019, %v2028
        %v2046 = vunpack.c.l.b16 %v1993
        %v2047 = vunpack.c.h.b16 %v1993
        %v2048 = vunpack.c.l.b16 %v1994
        %v2049 = vunpack.c.h.b16 %v1994
        %v2050 = vunpack.c.l.b16 %v1995
        %v2051 = vunpack.c.h.b16 %v1995
        %v2052 = vunpack.c.l.b16 %v1996
        %v2053 = vunpack.c.h.b16 %v1996
        %v2054 = vunpack.c.l.b16 %v1997
        %v2055 = vunpack.c.h.b16 %v1997
        %v2056 = vunpack.c.l.b16 %v1998
        %v2057 = vunpack.c.h.b16 %v1998
        %v2058 = vunpack.c.l.b16 %v1999
        %v2059 = vunpack.c.h.b16 %v1999
        %v2060 = vunpack.c.l.b16 %v2000
        %v2061 = vunpack.c.h.b16 %v2000
        %v2062 = vunpack.c.l.b16 %v2001
        %v2063 = vunpack.c.h.b16 %v2001
        %v2064 = vunpack.c.l.b16 %v2002
        %v2065 = vunpack.c.h.b16 %v2002
        %v2066 = vunpack.c.l.b16 %v2003
        %v2067 = vunpack.c.h.b16 %v2003
        %v2068 = vunpack.c.l.b16 %v2004
        %v2069 = vunpack.c.h.b16 %v2004
        %v2070 = vunpack.c.l.b16 %v2005
        %v2071 = vunpack.c.h.b16 %v2005
        %v2072 = vunpack.c.l.b16 %v2006
        %v2073 = vunpack.c.h.b16 %v2006
        %v2074 = vunpack.c.l.b16 %v2007
        %v2075 = vunpack.c.h.b16 %v2007
        %v2076 = vunpack.c.l.b16 %v2008
        %v2077 = vunpack.c.h.b16 %v2008
        %v2078 = vpack.c.b16 %v2048, %v2046
        %v2079 = vpack.c.b16 %v2049, %v2047
        %v2080 = vpack.c.b16 %v2052, %v2050
        %v2081 = vpack.c.b16 %v2053, %v2051
        %v2082 = vpack.c.b16 %v2056, %v2054
        %v2083 = vpack.c.b16 %v2057, %v2055
        %v2084 = vpack.c.b16 %v2060, %v2058
        %v2085 = vpack.c.b16 %v2061, %v2059
        %v2086 = vpack.c.b16 %v2064, %v2062
        %v2087 = vpack.c.b16 %v2065, %v2063
        %v2088 = vpack.c.b16 %v2068, %v2066
        %v2089 = vpack.c.b16 %v2069, %v2067
        %v2090 = vpack.c.b16 %v2072, %v2070
        %v2091 = vpack.c.b16 %v2073, %v2071
        %v2092 = vpack.c.b16 %v2076, %v2074
        %v2093 = vpack.c.b16 %v2077, %v2075
        %2110 = vmatprep.subr.bf16.mxu0 %v2079
        %2111 = vmatpush1.bf16.msra.mxu0 %v2078
        %2112 = vmatprep.subr.bf16.mxu0 %v2081
        %2113 = vmatpush1.bf16.msra.mxu0 %v2080
        %2114 = vmatprep.subr.bf16.mxu0 %v2083
        %2115 = vmatpush1.bf16.msra.mxu0 %v2082
        %2116 = vmatprep.subr.bf16.mxu0 %v2085
        %2117 = vmatpush1.bf16.msra.mxu0 %v2084
        %2118 = vmatprep.subr.bf16.mxu0 %v2087
        %2119 = vmatpush1.bf16.msra.mxu0 %v2086
        %2120 = vmatprep.subr.bf16.mxu0 %v2089
        %2121 = vmatpush1.bf16.msra.mxu0 %v2088
        %2122 = vmatprep.subr.bf16.mxu0 %v2091
        %2123 = vmatpush1.bf16.msra.mxu0 %v2090
        %2124 = vmatprep.subr.bf16.mxu0 %v2093
        %2125 = vmatpush1.bf16.msra.mxu0 %v2092
        %2126 = vmatprep.subr.bf16.mxu0 0
        %2127 = vmatpush1.bf16.msra.mxu0 0
        %2128 = vmatprep.subr.bf16.mxu0 0
        %2129 = vmatpush1.bf16.msra.mxu0 0
        %2130 = vmatprep.subr.bf16.mxu0 0
        %2131 = vmatpush1.bf16.msra.mxu0 0
        %2132 = vmatprep.subr.bf16.mxu0 0
        %2133 = vmatpush1.bf16.msra.mxu0 0
        %2134 = vmatprep.subr.bf16.mxu0 0
        %2135 = vmatpush1.bf16.msra.mxu0 0
        %2136 = vmatprep.subr.bf16.mxu0 0
        %2137 = vmatpush1.bf16.msra.mxu0 0
        %2138 = vmatprep.subr.bf16.mxu0 0
        %2139 = vmatpush1.bf16.msra.mxu0 0
        %2140 = vmatprep.subr.bf16.mxu0 0
        %2141 = vmatpush1.bf16.msra.mxu0 0
        %2142 = vmatprep.mubr.bf16.mxu0 0
        %2143 = vmatmul.mubr.bf16.gmra.mrb[0].mxu0 %v1985
        %v2144 = vpop.f32.mrb[0].mxu0
        %v2145 = vadd.f32 %v2025, %v2144
        %v2146 = vpop.f32.mrb[0].mxu0
        %v2147 = vadd.f32 %v2029, %v2146
        %v2148 = vpop.f32.mrb[0].mxu0
        %v2149 = vadd.f32 %v2025, %v2148
        %v2150 = vpop.f32.mrb[0].mxu0
        %v2151 = vadd.f32 %v2029, %v2150
        %2152 = vmatprep.mubr.bf16.mxu0 0
        %2153 = vmatmul.mubr.bf16.gmra.mrb[0].mxu0 %v1986
        %v2154 = vpop.f32.mrb[0].mxu0
        %v2155 = vadd.f32 %v2025, %v2154
        %v2156 = vpop.f32.mrb[0].mxu0
        %v2157 = vadd.f32 %v2029, %v2156
        %v2158 = vpop.f32.mrb[0].mxu0
        %v2159 = vadd.f32 %v2025, %v2158
        %v2160 = vpop.f32.mrb[0].mxu0
        %v2161 = vadd.f32 %v2029, %v2160
        %2162 = vmatprep.mubr.bf16.mxu0 0
        %2163 = vmatmul.mubr.bf16.gmra.mrb[0].mxu0 %v1987
        %v2164 = vpop.f32.mrb[0].mxu0
        %v2165 = vadd.f32 %v2025, %v2164
        %v2166 = vpop.f32.mrb[0].mxu0
        %v2167 = vadd.f32 %v2029, %v2166
        %v2168 = vpop.f32.mrb[0].mxu0
        %v2169 = vadd.f32 %v2025, %v2168
        %v2170 = vpop.f32.mrb[0].mxu0
        %v2171 = vadd.f32 %v2029, %v2170
        %2172 = vmatprep.mubr.bf16.mxu0 0
        %2173 = vmatmul.mubr.bf16.gmra.mrb[0].mxu0 %v1988
        %v2174 = vpop.f32.mrb[0].mxu0
        %v2175 = vadd.f32 %v2025, %v2174
        %v2176 = vpop.f32.mrb[0].mxu0
        %v2177 = vadd.f32 %v2029, %v2176
        %v2178 = vpop.f32.mrb[0].mxu0
        %v2179 = vadd.f32 %v2025, %v2178
        %v2180 = vpop.f32.mrb[0].mxu0
        %v2181 = vadd.f32 %v2029, %v2180
        %2182 = vmatprep.mubr.bf16.mxu0 0
        %2183 = vmatmul.mubr.bf16.gmra.mrb[0].mxu0 %v1989
        %v2184 = vpop.f32.mrb[0].mxu0
        %v2185 = vadd.f32 %v2025, %v2184
        %v2186 = vpop.f32.mrb[0].mxu0
        %v2187 = vadd.f32 %v2029, %v2186
        %v2188 = vpop.f32.mrb[0].mxu0
        %v2189 = vadd.f32 %v2025, %v2188
        %v2190 = vpop.f32.mrb[0].mxu0
        %v2191 = vadd.f32 %v2029, %v2190
        %2192 = vmatprep.mubr.bf16.mxu0 0
        %2193 = vmatmul.mubr.bf16.gmra.mrb[0].mxu0 %v1990
        %v2194 = vpop.f32.mrb[0].mxu0
        %v2195 = vadd.f32 %v2025, %v2194
        %v2196 = vpop.f32.mrb[0].mxu0
        %v2197 = vadd.f32 %v2029, %v2196
        %v2198 = vpop.f32.mrb[0].mxu0
        %v2199 = vadd.f32 %v2025, %v2198
        %v2200 = vpop.f32.mrb[0].mxu0
        %v2201 = vadd.f32 %v2029, %v2200
        %2202 = vmatprep.mubr.bf16.mxu0 0
        %2203 = vmatmul.mubr.bf16.gmra.mrb[0].mxu0 %v1991
        %v2204 = vpop.f32.mrb[0].mxu0
        %v2205 = vadd.f32 %v2025, %v2204
        %v2206 = vpop.f32.mrb[0].mxu0
        %v2207 = vadd.f32 %v2029, %v2206
        %v2208 = vpop.f32.mrb[0].mxu0
        %v2209 = vadd.f32 %v2025, %v2208
        %v2210 = vpop.f32.mrb[0].mxu0
        %v2211 = vadd.f32 %v2029, %v2210
        %2212 = vmatprep.mubr.bf16.mxu0 0
        %2213 = vmatmul.mubr.bf16.gmra.mrb[0].mxu0 %v1992
        %v2214 = vpop.f32.mrb[0].mxu0
        %v2215 = vadd.f32 %v2025, %v2214
        %v2216 = vpop.f32.mrb[0].mxu0
        %v2217 = vadd.f32 %v2029, %v2216
        %v2218 = vpop.f32.mrb[0].mxu0
        %v2219 = vadd.f32 %v2025, %v2218
        %v2220 = vpop.f32.mrb[0].mxu0
        %v2221 = vadd.f32 %v2029, %v2220
        %2222 = vdwg.mxu0
        %v2223 = vmax.f32 %v2145, 0.0
        %v2224 = vmax.f32 %v2147, 0.0
        %v2225 = vmax.f32 %v2149, 0.0
        %v2226 = vmax.f32 %v2151, 0.0
        %v2227 = vmax.f32 %v2155, 0.0
        %v2228 = vmax.f32 %v2157, 0.0
        %v2229 = vmax.f32 %v2159, 0.0
        %v2230 = vmax.f32 %v2161, 0.0
        %v2231 = vmax.f32 %v2165, 0.0
        %v2232 = vmax.f32 %v2167, 0.0
        %v2233 = vmax.f32 %v2169, 0.0
        %v2234 = vmax.f32 %v2171, 0.0
        %v2235 = vmax.f32 %v2175, 0.0
        %v2236 = vmax.f32 %v2177, 0.0
        %v2237 = vmax.f32 %v2179, 0.0
        %v2238 = vmax.f32 %v2181, 0.0
        %v2239 = vmax.f32 %v2185, 0.0
        %v2240 = vmax.f32 %v2187, 0.0
        %v2241 = vmax.f32 %v2189, 0.0
        %v2242 = vmax.f32 %v2191, 0.0
        %v2243 = vmax.f32 %v2195, 0.0
        %v2244 = vmax.f32 %v2197, 0.0
        %v2245 = vmax.f32 %v2199, 0.0
        %v2246 = vmax.f32 %v2201, 0.0
        %v2247 = vmax.f32 %v2205, 0.0
        %v2248 = vmax.f32 %v2207, 0.0
        %v2249 = vmax.f32 %v2209, 0.0
        %v2250 = vmax.f32 %v2211, 0.0
        %v2251 = vmax.f32 %v2215, 0.0
        %v2252 = vmax.f32 %v2217, 0.0
        %v2253 = vmax.f32 %v2219, 0.0
        %v2254 = vmax.f32 %v2221, 0.0
        %v2255 = vld [vmem:[#allocation2] sm:$0xff]
        %v2256 = vmax.f32 %v2223, %v2225
        %v2257 = vmax.f32 %v2256, %v2227
        %v2258 = vmax.f32 %v2257, %v2229
        %v2259 = vrot.slane %v2258, 4
        %v2260 = vmax.f32 %v2258, %v2259
        %v2261 = vrot.slane %v2260, 2
        %v2262 = vmax.f32 %v2260, %v2261
        %v2263 = vrot.slane %v2262, 1
        %v2264 = vmax.f32 %v2262, %v2263
        %v2265 = vmax.f32 %v2224, %v2226
        %v2266 = vmax.f32 %v2265, %v2228
        %v2267 = vmax.f32 %v2266, %v2230
        %v2268 = vrot.slane %v2267, 4
        %v2269 = vmax.f32 %v2267, %v2268
        %v2270 = vrot.slane %v2269, 2
        %v2271 = vmax.f32 %v2269, %v2270
        %v2272 = vrot.slane %v2271, 1
        %v2273 = vmax.f32 %v2271, %v2272
        %v2274 = vmax.f32 %v2231, %v2233
        %v2275 = vmax.f32 %v2274, %v2235
        %v2276 = vmax.f32 %v2275, %v2237
        %v2277 = vrot.slane %v2276, 4
        %v2278 = vmax.f32 %v2276, %v2277
        %v2279 = vrot.slane %v2278, 2
        %v2280 = vmax.f32 %v2278, %v2279
        %v2281 = vrot.slane %v2280, 1
        %v2282 = vmax.f32 %v2280, %v2281
        %v2283 = vmax.f32 %v2232, %v2234
        %v2284 = vmax.f32 %v2283, %v2236
        %v2285 = vmax.f32 %v2284, %v2238
        %v2286 = vrot.slane %v2285, 4
        %v2287 = vmax.f32 %v2285, %v2286
        %v2288 = vrot.slane %v2287, 2
        %v2289 = vmax.f32 %v2287, %v2288
        %v2290 = vrot.slane %v2289, 1
        %v2291 = vmax.f32 %v2289, %v2290
        %v2292 = vmax.f32 %v2239, %v2241
        %v2293 = vmax.f32 %v2292, %v2243
        %v2294 = vmax.f32 %v2293, %v2245
        %v2295 = vrot.slane %v2294, 4
        %v2296 = vmax.f32 %v2294, %v2295
        %v2297 = vrot.slane %v2296, 2
        %v2298 = vmax.f32 %v2296, %v2297
        %v2299 = vrot.slane %v2298, 1
        %v2300 = vmax.f32 %v2298, %v2299
        %v2301 = vmax.f32 %v2240, %v2242
        %v2302 = vmax.f32 %v2301, %v2244
        %v2303 = vmax.f32 %v2302, %v2246
        %v2304 = vrot.slane %v2303, 4
        %v2305 = vmax.f32 %v2303, %v2304
        %v2306 = vrot.slane %v2305, 2
        %v2307 = vmax.f32 %v2305, %v2306
        %v2308 = vrot.slane %v2307, 1
        %v2309 = vmax.f32 %v2307, %v2308
        %v2310 = vmax.f32 %v2247, %v2249
        %v2311 = vmax.f32 %v2310, %v2251
        %v2312 = vmax.f32 %v2311, %v2253
        %v2313 = vrot.slane %v2312, 4
        %v2314 = vmax.f32 %v2312, %v2313
        %v2315 = vrot.slane %v2314, 2
        %v2316 = vmax.f32 %v2314, %v2315
        %v2317 = vrot.slane %v2316, 1
        %v2318 = vmax.f32 %v2316, %v2317
        %v2319 = vmax.f32 %v2248, %v2250
        %v2320 = vmax.f32 %v2319, %v2252
        %v2321 = vmax.f32 %v2320, %v2254
        %v2322 = vrot.slane %v2321, 4
        %v2323 = vmax.f32 %v2321, %v2322
        %v2324 = vrot.slane %v2323, 2
        %v2325 = vmax.f32 %v2323, %v2324
        %v2326 = vrot.slane %v2325, 1
        %v2327 = vmax.f32 %v2325, %v2326
        %v2336 = vcombine.low %v2264, %v2273
        %v2337 = vcombine.low %v2282, %v2291
        %v2338 = vcombine.low %v2300, %v2309
        %v2339 = vcombine.low %v2318, %v2327
        %v2340 = vrot.slane %v2337, 7
        %vm2341 = vcmask 1041409
        %v2342 = vsel %vm2341, %v2340, %v2336
        %vm2343 = vcmask 1045509
        %v2344 = vsel %vm2343, %v2340, %v2342
        %v2345 = vrot.slane %v2338, 6
        %vm2346 = vcmask 1042434
        %v2347 = vsel %vm2346, %v2345, %v2344
        %vm2348 = vcmask 1046534
        %v2349 = vsel %vm2348, %v2345, %v2347
        %v2350 = vrot.slane %v2339, 5
        %vm2351 = vcmask 1043459
        %v2352 = vsel %vm2351, %v2350, %v2349
        %vm2353 = vcmask 1047559
        %v2354 = vsel %vm2353, %v2350, %v2352
        %v2356 = vmax.f32 %v2255, %v2354
        %2357 = vst [vmem:[#allocation2] sm:$0xff] %v2356
        %p2358 = scmp.eq.s32.totalorder %s45, 1
        // Predicated region
        $region239: #{ipcrnet_forward.1} parent=145 // pred_check
          %p2359 = pneg %p2358
        $region240: #{ipcrnet_forward.1} parent=145 // pred_check_branch
          %2361 = sbr.rel (%p2359) target = $region242
        $region241: #{ipcrnet_forward.1} parent=145 // pred_region
          %v2362 = vld [vmem:[#allocation2] sm:$0xff]
          %v2364 = vcombine.high %v2362, %v2362
          %v2366 = vpack.c.bf16 %v2362, %v2362
          %v2367 = vpack.c.bf16 %v2364, %v2364
          %v2368 = vld [vmem:[#allocation20] sm:$0xff]
          %v2369 = vld [vmem:[#allocation20 + $0x8] sm:$0xff]
          %v2370 = vld [vmem:[#allocation20 + $0x10] sm:$0xff]
          %v2371 = vld [vmem:[#allocation20 + $0x18] sm:$0xff]
          %v2372 = vld [vmem:[#allocation20 + $0x20] sm:$0xff]
          %v2373 = vld [vmem:[#allocation20 + $0x28] sm:$0xff]
          %v2374 = vld [vmem:[#allocation20 + $0x30] sm:$0xff]
          %v2375 = vld [vmem:[#allocation20 + $0x38] sm:$0xff]
          %v2376 = vld [vmem:[#allocation20 + $0x40] sm:$0xff]
          %v2377 = vld [vmem:[#allocation20 + $0x48] sm:$0xff]
          %v2378 = vld [vmem:[#allocation20 + $0x50] sm:$0xff]
          %v2379 = vld [vmem:[#allocation20 + $0x58] sm:$0xff]
          %v2380 = vld [vmem:[#allocation20 + $0x60] sm:$0xff]
          %v2381 = vld [vmem:[#allocation20 + $0x68] sm:$0xff]
          %v2382 = vld [vmem:[#allocation20 + $0x70] sm:$0xff]
          %v2383 = vld [vmem:[#allocation20 + $0x78] sm:$0xff]
          %v2384 = vld [vmem:[#allocation20 + $0x80] sm:$0xff]
          %v2385 = vld [vmem:[#allocation20 + $0x88] sm:$0xff]
          %v2386 = vld [vmem:[#allocation20 + $0x90] sm:$0xff]
          %v2387 = vld [vmem:[#allocation20 + $0x98] sm:$0xff]
          %v2388 = vld [vmem:[#allocation20 + $0xa0] sm:$0xff]
          %v2389 = vld [vmem:[#allocation20 + $0xa8] sm:$0xff]
          %v2390 = vld [vmem:[#allocation20 + $0xb0] sm:$0xff]
          %v2391 = vld [vmem:[#allocation20 + $0xb8] sm:$0xff]
          %v2392 = vld [vmem:[#allocation20 + $0xc0] sm:$0xff]
          %v2393 = vld [vmem:[#allocation20 + $0xc8] sm:$0xff]
          %v2394 = vld [vmem:[#allocation20 + $0xd0] sm:$0xff]
          %v2395 = vld [vmem:[#allocation20 + $0xd8] sm:$0xff]
          %v2396 = vld [vmem:[#allocation20 + $0xe0] sm:$0xff]
          %v2397 = vld [vmem:[#allocation20 + $0xe8] sm:$0xff]
          %v2398 = vld [vmem:[#allocation20 + $0xf0] sm:$0xff]
          %v2399 = vld [vmem:[#allocation20 + $0xf8] sm:$0xff]
          %v2400 = vld [vmem:[#allocation20 + $0x100] sm:$0xff]
          %v2401 = vld [vmem:[#allocation20 + $0x108] sm:$0xff]
          %v2402 = vld [vmem:[#allocation20 + $0x110] sm:$0xff]
          %v2403 = vld [vmem:[#allocation20 + $0x118] sm:$0xff]
          %v2404 = vld [vmem:[#allocation20 + $0x120] sm:$0xff]
          %v2405 = vld [vmem:[#allocation20 + $0x128] sm:$0xff]
          %v2406 = vld [vmem:[#allocation20 + $0x130] sm:$0xff]
          %v2407 = vld [vmem:[#allocation20 + $0x138] sm:$0xff]
          %v2408 = vld [vmem:[#allocation20 + $0x140] sm:$0xff]
          %v2409 = vld [vmem:[#allocation20 + $0x148] sm:$0xff]
          %v2410 = vld [vmem:[#allocation20 + $0x150] sm:$0xff]
          %v2411 = vld [vmem:[#allocation20 + $0x158] sm:$0xff]
          %v2412 = vld [vmem:[#allocation20 + $0x160] sm:$0xff]
          %v2413 = vld [vmem:[#allocation20 + $0x168] sm:$0xff]
          %v2414 = vld [vmem:[#allocation20 + $0x170] sm:$0xff]
          %v2415 = vld [vmem:[#allocation20 + $0x178] sm:$0xff]
          %v2416 = vld [vmem:[#allocation20 + $0x180] sm:$0xff]
          %v2417 = vld [vmem:[#allocation20 + $0x188] sm:$0xff]
          %v2418 = vld [vmem:[#allocation20 + $0x190] sm:$0xff]
          %v2419 = vld [vmem:[#allocation20 + $0x198] sm:$0xff]
          %v2420 = vld [vmem:[#allocation20 + $0x1a0] sm:$0xff]
          %v2421 = vld [vmem:[#allocation20 + $0x1a8] sm:$0xff]
          %v2422 = vld [vmem:[#allocation20 + $0x1b0] sm:$0xff]
          %v2423 = vld [vmem:[#allocation20 + $0x1b8] sm:$0xff]
          %v2424 = vld [vmem:[#allocation20 + $0x1c0] sm:$0xff]
          %v2425 = vld [vmem:[#allocation20 + $0x1c8] sm:$0xff]
          %v2426 = vld [vmem:[#allocation20 + $0x1d0] sm:$0xff]
          %v2427 = vld [vmem:[#allocation20 + $0x1d8] sm:$0xff]
          %v2428 = vld [vmem:[#allocation20 + $0x1e0] sm:$0xff]
          %v2429 = vld [vmem:[#allocation20 + $0x1e8] sm:$0xff]
          %v2430 = vld [vmem:[#allocation20 + $0x1f0] sm:$0xff]
          %v2431 = vld [vmem:[#allocation20 + $0x1f8] sm:$0xff]
          %v2432 = vld [vmem:[#allocation20 + $0x200] sm:$0xff]
          %v2433 = vld [vmem:[#allocation20 + $0x208] sm:$0xff]
          %v2434 = vld [vmem:[#allocation20 + $0x210] sm:$0xff]
          %v2435 = vld [vmem:[#allocation20 + $0x218] sm:$0xff]
          %v2436 = vld [vmem:[#allocation20 + $0x220] sm:$0xff]
          %v2437 = vld [vmem:[#allocation20 + $0x228] sm:$0xff]
          %v2438 = vld [vmem:[#allocation20 + $0x230] sm:$0xff]
          %v2439 = vld [vmem:[#allocation20 + $0x238] sm:$0xff]
          %v2440 = vld [vmem:[#allocation20 + $0x240] sm:$0xff]
          %v2441 = vld [vmem:[#allocation20 + $0x248] sm:$0xff]
          %v2442 = vld [vmem:[#allocation20 + $0x250] sm:$0xff]
          %v2443 = vld [vmem:[#allocation20 + $0x258] sm:$0xff]
          %v2444 = vld [vmem:[#allocation20 + $0x260] sm:$0xff]
          %v2445 = vld [vmem:[#allocation20 + $0x268] sm:$0xff]
          %v2446 = vld [vmem:[#allocation20 + $0x270] sm:$0xff]
          %v2447 = vld [vmem:[#allocation20 + $0x278] sm:$0xff]
          %v2448 = vld [vmem:[#allocation20 + $0x280] sm:$0xff]
          %v2449 = vld [vmem:[#allocation20 + $0x288] sm:$0xff]
          %v2450 = vld [vmem:[#allocation20 + $0x290] sm:$0xff]
          %v2451 = vld [vmem:[#allocation20 + $0x298] sm:$0xff]
          %v2452 = vld [vmem:[#allocation20 + $0x2a0] sm:$0xff]
          %v2453 = vld [vmem:[#allocation20 + $0x2a8] sm:$0xff]
          %v2454 = vld [vmem:[#allocation20 + $0x2b0] sm:$0xff]
          %v2455 = vld [vmem:[#allocation20 + $0x2b8] sm:$0xff]
          %v2456 = vld [vmem:[#allocation20 + $0x2c0] sm:$0xff]
          %v2457 = vld [vmem:[#allocation20 + $0x2c8] sm:$0xff]
          %v2458 = vld [vmem:[#allocation20 + $0x2d0] sm:$0xff]
          %v2459 = vld [vmem:[#allocation20 + $0x2d8] sm:$0xff]
          %v2460 = vld [vmem:[#allocation20 + $0x2e0] sm:$0xff]
          %v2461 = vld [vmem:[#allocation20 + $0x2e8] sm:$0xff]
          %v2462 = vld [vmem:[#allocation20 + $0x2f0] sm:$0xff]
          %v2463 = vld [vmem:[#allocation20 + $0x2f8] sm:$0xff]
          %v2464 = vld [vmem:[#allocation20 + $0x300] sm:$0xff]
          %v2465 = vld [vmem:[#allocation20 + $0x308] sm:$0xff]
          %v2466 = vld [vmem:[#allocation20 + $0x310] sm:$0xff]
          %v2467 = vld [vmem:[#allocation20 + $0x318] sm:$0xff]
          %v2468 = vld [vmem:[#allocation20 + $0x320] sm:$0xff]
          %v2469 = vld [vmem:[#allocation20 + $0x328] sm:$0xff]
          %v2470 = vld [vmem:[#allocation20 + $0x330] sm:$0xff]
          %v2471 = vld [vmem:[#allocation20 + $0x338] sm:$0xff]
          %v2472 = vld [vmem:[#allocation20 + $0x340] sm:$0xff]
          %v2473 = vld [vmem:[#allocation20 + $0x348] sm:$0xff]
          %v2474 = vld [vmem:[#allocation20 + $0x350] sm:$0xff]
          %v2475 = vld [vmem:[#allocation20 + $0x358] sm:$0xff]
          %v2476 = vld [vmem:[#allocation20 + $0x360] sm:$0xff]
          %v2477 = vld [vmem:[#allocation20 + $0x368] sm:$0xff]
          %v2478 = vld [vmem:[#allocation20 + $0x370] sm:$0xff]
          %v2479 = vld [vmem:[#allocation20 + $0x378] sm:$0xff]
          %v2480 = vld [vmem:[#allocation20 + $0x380] sm:$0xff]
          %v2481 = vld [vmem:[#allocation20 + $0x388] sm:$0xff]
          %v2482 = vld [vmem:[#allocation20 + $0x390] sm:$0xff]
          %v2483 = vld [vmem:[#allocation20 + $0x398] sm:$0xff]
          %v2484 = vld [vmem:[#allocation20 + $0x3a0] sm:$0xff]
          %v2485 = vld [vmem:[#allocation20 + $0x3a8] sm:$0xff]
          %v2486 = vld [vmem:[#allocation20 + $0x3b0] sm:$0xff]
          %v2487 = vld [vmem:[#allocation20 + $0x3b8] sm:$0xff]
          %v2488 = vld [vmem:[#allocation20 + $0x3c0] sm:$0xff]
          %v2489 = vld [vmem:[#allocation20 + $0x3c8] sm:$0xff]
          %v2490 = vld [vmem:[#allocation20 + $0x3d0] sm:$0xff]
          %v2491 = vld [vmem:[#allocation20 + $0x3d8] sm:$0xff]
          %v2492 = vld [vmem:[#allocation20 + $0x3e0] sm:$0xff]
          %v2493 = vld [vmem:[#allocation20 + $0x3e8] sm:$0xff]
          %v2494 = vld [vmem:[#allocation20 + $0x3f0] sm:$0xff]
          %v2495 = vld [vmem:[#allocation20 + $0x3f8] sm:$0xff]
          %v2496 = vld [vmem:[#allocation20 + $0x400] sm:$0xff]
          %v2497 = vld [vmem:[#allocation20 + $0x408] sm:$0xff]
          %v2498 = vld [vmem:[#allocation20 + $0x410] sm:$0xff]
          %v2499 = vld [vmem:[#allocation20 + $0x418] sm:$0xff]
          %v2500 = vld [vmem:[#allocation20 + $0x420] sm:$0xff]
          %v2501 = vld [vmem:[#allocation20 + $0x428] sm:$0xff]
          %v2502 = vld [vmem:[#allocation20 + $0x430] sm:$0xff]
          %v2503 = vld [vmem:[#allocation20 + $0x438] sm:$0xff]
          %v2504 = vld [vmem:[#allocation20 + $0x440] sm:$0xff]
          %v2505 = vld [vmem:[#allocation20 + $0x448] sm:$0xff]
          %v2506 = vld [vmem:[#allocation20 + $0x450] sm:$0xff]
          %v2507 = vld [vmem:[#allocation20 + $0x458] sm:$0xff]
          %v2508 = vld [vmem:[#allocation20 + $0x460] sm:$0xff]
          %v2509 = vld [vmem:[#allocation20 + $0x468] sm:$0xff]
          %v2510 = vld [vmem:[#allocation20 + $0x470] sm:$0xff]
          %v2511 = vld [vmem:[#allocation20 + $0x478] sm:$0xff]
          %v2512 = vld [vmem:[#allocation20 + $0x480] sm:$0xff]
          %v2513 = vld [vmem:[#allocation20 + $0x488] sm:$0xff]
          %v2514 = vld [vmem:[#allocation20 + $0x490] sm:$0xff]
          %v2515 = vld [vmem:[#allocation20 + $0x498] sm:$0xff]
          %v2516 = vld [vmem:[#allocation20 + $0x4a0] sm:$0xff]
          %v2517 = vld [vmem:[#allocation20 + $0x4a8] sm:$0xff]
          %v2518 = vld [vmem:[#allocation20 + $0x4b0] sm:$0xff]
          %v2519 = vld [vmem:[#allocation20 + $0x4b8] sm:$0xff]
          %v2520 = vld [vmem:[#allocation20 + $0x4c0] sm:$0xff]
          %v2521 = vld [vmem:[#allocation20 + $0x4c8] sm:$0xff]
          %v2522 = vld [vmem:[#allocation20 + $0x4d0] sm:$0xff]
          %v2523 = vld [vmem:[#allocation20 + $0x4d8] sm:$0xff]
          %v2524 = vld [vmem:[#allocation20 + $0x4e0] sm:$0xff]
          %v2525 = vld [vmem:[#allocation20 + $0x4e8] sm:$0xff]
          %v2526 = vld [vmem:[#allocation20 + $0x4f0] sm:$0xff]
          %v2527 = vld [vmem:[#allocation20 + $0x4f8] sm:$0xff]
          %v2528 = vld [vmem:[#allocation20 + $0x500] sm:$0xff]
          %v2529 = vld [vmem:[#allocation20 + $0x508] sm:$0xff]
          %v2530 = vld [vmem:[#allocation20 + $0x510] sm:$0xff]
          %v2531 = vld [vmem:[#allocation20 + $0x518] sm:$0xff]
          %v2532 = vld [vmem:[#allocation20 + $0x520] sm:$0xff]
          %v2533 = vld [vmem:[#allocation20 + $0x528] sm:$0xff]
          %v2534 = vld [vmem:[#allocation20 + $0x530] sm:$0xff]
          %v2535 = vld [vmem:[#allocation20 + $0x538] sm:$0xff]
          %v2536 = vld [vmem:[#allocation20 + $0x540] sm:$0xff]
          %v2537 = vld [vmem:[#allocation20 + $0x548] sm:$0xff]
          %v2538 = vld [vmem:[#allocation20 + $0x550] sm:$0xff]
          %v2539 = vld [vmem:[#allocation20 + $0x558] sm:$0xff]
          %v2540 = vld [vmem:[#allocation20 + $0x560] sm:$0xff]
          %v2541 = vld [vmem:[#allocation20 + $0x568] sm:$0xff]
          %v2542 = vld [vmem:[#allocation20 + $0x570] sm:$0xff]
          %v2543 = vld [vmem:[#allocation20 + $0x578] sm:$0xff]
          %v2544 = vld [vmem:[#allocation20 + $0x580] sm:$0xff]
          %v2545 = vld [vmem:[#allocation20 + $0x588] sm:$0xff]
          %v2546 = vld [vmem:[#allocation20 + $0x590] sm:$0xff]
          %v2547 = vld [vmem:[#allocation20 + $0x598] sm:$0xff]
          %v2548 = vld [vmem:[#allocation20 + $0x5a0] sm:$0xff]
          %v2549 = vld [vmem:[#allocation20 + $0x5a8] sm:$0xff]
          %v2550 = vld [vmem:[#allocation20 + $0x5b0] sm:$0xff]
          %v2551 = vld [vmem:[#allocation20 + $0x5b8] sm:$0xff]
          %v2552 = vld [vmem:[#allocation20 + $0x5c0] sm:$0xff]
          %v2553 = vld [vmem:[#allocation20 + $0x5c8] sm:$0xff]
          %v2554 = vld [vmem:[#allocation20 + $0x5d0] sm:$0xff]
          %v2555 = vld [vmem:[#allocation20 + $0x5d8] sm:$0xff]
          %v2556 = vld [vmem:[#allocation20 + $0x5e0] sm:$0xff]
          %v2557 = vld [vmem:[#allocation20 + $0x5e8] sm:$0xff]
          %v2558 = vld [vmem:[#allocation20 + $0x5f0] sm:$0xff]
          %v2559 = vld [vmem:[#allocation20 + $0x5f8] sm:$0xff]
          %v2560 = vld [vmem:[#allocation20 + $0x600] sm:$0xff]
          %v2561 = vld [vmem:[#allocation20 + $0x608] sm:$0xff]
          %v2562 = vld [vmem:[#allocation20 + $0x610] sm:$0xff]
          %v2563 = vld [vmem:[#allocation20 + $0x618] sm:$0xff]
          %v2564 = vld [vmem:[#allocation20 + $0x620] sm:$0xff]
          %v2565 = vld [vmem:[#allocation20 + $0x628] sm:$0xff]
          %v2566 = vld [vmem:[#allocation20 + $0x630] sm:$0xff]
          %v2567 = vld [vmem:[#allocation20 + $0x638] sm:$0xff]
          %v2568 = vld [vmem:[#allocation20 + $0x640] sm:$0xff]
          %v2569 = vld [vmem:[#allocation20 + $0x648] sm:$0xff]
          %v2570 = vld [vmem:[#allocation20 + $0x650] sm:$0xff]
          %v2571 = vld [vmem:[#allocation20 + $0x658] sm:$0xff]
          %v2572 = vld [vmem:[#allocation20 + $0x660] sm:$0xff]
          %v2573 = vld [vmem:[#allocation20 + $0x668] sm:$0xff]
          %v2574 = vld [vmem:[#allocation20 + $0x670] sm:$0xff]
          %v2575 = vld [vmem:[#allocation20 + $0x678] sm:$0xff]
          %v2576 = vld [vmem:[#allocation20 + $0x680] sm:$0xff]
          %v2577 = vld [vmem:[#allocation20 + $0x688] sm:$0xff]
          %v2578 = vld [vmem:[#allocation20 + $0x690] sm:$0xff]
          %v2579 = vld [vmem:[#allocation20 + $0x698] sm:$0xff]
          %v2580 = vld [vmem:[#allocation20 + $0x6a0] sm:$0xff]
          %v2581 = vld [vmem:[#allocation20 + $0x6a8] sm:$0xff]
          %v2582 = vld [vmem:[#allocation20 + $0x6b0] sm:$0xff]
          %v2583 = vld [vmem:[#allocation20 + $0x6b8] sm:$0xff]
          %v2584 = vld [vmem:[#allocation20 + $0x6c0] sm:$0xff]
          %v2585 = vld [vmem:[#allocation20 + $0x6c8] sm:$0xff]
          %v2586 = vld [vmem:[#allocation20 + $0x6d0] sm:$0xff]
          %v2587 = vld [vmem:[#allocation20 + $0x6d8] sm:$0xff]
          %v2588 = vld [vmem:[#allocation20 + $0x6e0] sm:$0xff]
          %v2589 = vld [vmem:[#allocation20 + $0x6e8] sm:$0xff]
          %v2590 = vld [vmem:[#allocation20 + $0x6f0] sm:$0xff]
          %v2591 = vld [vmem:[#allocation20 + $0x6f8] sm:$0xff]
          %v2592 = vld [vmem:[#allocation20 + $0x700] sm:$0xff]
          %v2593 = vld [vmem:[#allocation20 + $0x708] sm:$0xff]
          %v2594 = vld [vmem:[#allocation20 + $0x710] sm:$0xff]
          %v2595 = vld [vmem:[#allocation20 + $0x718] sm:$0xff]
          %v2596 = vld [vmem:[#allocation20 + $0x720] sm:$0xff]
          %v2597 = vld [vmem:[#allocation20 + $0x728] sm:$0xff]
          %v2598 = vld [vmem:[#allocation20 + $0x730] sm:$0xff]
          %v2599 = vld [vmem:[#allocation20 + $0x738] sm:$0xff]
          %v2600 = vld [vmem:[#allocation20 + $0x740] sm:$0xff]
          %v2601 = vld [vmem:[#allocation20 + $0x748] sm:$0xff]
          %v2602 = vld [vmem:[#allocation20 + $0x750] sm:$0xff]
          %v2603 = vld [vmem:[#allocation20 + $0x758] sm:$0xff]
          %v2604 = vld [vmem:[#allocation20 + $0x760] sm:$0xff]
          %v2605 = vld [vmem:[#allocation20 + $0x768] sm:$0xff]
          %v2606 = vld [vmem:[#allocation20 + $0x770] sm:$0xff]
          %v2607 = vld [vmem:[#allocation20 + $0x778] sm:$0xff]
          %v2608 = vld [vmem:[#allocation20 + $0x780] sm:$0xff]
          %v2609 = vld [vmem:[#allocation20 + $0x788] sm:$0xff]
          %v2610 = vld [vmem:[#allocation20 + $0x790] sm:$0xff]
          %v2611 = vld [vmem:[#allocation20 + $0x798] sm:$0xff]
          %v2612 = vld [vmem:[#allocation20 + $0x7a0] sm:$0xff]
          %v2613 = vld [vmem:[#allocation20 + $0x7a8] sm:$0xff]
          %v2614 = vld [vmem:[#allocation20 + $0x7b0] sm:$0xff]
          %v2615 = vld [vmem:[#allocation20 + $0x7b8] sm:$0xff]
          %v2616 = vld [vmem:[#allocation20 + $0x7c0] sm:$0xff]
          %v2617 = vld [vmem:[#allocation20 + $0x7c8] sm:$0xff]
          %v2618 = vld [vmem:[#allocation20 + $0x7d0] sm:$0xff]
          %v2619 = vld [vmem:[#allocation20 + $0x7d8] sm:$0xff]
          %v2620 = vld [vmem:[#allocation20 + $0x7e0] sm:$0xff]
          %v2621 = vld [vmem:[#allocation20 + $0x7e8] sm:$0xff]
          %v2622 = vld [vmem:[#allocation20 + $0x7f0] sm:$0xff]
          %v2623 = vld [vmem:[#allocation20 + $0x7f8] sm:$0xff]
          %v2626 = vrot.slane %v2366, 1
          %v2627 = vrot.slane %v2367, 1
          %v2758 = vunpack.c.l.b16 %v2496
          %v2759 = vunpack.c.h.b16 %v2496
          %v2760 = vunpack.c.l.b16 %v2497
          %v2761 = vunpack.c.h.b16 %v2497
          %v2762 = vunpack.c.l.b16 %v2498
          %v2763 = vunpack.c.h.b16 %v2498
          %v2764 = vunpack.c.l.b16 %v2499
          %v2765 = vunpack.c.h.b16 %v2499
          %v2766 = vunpack.c.l.b16 %v2500
          %v2767 = vunpack.c.h.b16 %v2500
          %v2768 = vunpack.c.l.b16 %v2501
          %v2769 = vunpack.c.h.b16 %v2501
          %v2770 = vunpack.c.l.b16 %v2502
          %v2771 = vunpack.c.h.b16 %v2502
          %v2772 = vunpack.c.l.b16 %v2503
          %v2773 = vunpack.c.h.b16 %v2503
          %v2774 = vunpack.c.l.b16 %v2504
          %v2775 = vunpack.c.h.b16 %v2504
          %v2776 = vunpack.c.l.b16 %v2505
          %v2777 = vunpack.c.h.b16 %v2505
          %v2778 = vunpack.c.l.b16 %v2506
          %v2779 = vunpack.c.h.b16 %v2506
          %v2780 = vunpack.c.l.b16 %v2507
          %v2781 = vunpack.c.h.b16 %v2507
          %v2782 = vunpack.c.l.b16 %v2508
          %v2783 = vunpack.c.h.b16 %v2508
          %v2784 = vunpack.c.l.b16 %v2509
          %v2785 = vunpack.c.h.b16 %v2509
          %v2786 = vunpack.c.l.b16 %v2510
          %v2787 = vunpack.c.h.b16 %v2510
          %v2788 = vunpack.c.l.b16 %v2511
          %v2789 = vunpack.c.h.b16 %v2511
          %v2790 = vunpack.c.l.b16 %v2512
          %v2791 = vunpack.c.h.b16 %v2512
          %v2792 = vunpack.c.l.b16 %v2513
          %v2793 = vunpack.c.h.b16 %v2513
          %v2794 = vunpack.c.l.b16 %v2514
          %v2795 = vunpack.c.h.b16 %v2514
          %v2796 = vunpack.c.l.b16 %v2515
          %v2797 = vunpack.c.h.b16 %v2515
          %v2798 = vunpack.c.l.b16 %v2516
          %v2799 = vunpack.c.h.b16 %v2516
          %v2800 = vunpack.c.l.b16 %v2517
          %v2801 = vunpack.c.h.b16 %v2517
          %v2802 = vunpack.c.l.b16 %v2518
          %v2803 = vunpack.c.h.b16 %v2518
          %v2804 = vunpack.c.l.b16 %v2519
          %v2805 = vunpack.c.h.b16 %v2519
          %v2806 = vunpack.c.l.b16 %v2520
          %v2807 = vunpack.c.h.b16 %v2520
          %v2808 = vunpack.c.l.b16 %v2521
          %v2809 = vunpack.c.h.b16 %v2521
          %v2810 = vunpack.c.l.b16 %v2522
          %v2811 = vunpack.c.h.b16 %v2522
          %v2812 = vunpack.c.l.b16 %v2523
          %v2813 = vunpack.c.h.b16 %v2523
          %v2814 = vunpack.c.l.b16 %v2524
          %v2815 = vunpack.c.h.b16 %v2524
          %v2816 = vunpack.c.l.b16 %v2525
          %v2817 = vunpack.c.h.b16 %v2525
          %v2818 = vunpack.c.l.b16 %v2526
          %v2819 = vunpack.c.h.b16 %v2526
          %v2820 = vunpack.c.l.b16 %v2527
          %v2821 = vunpack.c.h.b16 %v2527
          %v2822 = vunpack.c.l.b16 %v2528
          %v2823 = vunpack.c.h.b16 %v2528
          %v2824 = vunpack.c.l.b16 %v2529
          %v2825 = vunpack.c.h.b16 %v2529
          %v2826 = vunpack.c.l.b16 %v2530
          %v2827 = vunpack.c.h.b16 %v2530
          %v2828 = vunpack.c.l.b16 %v2531
          %v2829 = vunpack.c.h.b16 %v2531
          %v2830 = vunpack.c.l.b16 %v2532
          %v2831 = vunpack.c.h.b16 %v2532
          %v2832 = vunpack.c.l.b16 %v2533
          %v2833 = vunpack.c.h.b16 %v2533
          %v2834 = vunpack.c.l.b16 %v2534
          %v2835 = vunpack.c.h.b16 %v2534
          %v2836 = vunpack.c.l.b16 %v2535
          %v2837 = vunpack.c.h.b16 %v2535
          %v2838 = vunpack.c.l.b16 %v2536
          %v2839 = vunpack.c.h.b16 %v2536
          %v2840 = vunpack.c.l.b16 %v2537
          %v2841 = vunpack.c.h.b16 %v2537
          %v2842 = vunpack.c.l.b16 %v2538
          %v2843 = vunpack.c.h.b16 %v2538
          %v2844 = vunpack.c.l.b16 %v2539
          %v2845 = vunpack.c.h.b16 %v2539
          %v2846 = vunpack.c.l.b16 %v2540
          %v2847 = vunpack.c.h.b16 %v2540
          %v2848 = vunpack.c.l.b16 %v2541
          %v2849 = vunpack.c.h.b16 %v2541
          %v2850 = vunpack.c.l.b16 %v2542
          %v2851 = vunpack.c.h.b16 %v2542
          %v2852 = vunpack.c.l.b16 %v2543
          %v2853 = vunpack.c.h.b16 %v2543
          %v2854 = vunpack.c.l.b16 %v2544
          %v2855 = vunpack.c.h.b16 %v2544
          %v2856 = vunpack.c.l.b16 %v2545
          %v2857 = vunpack.c.h.b16 %v2545
          %v2858 = vunpack.c.l.b16 %v2546
          %v2859 = vunpack.c.h.b16 %v2546
          %v2860 = vunpack.c.l.b16 %v2547
          %v2861 = vunpack.c.h.b16 %v2547
          %v2862 = vunpack.c.l.b16 %v2548
          %v2863 = vunpack.c.h.b16 %v2548
          %v2864 = vunpack.c.l.b16 %v2549
          %v2865 = vunpack.c.h.b16 %v2549
          %v2866 = vunpack.c.l.b16 %v2550
          %v2867 = vunpack.c.h.b16 %v2550
          %v2868 = vunpack.c.l.b16 %v2551
          %v2869 = vunpack.c.h.b16 %v2551
          %v2870 = vunpack.c.l.b16 %v2552
          %v2871 = vunpack.c.h.b16 %v2552
          %v2872 = vunpack.c.l.b16 %v2553
          %v2873 = vunpack.c.h.b16 %v2553
          %v2874 = vunpack.c.l.b16 %v2554
          %v2875 = vunpack.c.h.b16 %v2554
          %v2876 = vunpack.c.l.b16 %v2555
          %v2877 = vunpack.c.h.b16 %v2555
          %v2878 = vunpack.c.l.b16 %v2556
          %v2879 = vunpack.c.h.b16 %v2556
          %v2880 = vunpack.c.l.b16 %v2557
          %v2881 = vunpack.c.h.b16 %v2557
          %v2882 = vunpack.c.l.b16 %v2558
          %v2883 = vunpack.c.h.b16 %v2558
          %v2884 = vunpack.c.l.b16 %v2559
          %v2885 = vunpack.c.h.b16 %v2559
          %v2886 = vunpack.c.l.b16 %v2560
          %v2887 = vunpack.c.h.b16 %v2560
          %v2888 = vunpack.c.l.b16 %v2561
          %v2889 = vunpack.c.h.b16 %v2561
          %v2890 = vunpack.c.l.b16 %v2562
          %v2891 = vunpack.c.h.b16 %v2562
          %v2892 = vunpack.c.l.b16 %v2563
          %v2893 = vunpack.c.h.b16 %v2563
          %v2894 = vunpack.c.l.b16 %v2564
          %v2895 = vunpack.c.h.b16 %v2564
          %v2896 = vunpack.c.l.b16 %v2565
          %v2897 = vunpack.c.h.b16 %v2565
          %v2898 = vunpack.c.l.b16 %v2566
          %v2899 = vunpack.c.h.b16 %v2566
          %v2900 = vunpack.c.l.b16 %v2567
          %v2901 = vunpack.c.h.b16 %v2567
          %v2902 = vunpack.c.l.b16 %v2568
          %v2903 = vunpack.c.h.b16 %v2568
          %v2904 = vunpack.c.l.b16 %v2569
          %v2905 = vunpack.c.h.b16 %v2569
          %v2906 = vunpack.c.l.b16 %v2570
          %v2907 = vunpack.c.h.b16 %v2570
          %v2908 = vunpack.c.l.b16 %v2571
          %v2909 = vunpack.c.h.b16 %v2571
          %v2910 = vunpack.c.l.b16 %v2572
          %v2911 = vunpack.c.h.b16 %v2572
          %v2912 = vunpack.c.l.b16 %v2573
          %v2913 = vunpack.c.h.b16 %v2573
          %v2914 = vunpack.c.l.b16 %v2574
          %v2915 = vunpack.c.h.b16 %v2574
          %v2916 = vunpack.c.l.b16 %v2575
          %v2917 = vunpack.c.h.b16 %v2575
          %v2918 = vunpack.c.l.b16 %v2576
          %v2919 = vunpack.c.h.b16 %v2576
          %v2920 = vunpack.c.l.b16 %v2577
          %v2921 = vunpack.c.h.b16 %v2577
          %v2922 = vunpack.c.l.b16 %v2578
          %v2923 = vunpack.c.h.b16 %v2578
          %v2924 = vunpack.c.l.b16 %v2579
          %v2925 = vunpack.c.h.b16 %v2579
          %v2926 = vunpack.c.l.b16 %v2580
          %v2927 = vunpack.c.h.b16 %v2580
          %v2928 = vunpack.c.l.b16 %v2581
          %v2929 = vunpack.c.h.b16 %v2581
          %v2930 = vunpack.c.l.b16 %v2582
          %v2931 = vunpack.c.h.b16 %v2582
          %v2932 = vunpack.c.l.b16 %v2583
          %v2933 = vunpack.c.h.b16 %v2583
          %v2934 = vunpack.c.l.b16 %v2584
          %v2935 = vunpack.c.h.b16 %v2584
          %v2936 = vunpack.c.l.b16 %v2585
          %v2937 = vunpack.c.h.b16 %v2585
          %v2938 = vunpack.c.l.b16 %v2586
          %v2939 = vunpack.c.h.b16 %v2586
          %v2940 = vunpack.c.l.b16 %v2587
          %v2941 = vunpack.c.h.b16 %v2587
          %v2942 = vunpack.c.l.b16 %v2588
          %v2943 = vunpack.c.h.b16 %v2588
          %v2944 = vunpack.c.l.b16 %v2589
          %v2945 = vunpack.c.h.b16 %v2589
          %v2946 = vunpack.c.l.b16 %v2590
          %v2947 = vunpack.c.h.b16 %v2590
          %v2948 = vunpack.c.l.b16 %v2591
          %v2949 = vunpack.c.h.b16 %v2591
          %v2950 = vunpack.c.l.b16 %v2592
          %v2951 = vunpack.c.h.b16 %v2592
          %v2952 = vunpack.c.l.b16 %v2593
          %v2953 = vunpack.c.h.b16 %v2593
          %v2954 = vunpack.c.l.b16 %v2594
          %v2955 = vunpack.c.h.b16 %v2594
          %v2956 = vunpack.c.l.b16 %v2595
          %v2957 = vunpack.c.h.b16 %v2595
          %v2958 = vunpack.c.l.b16 %v2596
          %v2959 = vunpack.c.h.b16 %v2596
          %v2960 = vunpack.c.l.b16 %v2597
          %v2961 = vunpack.c.h.b16 %v2597
          %v2962 = vunpack.c.l.b16 %v2598
          %v2963 = vunpack.c.h.b16 %v2598
          %v2964 = vunpack.c.l.b16 %v2599
          %v2965 = vunpack.c.h.b16 %v2599
          %v2966 = vunpack.c.l.b16 %v2600
          %v2967 = vunpack.c.h.b16 %v2600
          %v2968 = vunpack.c.l.b16 %v2601
          %v2969 = vunpack.c.h.b16 %v2601
          %v2970 = vunpack.c.l.b16 %v2602
          %v2971 = vunpack.c.h.b16 %v2602
          %v2972 = vunpack.c.l.b16 %v2603
          %v2973 = vunpack.c.h.b16 %v2603
          %v2974 = vunpack.c.l.b16 %v2604
          %v2975 = vunpack.c.h.b16 %v2604
          %v2976 = vunpack.c.l.b16 %v2605
          %v2977 = vunpack.c.h.b16 %v2605
          %v2978 = vunpack.c.l.b16 %v2606
          %v2979 = vunpack.c.h.b16 %v2606
          %v2980 = vunpack.c.l.b16 %v2607
          %v2981 = vunpack.c.h.b16 %v2607
          %v2982 = vunpack.c.l.b16 %v2608
          %v2983 = vunpack.c.h.b16 %v2608
          %v2984 = vunpack.c.l.b16 %v2609
          %v2985 = vunpack.c.h.b16 %v2609
          %v2986 = vunpack.c.l.b16 %v2610
          %v2987 = vunpack.c.h.b16 %v2610
          %v2988 = vunpack.c.l.b16 %v2611
          %v2989 = vunpack.c.h.b16 %v2611
          %v2990 = vunpack.c.l.b16 %v2612
          %v2991 = vunpack.c.h.b16 %v2612
          %v2992 = vunpack.c.l.b16 %v2613
          %v2993 = vunpack.c.h.b16 %v2613
          %v2994 = vunpack.c.l.b16 %v2614
          %v2995 = vunpack.c.h.b16 %v2614
          %v2996 = vunpack.c.l.b16 %v2615
          %v2997 = vunpack.c.h.b16 %v2615
          %v2998 = vunpack.c.l.b16 %v2616
          %v2999 = vunpack.c.h.b16 %v2616
          %v3000 = vunpack.c.l.b16 %v2617
          %v3001 = vunpack.c.h.b16 %v2617
          %v3002 = vunpack.c.l.b16 %v2618
          %v3003 = vunpack.c.h.b16 %v2618
          %v3004 = vunpack.c.l.b16 %v2619
          %v3005 = vunpack.c.h.b16 %v2619
          %v3006 = vunpack.c.l.b16 %v2620
          %v3007 = vunpack.c.h.b16 %v2620
          %v3008 = vunpack.c.l.b16 %v2621
          %v3009 = vunpack.c.h.b16 %v2621
          %v3010 = vunpack.c.l.b16 %v2622
          %v3011 = vunpack.c.h.b16 %v2622
          %v3012 = vunpack.c.l.b16 %v2623
          %v3013 = vunpack.c.h.b16 %v2623
          %v3014 = vpack.c.b16 %v2766, %v2758
          %v3015 = vpack.c.b16 %v2767, %v2759
          %v3016 = vpack.c.b16 %v2768, %v2760
          %v3017 = vpack.c.b16 %v2769, %v2761
          %v3018 = vpack.c.b16 %v2770, %v2762
          %v3019 = vpack.c.b16 %v2771, %v2763
          %v3020 = vpack.c.b16 %v2772, %v2764
          %v3021 = vpack.c.b16 %v2773, %v2765
          %v3022 = vpack.c.b16 %v2782, %v2774
          %v3023 = vpack.c.b16 %v2783, %v2775
          %v3024 = vpack.c.b16 %v2784, %v2776
          %v3025 = vpack.c.b16 %v2785, %v2777
          %v3026 = vpack.c.b16 %v2786, %v2778
          %v3027 = vpack.c.b16 %v2787, %v2779
          %v3028 = vpack.c.b16 %v2788, %v2780
          %v3029 = vpack.c.b16 %v2789, %v2781
          %v3030 = vpack.c.b16 %v2798, %v2790
          %v3031 = vpack.c.b16 %v2799, %v2791
          %v3032 = vpack.c.b16 %v2800, %v2792
          %v3033 = vpack.c.b16 %v2801, %v2793
          %v3034 = vpack.c.b16 %v2802, %v2794
          %v3035 = vpack.c.b16 %v2803, %v2795
          %v3036 = vpack.c.b16 %v2804, %v2796
          %v3037 = vpack.c.b16 %v2805, %v2797
          %v3038 = vpack.c.b16 %v2814, %v2806
          %v3039 = vpack.c.b16 %v2815, %v2807
          %v3040 = vpack.c.b16 %v2816, %v2808
          %v3041 = vpack.c.b16 %v2817, %v2809
          %v3042 = vpack.c.b16 %v2818, %v2810
          %v3043 = vpack.c.b16 %v2819, %v2811
          %v3044 = vpack.c.b16 %v2820, %v2812
          %v3045 = vpack.c.b16 %v2821, %v2813
          %v3046 = vpack.c.b16 %v2830, %v2822
          %v3047 = vpack.c.b16 %v2831, %v2823
          %v3048 = vpack.c.b16 %v2832, %v2824
          %v3049 = vpack.c.b16 %v2833, %v2825
          %v3050 = vpack.c.b16 %v2834, %v2826
          %v3051 = vpack.c.b16 %v2835, %v2827
          %v3052 = vpack.c.b16 %v2836, %v2828
          %v3053 = vpack.c.b16 %v2837, %v2829
          %v3054 = vpack.c.b16 %v2846, %v2838
          %v3055 = vpack.c.b16 %v2847, %v2839
          %v3056 = vpack.c.b16 %v2848, %v2840
          %v3057 = vpack.c.b16 %v2849, %v2841
          %v3058 = vpack.c.b16 %v2850, %v2842
          %v3059 = vpack.c.b16 %v2851, %v2843
          %v3060 = vpack.c.b16 %v2852, %v2844
          %v3061 = vpack.c.b16 %v2853, %v2845
          %v3062 = vpack.c.b16 %v2862, %v2854
          %v3063 = vpack.c.b16 %v2863, %v2855
          %v3064 = vpack.c.b16 %v2864, %v2856
          %v3065 = vpack.c.b16 %v2865, %v2857
          %v3066 = vpack.c.b16 %v2866, %v2858
          %v3067 = vpack.c.b16 %v2867, %v2859
          %v3068 = vpack.c.b16 %v2868, %v2860
          %v3069 = vpack.c.b16 %v2869, %v2861
          %v3070 = vpack.c.b16 %v2878, %v2870
          %v3071 = vpack.c.b16 %v2879, %v2871
          %v3072 = vpack.c.b16 %v2880, %v2872
          %v3073 = vpack.c.b16 %v2881, %v2873
          %v3074 = vpack.c.b16 %v2882, %v2874
          %v3075 = vpack.c.b16 %v2883, %v2875
          %v3076 = vpack.c.b16 %v2884, %v2876
          %v3077 = vpack.c.b16 %v2885, %v2877
          %v3078 = vpack.c.b16 %v2894, %v2886
          %v3079 = vpack.c.b16 %v2895, %v2887
          %v3080 = vpack.c.b16 %v2896, %v2888
          %v3081 = vpack.c.b16 %v2897, %v2889
          %v3082 = vpack.c.b16 %v2898, %v2890
          %v3083 = vpack.c.b16 %v2899, %v2891
          %v3084 = vpack.c.b16 %v2900, %v2892
          %v3085 = vpack.c.b16 %v2901, %v2893
          %v3086 = vpack.c.b16 %v2910, %v2902
          %v3087 = vpack.c.b16 %v2911, %v2903
          %v3088 = vpack.c.b16 %v2912, %v2904
          %v3089 = vpack.c.b16 %v2913, %v2905
          %v3090 = vpack.c.b16 %v2914, %v2906
          %v3091 = vpack.c.b16 %v2915, %v2907
          %v3092 = vpack.c.b16 %v2916, %v2908
          %v3093 = vpack.c.b16 %v2917, %v2909
          %v3094 = vpack.c.b16 %v2926, %v2918
          %v3095 = vpack.c.b16 %v2927, %v2919
          %v3096 = vpack.c.b16 %v2928, %v2920
          %v3097 = vpack.c.b16 %v2929, %v2921
          %v3098 = vpack.c.b16 %v2930, %v2922
          %v3099 = vpack.c.b16 %v2931, %v2923
          %v3100 = vpack.c.b16 %v2932, %v2924
          %v3101 = vpack.c.b16 %v2933, %v2925
          %v3102 = vpack.c.b16 %v2942, %v2934
          %v3103 = vpack.c.b16 %v2943, %v2935
          %v3104 = vpack.c.b16 %v2944, %v2936
          %v3105 = vpack.c.b16 %v2945, %v2937
          %v3106 = vpack.c.b16 %v2946, %v2938
          %v3107 = vpack.c.b16 %v2947, %v2939
          %v3108 = vpack.c.b16 %v2948, %v2940
          %v3109 = vpack.c.b16 %v2949, %v2941
          %v3110 = vpack.c.b16 %v2958, %v2950
          %v3111 = vpack.c.b16 %v2959, %v2951
          %v3112 = vpack.c.b16 %v2960, %v2952
          %v3113 = vpack.c.b16 %v2961, %v2953
          %v3114 = vpack.c.b16 %v2962, %v2954
          %v3115 = vpack.c.b16 %v2963, %v2955
          %v3116 = vpack.c.b16 %v2964, %v2956
          %v3117 = vpack.c.b16 %v2965, %v2957
          %v3118 = vpack.c.b16 %v2974, %v2966
          %v3119 = vpack.c.b16 %v2975, %v2967
          %v3120 = vpack.c.b16 %v2976, %v2968
          %v3121 = vpack.c.b16 %v2977, %v2969
          %v3122 = vpack.c.b16 %v2978, %v2970
          %v3123 = vpack.c.b16 %v2979, %v2971
          %v3124 = vpack.c.b16 %v2980, %v2972
          %v3125 = vpack.c.b16 %v2981, %v2973
          %v3126 = vpack.c.b16 %v2990, %v2982
          %v3127 = vpack.c.b16 %v2991, %v2983
          %v3128 = vpack.c.b16 %v2992, %v2984
          %v3129 = vpack.c.b16 %v2993, %v2985
          %v3130 = vpack.c.b16 %v2994, %v2986
          %v3131 = vpack.c.b16 %v2995, %v2987
          %v3132 = vpack.c.b16 %v2996, %v2988
          %v3133 = vpack.c.b16 %v2997, %v2989
          %v3134 = vpack.c.b16 %v3006, %v2998
          %v3135 = vpack.c.b16 %v3007, %v2999
          %v3136 = vpack.c.b16 %v3008, %v3000
          %v3137 = vpack.c.b16 %v3009, %v3001
          %v3138 = vpack.c.b16 %v3010, %v3002
          %v3139 = vpack.c.b16 %v3011, %v3003
          %v3140 = vpack.c.b16 %v3012, %v3004
          %v3141 = vpack.c.b16 %v3013, %v3005
          %3270 = vmatprep.subr.bf16.mxu0 %v3015
          %3271 = vmatpush1.bf16.msra.mxu0 %v3014
          %3272 = vmatprep.subr.bf16.mxu0 %v3023
          %3273 = vmatpush1.bf16.msra.mxu0 %v3022
          %3274 = vmatprep.subr.bf16.mxu0 %v3031
          %3275 = vmatpush1.bf16.msra.mxu0 %v3030
          %3276 = vmatprep.subr.bf16.mxu0 %v3039
          %3277 = vmatpush1.bf16.msra.mxu0 %v3038
          %3278 = vmatprep.subr.bf16.mxu0 %v3047
          %3279 = vmatpush1.bf16.msra.mxu0 %v3046
          %3280 = vmatprep.subr.bf16.mxu0 %v3055
          %3281 = vmatpush1.bf16.msra.mxu0 %v3054
          %3282 = vmatprep.subr.bf16.mxu0 %v3063
          %3283 = vmatpush1.bf16.msra.mxu0 %v3062
          %3284 = vmatprep.subr.bf16.mxu0 %v3071
          %3285 = vmatpush1.bf16.msra.mxu0 %v3070
          %3286 = vmatprep.subr.bf16.mxu0 %v3079
          %3287 = vmatpush1.bf16.msra.mxu0 %v3078
          %3288 = vmatprep.subr.bf16.mxu0 %v3087
          %3289 = vmatpush1.bf16.msra.mxu0 %v3086
          %3290 = vmatprep.subr.bf16.mxu0 %v3095
          %3291 = vmatpush1.bf16.msra.mxu0 %v3094
          %3292 = vmatprep.subr.bf16.mxu0 %v3103
          %3293 = vmatpush1.bf16.msra.mxu0 %v3102
          %3294 = vmatprep.subr.bf16.mxu0 %v3111
          %3295 = vmatpush1.bf16.msra.mxu0 %v3110
          %3296 = vmatprep.subr.bf16.mxu0 %v3119
          %3297 = vmatpush1.bf16.msra.mxu0 %v3118
          %3298 = vmatprep.subr.bf16.mxu0 %v3127
          %3299 = vmatpush1.bf16.msra.mxu0 %v3126
          %3300 = vmatprep.subr.bf16.mxu0 %v3135
          %3301 = vmatpush1.bf16.msra.mxu0 %v3134
          %3302 = vmatprep.mubr.bf16.mxu0 %v2627
          %3303 = vmatmul.mubr.bf16.gmra.mrb[0].mxu0 %v2626
          %v3304 = vpop.f32.mrb[0].mxu0
          %v3305 = vadd.f32 0.0, %v3304
          %v3306 = vpop.f32.mrb[0].mxu0
          %v3307 = vadd.f32 0.0, %v3306
          %v3308 = vpop.f32.mrb[0].mxu0
          %v3309 = vpop.f32.mrb[0].mxu0
          %3310 = vdwg.mxu0
          %3311 = vmatprep.subr.bf16.mxu0 %v3017
          %3312 = vmatpush1.bf16.msra.mxu0 %v3016
          %3313 = vmatprep.subr.bf16.mxu0 %v3025
          %3314 = vmatpush1.bf16.msra.mxu0 %v3024
          %3315 = vmatprep.subr.bf16.mxu0 %v3033
          %3316 = vmatpush1.bf16.msra.mxu0 %v3032
          %3317 = vmatprep.subr.bf16.mxu0 %v3041
          %3318 = vmatpush1.bf16.msra.mxu0 %v3040
          %3319 = vmatprep.subr.bf16.mxu0 %v3049
          %3320 = vmatpush1.bf16.msra.mxu0 %v3048
          %3321 = vmatprep.subr.bf16.mxu0 %v3057
          %3322 = vmatpush1.bf16.msra.mxu0 %v3056
          %3323 = vmatprep.subr.bf16.mxu0 %v3065
          %3324 = vmatpush1.bf16.msra.mxu0 %v3064
          %3325 = vmatprep.subr.bf16.mxu0 %v3073
          %3326 = vmatpush1.bf16.msra.mxu0 %v3072
          %3327 = vmatprep.subr.bf16.mxu0 %v3081
          %3328 = vmatpush1.bf16.msra.mxu0 %v3080
          %3329 = vmatprep.subr.bf16.mxu0 %v3089
          %3330 = vmatpush1.bf16.msra.mxu0 %v3088
          %3331 = vmatprep.subr.bf16.mxu0 %v3097
          %3332 = vmatpush1.bf16.msra.mxu0 %v3096
          %3333 = vmatprep.subr.bf16.mxu0 %v3105
          %3334 = vmatpush1.bf16.msra.mxu0 %v3104
          %3335 = vmatprep.subr.bf16.mxu0 %v3113
          %3336 = vmatpush1.bf16.msra.mxu0 %v3112
          %3337 = vmatprep.subr.bf16.mxu0 %v3121
          %3338 = vmatpush1.bf16.msra.mxu0 %v3120
          %3339 = vmatprep.subr.bf16.mxu0 %v3129
          %3340 = vmatpush1.bf16.msra.mxu0 %v3128
          %3341 = vmatprep.subr.bf16.mxu0 %v3137
          %3342 = vmatpush1.bf16.msra.mxu0 %v3136
          %3343 = vmatprep.mubr.bf16.mxu0 %v2627
          %3344 = vmatmul.mubr.bf16.gmra.mrb[0].mxu0 %v2626
          %v3345 = vpop.f32.mrb[0].mxu0
          %v3346 = vadd.f32 0.0, %v3345
          %v3347 = vpop.f32.mrb[0].mxu0
          %v3348 = vadd.f32 0.0, %v3347
          %v3349 = vpop.f32.mrb[0].mxu0
          %v3350 = vpop.f32.mrb[0].mxu0
          %3351 = vdwg.mxu0
          %3352 = vmatprep.subr.bf16.mxu0 %v3019
          %3353 = vmatpush1.bf16.msra.mxu0 %v3018
          %3354 = vmatprep.subr.bf16.mxu0 %v3027
          %3355 = vmatpush1.bf16.msra.mxu0 %v3026
          %3356 = vmatprep.subr.bf16.mxu0 %v3035
          %3357 = vmatpush1.bf16.msra.mxu0 %v3034
          %3358 = vmatprep.subr.bf16.mxu0 %v3043
          %3359 = vmatpush1.bf16.msra.mxu0 %v3042
          %3360 = vmatprep.subr.bf16.mxu0 %v3051
          %3361 = vmatpush1.bf16.msra.mxu0 %v3050
          %3362 = vmatprep.subr.bf16.mxu0 %v3059
          %3363 = vmatpush1.bf16.msra.mxu0 %v3058
          %3364 = vmatprep.subr.bf16.mxu0 %v3067
          %3365 = vmatpush1.bf16.msra.mxu0 %v3066
          %3366 = vmatprep.subr.bf16.mxu0 %v3075
          %3367 = vmatpush1.bf16.msra.mxu0 %v3074
          %3368 = vmatprep.subr.bf16.mxu0 %v3083
          %3369 = vmatpush1.bf16.msra.mxu0 %v3082
          %3370 = vmatprep.subr.bf16.mxu0 %v3091
          %3371 = vmatpush1.bf16.msra.mxu0 %v3090
          %3372 = vmatprep.subr.bf16.mxu0 %v3099
          %3373 = vmatpush1.bf16.msra.mxu0 %v3098
          %3374 = vmatprep.subr.bf16.mxu0 %v3107
          %3375 = vmatpush1.bf16.msra.mxu0 %v3106
          %3376 = vmatprep.subr.bf16.mxu0 %v3115
          %3377 = vmatpush1.bf16.msra.mxu0 %v3114
          %3378 = vmatprep.subr.bf16.mxu0 %v3123
          %3379 = vmatpush1.bf16.msra.mxu0 %v3122
          %3380 = vmatprep.subr.bf16.mxu0 %v3131
          %3381 = vmatpush1.bf16.msra.mxu0 %v3130
          %3382 = vmatprep.subr.bf16.mxu0 %v3139
          %3383 = vmatpush1.bf16.msra.mxu0 %v3138
          %3384 = vmatprep.mubr.bf16.mxu0 %v2627
          %3385 = vmatmul.mubr.bf16.gmra.mrb[0].mxu0 %v2626
          %v3386 = vpop.f32.mrb[0].mxu0
          %v3387 = vadd.f32 0.0, %v3386
          %v3388 = vpop.f32.mrb[0].mxu0
          %v3389 = vadd.f32 0.0, %v3388
          %v3390 = vpop.f32.mrb[0].mxu0
          %v3391 = vpop.f32.mrb[0].mxu0
          %3392 = vdwg.mxu0
          %3393 = vmatprep.subr.bf16.mxu0 %v3021
          %3394 = vmatpush1.bf16.msra.mxu0 %v3020
          %3395 = vmatprep.subr.bf16.mxu0 %v3029
          %3396 = vmatpush1.bf16.msra.mxu0 %v3028
          %3397 = vmatprep.subr.bf16.mxu0 %v3037
          %3398 = vmatpush1.bf16.msra.mxu0 %v3036
          %3399 = vmatprep.subr.bf16.mxu0 %v3045
          %3400 = vmatpush1.bf16.msra.mxu0 %v3044
          %3401 = vmatprep.subr.bf16.mxu0 %v3053
          %3402 = vmatpush1.bf16.msra.mxu0 %v3052
          %3403 = vmatprep.subr.bf16.mxu0 %v3061
          %3404 = vmatpush1.bf16.msra.mxu0 %v3060
          %3405 = vmatprep.subr.bf16.mxu0 %v3069
          %3406 = vmatpush1.bf16.msra.mxu0 %v3068
          %3407 = vmatprep.subr.bf16.mxu0 %v3077
          %3408 = vmatpush1.bf16.msra.mxu0 %v3076
          %3409 = vmatprep.subr.bf16.mxu0 %v3085
          %3410 = vmatpush1.bf16.msra.mxu0 %v3084
          %3411 = vmatprep.subr.bf16.mxu0 %v3093
          %3412 = vmatpush1.bf16.msra.mxu0 %v3092
          %3413 = vmatprep.subr.bf16.mxu0 %v3101
          %3414 = vmatpush1.bf16.msra.mxu0 %v3100
          %3415 = vmatprep.subr.bf16.mxu0 %v3109
          %3416 = vmatpush1.bf16.msra.mxu0 %v3108
          %3417 = vmatprep.subr.bf16.mxu0 %v3117
          %3418 = vmatpush1.bf16.msra.mxu0 %v3116
          %3419 = vmatprep.subr.bf16.mxu0 %v3125
          %3420 = vmatpush1.bf16.msra.mxu0 %v3124
          %3421 = vmatprep.subr.bf16.mxu0 %v3133
          %3422 = vmatpush1.bf16.msra.mxu0 %v3132
          %3423 = vmatprep.subr.bf16.mxu0 %v3141
          %3424 = vmatpush1.bf16.msra.mxu0 %v3140
          %3425 = vmatprep.mubr.bf16.mxu0 %v2627
          %3426 = vmatmul.mubr.bf16.gmra.mrb[0].mxu0 %v2626
          %v3427 = vpop.f32.mrb[0].mxu0
          %v3428 = vadd.f32 0.0, %v3427
          %v3429 = vpop.f32.mrb[0].mxu0
          %v3430 = vadd.f32 0.0, %v3429
          %v3431 = vpop.f32.mrb[0].mxu0
          %v3432 = vpop.f32.mrb[0].mxu0
          %3433 = vdwg.mxu0
          %v3562 = vunpack.c.l.b16 %v2368
          %v3563 = vunpack.c.h.b16 %v2368
          %v3564 = vunpack.c.l.b16 %v2369
          %v3565 = vunpack.c.h.b16 %v2369
          %v3566 = vunpack.c.l.b16 %v2370
          %v3567 = vunpack.c.h.b16 %v2370
          %v3568 = vunpack.c.l.b16 %v2371
          %v3569 = vunpack.c.h.b16 %v2371
          %v3570 = vunpack.c.l.b16 %v2372
          %v3571 = vunpack.c.h.b16 %v2372
          %v3572 = vunpack.c.l.b16 %v2373
          %v3573 = vunpack.c.h.b16 %v2373
          %v3574 = vunpack.c.l.b16 %v2374
          %v3575 = vunpack.c.h.b16 %v2374
          %v3576 = vunpack.c.l.b16 %v2375
          %v3577 = vunpack.c.h.b16 %v2375
          %v3578 = vunpack.c.l.b16 %v2376
          %v3579 = vunpack.c.h.b16 %v2376
          %v3580 = vunpack.c.l.b16 %v2377
          %v3581 = vunpack.c.h.b16 %v2377
          %v3582 = vunpack.c.l.b16 %v2378
          %v3583 = vunpack.c.h.b16 %v2378
          %v3584 = vunpack.c.l.b16 %v2379
          %v3585 = vunpack.c.h.b16 %v2379
          %v3586 = vunpack.c.l.b16 %v2380
          %v3587 = vunpack.c.h.b16 %v2380
          %v3588 = vunpack.c.l.b16 %v2381
          %v3589 = vunpack.c.h.b16 %v2381
          %v3590 = vunpack.c.l.b16 %v2382
          %v3591 = vunpack.c.h.b16 %v2382
          %v3592 = vunpack.c.l.b16 %v2383
          %v3593 = vunpack.c.h.b16 %v2383
          %v3594 = vunpack.c.l.b16 %v2384
          %v3595 = vunpack.c.h.b16 %v2384
          %v3596 = vunpack.c.l.b16 %v2385
          %v3597 = vunpack.c.h.b16 %v2385
          %v3598 = vunpack.c.l.b16 %v2386
          %v3599 = vunpack.c.h.b16 %v2386
          %v3600 = vunpack.c.l.b16 %v2387
          %v3601 = vunpack.c.h.b16 %v2387
          %v3602 = vunpack.c.l.b16 %v2388
          %v3603 = vunpack.c.h.b16 %v2388
          %v3604 = vunpack.c.l.b16 %v2389
          %v3605 = vunpack.c.h.b16 %v2389
          %v3606 = vunpack.c.l.b16 %v2390
          %v3607 = vunpack.c.h.b16 %v2390
          %v3608 = vunpack.c.l.b16 %v2391
          %v3609 = vunpack.c.h.b16 %v2391
          %v3610 = vunpack.c.l.b16 %v2392
          %v3611 = vunpack.c.h.b16 %v2392
          %v3612 = vunpack.c.l.b16 %v2393
          %v3613 = vunpack.c.h.b16 %v2393
          %v3614 = vunpack.c.l.b16 %v2394
          %v3615 = vunpack.c.h.b16 %v2394
          %v3616 = vunpack.c.l.b16 %v2395
          %v3617 = vunpack.c.h.b16 %v2395
          %v3618 = vunpack.c.l.b16 %v2396
          %v3619 = vunpack.c.h.b16 %v2396
          %v3620 = vunpack.c.l.b16 %v2397
          %v3621 = vunpack.c.h.b16 %v2397
          %v3622 = vunpack.c.l.b16 %v2398
          %v3623 = vunpack.c.h.b16 %v2398
          %v3624 = vunpack.c.l.b16 %v2399
          %v3625 = vunpack.c.h.b16 %v2399
          %v3626 = vunpack.c.l.b16 %v2400
          %v3627 = vunpack.c.h.b16 %v2400
          %v3628 = vunpack.c.l.b16 %v2401
          %v3629 = vunpack.c.h.b16 %v2401
          %v3630 = vunpack.c.l.b16 %v2402
          %v3631 = vunpack.c.h.b16 %v2402
          %v3632 = vunpack.c.l.b16 %v2403
          %v3633 = vunpack.c.h.b16 %v2403
          %v3634 = vunpack.c.l.b16 %v2404
          %v3635 = vunpack.c.h.b16 %v2404
          %v3636 = vunpack.c.l.b16 %v2405
          %v3637 = vunpack.c.h.b16 %v2405
          %v3638 = vunpack.c.l.b16 %v2406
          %v3639 = vunpack.c.h.b16 %v2406
          %v3640 = vunpack.c.l.b16 %v2407
          %v3641 = vunpack.c.h.b16 %v2407
          %v3642 = vunpack.c.l.b16 %v2408
          %v3643 = vunpack.c.h.b16 %v2408
          %v3644 = vunpack.c.l.b16 %v2409
          %v3645 = vunpack.c.h.b16 %v2409
          %v3646 = vunpack.c.l.b16 %v2410
          %v3647 = vunpack.c.h.b16 %v2410
          %v3648 = vunpack.c.l.b16 %v2411
          %v3649 = vunpack.c.h.b16 %v2411
          %v3650 = vunpack.c.l.b16 %v2412
          %v3651 = vunpack.c.h.b16 %v2412
          %v3652 = vunpack.c.l.b16 %v2413
          %v3653 = vunpack.c.h.b16 %v2413
          %v3654 = vunpack.c.l.b16 %v2414
          %v3655 = vunpack.c.h.b16 %v2414
          %v3656 = vunpack.c.l.b16 %v2415
          %v3657 = vunpack.c.h.b16 %v2415
          %v3658 = vunpack.c.l.b16 %v2416
          %v3659 = vunpack.c.h.b16 %v2416
          %v3660 = vunpack.c.l.b16 %v2417
          %v3661 = vunpack.c.h.b16 %v2417
          %v3662 = vunpack.c.l.b16 %v2418
          %v3663 = vunpack.c.h.b16 %v2418
          %v3664 = vunpack.c.l.b16 %v2419
          %v3665 = vunpack.c.h.b16 %v2419
          %v3666 = vunpack.c.l.b16 %v2420
          %v3667 = vunpack.c.h.b16 %v2420
          %v3668 = vunpack.c.l.b16 %v2421
          %v3669 = vunpack.c.h.b16 %v2421
          %v3670 = vunpack.c.l.b16 %v2422
          %v3671 = vunpack.c.h.b16 %v2422
          %v3672 = vunpack.c.l.b16 %v2423
          %v3673 = vunpack.c.h.b16 %v2423
          %v3674 = vunpack.c.l.b16 %v2424
          %v3675 = vunpack.c.h.b16 %v2424
          %v3676 = vunpack.c.l.b16 %v2425
          %v3677 = vunpack.c.h.b16 %v2425
          %v3678 = vunpack.c.l.b16 %v2426
          %v3679 = vunpack.c.h.b16 %v2426
          %v3680 = vunpack.c.l.b16 %v2427
          %v3681 = vunpack.c.h.b16 %v2427
          %v3682 = vunpack.c.l.b16 %v2428
          %v3683 = vunpack.c.h.b16 %v2428
          %v3684 = vunpack.c.l.b16 %v2429
          %v3685 = vunpack.c.h.b16 %v2429
          %v3686 = vunpack.c.l.b16 %v2430
          %v3687 = vunpack.c.h.b16 %v2430
          %v3688 = vunpack.c.l.b16 %v2431
          %v3689 = vunpack.c.h.b16 %v2431
          %v3690 = vunpack.c.l.b16 %v2432
          %v3691 = vunpack.c.h.b16 %v2432
          %v3692 = vunpack.c.l.b16 %v2433
          %v3693 = vunpack.c.h.b16 %v2433
          %v3694 = vunpack.c.l.b16 %v2434
          %v3695 = vunpack.c.h.b16 %v2434
          %v3696 = vunpack.c.l.b16 %v2435
          %v3697 = vunpack.c.h.b16 %v2435
          %v3698 = vunpack.c.l.b16 %v2436
          %v3699 = vunpack.c.h.b16 %v2436
          %v3700 = vunpack.c.l.b16 %v2437
          %v3701 = vunpack.c.h.b16 %v2437
          %v3702 = vunpack.c.l.b16 %v2438
          %v3703 = vunpack.c.h.b16 %v2438
          %v3704 = vunpack.c.l.b16 %v2439
          %v3705 = vunpack.c.h.b16 %v2439
          %v3706 = vunpack.c.l.b16 %v2440
          %v3707 = vunpack.c.h.b16 %v2440
          %v3708 = vunpack.c.l.b16 %v2441
          %v3709 = vunpack.c.h.b16 %v2441
          %v3710 = vunpack.c.l.b16 %v2442
          %v3711 = vunpack.c.h.b16 %v2442
          %v3712 = vunpack.c.l.b16 %v2443
          %v3713 = vunpack.c.h.b16 %v2443
          %v3714 = vunpack.c.l.b16 %v2444
          %v3715 = vunpack.c.h.b16 %v2444
          %v3716 = vunpack.c.l.b16 %v2445
          %v3717 = vunpack.c.h.b16 %v2445
          %v3718 = vunpack.c.l.b16 %v2446
          %v3719 = vunpack.c.h.b16 %v2446
          %v3720 = vunpack.c.l.b16 %v2447
          %v3721 = vunpack.c.h.b16 %v2447
          %v3722 = vunpack.c.l.b16 %v2448
          %v3723 = vunpack.c.h.b16 %v2448
          %v3724 = vunpack.c.l.b16 %v2449
          %v3725 = vunpack.c.h.b16 %v2449
          %v3726 = vunpack.c.l.b16 %v2450
          %v3727 = vunpack.c.h.b16 %v2450
          %v3728 = vunpack.c.l.b16 %v2451
          %v3729 = vunpack.c.h.b16 %v2451
          %v3730 = vunpack.c.l.b16 %v2452
          %v3731 = vunpack.c.h.b16 %v2452
          %v3732 = vunpack.c.l.b16 %v2453
          %v3733 = vunpack.c.h.b16 %v2453
          %v3734 = vunpack.c.l.b16 %v2454
          %v3735 = vunpack.c.h.b16 %v2454
          %v3736 = vunpack.c.l.b16 %v2455
          %v3737 = vunpack.c.h.b16 %v2455
          %v3738 = vunpack.c.l.b16 %v2456
          %v3739 = vunpack.c.h.b16 %v2456
          %v3740 = vunpack.c.l.b16 %v2457
          %v3741 = vunpack.c.h.b16 %v2457
          %v3742 = vunpack.c.l.b16 %v2458
          %v3743 = vunpack.c.h.b16 %v2458
          %v3744 = vunpack.c.l.b16 %v2459
          %v3745 = vunpack.c.h.b16 %v2459
          %v3746 = vunpack.c.l.b16 %v2460
          %v3747 = vunpack.c.h.b16 %v2460
          %v3748 = vunpack.c.l.b16 %v2461
          %v3749 = vunpack.c.h.b16 %v2461
          %v3750 = vunpack.c.l.b16 %v2462
          %v3751 = vunpack.c.h.b16 %v2462
          %v3752 = vunpack.c.l.b16 %v2463
          %v3753 = vunpack.c.h.b16 %v2463
          %v3754 = vunpack.c.l.b16 %v2464
          %v3755 = vunpack.c.h.b16 %v2464
          %v3756 = vunpack.c.l.b16 %v2465
          %v3757 = vunpack.c.h.b16 %v2465
          %v3758 = vunpack.c.l.b16 %v2466
          %v3759 = vunpack.c.h.b16 %v2466
          %v3760 = vunpack.c.l.b16 %v2467
          %v3761 = vunpack.c.h.b16 %v2467
          %v3762 = vunpack.c.l.b16 %v2468
          %v3763 = vunpack.c.h.b16 %v2468
          %v3764 = vunpack.c.l.b16 %v2469
          %v3765 = vunpack.c.h.b16 %v2469
          %v3766 = vunpack.c.l.b16 %v2470
          %v3767 = vunpack.c.h.b16 %v2470
          %v3768 = vunpack.c.l.b16 %v2471
          %v3769 = vunpack.c.h.b16 %v2471
          %v3770 = vunpack.c.l.b16 %v2472
          %v3771 = vunpack.c.h.b16 %v2472
          %v3772 = vunpack.c.l.b16 %v2473
          %v3773 = vunpack.c.h.b16 %v2473
          %v3774 = vunpack.c.l.b16 %v2474
          %v3775 = vunpack.c.h.b16 %v2474
          %v3776 = vunpack.c.l.b16 %v2475
          %v3777 = vunpack.c.h.b16 %v2475
          %v3778 = vunpack.c.l.b16 %v2476
          %v3779 = vunpack.c.h.b16 %v2476
          %v3780 = vunpack.c.l.b16 %v2477
          %v3781 = vunpack.c.h.b16 %v2477
          %v3782 = vunpack.c.l.b16 %v2478
          %v3783 = vunpack.c.h.b16 %v2478
          %v3784 = vunpack.c.l.b16 %v2479
          %v3785 = vunpack.c.h.b16 %v2479
          %v3786 = vunpack.c.l.b16 %v2480
          %v3787 = vunpack.c.h.b16 %v2480
          %v3788 = vunpack.c.l.b16 %v2481
          %v3789 = vunpack.c.h.b16 %v2481
          %v3790 = vunpack.c.l.b16 %v2482
          %v3791 = vunpack.c.h.b16 %v2482
          %v3792 = vunpack.c.l.b16 %v2483
          %v3793 = vunpack.c.h.b16 %v2483
          %v3794 = vunpack.c.l.b16 %v2484
          %v3795 = vunpack.c.h.b16 %v2484
          %v3796 = vunpack.c.l.b16 %v2485
          %v3797 = vunpack.c.h.b16 %v2485
          %v3798 = vunpack.c.l.b16 %v2486
          %v3799 = vunpack.c.h.b16 %v2486
          %v3800 = vunpack.c.l.b16 %v2487
          %v3801 = vunpack.c.h.b16 %v2487
          %v3802 = vunpack.c.l.b16 %v2488
          %v3803 = vunpack.c.h.b16 %v2488
          %v3804 = vunpack.c.l.b16 %v2489
          %v3805 = vunpack.c.h.b16 %v2489
          %v3806 = vunpack.c.l.b16 %v2490
          %v3807 = vunpack.c.h.b16 %v2490
          %v3808 = vunpack.c.l.b16 %v2491
          %v3809 = vunpack.c.h.b16 %v2491
          %v3810 = vunpack.c.l.b16 %v2492
          %v3811 = vunpack.c.h.b16 %v2492
          %v3812 = vunpack.c.l.b16 %v2493
          %v3813 = vunpack.c.h.b16 %v2493
          %v3814 = vunpack.c.l.b16 %v2494
          %v3815 = vunpack.c.h.b16 %v2494
          %v3816 = vunpack.c.l.b16 %v2495
          %v3817 = vunpack.c.h.b16 %v2495
          %v3818 = vpack.c.b16 %v3570, %v3562
          %v3819 = vpack.c.b16 %v3571, %v3563
          %v3820 = vpack.c.b16 %v3572, %v3564
          %v3821 = vpack.c.b16 %v3573, %v3565
          %v3822 = vpack.c.b16 %v3574, %v3566
          %v3823 = vpack.c.b16 %v3575, %v3567
          %v3824 = vpack.c.b16 %v3576, %v3568
          %v3825 = vpack.c.b16 %v3577, %v3569
          %v3826 = vpack.c.b16 %v3586, %v3578
          %v3827 = vpack.c.b16 %v3587, %v3579
          %v3828 = vpack.c.b16 %v3588, %v3580
          %v3829 = vpack.c.b16 %v3589, %v3581
          %v3830 = vpack.c.b16 %v3590, %v3582
          %v3831 = vpack.c.b16 %v3591, %v3583
          %v3832 = vpack.c.b16 %v3592, %v3584
          %v3833 = vpack.c.b16 %v3593, %v3585
          %v3834 = vpack.c.b16 %v3602, %v3594
          %v3835 = vpack.c.b16 %v3603, %v3595
          %v3836 = vpack.c.b16 %v3604, %v3596
          %v3837 = vpack.c.b16 %v3605, %v3597
          %v3838 = vpack.c.b16 %v3606, %v3598
          %v3839 = vpack.c.b16 %v3607, %v3599
          %v3840 = vpack.c.b16 %v3608, %v3600
          %v3841 = vpack.c.b16 %v3609, %v3601
          %v3842 = vpack.c.b16 %v3618, %v3610
          %v3843 = vpack.c.b16 %v3619, %v3611
          %v3844 = vpack.c.b16 %v3620, %v3612
          %v3845 = vpack.c.b16 %v3621, %v3613
          %v3846 = vpack.c.b16 %v3622, %v3614
          %v3847 = vpack.c.b16 %v3623, %v3615
          %v3848 = vpack.c.b16 %v3624, %v3616
          %v3849 = vpack.c.b16 %v3625, %v3617
          %v3850 = vpack.c.b16 %v3634, %v3626
          %v3851 = vpack.c.b16 %v3635, %v3627
          %v3852 = vpack.c.b16 %v3636, %v3628
          %v3853 = vpack.c.b16 %v3637, %v3629
          %v3854 = vpack.c.b16 %v3638, %v3630
          %v3855 = vpack.c.b16 %v3639, %v3631
          %v3856 = vpack.c.b16 %v3640, %v3632
          %v3857 = vpack.c.b16 %v3641, %v3633
          %v3858 = vpack.c.b16 %v3650, %v3642
          %v3859 = vpack.c.b16 %v3651, %v3643
          %v3860 = vpack.c.b16 %v3652, %v3644
          %v3861 = vpack.c.b16 %v3653, %v3645
          %v3862 = vpack.c.b16 %v3654, %v3646
          %v3863 = vpack.c.b16 %v3655, %v3647
          %v3864 = vpack.c.b16 %v3656, %v3648
          %v3865 = vpack.c.b16 %v3657, %v3649
          %v3866 = vpack.c.b16 %v3666, %v3658
          %v3867 = vpack.c.b16 %v3667, %v3659
          %v3868 = vpack.c.b16 %v3668, %v3660
          %v3869 = vpack.c.b16 %v3669, %v3661
          %v3870 = vpack.c.b16 %v3670, %v3662
          %v3871 = vpack.c.b16 %v3671, %v3663
          %v3872 = vpack.c.b16 %v3672, %v3664
          %v3873 = vpack.c.b16 %v3673, %v3665
          %v3874 = vpack.c.b16 %v3682, %v3674
          %v3875 = vpack.c.b16 %v3683, %v3675
          %v3876 = vpack.c.b16 %v3684, %v3676
          %v3877 = vpack.c.b16 %v3685, %v3677
          %v3878 = vpack.c.b16 %v3686, %v3678
          %v3879 = vpack.c.b16 %v3687, %v3679
          %v3880 = vpack.c.b16 %v3688, %v3680
          %v3881 = vpack.c.b16 %v3689, %v3681
          %v3882 = vpack.c.b16 %v3698, %v3690
          %v3883 = vpack.c.b16 %v3699, %v3691
          %v3884 = vpack.c.b16 %v3700, %v3692
          %v3885 = vpack.c.b16 %v3701, %v3693
          %v3886 = vpack.c.b16 %v3702, %v3694
          %v3887 = vpack.c.b16 %v3703, %v3695
          %v3888 = vpack.c.b16 %v3704, %v3696
          %v3889 = vpack.c.b16 %v3705, %v3697
          %v3890 = vpack.c.b16 %v3714, %v3706
          %v3891 = vpack.c.b16 %v3715, %v3707
          %v3892 = vpack.c.b16 %v3716, %v3708
          %v3893 = vpack.c.b16 %v3717, %v3709
          %v3894 = vpack.c.b16 %v3718, %v3710
          %v3895 = vpack.c.b16 %v3719, %v3711
          %v3896 = vpack.c.b16 %v3720, %v3712
          %v3897 = vpack.c.b16 %v3721, %v3713
          %v3898 = vpack.c.b16 %v3730, %v3722
          %v3899 = vpack.c.b16 %v3731, %v3723
          %v3900 = vpack.c.b16 %v3732, %v3724
          %v3901 = vpack.c.b16 %v3733, %v3725
          %v3902 = vpack.c.b16 %v3734, %v3726
          %v3903 = vpack.c.b16 %v3735, %v3727
          %v3904 = vpack.c.b16 %v3736, %v3728
          %v3905 = vpack.c.b16 %v3737, %v3729
          %v3906 = vpack.c.b16 %v3746, %v3738
          %v3907 = vpack.c.b16 %v3747, %v3739
          %v3908 = vpack.c.b16 %v3748, %v3740
          %v3909 = vpack.c.b16 %v3749, %v3741
          %v3910 = vpack.c.b16 %v3750, %v3742
          %v3911 = vpack.c.b16 %v3751, %v3743
          %v3912 = vpack.c.b16 %v3752, %v3744
          %v3913 = vpack.c.b16 %v3753, %v3745
          %v3914 = vpack.c.b16 %v3762, %v3754
          %v3915 = vpack.c.b16 %v3763, %v3755
          %v3916 = vpack.c.b16 %v3764, %v3756
          %v3917 = vpack.c.b16 %v3765, %v3757
          %v3918 = vpack.c.b16 %v3766, %v3758
          %v3919 = vpack.c.b16 %v3767, %v3759
          %v3920 = vpack.c.b16 %v3768, %v3760
          %v3921 = vpack.c.b16 %v3769, %v3761
          %v3922 = vpack.c.b16 %v3778, %v3770
          %v3923 = vpack.c.b16 %v3779, %v3771
          %v3924 = vpack.c.b16 %v3780, %v3772
          %v3925 = vpack.c.b16 %v3781, %v3773
          %v3926 = vpack.c.b16 %v3782, %v3774
          %v3927 = vpack.c.b16 %v3783, %v3775
          %v3928 = vpack.c.b16 %v3784, %v3776
          %v3929 = vpack.c.b16 %v3785, %v3777
          %v3930 = vpack.c.b16 %v3794, %v3786
          %v3931 = vpack.c.b16 %v3795, %v3787
          %v3932 = vpack.c.b16 %v3796, %v3788
          %v3933 = vpack.c.b16 %v3797, %v3789
          %v3934 = vpack.c.b16 %v3798, %v3790
          %v3935 = vpack.c.b16 %v3799, %v3791
          %v3936 = vpack.c.b16 %v3800, %v3792
          %v3937 = vpack.c.b16 %v3801, %v3793
          %v3938 = vpack.c.b16 %v3810, %v3802
          %v3939 = vpack.c.b16 %v3811, %v3803
          %v3940 = vpack.c.b16 %v3812, %v3804
          %v3941 = vpack.c.b16 %v3813, %v3805
          %v3942 = vpack.c.b16 %v3814, %v3806
          %v3943 = vpack.c.b16 %v3815, %v3807
          %v3944 = vpack.c.b16 %v3816, %v3808
          %v3945 = vpack.c.b16 %v3817, %v3809
          %4074 = vmatprep.subr.bf16.mxu0 %v3819
          %4075 = vmatpush1.bf16.msra.mxu0 %v3818
          %4076 = vmatprep.subr.bf16.mxu0 %v3827
          %4077 = vmatpush1.bf16.msra.mxu0 %v3826
          %4078 = vmatprep.subr.bf16.mxu0 %v3835
          %4079 = vmatpush1.bf16.msra.mxu0 %v3834
          %4080 = vmatprep.subr.bf16.mxu0 %v3843
          %4081 = vmatpush1.bf16.msra.mxu0 %v3842
          %4082 = vmatprep.subr.bf16.mxu0 %v3851
          %4083 = vmatpush1.bf16.msra.mxu0 %v3850
          %4084 = vmatprep.subr.bf16.mxu0 %v3859
          %4085 = vmatpush1.bf16.msra.mxu0 %v3858
          %4086 = vmatprep.subr.bf16.mxu0 %v3867
          %4087 = vmatpush1.bf16.msra.mxu0 %v3866
          %4088 = vmatprep.subr.bf16.mxu0 %v3875
          %4089 = vmatpush1.bf16.msra.mxu0 %v3874
          %4090 = vmatprep.subr.bf16.mxu0 %v3883
          %4091 = vmatpush1.bf16.msra.mxu0 %v3882
          %4092 = vmatprep.subr.bf16.mxu0 %v3891
          %4093 = vmatpush1.bf16.msra.mxu0 %v3890
          %4094 = vmatprep.subr.bf16.mxu0 %v3899
          %4095 = vmatpush1.bf16.msra.mxu0 %v3898
          %4096 = vmatprep.subr.bf16.mxu0 %v3907
          %4097 = vmatpush1.bf16.msra.mxu0 %v3906
          %4098 = vmatprep.subr.bf16.mxu0 %v3915
          %4099 = vmatpush1.bf16.msra.mxu0 %v3914
          %4100 = vmatprep.subr.bf16.mxu0 %v3923
          %4101 = vmatpush1.bf16.msra.mxu0 %v3922
          %4102 = vmatprep.subr.bf16.mxu0 %v3931
          %4103 = vmatpush1.bf16.msra.mxu0 %v3930
          %4104 = vmatprep.subr.bf16.mxu0 %v3939
          %4105 = vmatpush1.bf16.msra.mxu0 %v3938
          %4106 = vmatprep.mubr.bf16.mxu0 %v2367
          %4107 = vmatmul.mubr.bf16.gmra.mrb[0].mxu0 %v2366
          %v4108 = vpop.f32.mrb[0].mxu0
          %v4109 = vadd.f32 %v3305, %v4108
          %v4110 = vpop.f32.mrb[0].mxu0
          %v4111 = vadd.f32 %v3307, %v4110
          %v4112 = vpop.f32.mrb[0].mxu0
          %v4113 = vpop.f32.mrb[0].mxu0
          %4114 = vdwg.mxu0
          %4115 = vmatprep.subr.bf16.mxu0 %v3821
          %4116 = vmatpush1.bf16.msra.mxu0 %v3820
          %4117 = vmatprep.subr.bf16.mxu0 %v3829
          %4118 = vmatpush1.bf16.msra.mxu0 %v3828
          %4119 = vmatprep.subr.bf16.mxu0 %v3837
          %4120 = vmatpush1.bf16.msra.mxu0 %v3836
          %4121 = vmatprep.subr.bf16.mxu0 %v3845
          %4122 = vmatpush1.bf16.msra.mxu0 %v3844
          %4123 = vmatprep.subr.bf16.mxu0 %v3853
          %4124 = vmatpush1.bf16.msra.mxu0 %v3852
          %4125 = vmatprep.subr.bf16.mxu0 %v3861
          %4126 = vmatpush1.bf16.msra.mxu0 %v3860
          %4127 = vmatprep.subr.bf16.mxu0 %v3869
          %4128 = vmatpush1.bf16.msra.mxu0 %v3868
          %4129 = vmatprep.subr.bf16.mxu0 %v3877
          %4130 = vmatpush1.bf16.msra.mxu0 %v3876
          %4131 = vmatprep.subr.bf16.mxu0 %v3885
          %4132 = vmatpush1.bf16.msra.mxu0 %v3884
          %4133 = vmatprep.subr.bf16.mxu0 %v3893
          %4134 = vmatpush1.bf16.msra.mxu0 %v3892
          %4135 = vmatprep.subr.bf16.mxu0 %v3901
          %4136 = vmatpush1.bf16.msra.mxu0 %v3900
          %4137 = vmatprep.subr.bf16.mxu0 %v3909
          %4138 = vmatpush1.bf16.msra.mxu0 %v3908
          %4139 = vmatprep.subr.bf16.mxu0 %v3917
          %4140 = vmatpush1.bf16.msra.mxu0 %v3916
          %4141 = vmatprep.subr.bf16.mxu0 %v3925
          %4142 = vmatpush1.bf16.msra.mxu0 %v3924
          %4143 = vmatprep.subr.bf16.mxu0 %v3933
          %4144 = vmatpush1.bf16.msra.mxu0 %v3932
          %4145 = vmatprep.subr.bf16.mxu0 %v3941
          %4146 = vmatpush1.bf16.msra.mxu0 %v3940
          %4147 = vmatprep.mubr.bf16.mxu0 %v2367
          %4148 = vmatmul.mubr.bf16.gmra.mrb[0].mxu0 %v2366
          %v4149 = vpop.f32.mrb[0].mxu0
          %v4150 = vadd.f32 %v3346, %v4149
          %v4151 = vpop.f32.mrb[0].mxu0
          %v4152 = vadd.f32 %v3348, %v4151
          %v4153 = vpop.f32.mrb[0].mxu0
          %v4154 = vpop.f32.mrb[0].mxu0
          %4155 = vdwg.mxu0
          %4156 = vmatprep.subr.bf16.mxu0 %v3823
          %4157 = vmatpush1.bf16.msra.mxu0 %v3822
          %4158 = vmatprep.subr.bf16.mxu0 %v3831
          %4159 = vmatpush1.bf16.msra.mxu0 %v3830
          %4160 = vmatprep.subr.bf16.mxu0 %v3839
          %4161 = vmatpush1.bf16.msra.mxu0 %v3838
          %4162 = vmatprep.subr.bf16.mxu0 %v3847
          %4163 = vmatpush1.bf16.msra.mxu0 %v3846
          %4164 = vmatprep.subr.bf16.mxu0 %v3855
          %4165 = vmatpush1.bf16.msra.mxu0 %v3854
          %4166 = vmatprep.subr.bf16.mxu0 %v3863
          %4167 = vmatpush1.bf16.msra.mxu0 %v3862
          %4168 = vmatprep.subr.bf16.mxu0 %v3871
          %4169 = vmatpush1.bf16.msra.mxu0 %v3870
          %4170 = vmatprep.subr.bf16.mxu0 %v3879
          %4171 = vmatpush1.bf16.msra.mxu0 %v3878
          %4172 = vmatprep.subr.bf16.mxu0 %v3887
          %4173 = vmatpush1.bf16.msra.mxu0 %v3886
          %4174 = vmatprep.subr.bf16.mxu0 %v3895
          %4175 = vmatpush1.bf16.msra.mxu0 %v3894
          %4176 = vmatprep.subr.bf16.mxu0 %v3903
          %4177 = vmatpush1.bf16.msra.mxu0 %v3902
          %4178 = vmatprep.subr.bf16.mxu0 %v3911
          %4179 = vmatpush1.bf16.msra.mxu0 %v3910
          %4180 = vmatprep.subr.bf16.mxu0 %v3919
          %4181 = vmatpush1.bf16.msra.mxu0 %v3918
          %4182 = vmatprep.subr.bf16.mxu0 %v3927
          %4183 = vmatpush1.bf16.msra.mxu0 %v3926
          %4184 = vmatprep.subr.bf16.mxu0 %v3935
          %4185 = vmatpush1.bf16.msra.mxu0 %v3934
          %4186 = vmatprep.subr.bf16.mxu0 %v3943
          %4187 = vmatpush1.bf16.msra.mxu0 %v3942
          %4188 = vmatprep.mubr.bf16.mxu0 %v2367
          %4189 = vmatmul.mubr.bf16.gmra.mrb[0].mxu0 %v2366
          %v4190 = vpop.f32.mrb[0].mxu0
          %v4191 = vadd.f32 %v3387, %v4190
          %v4192 = vpop.f32.mrb[0].mxu0
          %v4193 = vadd.f32 %v3389, %v4192
          %v4194 = vpop.f32.mrb[0].mxu0
          %v4195 = vpop.f32.mrb[0].mxu0
          %4196 = vdwg.mxu0
          %4197 = vmatprep.subr.bf16.mxu0 %v3825
          %4198 = vmatpush1.bf16.msra.mxu0 %v3824
          %4199 = vmatprep.subr.bf16.mxu0 %v3833
          %4200 = vmatpush1.bf16.msra.mxu0 %v3832
          %4201 = vmatprep.subr.bf16.mxu0 %v3841
          %4202 = vmatpush1.bf16.msra.mxu0 %v3840
          %4203 = vmatprep.subr.bf16.mxu0 %v3849
          %4204 = vmatpush1.bf16.msra.mxu0 %v3848
          %4205 = vmatprep.subr.bf16.mxu0 %v3857
          %4206 = vmatpush1.bf16.msra.mxu0 %v3856
          %4207 = vmatprep.subr.bf16.mxu0 %v3865
          %4208 = vmatpush1.bf16.msra.mxu0 %v3864
          %4209 = vmatprep.subr.bf16.mxu0 %v3873
          %4210 = vmatpush1.bf16.msra.mxu0 %v3872
          %4211 = vmatprep.subr.bf16.mxu0 %v3881
          %4212 = vmatpush1.bf16.msra.mxu0 %v3880
          %4213 = vmatprep.subr.bf16.mxu0 %v3889
          %4214 = vmatpush1.bf16.msra.mxu0 %v3888
          %4215 = vmatprep.subr.bf16.mxu0 %v3897
          %4216 = vmatpush1.bf16.msra.mxu0 %v3896
          %4217 = vmatprep.subr.bf16.mxu0 %v3905
          %4218 = vmatpush1.bf16.msra.mxu0 %v3904
          %4219 = vmatprep.subr.bf16.mxu0 %v3913
          %4220 = vmatpush1.bf16.msra.mxu0 %v3912
          %4221 = vmatprep.subr.bf16.mxu0 %v3921
          %4222 = vmatpush1.bf16.msra.mxu0 %v3920
          %4223 = vmatprep.subr.bf16.mxu0 %v3929
          %4224 = vmatpush1.bf16.msra.mxu0 %v3928
          %4225 = vmatprep.subr.bf16.mxu0 %v3937
          %4226 = vmatpush1.bf16.msra.mxu0 %v3936
          %4227 = vmatprep.subr.bf16.mxu0 %v3945
          %4228 = vmatpush1.bf16.msra.mxu0 %v3944
          %4229 = vmatprep.mubr.bf16.mxu0 %v2367
          %4230 = vmatmul.mubr.bf16.gmra.mrb[0].mxu0 %v2366
          %v4231 = vpop.f32.mrb[0].mxu0
          %v4232 = vadd.f32 %v3428, %v4231
          %v4233 = vpop.f32.mrb[0].mxu0
          %v4234 = vadd.f32 %v3430, %v4233
          %v4235 = vpop.f32.mrb[0].mxu0
          %v4236 = vpop.f32.mrb[0].mxu0
          %4237 = vdwg.mxu0
          %v4238 = vld [vmem:[#allocation21] sm:$0xff]
          %v4239 = vunpack.c.l.bf16 %v4238
          %v4240 = vunpack.c.h.bf16 %v4238
          %v4243 = vlaneseq
          %v4244 = vshrl.u32 %v4243, 7
          %v4245 = vsub.s32 0, %v4244
          %v4246 = vrot.slane %v4239, %v4245
          %v4247 = vlaneseq
          %v4248 = vshrl.u32 %v4247, 7
          %v4249 = vsub.s32 2, %v4248
          %v4250 = vrot.slane %v4239, %v4249
          %v4251 = vlaneseq
          %v4252 = vshrl.u32 %v4251, 7
          %v4253 = vsub.s32 4, %v4252
          %v4254 = vrot.slane %v4239, %v4253
          %v4255 = vlaneseq
          %v4256 = vshrl.u32 %v4255, 7
          %v4257 = vsub.s32 6, %v4256
          %v4258 = vrot.slane %v4239, %v4257
          %v4259 = vlaneseq
          %v4260 = vshrl.u32 %v4259, 7
          %v4261 = vsub.s32 0, %v4260
          %v4262 = vrot.slane %v4240, %v4261
          %v4263 = vlaneseq
          %v4264 = vshrl.u32 %v4263, 7
          %v4265 = vsub.s32 2, %v4264
          %v4266 = vrot.slane %v4240, %v4265
          %v4267 = vlaneseq
          %v4268 = vshrl.u32 %v4267, 7
          %v4269 = vsub.s32 4, %v4268
          %v4270 = vrot.slane %v4240, %v4269
          %v4271 = vlaneseq
          %v4272 = vshrl.u32 %v4271, 7
          %v4273 = vsub.s32 6, %v4272
          %v4274 = vrot.slane %v4240, %v4273
          %v4283 = vlaneseq
          %v4284 = vshrl.u32 %v4283, 7
          %v4285 = vsub.s32 0, %v4284
          %v4286 = vrot.slane %v4246, %v4285
          %v4287 = vlaneseq
          %v4288 = vshrl.u32 %v4287, 7
          %v4289 = vsub.s32 0, %v4288
          %v4290 = vrot.slane %v4250, %v4289
          %v4291 = vlaneseq
          %v4292 = vshrl.u32 %v4291, 7
          %v4293 = vsub.s32 0, %v4292
          %v4294 = vrot.slane %v4254, %v4293
          %v4295 = vlaneseq
          %v4296 = vshrl.u32 %v4295, 7
          %v4297 = vsub.s32 0, %v4296
          %v4298 = vrot.slane %v4258, %v4297
          %v4299 = vlaneseq
          %v4300 = vshrl.u32 %v4299, 7
          %v4301 = vsub.s32 0, %v4300
          %v4302 = vrot.slane %v4262, %v4301
          %v4303 = vlaneseq
          %v4304 = vshrl.u32 %v4303, 7
          %v4305 = vsub.s32 0, %v4304
          %v4306 = vrot.slane %v4266, %v4305
          %v4307 = vlaneseq
          %v4308 = vshrl.u32 %v4307, 7
          %v4309 = vsub.s32 0, %v4308
          %v4310 = vrot.slane %v4270, %v4309
          %v4311 = vlaneseq
          %v4312 = vshrl.u32 %v4311, 7
          %v4313 = vsub.s32 0, %v4312
          %v4314 = vrot.slane %v4274, %v4313
          %v4315 = vadd.f32 %v4109, %v4286
          %v4316 = vadd.f32 %v4111, %v4290
          %v4317 = vadd.f32 %v4150, %v4294
          %v4318 = vadd.f32 %v4152, %v4298
          %v4319 = vadd.f32 %v4191, %v4302
          %v4320 = vadd.f32 %v4193, %v4306
          %v4321 = vadd.f32 %v4232, %v4310
          %v4322 = vadd.f32 %v4234, %v4314
          %v4323 = vmax.f32 %v4315, 0.0
          %v4324 = vmax.f32 %v4316, 0.0
          %v4325 = vmax.f32 %v4317, 0.0
          %v4326 = vmax.f32 %v4318, 0.0
          %v4327 = vmax.f32 %v4319, 0.0
          %v4328 = vmax.f32 %v4320, 0.0
          %v4329 = vmax.f32 %v4321, 0.0
          %v4330 = vmax.f32 %v4322, 0.0
          %v4331 = vpack.c.bf16 %v4323, %v4323
          %v4332 = vpack.c.bf16 %v4324, %v4324
          %v4333 = vpack.c.bf16 %v4325, %v4325
          %v4334 = vpack.c.bf16 %v4326, %v4326
          %v4335 = vpack.c.bf16 %v4327, %v4327
          %v4336 = vpack.c.bf16 %v4328, %v4328
          %v4337 = vpack.c.bf16 %v4329, %v4329
          %v4338 = vpack.c.bf16 %v4330, %v4330
          %v4339 = vld [vmem:[#allocation23] sm:$0xff]
          %v4340 = vld [vmem:[#allocation23 + $0x8] sm:$0xff]
          %v4341 = vld [vmem:[#allocation23 + $0x10] sm:$0xff]
          %v4342 = vld [vmem:[#allocation23 + $0x18] sm:$0xff]
          %v4343 = vld [vmem:[#allocation23 + $0x20] sm:$0xff]
          %v4344 = vld [vmem:[#allocation23 + $0x28] sm:$0xff]
          %v4345 = vld [vmem:[#allocation23 + $0x30] sm:$0xff]
          %v4346 = vld [vmem:[#allocation23 + $0x38] sm:$0xff]
          %v4347 = vld [vmem:[#allocation23 + $0x40] sm:$0xff]
          %v4348 = vld [vmem:[#allocation23 + $0x48] sm:$0xff]
          %v4349 = vld [vmem:[#allocation23 + $0x50] sm:$0xff]
          %v4350 = vld [vmem:[#allocation23 + $0x58] sm:$0xff]
          %v4351 = vld [vmem:[#allocation23 + $0x60] sm:$0xff]
          %v4352 = vld [vmem:[#allocation23 + $0x68] sm:$0xff]
          %v4353 = vld [vmem:[#allocation23 + $0x70] sm:$0xff]
          %v4354 = vld [vmem:[#allocation23 + $0x78] sm:$0xff]
          %v4355 = vld [vmem:[#allocation23 + $0x80] sm:$0xff]
          %v4356 = vld [vmem:[#allocation23 + $0x88] sm:$0xff]
          %v4357 = vld [vmem:[#allocation23 + $0x90] sm:$0xff]
          %v4358 = vld [vmem:[#allocation23 + $0x98] sm:$0xff]
          %v4359 = vld [vmem:[#allocation23 + $0xa0] sm:$0xff]
          %v4360 = vld [vmem:[#allocation23 + $0xa8] sm:$0xff]
          %v4361 = vld [vmem:[#allocation23 + $0xb0] sm:$0xff]
          %v4362 = vld [vmem:[#allocation23 + $0xb8] sm:$0xff]
          %v4363 = vld [vmem:[#allocation23 + $0xc0] sm:$0xff]
          %v4364 = vld [vmem:[#allocation23 + $0xc8] sm:$0xff]
          %v4365 = vld [vmem:[#allocation23 + $0xd0] sm:$0xff]
          %v4366 = vld [vmem:[#allocation23 + $0xd8] sm:$0xff]
          %v4367 = vld [vmem:[#allocation23 + $0xe0] sm:$0xff]
          %v4368 = vld [vmem:[#allocation23 + $0xe8] sm:$0xff]
          %v4369 = vld [vmem:[#allocation23 + $0xf0] sm:$0xff]
          %v4370 = vld [vmem:[#allocation23 + $0xf8] sm:$0xff]
          %v4371 = vld [vmem:[#allocation23 + $0x100] sm:$0xff]
          %v4372 = vld [vmem:[#allocation23 + $0x108] sm:$0xff]
          %v4373 = vld [vmem:[#allocation23 + $0x110] sm:$0xff]
          %v4374 = vld [vmem:[#allocation23 + $0x118] sm:$0xff]
          %v4375 = vld [vmem:[#allocation23 + $0x120] sm:$0xff]
          %v4376 = vld [vmem:[#allocation23 + $0x128] sm:$0xff]
          %v4377 = vld [vmem:[#allocation23 + $0x130] sm:$0xff]
          %v4378 = vld [vmem:[#allocation23 + $0x138] sm:$0xff]
          %v4379 = vld [vmem:[#allocation23 + $0x140] sm:$0xff]
          %v4380 = vld [vmem:[#allocation23 + $0x148] sm:$0xff]
          %v4381 = vld [vmem:[#allocation23 + $0x150] sm:$0xff]
          %v4382 = vld [vmem:[#allocation23 + $0x158] sm:$0xff]
          %v4383 = vld [vmem:[#allocation23 + $0x160] sm:$0xff]
          %v4384 = vld [vmem:[#allocation23 + $0x168] sm:$0xff]
          %v4385 = vld [vmem:[#allocation23 + $0x170] sm:$0xff]
          %v4386 = vld [vmem:[#allocation23 + $0x178] sm:$0xff]
          %v4387 = vld [vmem:[#allocation23 + $0x180] sm:$0xff]
          %v4388 = vld [vmem:[#allocation23 + $0x188] sm:$0xff]
          %v4389 = vld [vmem:[#allocation23 + $0x190] sm:$0xff]
          %v4390 = vld [vmem:[#allocation23 + $0x198] sm:$0xff]
          %v4391 = vld [vmem:[#allocation23 + $0x1a0] sm:$0xff]
          %v4392 = vld [vmem:[#allocation23 + $0x1a8] sm:$0xff]
          %v4393 = vld [vmem:[#allocation23 + $0x1b0] sm:$0xff]
          %v4394 = vld [vmem:[#allocation23 + $0x1b8] sm:$0xff]
          %v4395 = vld [vmem:[#allocation23 + $0x1c0] sm:$0xff]
          %v4396 = vld [vmem:[#allocation23 + $0x1c8] sm:$0xff]
          %v4397 = vld [vmem:[#allocation23 + $0x1d0] sm:$0xff]
          %v4398 = vld [vmem:[#allocation23 + $0x1d8] sm:$0xff]
          %v4399 = vld [vmem:[#allocation23 + $0x1e0] sm:$0xff]
          %v4400 = vld [vmem:[#allocation23 + $0x1e8] sm:$0xff]
          %v4401 = vld [vmem:[#allocation23 + $0x1f0] sm:$0xff]
          %v4402 = vld [vmem:[#allocation23 + $0x1f8] sm:$0xff]
          %v4403 = vld [vmem:[#allocation23 + $0x200] sm:$0xff]
          %v4404 = vld [vmem:[#allocation23 + $0x208] sm:$0xff]
          %v4405 = vld [vmem:[#allocation23 + $0x210] sm:$0xff]
          %v4406 = vld [vmem:[#allocation23 + $0x218] sm:$0xff]
          %v4407 = vld [vmem:[#allocation23 + $0x220] sm:$0xff]
          %v4408 = vld [vmem:[#allocation23 + $0x228] sm:$0xff]
          %v4409 = vld [vmem:[#allocation23 + $0x230] sm:$0xff]
          %v4410 = vld [vmem:[#allocation23 + $0x238] sm:$0xff]
          %v4411 = vld [vmem:[#allocation23 + $0x240] sm:$0xff]
          %v4412 = vld [vmem:[#allocation23 + $0x248] sm:$0xff]
          %v4413 = vld [vmem:[#allocation23 + $0x250] sm:$0xff]
          %v4414 = vld [vmem:[#allocation23 + $0x258] sm:$0xff]
          %v4415 = vld [vmem:[#allocation23 + $0x260] sm:$0xff]
          %v4416 = vld [vmem:[#allocation23 + $0x268] sm:$0xff]
          %v4417 = vld [vmem:[#allocation23 + $0x270] sm:$0xff]
          %v4418 = vld [vmem:[#allocation23 + $0x278] sm:$0xff]
          %v4419 = vld [vmem:[#allocation23 + $0x280] sm:$0xff]
          %v4420 = vld [vmem:[#allocation23 + $0x288] sm:$0xff]
          %v4421 = vld [vmem:[#allocation23 + $0x290] sm:$0xff]
          %v4422 = vld [vmem:[#allocation23 + $0x298] sm:$0xff]
          %v4423 = vld [vmem:[#allocation23 + $0x2a0] sm:$0xff]
          %v4424 = vld [vmem:[#allocation23 + $0x2a8] sm:$0xff]
          %v4425 = vld [vmem:[#allocation23 + $0x2b0] sm:$0xff]
          %v4426 = vld [vmem:[#allocation23 + $0x2b8] sm:$0xff]
          %v4427 = vld [vmem:[#allocation23 + $0x2c0] sm:$0xff]
          %v4428 = vld [vmem:[#allocation23 + $0x2c8] sm:$0xff]
          %v4429 = vld [vmem:[#allocation23 + $0x2d0] sm:$0xff]
          %v4430 = vld [vmem:[#allocation23 + $0x2d8] sm:$0xff]
          %v4431 = vld [vmem:[#allocation23 + $0x2e0] sm:$0xff]
          %v4432 = vld [vmem:[#allocation23 + $0x2e8] sm:$0xff]
          %v4433 = vld [vmem:[#allocation23 + $0x2f0] sm:$0xff]
          %v4434 = vld [vmem:[#allocation23 + $0x2f8] sm:$0xff]
          %v4435 = vld [vmem:[#allocation23 + $0x300] sm:$0xff]
          %v4436 = vld [vmem:[#allocation23 + $0x308] sm:$0xff]
          %v4437 = vld [vmem:[#allocation23 + $0x310] sm:$0xff]
          %v4438 = vld [vmem:[#allocation23 + $0x318] sm:$0xff]
          %v4439 = vld [vmem:[#allocation23 + $0x320] sm:$0xff]
          %v4440 = vld [vmem:[#allocation23 + $0x328] sm:$0xff]
          %v4441 = vld [vmem:[#allocation23 + $0x330] sm:$0xff]
          %v4442 = vld [vmem:[#allocation23 + $0x338] sm:$0xff]
          %v4443 = vld [vmem:[#allocation23 + $0x340] sm:$0xff]
          %v4444 = vld [vmem:[#allocation23 + $0x348] sm:$0xff]
          %v4445 = vld [vmem:[#allocation23 + $0x350] sm:$0xff]
          %v4446 = vld [vmem:[#allocation23 + $0x358] sm:$0xff]
          %v4447 = vld [vmem:[#allocation23 + $0x360] sm:$0xff]
          %v4448 = vld [vmem:[#allocation23 + $0x368] sm:$0xff]
          %v4449 = vld [vmem:[#allocation23 + $0x370] sm:$0xff]
          %v4450 = vld [vmem:[#allocation23 + $0x378] sm:$0xff]
          %v4451 = vld [vmem:[#allocation23 + $0x380] sm:$0xff]
          %v4452 = vld [vmem:[#allocation23 + $0x388] sm:$0xff]
          %v4453 = vld [vmem:[#allocation23 + $0x390] sm:$0xff]
          %v4454 = vld [vmem:[#allocation23 + $0x398] sm:$0xff]
          %v4455 = vld [vmem:[#allocation23 + $0x3a0] sm:$0xff]
          %v4456 = vld [vmem:[#allocation23 + $0x3a8] sm:$0xff]
          %v4457 = vld [vmem:[#allocation23 + $0x3b0] sm:$0xff]
          %v4458 = vld [vmem:[#allocation23 + $0x3b8] sm:$0xff]
          %v4459 = vld [vmem:[#allocation23 + $0x3c0] sm:$0xff]
          %v4460 = vld [vmem:[#allocation23 + $0x3c8] sm:$0xff]
          %v4461 = vld [vmem:[#allocation23 + $0x3d0] sm:$0xff]
          %v4462 = vld [vmem:[#allocation23 + $0x3d8] sm:$0xff]
          %v4463 = vld [vmem:[#allocation23 + $0x3e0] sm:$0xff]
          %v4464 = vld [vmem:[#allocation23 + $0x3e8] sm:$0xff]
          %v4465 = vld [vmem:[#allocation23 + $0x3f0] sm:$0xff]
          %v4466 = vld [vmem:[#allocation23 + $0x3f8] sm:$0xff]
          %v4467 = vld [vmem:[#allocation23 + $0x400] sm:$0xff]
          %v4468 = vld [vmem:[#allocation23 + $0x408] sm:$0xff]
          %v4469 = vld [vmem:[#allocation23 + $0x410] sm:$0xff]
          %v4470 = vld [vmem:[#allocation23 + $0x418] sm:$0xff]
          %v4471 = vld [vmem:[#allocation23 + $0x420] sm:$0xff]
          %v4472 = vld [vmem:[#allocation23 + $0x428] sm:$0xff]
          %v4473 = vld [vmem:[#allocation23 + $0x430] sm:$0xff]
          %v4474 = vld [vmem:[#allocation23 + $0x438] sm:$0xff]
          %v4475 = vld [vmem:[#allocation23 + $0x440] sm:$0xff]
          %v4476 = vld [vmem:[#allocation23 + $0x448] sm:$0xff]
          %v4477 = vld [vmem:[#allocation23 + $0x450] sm:$0xff]
          %v4478 = vld [vmem:[#allocation23 + $0x458] sm:$0xff]
          %v4479 = vld [vmem:[#allocation23 + $0x460] sm:$0xff]
          %v4480 = vld [vmem:[#allocation23 + $0x468] sm:$0xff]
          %v4481 = vld [vmem:[#allocation23 + $0x470] sm:$0xff]
          %v4482 = vld [vmem:[#allocation23 + $0x478] sm:$0xff]
          %v4483 = vld [vmem:[#allocation23 + $0x480] sm:$0xff]
          %v4484 = vld [vmem:[#allocation23 + $0x488] sm:$0xff]
          %v4485 = vld [vmem:[#allocation23 + $0x490] sm:$0xff]
          %v4486 = vld [vmem:[#allocation23 + $0x498] sm:$0xff]
          %v4487 = vld [vmem:[#allocation23 + $0x4a0] sm:$0xff]
          %v4488 = vld [vmem:[#allocation23 + $0x4a8] sm:$0xff]
          %v4489 = vld [vmem:[#allocation23 + $0x4b0] sm:$0xff]
          %v4490 = vld [vmem:[#allocation23 + $0x4b8] sm:$0xff]
          %v4491 = vld [vmem:[#allocation23 + $0x4c0] sm:$0xff]
          %v4492 = vld [vmem:[#allocation23 + $0x4c8] sm:$0xff]
          %v4493 = vld [vmem:[#allocation23 + $0x4d0] sm:$0xff]
          %v4494 = vld [vmem:[#allocation23 + $0x4d8] sm:$0xff]
          %v4495 = vld [vmem:[#allocation23 + $0x4e0] sm:$0xff]
          %v4496 = vld [vmem:[#allocation23 + $0x4e8] sm:$0xff]
          %v4497 = vld [vmem:[#allocation23 + $0x4f0] sm:$0xff]
          %v4498 = vld [vmem:[#allocation23 + $0x4f8] sm:$0xff]
          %v4499 = vld [vmem:[#allocation23 + $0x500] sm:$0xff]
          %v4500 = vld [vmem:[#allocation23 + $0x508] sm:$0xff]
          %v4501 = vld [vmem:[#allocation23 + $0x510] sm:$0xff]
          %v4502 = vld [vmem:[#allocation23 + $0x518] sm:$0xff]
          %v4503 = vld [vmem:[#allocation23 + $0x520] sm:$0xff]
          %v4504 = vld [vmem:[#allocation23 + $0x528] sm:$0xff]
          %v4505 = vld [vmem:[#allocation23 + $0x530] sm:$0xff]
          %v4506 = vld [vmem:[#allocation23 + $0x538] sm:$0xff]
          %v4507 = vld [vmem:[#allocation23 + $0x540] sm:$0xff]
          %v4508 = vld [vmem:[#allocation23 + $0x548] sm:$0xff]
          %v4509 = vld [vmem:[#allocation23 + $0x550] sm:$0xff]
          %v4510 = vld [vmem:[#allocation23 + $0x558] sm:$0xff]
          %v4511 = vld [vmem:[#allocation23 + $0x560] sm:$0xff]
          %v4512 = vld [vmem:[#allocation23 + $0x568] sm:$0xff]
          %v4513 = vld [vmem:[#allocation23 + $0x570] sm:$0xff]
          %v4514 = vld [vmem:[#allocation23 + $0x578] sm:$0xff]
          %v4515 = vld [vmem:[#allocation23 + $0x580] sm:$0xff]
          %v4516 = vld [vmem:[#allocation23 + $0x588] sm:$0xff]
          %v4517 = vld [vmem:[#allocation23 + $0x590] sm:$0xff]
          %v4518 = vld [vmem:[#allocation23 + $0x598] sm:$0xff]
          %v4519 = vld [vmem:[#allocation23 + $0x5a0] sm:$0xff]
          %v4520 = vld [vmem:[#allocation23 + $0x5a8] sm:$0xff]
          %v4521 = vld [vmem:[#allocation23 + $0x5b0] sm:$0xff]
          %v4522 = vld [vmem:[#allocation23 + $0x5b8] sm:$0xff]
          %v4523 = vld [vmem:[#allocation23 + $0x5c0] sm:$0xff]
          %v4524 = vld [vmem:[#allocation23 + $0x5c8] sm:$0xff]
          %v4525 = vld [vmem:[#allocation23 + $0x5d0] sm:$0xff]
          %v4526 = vld [vmem:[#allocation23 + $0x5d8] sm:$0xff]
          %v4527 = vld [vmem:[#allocation23 + $0x5e0] sm:$0xff]
          %v4528 = vld [vmem:[#allocation23 + $0x5e8] sm:$0xff]
          %v4529 = vld [vmem:[#allocation23 + $0x5f0] sm:$0xff]
          %v4530 = vld [vmem:[#allocation23 + $0x5f8] sm:$0xff]
          %v4531 = vld [vmem:[#allocation23 + $0x600] sm:$0xff]
          %v4532 = vld [vmem:[#allocation23 + $0x608] sm:$0xff]
          %v4533 = vld [vmem:[#allocation23 + $0x610] sm:$0xff]
          %v4534 = vld [vmem:[#allocation23 + $0x618] sm:$0xff]
          %v4535 = vld [vmem:[#allocation23 + $0x620] sm:$0xff]
          %v4536 = vld [vmem:[#allocation23 + $0x628] sm:$0xff]
          %v4537 = vld [vmem:[#allocation23 + $0x630] sm:$0xff]
          %v4538 = vld [vmem:[#allocation23 + $0x638] sm:$0xff]
          %v4539 = vld [vmem:[#allocation23 + $0x640] sm:$0xff]
          %v4540 = vld [vmem:[#allocation23 + $0x648] sm:$0xff]
          %v4541 = vld [vmem:[#allocation23 + $0x650] sm:$0xff]
          %v4542 = vld [vmem:[#allocation23 + $0x658] sm:$0xff]
          %v4543 = vld [vmem:[#allocation23 + $0x660] sm:$0xff]
          %v4544 = vld [vmem:[#allocation23 + $0x668] sm:$0xff]
          %v4545 = vld [vmem:[#allocation23 + $0x670] sm:$0xff]
          %v4546 = vld [vmem:[#allocation23 + $0x678] sm:$0xff]
          %v4547 = vld [vmem:[#allocation23 + $0x680] sm:$0xff]
          %v4548 = vld [vmem:[#allocation23 + $0x688] sm:$0xff]
          %v4549 = vld [vmem:[#allocation23 + $0x690] sm:$0xff]
          %v4550 = vld [vmem:[#allocation23 + $0x698] sm:$0xff]
          %v4551 = vld [vmem:[#allocation23 + $0x6a0] sm:$0xff]
          %v4552 = vld [vmem:[#allocation23 + $0x6a8] sm:$0xff]
          %v4553 = vld [vmem:[#allocation23 + $0x6b0] sm:$0xff]
          %v4554 = vld [vmem:[#allocation23 + $0x6b8] sm:$0xff]
          %v4555 = vld [vmem:[#allocation23 + $0x6c0] sm:$0xff]
          %v4556 = vld [vmem:[#allocation23 + $0x6c8] sm:$0xff]
          %v4557 = vld [vmem:[#allocation23 + $0x6d0] sm:$0xff]
          %v4558 = vld [vmem:[#allocation23 + $0x6d8] sm:$0xff]
          %v4559 = vld [vmem:[#allocation23 + $0x6e0] sm:$0xff]
          %v4560 = vld [vmem:[#allocation23 + $0x6e8] sm:$0xff]
          %v4561 = vld [vmem:[#allocation23 + $0x6f0] sm:$0xff]
          %v4562 = vld [vmem:[#allocation23 + $0x6f8] sm:$0xff]
          %v4563 = vld [vmem:[#allocation23 + $0x700] sm:$0xff]
          %v4564 = vld [vmem:[#allocation23 + $0x708] sm:$0xff]
          %v4565 = vld [vmem:[#allocation23 + $0x710] sm:$0xff]
          %v4566 = vld [vmem:[#allocation23 + $0x718] sm:$0xff]
          %v4567 = vld [vmem:[#allocation23 + $0x720] sm:$0xff]
          %v4568 = vld [vmem:[#allocation23 + $0x728] sm:$0xff]
          %v4569 = vld [vmem:[#allocation23 + $0x730] sm:$0xff]
          %v4570 = vld [vmem:[#allocation23 + $0x738] sm:$0xff]
          %v4571 = vld [vmem:[#allocation23 + $0x740] sm:$0xff]
          %v4572 = vld [vmem:[#allocation23 + $0x748] sm:$0xff]
          %v4573 = vld [vmem:[#allocation23 + $0x750] sm:$0xff]
          %v4574 = vld [vmem:[#allocation23 + $0x758] sm:$0xff]
          %v4575 = vld [vmem:[#allocation23 + $0x760] sm:$0xff]
          %v4576 = vld [vmem:[#allocation23 + $0x768] sm:$0xff]
          %v4577 = vld [vmem:[#allocation23 + $0x770] sm:$0xff]
          %v4578 = vld [vmem:[#allocation23 + $0x778] sm:$0xff]
          %v4579 = vld [vmem:[#allocation23 + $0x780] sm:$0xff]
          %v4580 = vld [vmem:[#allocation23 + $0x788] sm:$0xff]
          %v4581 = vld [vmem:[#allocation23 + $0x790] sm:$0xff]
          %v4582 = vld [vmem:[#allocation23 + $0x798] sm:$0xff]
          %v4583 = vld [vmem:[#allocation23 + $0x7a0] sm:$0xff]
          %v4584 = vld [vmem:[#allocation23 + $0x7a8] sm:$0xff]
          %v4585 = vld [vmem:[#allocation23 + $0x7b0] sm:$0xff]
          %v4586 = vld [vmem:[#allocation23 + $0x7b8] sm:$0xff]
          %v4587 = vld [vmem:[#allocation23 + $0x7c0] sm:$0xff]
          %v4588 = vld [vmem:[#allocation23 + $0x7c8] sm:$0xff]
          %v4589 = vld [vmem:[#allocation23 + $0x7d0] sm:$0xff]
          %v4590 = vld [vmem:[#allocation23 + $0x7d8] sm:$0xff]
          %v4591 = vld [vmem:[#allocation23 + $0x7e0] sm:$0xff]
          %v4592 = vld [vmem:[#allocation23 + $0x7e8] sm:$0xff]
          %v4593 = vld [vmem:[#allocation23 + $0x7f0] sm:$0xff]
          %v4594 = vld [vmem:[#allocation23 + $0x7f8] sm:$0xff]
          %v4595 = vld [vmem:[#allocation23 + $0x800] sm:$0xff]
          %v4596 = vld [vmem:[#allocation23 + $0x808] sm:$0xff]
          %v4597 = vld [vmem:[#allocation23 + $0x810] sm:$0xff]
          %v4598 = vld [vmem:[#allocation23 + $0x818] sm:$0xff]
          %v4599 = vld [vmem:[#allocation23 + $0x820] sm:$0xff]
          %v4600 = vld [vmem:[#allocation23 + $0x828] sm:$0xff]
          %v4601 = vld [vmem:[#allocation23 + $0x830] sm:$0xff]
          %v4602 = vld [vmem:[#allocation23 + $0x838] sm:$0xff]
          %v4603 = vld [vmem:[#allocation23 + $0x840] sm:$0xff]
          %v4604 = vld [vmem:[#allocation23 + $0x848] sm:$0xff]
          %v4605 = vld [vmem:[#allocation23 + $0x850] sm:$0xff]
          %v4606 = vld [vmem:[#allocation23 + $0x858] sm:$0xff]
          %v4607 = vld [vmem:[#allocation23 + $0x860] sm:$0xff]
          %v4608 = vld [vmem:[#allocation23 + $0x868] sm:$0xff]
          %v4609 = vld [vmem:[#allocation23 + $0x870] sm:$0xff]
          %v4610 = vld [vmem:[#allocation23 + $0x878] sm:$0xff]
          %v4611 = vld [vmem:[#allocation23 + $0x880] sm:$0xff]
          %v4612 = vld [vmem:[#allocation23 + $0x888] sm:$0xff]
          %v4613 = vld [vmem:[#allocation23 + $0x890] sm:$0xff]
          %v4614 = vld [vmem:[#allocation23 + $0x898] sm:$0xff]
          %v4615 = vld [vmem:[#allocation23 + $0x8a0] sm:$0xff]
          %v4616 = vld [vmem:[#allocation23 + $0x8a8] sm:$0xff]
          %v4617 = vld [vmem:[#allocation23 + $0x8b0] sm:$0xff]
          %v4618 = vld [vmem:[#allocation23 + $0x8b8] sm:$0xff]
          %v4619 = vld [vmem:[#allocation23 + $0x8c0] sm:$0xff]
          %v4620 = vld [vmem:[#allocation23 + $0x8c8] sm:$0xff]
          %v4621 = vld [vmem:[#allocation23 + $0x8d0] sm:$0xff]
          %v4622 = vld [vmem:[#allocation23 + $0x8d8] sm:$0xff]
          %v4623 = vld [vmem:[#allocation23 + $0x8e0] sm:$0xff]
          %v4624 = vld [vmem:[#allocation23 + $0x8e8] sm:$0xff]
          %v4625 = vld [vmem:[#allocation23 + $0x8f0] sm:$0xff]
          %v4626 = vld [vmem:[#allocation23 + $0x8f8] sm:$0xff]
          %v4627 = vld [vmem:[#allocation23 + $0x900] sm:$0xff]
          %v4628 = vld [vmem:[#allocation23 + $0x908] sm:$0xff]
          %v4629 = vld [vmem:[#allocation23 + $0x910] sm:$0xff]
          %v4630 = vld [vmem:[#allocation23 + $0x918] sm:$0xff]
          %v4631 = vld [vmem:[#allocation23 + $0x920] sm:$0xff]
          %v4632 = vld [vmem:[#allocation23 + $0x928] sm:$0xff]
          %v4633 = vld [vmem:[#allocation23 + $0x930] sm:$0xff]
          %v4634 = vld [vmem:[#allocation23 + $0x938] sm:$0xff]
          %v4635 = vld [vmem:[#allocation23 + $0x940] sm:$0xff]
          %v4636 = vld [vmem:[#allocation23 + $0x948] sm:$0xff]
          %v4637 = vld [vmem:[#allocation23 + $0x950] sm:$0xff]
          %v4638 = vld [vmem:[#allocation23 + $0x958] sm:$0xff]
          %v4639 = vld [vmem:[#allocation23 + $0x960] sm:$0xff]
          %v4640 = vld [vmem:[#allocation23 + $0x968] sm:$0xff]
          %v4641 = vld [vmem:[#allocation23 + $0x970] sm:$0xff]
          %v4642 = vld [vmem:[#allocation23 + $0x978] sm:$0xff]
          %v4643 = vld [vmem:[#allocation23 + $0x980] sm:$0xff]
          %v4644 = vld [vmem:[#allocation23 + $0x988] sm:$0xff]
          %v4645 = vld [vmem:[#allocation23 + $0x990] sm:$0xff]
          %v4646 = vld [vmem:[#allocation23 + $0x998] sm:$0xff]
          %v4647 = vld [vmem:[#allocation23 + $0x9a0] sm:$0xff]
          %v4648 = vld [vmem:[#allocation23 + $0x9a8] sm:$0xff]
          %v4649 = vld [vmem:[#allocation23 + $0x9b0] sm:$0xff]
          %v4650 = vld [vmem:[#allocation23 + $0x9b8] sm:$0xff]
          %v4651 = vld [vmem:[#allocation23 + $0x9c0] sm:$0xff]
          %v4652 = vld [vmem:[#allocation23 + $0x9c8] sm:$0xff]
          %v4653 = vld [vmem:[#allocation23 + $0x9d0] sm:$0xff]
          %v4654 = vld [vmem:[#allocation23 + $0x9d8] sm:$0xff]
          %v4655 = vld [vmem:[#allocation23 + $0x9e0] sm:$0xff]
          %v4656 = vld [vmem:[#allocation23 + $0x9e8] sm:$0xff]
          %v4657 = vld [vmem:[#allocation23 + $0x9f0] sm:$0xff]
          %v4658 = vld [vmem:[#allocation23 + $0x9f8] sm:$0xff]
          %v4659 = vld [vmem:[#allocation23 + $0xa00] sm:$0xff]
          %v4660 = vld [vmem:[#allocation23 + $0xa08] sm:$0xff]
          %v4661 = vld [vmem:[#allocation23 + $0xa10] sm:$0xff]
          %v4662 = vld [vmem:[#allocation23 + $0xa18] sm:$0xff]
          %v4663 = vld [vmem:[#allocation23 + $0xa20] sm:$0xff]
          %v4664 = vld [vmem:[#allocation23 + $0xa28] sm:$0xff]
          %v4665 = vld [vmem:[#allocation23 + $0xa30] sm:$0xff]
          %v4666 = vld [vmem:[#allocation23 + $0xa38] sm:$0xff]
          %v4667 = vld [vmem:[#allocation23 + $0xa40] sm:$0xff]
          %v4668 = vld [vmem:[#allocation23 + $0xa48] sm:$0xff]
          %v4669 = vld [vmem:[#allocation23 + $0xa50] sm:$0xff]
          %v4670 = vld [vmem:[#allocation23 + $0xa58] sm:$0xff]
          %v4671 = vld [vmem:[#allocation23 + $0xa60] sm:$0xff]
          %v4672 = vld [vmem:[#allocation23 + $0xa68] sm:$0xff]
          %v4673 = vld [vmem:[#allocation23 + $0xa70] sm:$0xff]
          %v4674 = vld [vmem:[#allocation23 + $0xa78] sm:$0xff]
          %v4675 = vld [vmem:[#allocation23 + $0xa80] sm:$0xff]
          %v4676 = vld [vmem:[#allocation23 + $0xa88] sm:$0xff]
          %v4677 = vld [vmem:[#allocation23 + $0xa90] sm:$0xff]
          %v4678 = vld [vmem:[#allocation23 + $0xa98] sm:$0xff]
          %v4679 = vld [vmem:[#allocation23 + $0xaa0] sm:$0xff]
          %v4680 = vld [vmem:[#allocation23 + $0xaa8] sm:$0xff]
          %v4681 = vld [vmem:[#allocation23 + $0xab0] sm:$0xff]
          %v4682 = vld [vmem:[#allocation23 + $0xab8] sm:$0xff]
          %v4683 = vld [vmem:[#allocation23 + $0xac0] sm:$0xff]
          %v4684 = vld [vmem:[#allocation23 + $0xac8] sm:$0xff]
          %v4685 = vld [vmem:[#allocation23 + $0xad0] sm:$0xff]
          %v4686 = vld [vmem:[#allocation23 + $0xad8] sm:$0xff]
          %v4687 = vld [vmem:[#allocation23 + $0xae0] sm:$0xff]
          %v4688 = vld [vmem:[#allocation23 + $0xae8] sm:$0xff]
          %v4689 = vld [vmem:[#allocation23 + $0xaf0] sm:$0xff]
          %v4690 = vld [vmem:[#allocation23 + $0xaf8] sm:$0xff]
          %v4691 = vld [vmem:[#allocation23 + $0xb00] sm:$0xff]
          %v4692 = vld [vmem:[#allocation23 + $0xb08] sm:$0xff]
          %v4693 = vld [vmem:[#allocation23 + $0xb10] sm:$0xff]
          %v4694 = vld [vmem:[#allocation23 + $0xb18] sm:$0xff]
          %v4695 = vld [vmem:[#allocation23 + $0xb20] sm:$0xff]
          %v4696 = vld [vmem:[#allocation23 + $0xb28] sm:$0xff]
          %v4697 = vld [vmem:[#allocation23 + $0xb30] sm:$0xff]
          %v4698 = vld [vmem:[#allocation23 + $0xb38] sm:$0xff]
          %v4699 = vld [vmem:[#allocation23 + $0xb40] sm:$0xff]
          %v4700 = vld [vmem:[#allocation23 + $0xb48] sm:$0xff]
          %v4701 = vld [vmem:[#allocation23 + $0xb50] sm:$0xff]
          %v4702 = vld [vmem:[#allocation23 + $0xb58] sm:$0xff]
          %v4703 = vld [vmem:[#allocation23 + $0xb60] sm:$0xff]
          %v4704 = vld [vmem:[#allocation23 + $0xb68] sm:$0xff]
          %v4705 = vld [vmem:[#allocation23 + $0xb70] sm:$0xff]
          %v4706 = vld [vmem:[#allocation23 + $0xb78] sm:$0xff]
          %v4707 = vld [vmem:[#allocation23 + $0xb80] sm:$0xff]
          %v4708 = vld [vmem:[#allocation23 + $0xb88] sm:$0xff]
          %v4709 = vld [vmem:[#allocation23 + $0xb90] sm:$0xff]
          %v4710 = vld [vmem:[#allocation23 + $0xb98] sm:$0xff]
          %v4711 = vld [vmem:[#allocation23 + $0xba0] sm:$0xff]
          %v4712 = vld [vmem:[#allocation23 + $0xba8] sm:$0xff]
          %v4713 = vld [vmem:[#allocation23 + $0xbb0] sm:$0xff]
          %v4714 = vld [vmem:[#allocation23 + $0xbb8] sm:$0xff]
          %v4715 = vld [vmem:[#allocation23 + $0xbc0] sm:$0xff]
          %v4716 = vld [vmem:[#allocation23 + $0xbc8] sm:$0xff]
          %v4717 = vld [vmem:[#allocation23 + $0xbd0] sm:$0xff]
          %v4718 = vld [vmem:[#allocation23 + $0xbd8] sm:$0xff]
          %v4719 = vld [vmem:[#allocation23 + $0xbe0] sm:$0xff]
          %v4720 = vld [vmem:[#allocation23 + $0xbe8] sm:$0xff]
          %v4721 = vld [vmem:[#allocation23 + $0xbf0] sm:$0xff]
          %v4722 = vld [vmem:[#allocation23 + $0xbf8] sm:$0xff]
          %v4723 = vld [vmem:[#allocation23 + $0xc00] sm:$0xff]
          %v4724 = vld [vmem:[#allocation23 + $0xc08] sm:$0xff]
          %v4725 = vld [vmem:[#allocation23 + $0xc10] sm:$0xff]
          %v4726 = vld [vmem:[#allocation23 + $0xc18] sm:$0xff]
          %v4727 = vld [vmem:[#allocation23 + $0xc20] sm:$0xff]
          %v4728 = vld [vmem:[#allocation23 + $0xc28] sm:$0xff]
          %v4729 = vld [vmem:[#allocation23 + $0xc30] sm:$0xff]
          %v4730 = vld [vmem:[#allocation23 + $0xc38] sm:$0xff]
          %v4731 = vld [vmem:[#allocation23 + $0xc40] sm:$0xff]
          %v4732 = vld [vmem:[#allocation23 + $0xc48] sm:$0xff]
          %v4733 = vld [vmem:[#allocation23 + $0xc50] sm:$0xff]
          %v4734 = vld [vmem:[#allocation23 + $0xc58] sm:$0xff]
          %v4735 = vld [vmem:[#allocation23 + $0xc60] sm:$0xff]
          %v4736 = vld [vmem:[#allocation23 + $0xc68] sm:$0xff]
          %v4737 = vld [vmem:[#allocation23 + $0xc70] sm:$0xff]
          %v4738 = vld [vmem:[#allocation23 + $0xc78] sm:$0xff]
          %v4739 = vld [vmem:[#allocation23 + $0xc80] sm:$0xff]
          %v4740 = vld [vmem:[#allocation23 + $0xc88] sm:$0xff]
          %v4741 = vld [vmem:[#allocation23 + $0xc90] sm:$0xff]
          %v4742 = vld [vmem:[#allocation23 + $0xc98] sm:$0xff]
          %v4743 = vld [vmem:[#allocation23 + $0xca0] sm:$0xff]
          %v4744 = vld [vmem:[#allocation23 + $0xca8] sm:$0xff]
          %v4745 = vld [vmem:[#allocation23 + $0xcb0] sm:$0xff]
          %v4746 = vld [vmem:[#allocation23 + $0xcb8] sm:$0xff]
          %v4747 = vld [vmem:[#allocation23 + $0xcc0] sm:$0xff]
          %v4748 = vld [vmem:[#allocation23 + $0xcc8] sm:$0xff]
          %v4749 = vld [vmem:[#allocation23 + $0xcd0] sm:$0xff]
          %v4750 = vld [vmem:[#allocation23 + $0xcd8] sm:$0xff]
          %v4751 = vld [vmem:[#allocation23 + $0xce0] sm:$0xff]
          %v4752 = vld [vmem:[#allocation23 + $0xce8] sm:$0xff]
          %v4753 = vld [vmem:[#allocation23 + $0xcf0] sm:$0xff]
          %v4754 = vld [vmem:[#allocation23 + $0xcf8] sm:$0xff]
          %v4755 = vld [vmem:[#allocation23 + $0xd00] sm:$0xff]
          %v4756 = vld [vmem:[#allocation23 + $0xd08] sm:$0xff]
          %v4757 = vld [vmem:[#allocation23 + $0xd10] sm:$0xff]
          %v4758 = vld [vmem:[#allocation23 + $0xd18] sm:$0xff]
          %v4759 = vld [vmem:[#allocation23 + $0xd20] sm:$0xff]
          %v4760 = vld [vmem:[#allocation23 + $0xd28] sm:$0xff]
          %v4761 = vld [vmem:[#allocation23 + $0xd30] sm:$0xff]
          %v4762 = vld [vmem:[#allocation23 + $0xd38] sm:$0xff]
          %v4763 = vld [vmem:[#allocation23 + $0xd40] sm:$0xff]
          %v4764 = vld [vmem:[#allocation23 + $0xd48] sm:$0xff]
          %v4765 = vld [vmem:[#allocation23 + $0xd50] sm:$0xff]
          %v4766 = vld [vmem:[#allocation23 + $0xd58] sm:$0xff]
          %v4767 = vld [vmem:[#allocation23 + $0xd60] sm:$0xff]
          %v4768 = vld [vmem:[#allocation23 + $0xd68] sm:$0xff]
          %v4769 = vld [vmem:[#allocation23 + $0xd70] sm:$0xff]
          %v4770 = vld [vmem:[#allocation23 + $0xd78] sm:$0xff]
          %v4771 = vld [vmem:[#allocation23 + $0xd80] sm:$0xff]
          %v4772 = vld [vmem:[#allocation23 + $0xd88] sm:$0xff]
          %v4773 = vld [vmem:[#allocation23 + $0xd90] sm:$0xff]
          %v4774 = vld [vmem:[#allocation23 + $0xd98] sm:$0xff]
          %v4775 = vld [vmem:[#allocation23 + $0xda0] sm:$0xff]
          %v4776 = vld [vmem:[#allocation23 + $0xda8] sm:$0xff]
          %v4777 = vld [vmem:[#allocation23 + $0xdb0] sm:$0xff]
          %v4778 = vld [vmem:[#allocation23 + $0xdb8] sm:$0xff]
          %v4779 = vld [vmem:[#allocation23 + $0xdc0] sm:$0xff]
          %v4780 = vld [vmem:[#allocation23 + $0xdc8] sm:$0xff]
          %v4781 = vld [vmem:[#allocation23 + $0xdd0] sm:$0xff]
          %v4782 = vld [vmem:[#allocation23 + $0xdd8] sm:$0xff]
          %v4783 = vld [vmem:[#allocation23 + $0xde0] sm:$0xff]
          %v4784 = vld [vmem:[#allocation23 + $0xde8] sm:$0xff]
          %v4785 = vld [vmem:[#allocation23 + $0xdf0] sm:$0xff]
          %v4786 = vld [vmem:[#allocation23 + $0xdf8] sm:$0xff]
          %v4787 = vld [vmem:[#allocation23 + $0xe00] sm:$0xff]
          %v4788 = vld [vmem:[#allocation23 + $0xe08] sm:$0xff]
          %v4789 = vld [vmem:[#allocation23 + $0xe10] sm:$0xff]
          %v4790 = vld [vmem:[#allocation23 + $0xe18] sm:$0xff]
          %v4791 = vld [vmem:[#allocation23 + $0xe20] sm:$0xff]
          %v4792 = vld [vmem:[#allocation23 + $0xe28] sm:$0xff]
          %v4793 = vld [vmem:[#allocation23 + $0xe30] sm:$0xff]
          %v4794 = vld [vmem:[#allocation23 + $0xe38] sm:$0xff]
          %v4795 = vld [vmem:[#allocation23 + $0xe40] sm:$0xff]
          %v4796 = vld [vmem:[#allocation23 + $0xe48] sm:$0xff]
          %v4797 = vld [vmem:[#allocation23 + $0xe50] sm:$0xff]
          %v4798 = vld [vmem:[#allocation23 + $0xe58] sm:$0xff]
          %v4799 = vld [vmem:[#allocation23 + $0xe60] sm:$0xff]
          %v4800 = vld [vmem:[#allocation23 + $0xe68] sm:$0xff]
          %v4801 = vld [vmem:[#allocation23 + $0xe70] sm:$0xff]
          %v4802 = vld [vmem:[#allocation23 + $0xe78] sm:$0xff]
          %v4803 = vld [vmem:[#allocation23 + $0xe80] sm:$0xff]
          %v4804 = vld [vmem:[#allocation23 + $0xe88] sm:$0xff]
          %v4805 = vld [vmem:[#allocation23 + $0xe90] sm:$0xff]
          %v4806 = vld [vmem:[#allocation23 + $0xe98] sm:$0xff]
          %v4807 = vld [vmem:[#allocation23 + $0xea0] sm:$0xff]
          %v4808 = vld [vmem:[#allocation23 + $0xea8] sm:$0xff]
          %v4809 = vld [vmem:[#allocation23 + $0xeb0] sm:$0xff]
          %v4810 = vld [vmem:[#allocation23 + $0xeb8] sm:$0xff]
          %v4811 = vld [vmem:[#allocation23 + $0xec0] sm:$0xff]
          %v4812 = vld [vmem:[#allocation23 + $0xec8] sm:$0xff]
          %v4813 = vld [vmem:[#allocation23 + $0xed0] sm:$0xff]
          %v4814 = vld [vmem:[#allocation23 + $0xed8] sm:$0xff]
          %v4815 = vld [vmem:[#allocation23 + $0xee0] sm:$0xff]
          %v4816 = vld [vmem:[#allocation23 + $0xee8] sm:$0xff]
          %v4817 = vld [vmem:[#allocation23 + $0xef0] sm:$0xff]
          %v4818 = vld [vmem:[#allocation23 + $0xef8] sm:$0xff]
          %v4819 = vld [vmem:[#allocation23 + $0xf00] sm:$0xff]
          %v4820 = vld [vmem:[#allocation23 + $0xf08] sm:$0xff]
          %v4821 = vld [vmem:[#allocation23 + $0xf10] sm:$0xff]
          %v4822 = vld [vmem:[#allocation23 + $0xf18] sm:$0xff]
          %v4823 = vld [vmem:[#allocation23 + $0xf20] sm:$0xff]
          %v4824 = vld [vmem:[#allocation23 + $0xf28] sm:$0xff]
          %v4825 = vld [vmem:[#allocation23 + $0xf30] sm:$0xff]
          %v4826 = vld [vmem:[#allocation23 + $0xf38] sm:$0xff]
          %v4827 = vld [vmem:[#allocation23 + $0xf40] sm:$0xff]
          %v4828 = vld [vmem:[#allocation23 + $0xf48] sm:$0xff]
          %v4829 = vld [vmem:[#allocation23 + $0xf50] sm:$0xff]
          %v4830 = vld [vmem:[#allocation23 + $0xf58] sm:$0xff]
          %v4831 = vld [vmem:[#allocation23 + $0xf60] sm:$0xff]
          %v4832 = vld [vmem:[#allocation23 + $0xf68] sm:$0xff]
          %v4833 = vld [vmem:[#allocation23 + $0xf70] sm:$0xff]
          %v4834 = vld [vmem:[#allocation23 + $0xf78] sm:$0xff]
          %v4835 = vld [vmem:[#allocation23 + $0xf80] sm:$0xff]
          %v4836 = vld [vmem:[#allocation23 + $0xf88] sm:$0xff]
          %v4837 = vld [vmem:[#allocation23 + $0xf90] sm:$0xff]
          %v4838 = vld [vmem:[#allocation23 + $0xf98] sm:$0xff]
          %v4839 = vld [vmem:[#allocation23 + $0xfa0] sm:$0xff]
          %v4840 = vld [vmem:[#allocation23 + $0xfa8] sm:$0xff]
          %v4841 = vld [vmem:[#allocation23 + $0xfb0] sm:$0xff]
          %v4842 = vld [vmem:[#allocation23 + $0xfb8] sm:$0xff]
          %v4843 = vld [vmem:[#allocation23 + $0xfc0] sm:$0xff]
          %v4844 = vld [vmem:[#allocation23 + $0xfc8] sm:$0xff]
          %v4845 = vld [vmem:[#allocation23 + $0xfd0] sm:$0xff]
          %v4846 = vld [vmem:[#allocation23 + $0xfd8] sm:$0xff]
          %v4847 = vld [vmem:[#allocation23 + $0xfe0] sm:$0xff]
          %v4848 = vld [vmem:[#allocation23 + $0xfe8] sm:$0xff]
          %v4849 = vld [vmem:[#allocation23 + $0xff0] sm:$0xff]
          %v4850 = vld [vmem:[#allocation23 + $0xff8] sm:$0xff]
          %v4851 = vld [vmem:[#allocation24] sm:$0xff]
          %v4852 = vunpack.c.l.bf16 %v4851
          %v4853 = vunpack.c.h.bf16 %v4851
          %v4856 = vlaneseq
          %v4857 = vshrl.u32 %v4856, 7
          %v4858 = vsub.s32 0, %v4857
          %v4859 = vrot.slane %v4852, %v4858
          %v4860 = vlaneseq
          %v4861 = vshrl.u32 %v4860, 7
          %v4862 = vsub.s32 2, %v4861
          %v4863 = vrot.slane %v4852, %v4862
          %v4864 = vlaneseq
          %v4865 = vshrl.u32 %v4864, 7
          %v4866 = vsub.s32 4, %v4865
          %v4867 = vrot.slane %v4852, %v4866
          %v4868 = vlaneseq
          %v4869 = vshrl.u32 %v4868, 7
          %v4870 = vsub.s32 6, %v4869
          %v4871 = vrot.slane %v4852, %v4870
          %v4872 = vlaneseq
          %v4873 = vshrl.u32 %v4872, 7
          %v4874 = vsub.s32 0, %v4873
          %v4875 = vrot.slane %v4853, %v4874
          %v4876 = vlaneseq
          %v4877 = vshrl.u32 %v4876, 7
          %v4878 = vsub.s32 2, %v4877
          %v4879 = vrot.slane %v4853, %v4878
          %v4880 = vlaneseq
          %v4881 = vshrl.u32 %v4880, 7
          %v4882 = vsub.s32 4, %v4881
          %v4883 = vrot.slane %v4853, %v4882
          %v4884 = vlaneseq
          %v4885 = vshrl.u32 %v4884, 7
          %v4886 = vsub.s32 6, %v4885
          %v4887 = vrot.slane %v4853, %v4886
          %v4896 = vlaneseq
          %v4897 = vshrl.u32 %v4896, 7
          %v4898 = vsub.s32 0, %v4897
          %v4899 = vrot.slane %v4859, %v4898
          %v4900 = vlaneseq
          %v4901 = vshrl.u32 %v4900, 7
          %v4902 = vsub.s32 0, %v4901
          %v4903 = vrot.slane %v4863, %v4902
          %v4904 = vlaneseq
          %v4905 = vshrl.u32 %v4904, 7
          %v4906 = vsub.s32 0, %v4905
          %v4907 = vrot.slane %v4867, %v4906
          %v4908 = vlaneseq
          %v4909 = vshrl.u32 %v4908, 7
          %v4910 = vsub.s32 0, %v4909
          %v4911 = vrot.slane %v4871, %v4910
          %v4912 = vlaneseq
          %v4913 = vshrl.u32 %v4912, 7
          %v4914 = vsub.s32 0, %v4913
          %v4915 = vrot.slane %v4875, %v4914
          %v4916 = vlaneseq
          %v4917 = vshrl.u32 %v4916, 7
          %v4918 = vsub.s32 0, %v4917
          %v4919 = vrot.slane %v4879, %v4918
          %v4920 = vlaneseq
          %v4921 = vshrl.u32 %v4920, 7
          %v4922 = vsub.s32 0, %v4921
          %v4923 = vrot.slane %v4883, %v4922
          %v4924 = vlaneseq
          %v4925 = vshrl.u32 %v4924, 7
          %v4926 = vsub.s32 0, %v4925
          %v4927 = vrot.slane %v4887, %v4926
          %v5440 = vunpack.c.l.b16 %v4339
          %v5441 = vunpack.c.h.b16 %v4339
          %v5442 = vunpack.c.l.b16 %v4340
          %v5443 = vunpack.c.h.b16 %v4340
          %v5444 = vunpack.c.l.b16 %v4341
          %v5445 = vunpack.c.h.b16 %v4341
          %v5446 = vunpack.c.l.b16 %v4342
          %v5447 = vunpack.c.h.b16 %v4342
          %v5448 = vunpack.c.l.b16 %v4343
          %v5449 = vunpack.c.h.b16 %v4343
          %v5450 = vunpack.c.l.b16 %v4344
          %v5451 = vunpack.c.h.b16 %v4344
          %v5452 = vunpack.c.l.b16 %v4345
          %v5453 = vunpack.c.h.b16 %v4345
          %v5454 = vunpack.c.l.b16 %v4346
          %v5455 = vunpack.c.h.b16 %v4346
          %v5456 = vunpack.c.l.b16 %v4347
          %v5457 = vunpack.c.h.b16 %v4347
          %v5458 = vunpack.c.l.b16 %v4348
          %v5459 = vunpack.c.h.b16 %v4348
          %v5460 = vunpack.c.l.b16 %v4349
          %v5461 = vunpack.c.h.b16 %v4349
          %v5462 = vunpack.c.l.b16 %v4350
          %v5463 = vunpack.c.h.b16 %v4350
          %v5464 = vunpack.c.l.b16 %v4351
          %v5465 = vunpack.c.h.b16 %v4351
          %v5466 = vunpack.c.l.b16 %v4352
          %v5467 = vunpack.c.h.b16 %v4352
          %v5468 = vunpack.c.l.b16 %v4353
          %v5469 = vunpack.c.h.b16 %v4353
          %v5470 = vunpack.c.l.b16 %v4354
          %v5471 = vunpack.c.h.b16 %v4354
          %v5472 = vunpack.c.l.b16 %v4355
          %v5473 = vunpack.c.h.b16 %v4355
          %v5474 = vunpack.c.l.b16 %v4356
          %v5475 = vunpack.c.h.b16 %v4356
          %v5476 = vunpack.c.l.b16 %v4357
          %v5477 = vunpack.c.h.b16 %v4357
          %v5478 = vunpack.c.l.b16 %v4358
          %v5479 = vunpack.c.h.b16 %v4358
          %v5480 = vunpack.c.l.b16 %v4359
          %v5481 = vunpack.c.h.b16 %v4359
          %v5482 = vunpack.c.l.b16 %v4360
          %v5483 = vunpack.c.h.b16 %v4360
          %v5484 = vunpack.c.l.b16 %v4361
          %v5485 = vunpack.c.h.b16 %v4361
          %v5486 = vunpack.c.l.b16 %v4362
          %v5487 = vunpack.c.h.b16 %v4362
          %v5488 = vunpack.c.l.b16 %v4363
          %v5489 = vunpack.c.h.b16 %v4363
          %v5490 = vunpack.c.l.b16 %v4364
          %v5491 = vunpack.c.h.b16 %v4364
          %v5492 = vunpack.c.l.b16 %v4365
          %v5493 = vunpack.c.h.b16 %v4365
          %v5494 = vunpack.c.l.b16 %v4366
          %v5495 = vunpack.c.h.b16 %v4366
          %v5496 = vunpack.c.l.b16 %v4367
          %v5497 = vunpack.c.h.b16 %v4367
          %v5498 = vunpack.c.l.b16 %v4368
          %v5499 = vunpack.c.h.b16 %v4368
          %v5500 = vunpack.c.l.b16 %v4369
          %v5501 = vunpack.c.h.b16 %v4369
          %v5502 = vunpack.c.l.b16 %v4370
          %v5503 = vunpack.c.h.b16 %v4370
          %v5504 = vunpack.c.l.b16 %v4371
          %v5505 = vunpack.c.h.b16 %v4371
          %v5506 = vunpack.c.l.b16 %v4372
          %v5507 = vunpack.c.h.b16 %v4372
          %v5508 = vunpack.c.l.b16 %v4373
          %v5509 = vunpack.c.h.b16 %v4373
          %v5510 = vunpack.c.l.b16 %v4374
          %v5511 = vunpack.c.h.b16 %v4374
          %v5512 = vunpack.c.l.b16 %v4375
          %v5513 = vunpack.c.h.b16 %v4375
          %v5514 = vunpack.c.l.b16 %v4376
          %v5515 = vunpack.c.h.b16 %v4376
          %v5516 = vunpack.c.l.b16 %v4377
          %v5517 = vunpack.c.h.b16 %v4377
          %v5518 = vunpack.c.l.b16 %v4378
          %v5519 = vunpack.c.h.b16 %v4378
          %v5520 = vunpack.c.l.b16 %v4379
          %v5521 = vunpack.c.h.b16 %v4379
          %v5522 = vunpack.c.l.b16 %v4380
          %v5523 = vunpack.c.h.b16 %v4380
          %v5524 = vunpack.c.l.b16 %v4381
          %v5525 = vunpack.c.h.b16 %v4381
          %v5526 = vunpack.c.l.b16 %v4382
          %v5527 = vunpack.c.h.b16 %v4382
          %v5528 = vunpack.c.l.b16 %v4383
          %v5529 = vunpack.c.h.b16 %v4383
          %v5530 = vunpack.c.l.b16 %v4384
          %v5531 = vunpack.c.h.b16 %v4384
          %v5532 = vunpack.c.l.b16 %v4385
          %v5533 = vunpack.c.h.b16 %v4385
          %v5534 = vunpack.c.l.b16 %v4386
          %v5535 = vunpack.c.h.b16 %v4386
          %v5536 = vunpack.c.l.b16 %v4387
          %v5537 = vunpack.c.h.b16 %v4387
          %v5538 = vunpack.c.l.b16 %v4388
          %v5539 = vunpack.c.h.b16 %v4388
          %v5540 = vunpack.c.l.b16 %v4389
          %v5541 = vunpack.c.h.b16 %v4389
          %v5542 = vunpack.c.l.b16 %v4390
          %v5543 = vunpack.c.h.b16 %v4390
          %v5544 = vunpack.c.l.b16 %v4391
          %v5545 = vunpack.c.h.b16 %v4391
          %v5546 = vunpack.c.l.b16 %v4392
          %v5547 = vunpack.c.h.b16 %v4392
          %v5548 = vunpack.c.l.b16 %v4393
          %v5549 = vunpack.c.h.b16 %v4393
          %v5550 = vunpack.c.l.b16 %v4394
          %v5551 = vunpack.c.h.b16 %v4394
          %v5552 = vunpack.c.l.b16 %v4395
          %v5553 = vunpack.c.h.b16 %v4395
          %v5554 = vunpack.c.l.b16 %v4396
          %v5555 = vunpack.c.h.b16 %v4396
          %v5556 = vunpack.c.l.b16 %v4397
          %v5557 = vunpack.c.h.b16 %v4397
          %v5558 = vunpack.c.l.b16 %v4398
          %v5559 = vunpack.c.h.b16 %v4398
          %v5560 = vunpack.c.l.b16 %v4399
          %v5561 = vunpack.c.h.b16 %v4399
          %v5562 = vunpack.c.l.b16 %v4400
          %v5563 = vunpack.c.h.b16 %v4400
          %v5564 = vunpack.c.l.b16 %v4401
          %v5565 = vunpack.c.h.b16 %v4401
          %v5566 = vunpack.c.l.b16 %v4402
          %v5567 = vunpack.c.h.b16 %v4402
          %v5568 = vunpack.c.l.b16 %v4403
          %v5569 = vunpack.c.h.b16 %v4403
          %v5570 = vunpack.c.l.b16 %v4404
          %v5571 = vunpack.c.h.b16 %v4404
          %v5572 = vunpack.c.l.b16 %v4405
          %v5573 = vunpack.c.h.b16 %v4405
          %v5574 = vunpack.c.l.b16 %v4406
          %v5575 = vunpack.c.h.b16 %v4406
          %v5576 = vunpack.c.l.b16 %v4407
          %v5577 = vunpack.c.h.b16 %v4407
          %v5578 = vunpack.c.l.b16 %v4408
          %v5579 = vunpack.c.h.b16 %v4408
          %v5580 = vunpack.c.l.b16 %v4409
          %v5581 = vunpack.c.h.b16 %v4409
          %v5582 = vunpack.c.l.b16 %v4410
          %v5583 = vunpack.c.h.b16 %v4410
          %v5584 = vunpack.c.l.b16 %v4411
          %v5585 = vunpack.c.h.b16 %v4411
          %v5586 = vunpack.c.l.b16 %v4412
          %v5587 = vunpack.c.h.b16 %v4412
          %v5588 = vunpack.c.l.b16 %v4413
          %v5589 = vunpack.c.h.b16 %v4413
          %v5590 = vunpack.c.l.b16 %v4414
          %v5591 = vunpack.c.h.b16 %v4414
          %v5592 = vunpack.c.l.b16 %v4415
          %v5593 = vunpack.c.h.b16 %v4415
          %v5594 = vunpack.c.l.b16 %v4416
          %v5595 = vunpack.c.h.b16 %v4416
          %v5596 = vunpack.c.l.b16 %v4417
          %v5597 = vunpack.c.h.b16 %v4417
          %v5598 = vunpack.c.l.b16 %v4418
          %v5599 = vunpack.c.h.b16 %v4418
          %v5600 = vunpack.c.l.b16 %v4419
          %v5601 = vunpack.c.h.b16 %v4419
          %v5602 = vunpack.c.l.b16 %v4420
          %v5603 = vunpack.c.h.b16 %v4420
          %v5604 = vunpack.c.l.b16 %v4421
          %v5605 = vunpack.c.h.b16 %v4421
          %v5606 = vunpack.c.l.b16 %v4422
          %v5607 = vunpack.c.h.b16 %v4422
          %v5608 = vunpack.c.l.b16 %v4423
          %v5609 = vunpack.c.h.b16 %v4423
          %v5610 = vunpack.c.l.b16 %v4424
          %v5611 = vunpack.c.h.b16 %v4424
          %v5612 = vunpack.c.l.b16 %v4425
          %v5613 = vunpack.c.h.b16 %v4425
          %v5614 = vunpack.c.l.b16 %v4426
          %v5615 = vunpack.c.h.b16 %v4426
          %v5616 = vunpack.c.l.b16 %v4427
          %v5617 = vunpack.c.h.b16 %v4427
          %v5618 = vunpack.c.l.b16 %v4428
          %v5619 = vunpack.c.h.b16 %v4428
          %v5620 = vunpack.c.l.b16 %v4429
          %v5621 = vunpack.c.h.b16 %v4429
          %v5622 = vunpack.c.l.b16 %v4430
          %v5623 = vunpack.c.h.b16 %v4430
          %v5624 = vunpack.c.l.b16 %v4431
          %v5625 = vunpack.c.h.b16 %v4431
          %v5626 = vunpack.c.l.b16 %v4432
          %v5627 = vunpack.c.h.b16 %v4432
          %v5628 = vunpack.c.l.b16 %v4433
          %v5629 = vunpack.c.h.b16 %v4433
          %v5630 = vunpack.c.l.b16 %v4434
          %v5631 = vunpack.c.h.b16 %v4434
          %v5632 = vunpack.c.l.b16 %v4435
          %v5633 = vunpack.c.h.b16 %v4435
          %v5634 = vunpack.c.l.b16 %v4436
          %v5635 = vunpack.c.h.b16 %v4436
          %v5636 = vunpack.c.l.b16 %v4437
          %v5637 = vunpack.c.h.b16 %v4437
          %v5638 = vunpack.c.l.b16 %v4438
          %v5639 = vunpack.c.h.b16 %v4438
          %v5640 = vunpack.c.l.b16 %v4439
          %v5641 = vunpack.c.h.b16 %v4439
          %v5642 = vunpack.c.l.b16 %v4440
          %v5643 = vunpack.c.h.b16 %v4440
          %v5644 = vunpack.c.l.b16 %v4441
          %v5645 = vunpack.c.h.b16 %v4441
          %v5646 = vunpack.c.l.b16 %v4442
          %v5647 = vunpack.c.h.b16 %v4442
          %v5648 = vunpack.c.l.b16 %v4443
          %v5649 = vunpack.c.h.b16 %v4443
          %v5650 = vunpack.c.l.b16 %v4444
          %v5651 = vunpack.c.h.b16 %v4444
          %v5652 = vunpack.c.l.b16 %v4445
          %v5653 = vunpack.c.h.b16 %v4445
          %v5654 = vunpack.c.l.b16 %v4446
          %v5655 = vunpack.c.h.b16 %v4446
          %v5656 = vunpack.c.l.b16 %v4447
          %v5657 = vunpack.c.h.b16 %v4447
          %v5658 = vunpack.c.l.b16 %v4448
          %v5659 = vunpack.c.h.b16 %v4448
          %v5660 = vunpack.c.l.b16 %v4449
          %v5661 = vunpack.c.h.b16 %v4449
          %v5662 = vunpack.c.l.b16 %v4450
          %v5663 = vunpack.c.h.b16 %v4450
          %v5664 = vunpack.c.l.b16 %v4451
          %v5665 = vunpack.c.h.b16 %v4451
          %v5666 = vunpack.c.l.b16 %v4452
          %v5667 = vunpack.c.h.b16 %v4452
          %v5668 = vunpack.c.l.b16 %v4453
          %v5669 = vunpack.c.h.b16 %v4453
          %v5670 = vunpack.c.l.b16 %v4454
          %v5671 = vunpack.c.h.b16 %v4454
          %v5672 = vunpack.c.l.b16 %v4455
          %v5673 = vunpack.c.h.b16 %v4455
          %v5674 = vunpack.c.l.b16 %v4456
          %v5675 = vunpack.c.h.b16 %v4456
          %v5676 = vunpack.c.l.b16 %v4457
          %v5677 = vunpack.c.h.b16 %v4457
          %v5678 = vunpack.c.l.b16 %v4458
          %v5679 = vunpack.c.h.b16 %v4458
          %v5680 = vunpack.c.l.b16 %v4459
          %v5681 = vunpack.c.h.b16 %v4459
          %v5682 = vunpack.c.l.b16 %v4460
          %v5683 = vunpack.c.h.b16 %v4460
          %v5684 = vunpack.c.l.b16 %v4461
          %v5685 = vunpack.c.h.b16 %v4461
          %v5686 = vunpack.c.l.b16 %v4462
          %v5687 = vunpack.c.h.b16 %v4462
          %v5688 = vunpack.c.l.b16 %v4463
          %v5689 = vunpack.c.h.b16 %v4463
          %v5690 = vunpack.c.l.b16 %v4464
          %v5691 = vunpack.c.h.b16 %v4464
          %v5692 = vunpack.c.l.b16 %v4465
          %v5693 = vunpack.c.h.b16 %v4465
          %v5694 = vunpack.c.l.b16 %v4466
          %v5695 = vunpack.c.h.b16 %v4466
          %v5696 = vunpack.c.l.b16 %v4467
          %v5697 = vunpack.c.h.b16 %v4467
          %v5698 = vunpack.c.l.b16 %v4468
          %v5699 = vunpack.c.h.b16 %v4468
          %v5700 = vunpack.c.l.b16 %v4469
          %v5701 = vunpack.c.h.b16 %v4469
          %v5702 = vunpack.c.l.b16 %v4470
          %v5703 = vunpack.c.h.b16 %v4470
          %v5704 = vunpack.c.l.b16 %v4471
          %v5705 = vunpack.c.h.b16 %v4471
          %v5706 = vunpack.c.l.b16 %v4472
          %v5707 = vunpack.c.h.b16 %v4472
          %v5708 = vunpack.c.l.b16 %v4473
          %v5709 = vunpack.c.h.b16 %v4473
          %v5710 = vunpack.c.l.b16 %v4474
          %v5711 = vunpack.c.h.b16 %v4474
          %v5712 = vunpack.c.l.b16 %v4475
          %v5713 = vunpack.c.h.b16 %v4475
          %v5714 = vunpack.c.l.b16 %v4476
          %v5715 = vunpack.c.h.b16 %v4476
          %v5716 = vunpack.c.l.b16 %v4477
          %v5717 = vunpack.c.h.b16 %v4477
          %v5718 = vunpack.c.l.b16 %v4478
          %v5719 = vunpack.c.h.b16 %v4478
          %v5720 = vunpack.c.l.b16 %v4479
          %v5721 = vunpack.c.h.b16 %v4479
          %v5722 = vunpack.c.l.b16 %v4480
          %v5723 = vunpack.c.h.b16 %v4480
          %v5724 = vunpack.c.l.b16 %v4481
          %v5725 = vunpack.c.h.b16 %v4481
          %v5726 = vunpack.c.l.b16 %v4482
          %v5727 = vunpack.c.h.b16 %v4482
          %v5728 = vunpack.c.l.b16 %v4483
          %v5729 = vunpack.c.h.b16 %v4483
          %v5730 = vunpack.c.l.b16 %v4484
          %v5731 = vunpack.c.h.b16 %v4484
          %v5732 = vunpack.c.l.b16 %v4485
          %v5733 = vunpack.c.h.b16 %v4485
          %v5734 = vunpack.c.l.b16 %v4486
          %v5735 = vunpack.c.h.b16 %v4486
          %v5736 = vunpack.c.l.b16 %v4487
          %v5737 = vunpack.c.h.b16 %v4487
          %v5738 = vunpack.c.l.b16 %v4488
          %v5739 = vunpack.c.h.b16 %v4488
          %v5740 = vunpack.c.l.b16 %v4489
          %v5741 = vunpack.c.h.b16 %v4489
          %v5742 = vunpack.c.l.b16 %v4490
          %v5743 = vunpack.c.h.b16 %v4490
          %v5744 = vunpack.c.l.b16 %v4491
          %v5745 = vunpack.c.h.b16 %v4491
          %v5746 = vunpack.c.l.b16 %v4492
          %v5747 = vunpack.c.h.b16 %v4492
          %v5748 = vunpack.c.l.b16 %v4493
          %v5749 = vunpack.c.h.b16 %v4493
          %v5750 = vunpack.c.l.b16 %v4494
          %v5751 = vunpack.c.h.b16 %v4494
          %v5752 = vunpack.c.l.b16 %v4495
          %v5753 = vunpack.c.h.b16 %v4495
          %v5754 = vunpack.c.l.b16 %v4496
          %v5755 = vunpack.c.h.b16 %v4496
          %v5756 = vunpack.c.l.b16 %v4497
          %v5757 = vunpack.c.h.b16 %v4497
          %v5758 = vunpack.c.l.b16 %v4498
          %v5759 = vunpack.c.h.b16 %v4498
          %v5760 = vunpack.c.l.b16 %v4499
          %v5761 = vunpack.c.h.b16 %v4499
          %v5762 = vunpack.c.l.b16 %v4500
          %v5763 = vunpack.c.h.b16 %v4500
          %v5764 = vunpack.c.l.b16 %v4501
          %v5765 = vunpack.c.h.b16 %v4501
          %v5766 = vunpack.c.l.b16 %v4502
          %v5767 = vunpack.c.h.b16 %v4502
          %v5768 = vunpack.c.l.b16 %v4503
          %v5769 = vunpack.c.h.b16 %v4503
          %v5770 = vunpack.c.l.b16 %v4504
          %v5771 = vunpack.c.h.b16 %v4504
          %v5772 = vunpack.c.l.b16 %v4505
          %v5773 = vunpack.c.h.b16 %v4505
          %v5774 = vunpack.c.l.b16 %v4506
          %v5775 = vunpack.c.h.b16 %v4506
          %v5776 = vunpack.c.l.b16 %v4507
          %v5777 = vunpack.c.h.b16 %v4507
          %v5778 = vunpack.c.l.b16 %v4508
          %v5779 = vunpack.c.h.b16 %v4508
          %v5780 = vunpack.c.l.b16 %v4509
          %v5781 = vunpack.c.h.b16 %v4509
          %v5782 = vunpack.c.l.b16 %v4510
          %v5783 = vunpack.c.h.b16 %v4510
          %v5784 = vunpack.c.l.b16 %v4511
          %v5785 = vunpack.c.h.b16 %v4511
          %v5786 = vunpack.c.l.b16 %v4512
          %v5787 = vunpack.c.h.b16 %v4512
          %v5788 = vunpack.c.l.b16 %v4513
          %v5789 = vunpack.c.h.b16 %v4513
          %v5790 = vunpack.c.l.b16 %v4514
          %v5791 = vunpack.c.h.b16 %v4514
          %v5792 = vunpack.c.l.b16 %v4515
          %v5793 = vunpack.c.h.b16 %v4515
          %v5794 = vunpack.c.l.b16 %v4516
          %v5795 = vunpack.c.h.b16 %v4516
          %v5796 = vunpack.c.l.b16 %v4517
          %v5797 = vunpack.c.h.b16 %v4517
          %v5798 = vunpack.c.l.b16 %v4518
          %v5799 = vunpack.c.h.b16 %v4518
          %v5800 = vunpack.c.l.b16 %v4519
          %v5801 = vunpack.c.h.b16 %v4519
          %v5802 = vunpack.c.l.b16 %v4520
          %v5803 = vunpack.c.h.b16 %v4520
          %v5804 = vunpack.c.l.b16 %v4521
          %v5805 = vunpack.c.h.b16 %v4521
          %v5806 = vunpack.c.l.b16 %v4522
          %v5807 = vunpack.c.h.b16 %v4522
          %v5808 = vunpack.c.l.b16 %v4523
          %v5809 = vunpack.c.h.b16 %v4523
          %v5810 = vunpack.c.l.b16 %v4524
          %v5811 = vunpack.c.h.b16 %v4524
          %v5812 = vunpack.c.l.b16 %v4525
          %v5813 = vunpack.c.h.b16 %v4525
          %v5814 = vunpack.c.l.b16 %v4526
          %v5815 = vunpack.c.h.b16 %v4526
          %v5816 = vunpack.c.l.b16 %v4527
          %v5817 = vunpack.c.h.b16 %v4527
          %v5818 = vunpack.c.l.b16 %v4528
          %v5819 = vunpack.c.h.b16 %v4528
          %v5820 = vunpack.c.l.b16 %v4529
          %v5821 = vunpack.c.h.b16 %v4529
          %v5822 = vunpack.c.l.b16 %v4530
          %v5823 = vunpack.c.h.b16 %v4530
          %v5824 = vunpack.c.l.b16 %v4531
          %v5825 = vunpack.c.h.b16 %v4531
          %v5826 = vunpack.c.l.b16 %v4532
          %v5827 = vunpack.c.h.b16 %v4532
          %v5828 = vunpack.c.l.b16 %v4533
          %v5829 = vunpack.c.h.b16 %v4533
          %v5830 = vunpack.c.l.b16 %v4534
          %v5831 = vunpack.c.h.b16 %v4534
          %v5832 = vunpack.c.l.b16 %v4535
          %v5833 = vunpack.c.h.b16 %v4535
          %v5834 = vunpack.c.l.b16 %v4536
          %v5835 = vunpack.c.h.b16 %v4536
          %v5836 = vunpack.c.l.b16 %v4537
          %v5837 = vunpack.c.h.b16 %v4537
          %v5838 = vunpack.c.l.b16 %v4538
          %v5839 = vunpack.c.h.b16 %v4538
          %v5840 = vunpack.c.l.b16 %v4539
          %v5841 = vunpack.c.h.b16 %v4539
          %v5842 = vunpack.c.l.b16 %v4540
          %v5843 = vunpack.c.h.b16 %v4540
          %v5844 = vunpack.c.l.b16 %v4541
          %v5845 = vunpack.c.h.b16 %v4541
          %v5846 = vunpack.c.l.b16 %v4542
          %v5847 = vunpack.c.h.b16 %v4542
          %v5848 = vunpack.c.l.b16 %v4543
          %v5849 = vunpack.c.h.b16 %v4543
          %v5850 = vunpack.c.l.b16 %v4544
          %v5851 = vunpack.c.h.b16 %v4544
          %v5852 = vunpack.c.l.b16 %v4545
          %v5853 = vunpack.c.h.b16 %v4545
          %v5854 = vunpack.c.l.b16 %v4546
          %v5855 = vunpack.c.h.b16 %v4546
          %v5856 = vunpack.c.l.b16 %v4547
          %v5857 = vunpack.c.h.b16 %v4547
          %v5858 = vunpack.c.l.b16 %v4548
          %v5859 = vunpack.c.h.b16 %v4548
          %v5860 = vunpack.c.l.b16 %v4549
          %v5861 = vunpack.c.h.b16 %v4549
          %v5862 = vunpack.c.l.b16 %v4550
          %v5863 = vunpack.c.h.b16 %v4550
          %v5864 = vunpack.c.l.b16 %v4551
          %v5865 = vunpack.c.h.b16 %v4551
          %v5866 = vunpack.c.l.b16 %v4552
          %v5867 = vunpack.c.h.b16 %v4552
          %v5868 = vunpack.c.l.b16 %v4553
          %v5869 = vunpack.c.h.b16 %v4553
          %v5870 = vunpack.c.l.b16 %v4554
          %v5871 = vunpack.c.h.b16 %v4554
          %v5872 = vunpack.c.l.b16 %v4555
          %v5873 = vunpack.c.h.b16 %v4555
          %v5874 = vunpack.c.l.b16 %v4556
          %v5875 = vunpack.c.h.b16 %v4556
          %v5876 = vunpack.c.l.b16 %v4557
          %v5877 = vunpack.c.h.b16 %v4557
          %v5878 = vunpack.c.l.b16 %v4558
          %v5879 = vunpack.c.h.b16 %v4558
          %v5880 = vunpack.c.l.b16 %v4559
          %v5881 = vunpack.c.h.b16 %v4559
          %v5882 = vunpack.c.l.b16 %v4560
          %v5883 = vunpack.c.h.b16 %v4560
          %v5884 = vunpack.c.l.b16 %v4561
          %v5885 = vunpack.c.h.b16 %v4561
          %v5886 = vunpack.c.l.b16 %v4562
          %v5887 = vunpack.c.h.b16 %v4562
          %v5888 = vunpack.c.l.b16 %v4563
          %v5889 = vunpack.c.h.b16 %v4563
          %v5890 = vunpack.c.l.b16 %v4564
          %v5891 = vunpack.c.h.b16 %v4564
          %v5892 = vunpack.c.l.b16 %v4565
          %v5893 = vunpack.c.h.b16 %v4565
          %v5894 = vunpack.c.l.b16 %v4566
          %v5895 = vunpack.c.h.b16 %v4566
          %v5896 = vunpack.c.l.b16 %v4567
          %v5897 = vunpack.c.h.b16 %v4567
          %v5898 = vunpack.c.l.b16 %v4568
          %v5899 = vunpack.c.h.b16 %v4568
          %v5900 = vunpack.c.l.b16 %v4569
          %v5901 = vunpack.c.h.b16 %v4569
          %v5902 = vunpack.c.l.b16 %v4570
          %v5903 = vunpack.c.h.b16 %v4570
          %v5904 = vunpack.c.l.b16 %v4571
          %v5905 = vunpack.c.h.b16 %v4571
          %v5906 = vunpack.c.l.b16 %v4572
          %v5907 = vunpack.c.h.b16 %v4572
          %v5908 = vunpack.c.l.b16 %v4573
          %v5909 = vunpack.c.h.b16 %v4573
          %v5910 = vunpack.c.l.b16 %v4574
          %v5911 = vunpack.c.h.b16 %v4574
          %v5912 = vunpack.c.l.b16 %v4575
          %v5913 = vunpack.c.h.b16 %v4575
          %v5914 = vunpack.c.l.b16 %v4576
          %v5915 = vunpack.c.h.b16 %v4576
          %v5916 = vunpack.c.l.b16 %v4577
          %v5917 = vunpack.c.h.b16 %v4577
          %v5918 = vunpack.c.l.b16 %v4578
          %v5919 = vunpack.c.h.b16 %v4578
          %v5920 = vunpack.c.l.b16 %v4579
          %v5921 = vunpack.c.h.b16 %v4579
          %v5922 = vunpack.c.l.b16 %v4580
          %v5923 = vunpack.c.h.b16 %v4580
          %v5924 = vunpack.c.l.b16 %v4581
          %v5925 = vunpack.c.h.b16 %v4581
          %v5926 = vunpack.c.l.b16 %v4582
          %v5927 = vunpack.c.h.b16 %v4582
          %v5928 = vunpack.c.l.b16 %v4583
          %v5929 = vunpack.c.h.b16 %v4583
          %v5930 = vunpack.c.l.b16 %v4584
          %v5931 = vunpack.c.h.b16 %v4584
          %v5932 = vunpack.c.l.b16 %v4585
          %v5933 = vunpack.c.h.b16 %v4585
          %v5934 = vunpack.c.l.b16 %v4586
          %v5935 = vunpack.c.h.b16 %v4586
          %v5936 = vunpack.c.l.b16 %v4587
          %v5937 = vunpack.c.h.b16 %v4587
          %v5938 = vunpack.c.l.b16 %v4588
          %v5939 = vunpack.c.h.b16 %v4588
          %v5940 = vunpack.c.l.b16 %v4589
          %v5941 = vunpack.c.h.b16 %v4589
          %v5942 = vunpack.c.l.b16 %v4590
          %v5943 = vunpack.c.h.b16 %v4590
          %v5944 = vunpack.c.l.b16 %v4591
          %v5945 = vunpack.c.h.b16 %v4591
          %v5946 = vunpack.c.l.b16 %v4592
          %v5947 = vunpack.c.h.b16 %v4592
          %v5948 = vunpack.c.l.b16 %v4593
          %v5949 = vunpack.c.h.b16 %v4593
          %v5950 = vunpack.c.l.b16 %v4594
          %v5951 = vunpack.c.h.b16 %v4594
          %v5952 = vunpack.c.l.b16 %v4595
          %v5953 = vunpack.c.h.b16 %v4595
          %v5954 = vunpack.c.l.b16 %v4596
          %v5955 = vunpack.c.h.b16 %v4596
          %v5956 = vunpack.c.l.b16 %v4597
          %v5957 = vunpack.c.h.b16 %v4597
          %v5958 = vunpack.c.l.b16 %v4598
          %v5959 = vunpack.c.h.b16 %v4598
          %v5960 = vunpack.c.l.b16 %v4599
          %v5961 = vunpack.c.h.b16 %v4599
          %v5962 = vunpack.c.l.b16 %v4600
          %v5963 = vunpack.c.h.b16 %v4600
          %v5964 = vunpack.c.l.b16 %v4601
          %v5965 = vunpack.c.h.b16 %v4601
          %v5966 = vunpack.c.l.b16 %v4602
          %v5967 = vunpack.c.h.b16 %v4602
          %v5968 = vunpack.c.l.b16 %v4603
          %v5969 = vunpack.c.h.b16 %v4603
          %v5970 = vunpack.c.l.b16 %v4604
          %v5971 = vunpack.c.h.b16 %v4604
          %v5972 = vunpack.c.l.b16 %v4605
          %v5973 = vunpack.c.h.b16 %v4605
          %v5974 = vunpack.c.l.b16 %v4606
          %v5975 = vunpack.c.h.b16 %v4606
          %v5976 = vunpack.c.l.b16 %v4607
          %v5977 = vunpack.c.h.b16 %v4607
          %v5978 = vunpack.c.l.b16 %v4608
          %v5979 = vunpack.c.h.b16 %v4608
          %v5980 = vunpack.c.l.b16 %v4609
          %v5981 = vunpack.c.h.b16 %v4609
          %v5982 = vunpack.c.l.b16 %v4610
          %v5983 = vunpack.c.h.b16 %v4610
          %v5984 = vunpack.c.l.b16 %v4611
          %v5985 = vunpack.c.h.b16 %v4611
          %v5986 = vunpack.c.l.b16 %v4612
          %v5987 = vunpack.c.h.b16 %v4612
          %v5988 = vunpack.c.l.b16 %v4613
          %v5989 = vunpack.c.h.b16 %v4613
          %v5990 = vunpack.c.l.b16 %v4614
          %v5991 = vunpack.c.h.b16 %v4614
          %v5992 = vunpack.c.l.b16 %v4615
          %v5993 = vunpack.c.h.b16 %v4615
          %v5994 = vunpack.c.l.b16 %v4616
          %v5995 = vunpack.c.h.b16 %v4616
          %v5996 = vunpack.c.l.b16 %v4617
          %v5997 = vunpack.c.h.b16 %v4617
          %v5998 = vunpack.c.l.b16 %v4618
          %v5999 = vunpack.c.h.b16 %v4618
          %v6000 = vunpack.c.l.b16 %v4619
          %v6001 = vunpack.c.h.b16 %v4619
          %v6002 = vunpack.c.l.b16 %v4620
          %v6003 = vunpack.c.h.b16 %v4620
          %v6004 = vunpack.c.l.b16 %v4621
          %v6005 = vunpack.c.h.b16 %v4621
          %v6006 = vunpack.c.l.b16 %v4622
          %v6007 = vunpack.c.h.b16 %v4622
          %v6008 = vunpack.c.l.b16 %v4623
          %v6009 = vunpack.c.h.b16 %v4623
          %v6010 = vunpack.c.l.b16 %v4624
          %v6011 = vunpack.c.h.b16 %v4624
          %v6012 = vunpack.c.l.b16 %v4625
          %v6013 = vunpack.c.h.b16 %v4625
          %v6014 = vunpack.c.l.b16 %v4626
          %v6015 = vunpack.c.h.b16 %v4626
          %v6016 = vunpack.c.l.b16 %v4627
          %v6017 = vunpack.c.h.b16 %v4627
          %v6018 = vunpack.c.l.b16 %v4628
          %v6019 = vunpack.c.h.b16 %v4628
          %v6020 = vunpack.c.l.b16 %v4629
          %v6021 = vunpack.c.h.b16 %v4629
          %v6022 = vunpack.c.l.b16 %v4630
          %v6023 = vunpack.c.h.b16 %v4630
          %v6024 = vunpack.c.l.b16 %v4631
          %v6025 = vunpack.c.h.b16 %v4631
          %v6026 = vunpack.c.l.b16 %v4632
          %v6027 = vunpack.c.h.b16 %v4632
          %v6028 = vunpack.c.l.b16 %v4633
          %v6029 = vunpack.c.h.b16 %v4633
          %v6030 = vunpack.c.l.b16 %v4634
          %v6031 = vunpack.c.h.b16 %v4634
          %v6032 = vunpack.c.l.b16 %v4635
          %v6033 = vunpack.c.h.b16 %v4635
          %v6034 = vunpack.c.l.b16 %v4636
          %v6035 = vunpack.c.h.b16 %v4636
          %v6036 = vunpack.c.l.b16 %v4637
          %v6037 = vunpack.c.h.b16 %v4637
          %v6038 = vunpack.c.l.b16 %v4638
          %v6039 = vunpack.c.h.b16 %v4638
          %v6040 = vunpack.c.l.b16 %v4639
          %v6041 = vunpack.c.h.b16 %v4639
          %v6042 = vunpack.c.l.b16 %v4640
          %v6043 = vunpack.c.h.b16 %v4640
          %v6044 = vunpack.c.l.b16 %v4641
          %v6045 = vunpack.c.h.b16 %v4641
          %v6046 = vunpack.c.l.b16 %v4642
          %v6047 = vunpack.c.h.b16 %v4642
          %v6048 = vunpack.c.l.b16 %v4643
          %v6049 = vunpack.c.h.b16 %v4643
          %v6050 = vunpack.c.l.b16 %v4644
          %v6051 = vunpack.c.h.b16 %v4644
          %v6052 = vunpack.c.l.b16 %v4645
          %v6053 = vunpack.c.h.b16 %v4645
          %v6054 = vunpack.c.l.b16 %v4646
          %v6055 = vunpack.c.h.b16 %v4646
          %v6056 = vunpack.c.l.b16 %v4647
          %v6057 = vunpack.c.h.b16 %v4647
          %v6058 = vunpack.c.l.b16 %v4648
          %v6059 = vunpack.c.h.b16 %v4648
          %v6060 = vunpack.c.l.b16 %v4649
          %v6061 = vunpack.c.h.b16 %v4649
          %v6062 = vunpack.c.l.b16 %v4650
          %v6063 = vunpack.c.h.b16 %v4650
          %v6064 = vunpack.c.l.b16 %v4651
          %v6065 = vunpack.c.h.b16 %v4651
          %v6066 = vunpack.c.l.b16 %v4652
          %v6067 = vunpack.c.h.b16 %v4652
          %v6068 = vunpack.c.l.b16 %v4653
          %v6069 = vunpack.c.h.b16 %v4653
          %v6070 = vunpack.c.l.b16 %v4654
          %v6071 = vunpack.c.h.b16 %v4654
          %v6072 = vunpack.c.l.b16 %v4655
          %v6073 = vunpack.c.h.b16 %v4655
          %v6074 = vunpack.c.l.b16 %v4656
          %v6075 = vunpack.c.h.b16 %v4656
          %v6076 = vunpack.c.l.b16 %v4657
          %v6077 = vunpack.c.h.b16 %v4657
          %v6078 = vunpack.c.l.b16 %v4658
          %v6079 = vunpack.c.h.b16 %v4658
          %v6080 = vunpack.c.l.b16 %v4659
          %v6081 = vunpack.c.h.b16 %v4659
          %v6082 = vunpack.c.l.b16 %v4660
          %v6083 = vunpack.c.h.b16 %v4660
          %v6084 = vunpack.c.l.b16 %v4661
          %v6085 = vunpack.c.h.b16 %v4661
          %v6086 = vunpack.c.l.b16 %v4662
          %v6087 = vunpack.c.h.b16 %v4662
          %v6088 = vunpack.c.l.b16 %v4663
          %v6089 = vunpack.c.h.b16 %v4663
          %v6090 = vunpack.c.l.b16 %v4664
          %v6091 = vunpack.c.h.b16 %v4664
          %v6092 = vunpack.c.l.b16 %v4665
          %v6093 = vunpack.c.h.b16 %v4665
          %v6094 = vunpack.c.l.b16 %v4666
          %v6095 = vunpack.c.h.b16 %v4666
          %v6096 = vunpack.c.l.b16 %v4667
          %v6097 = vunpack.c.h.b16 %v4667
          %v6098 = vunpack.c.l.b16 %v4668
          %v6099 = vunpack.c.h.b16 %v4668
          %v6100 = vunpack.c.l.b16 %v4669
          %v6101 = vunpack.c.h.b16 %v4669
          %v6102 = vunpack.c.l.b16 %v4670
          %v6103 = vunpack.c.h.b16 %v4670
          %v6104 = vunpack.c.l.b16 %v4671
          %v6105 = vunpack.c.h.b16 %v4671
          %v6106 = vunpack.c.l.b16 %v4672
          %v6107 = vunpack.c.h.b16 %v4672
          %v6108 = vunpack.c.l.b16 %v4673
          %v6109 = vunpack.c.h.b16 %v4673
          %v6110 = vunpack.c.l.b16 %v4674
          %v6111 = vunpack.c.h.b16 %v4674
          %v6112 = vunpack.c.l.b16 %v4675
          %v6113 = vunpack.c.h.b16 %v4675
          %v6114 = vunpack.c.l.b16 %v4676
          %v6115 = vunpack.c.h.b16 %v4676
          %v6116 = vunpack.c.l.b16 %v4677
          %v6117 = vunpack.c.h.b16 %v4677
          %v6118 = vunpack.c.l.b16 %v4678
          %v6119 = vunpack.c.h.b16 %v4678
          %v6120 = vunpack.c.l.b16 %v4679
          %v6121 = vunpack.c.h.b16 %v4679
          %v6122 = vunpack.c.l.b16 %v4680
          %v6123 = vunpack.c.h.b16 %v4680
          %v6124 = vunpack.c.l.b16 %v4681
          %v6125 = vunpack.c.h.b16 %v4681
          %v6126 = vunpack.c.l.b16 %v4682
          %v6127 = vunpack.c.h.b16 %v4682
          %v6128 = vunpack.c.l.b16 %v4683
          %v6129 = vunpack.c.h.b16 %v4683
          %v6130 = vunpack.c.l.b16 %v4684
          %v6131 = vunpack.c.h.b16 %v4684
          %v6132 = vunpack.c.l.b16 %v4685
          %v6133 = vunpack.c.h.b16 %v4685
          %v6134 = vunpack.c.l.b16 %v4686
          %v6135 = vunpack.c.h.b16 %v4686
          %v6136 = vunpack.c.l.b16 %v4687
          %v6137 = vunpack.c.h.b16 %v4687
          %v6138 = vunpack.c.l.b16 %v4688
          %v6139 = vunpack.c.h.b16 %v4688
          %v6140 = vunpack.c.l.b16 %v4689
          %v6141 = vunpack.c.h.b16 %v4689
          %v6142 = vunpack.c.l.b16 %v4690
          %v6143 = vunpack.c.h.b16 %v4690
          %v6144 = vunpack.c.l.b16 %v4691
          %v6145 = vunpack.c.h.b16 %v4691
          %v6146 = vunpack.c.l.b16 %v4692
          %v6147 = vunpack.c.h.b16 %v4692
          %v6148 = vunpack.c.l.b16 %v4693
          %v6149 = vunpack.c.h.b16 %v4693
          %v6150 = vunpack.c.l.b16 %v4694
          %v6151 = vunpack.c.h.b16 %v4694
          %v6152 = vunpack.c.l.b16 %v4695
          %v6153 = vunpack.c.h.b16 %v4695
          %v6154 = vunpack.c.l.b16 %v4696
          %v6155 = vunpack.c.h.b16 %v4696
          %v6156 = vunpack.c.l.b16 %v4697
          %v6157 = vunpack.c.h.b16 %v4697
          %v6158 = vunpack.c.l.b16 %v4698
          %v6159 = vunpack.c.h.b16 %v4698
          %v6160 = vunpack.c.l.b16 %v4699
          %v6161 = vunpack.c.h.b16 %v4699
          %v6162 = vunpack.c.l.b16 %v4700
          %v6163 = vunpack.c.h.b16 %v4700
          %v6164 = vunpack.c.l.b16 %v4701
          %v6165 = vunpack.c.h.b16 %v4701
          %v6166 = vunpack.c.l.b16 %v4702
          %v6167 = vunpack.c.h.b16 %v4702
          %v6168 = vunpack.c.l.b16 %v4703
          %v6169 = vunpack.c.h.b16 %v4703
          %v6170 = vunpack.c.l.b16 %v4704
          %v6171 = vunpack.c.h.b16 %v4704
          %v6172 = vunpack.c.l.b16 %v4705
          %v6173 = vunpack.c.h.b16 %v4705
          %v6174 = vunpack.c.l.b16 %v4706
          %v6175 = vunpack.c.h.b16 %v4706
          %v6176 = vunpack.c.l.b16 %v4707
          %v6177 = vunpack.c.h.b16 %v4707
          %v6178 = vunpack.c.l.b16 %v4708
          %v6179 = vunpack.c.h.b16 %v4708
          %v6180 = vunpack.c.l.b16 %v4709
          %v6181 = vunpack.c.h.b16 %v4709
          %v6182 = vunpack.c.l.b16 %v4710
          %v6183 = vunpack.c.h.b16 %v4710
          %v6184 = vunpack.c.l.b16 %v4711
          %v6185 = vunpack.c.h.b16 %v4711
          %v6186 = vunpack.c.l.b16 %v4712
          %v6187 = vunpack.c.h.b16 %v4712
          %v6188 = vunpack.c.l.b16 %v4713
          %v6189 = vunpack.c.h.b16 %v4713
          %v6190 = vunpack.c.l.b16 %v4714
          %v6191 = vunpack.c.h.b16 %v4714
          %v6192 = vunpack.c.l.b16 %v4715
          %v6193 = vunpack.c.h.b16 %v4715
          %v6194 = vunpack.c.l.b16 %v4716
          %v6195 = vunpack.c.h.b16 %v4716
          %v6196 = vunpack.c.l.b16 %v4717
          %v6197 = vunpack.c.h.b16 %v4717
          %v6198 = vunpack.c.l.b16 %v4718
          %v6199 = vunpack.c.h.b16 %v4718
          %v6200 = vunpack.c.l.b16 %v4719
          %v6201 = vunpack.c.h.b16 %v4719
          %v6202 = vunpack.c.l.b16 %v4720
          %v6203 = vunpack.c.h.b16 %v4720
          %v6204 = vunpack.c.l.b16 %v4721
          %v6205 = vunpack.c.h.b16 %v4721
          %v6206 = vunpack.c.l.b16 %v4722
          %v6207 = vunpack.c.h.b16 %v4722
          %v6208 = vunpack.c.l.b16 %v4723
          %v6209 = vunpack.c.h.b16 %v4723
          %v6210 = vunpack.c.l.b16 %v4724
          %v6211 = vunpack.c.h.b16 %v4724
          %v6212 = vunpack.c.l.b16 %v4725
          %v6213 = vunpack.c.h.b16 %v4725
          %v6214 = vunpack.c.l.b16 %v4726
          %v6215 = vunpack.c.h.b16 %v4726
          %v6216 = vunpack.c.l.b16 %v4727
          %v6217 = vunpack.c.h.b16 %v4727
          %v6218 = vunpack.c.l.b16 %v4728
          %v6219 = vunpack.c.h.b16 %v4728
          %v6220 = vunpack.c.l.b16 %v4729
          %v6221 = vunpack.c.h.b16 %v4729
          %v6222 = vunpack.c.l.b16 %v4730
          %v6223 = vunpack.c.h.b16 %v4730
          %v6224 = vunpack.c.l.b16 %v4731
          %v6225 = vunpack.c.h.b16 %v4731
          %v6226 = vunpack.c.l.b16 %v4732
          %v6227 = vunpack.c.h.b16 %v4732
          %v6228 = vunpack.c.l.b16 %v4733
          %v6229 = vunpack.c.h.b16 %v4733
          %v6230 = vunpack.c.l.b16 %v4734
          %v6231 = vunpack.c.h.b16 %v4734
          %v6232 = vunpack.c.l.b16 %v4735
          %v6233 = vunpack.c.h.b16 %v4735
          %v6234 = vunpack.c.l.b16 %v4736
          %v6235 = vunpack.c.h.b16 %v4736
          %v6236 = vunpack.c.l.b16 %v4737
          %v6237 = vunpack.c.h.b16 %v4737
          %v6238 = vunpack.c.l.b16 %v4738
          %v6239 = vunpack.c.h.b16 %v4738
          %v6240 = vunpack.c.l.b16 %v4739
          %v6241 = vunpack.c.h.b16 %v4739
          %v6242 = vunpack.c.l.b16 %v4740
          %v6243 = vunpack.c.h.b16 %v4740
          %v6244 = vunpack.c.l.b16 %v4741
          %v6245 = vunpack.c.h.b16 %v4741
          %v6246 = vunpack.c.l.b16 %v4742
          %v6247 = vunpack.c.h.b16 %v4742
          %v6248 = vunpack.c.l.b16 %v4743
          %v6249 = vunpack.c.h.b16 %v4743
          %v6250 = vunpack.c.l.b16 %v4744
          %v6251 = vunpack.c.h.b16 %v4744
          %v6252 = vunpack.c.l.b16 %v4745
          %v6253 = vunpack.c.h.b16 %v4745
          %v6254 = vunpack.c.l.b16 %v4746
          %v6255 = vunpack.c.h.b16 %v4746
          %v6256 = vunpack.c.l.b16 %v4747
          %v6257 = vunpack.c.h.b16 %v4747
          %v6258 = vunpack.c.l.b16 %v4748
          %v6259 = vunpack.c.h.b16 %v4748
          %v6260 = vunpack.c.l.b16 %v4749
          %v6261 = vunpack.c.h.b16 %v4749
          %v6262 = vunpack.c.l.b16 %v4750
          %v6263 = vunpack.c.h.b16 %v4750
          %v6264 = vunpack.c.l.b16 %v4751
          %v6265 = vunpack.c.h.b16 %v4751
          %v6266 = vunpack.c.l.b16 %v4752
          %v6267 = vunpack.c.h.b16 %v4752
          %v6268 = vunpack.c.l.b16 %v4753
          %v6269 = vunpack.c.h.b16 %v4753
          %v6270 = vunpack.c.l.b16 %v4754
          %v6271 = vunpack.c.h.b16 %v4754
          %v6272 = vunpack.c.l.b16 %v4755
          %v6273 = vunpack.c.h.b16 %v4755
          %v6274 = vunpack.c.l.b16 %v4756
          %v6275 = vunpack.c.h.b16 %v4756
          %v6276 = vunpack.c.l.b16 %v4757
          %v6277 = vunpack.c.h.b16 %v4757
          %v6278 = vunpack.c.l.b16 %v4758
          %v6279 = vunpack.c.h.b16 %v4758
          %v6280 = vunpack.c.l.b16 %v4759
          %v6281 = vunpack.c.h.b16 %v4759
          %v6282 = vunpack.c.l.b16 %v4760
          %v6283 = vunpack.c.h.b16 %v4760
          %v6284 = vunpack.c.l.b16 %v4761
          %v6285 = vunpack.c.h.b16 %v4761
          %v6286 = vunpack.c.l.b16 %v4762
          %v6287 = vunpack.c.h.b16 %v4762
          %v6288 = vunpack.c.l.b16 %v4763
          %v6289 = vunpack.c.h.b16 %v4763
          %v6290 = vunpack.c.l.b16 %v4764
          %v6291 = vunpack.c.h.b16 %v4764
          %v6292 = vunpack.c.l.b16 %v4765
          %v6293 = vunpack.c.h.b16 %v4765
          %v6294 = vunpack.c.l.b16 %v4766
          %v6295 = vunpack.c.h.b16 %v4766
          %v6296 = vunpack.c.l.b16 %v4767
          %v6297 = vunpack.c.h.b16 %v4767
          %v6298 = vunpack.c.l.b16 %v4768
          %v6299 = vunpack.c.h.b16 %v4768
          %v6300 = vunpack.c.l.b16 %v4769
          %v6301 = vunpack.c.h.b16 %v4769
          %v6302 = vunpack.c.l.b16 %v4770
          %v6303 = vunpack.c.h.b16 %v4770
          %v6304 = vunpack.c.l.b16 %v4771
          %v6305 = vunpack.c.h.b16 %v4771
          %v6306 = vunpack.c.l.b16 %v4772
          %v6307 = vunpack.c.h.b16 %v4772
          %v6308 = vunpack.c.l.b16 %v4773
          %v6309 = vunpack.c.h.b16 %v4773
          %v6310 = vunpack.c.l.b16 %v4774
          %v6311 = vunpack.c.h.b16 %v4774
          %v6312 = vunpack.c.l.b16 %v4775
          %v6313 = vunpack.c.h.b16 %v4775
          %v6314 = vunpack.c.l.b16 %v4776
          %v6315 = vunpack.c.h.b16 %v4776
          %v6316 = vunpack.c.l.b16 %v4777
          %v6317 = vunpack.c.h.b16 %v4777
          %v6318 = vunpack.c.l.b16 %v4778
          %v6319 = vunpack.c.h.b16 %v4778
          %v6320 = vunpack.c.l.b16 %v4779
          %v6321 = vunpack.c.h.b16 %v4779
          %v6322 = vunpack.c.l.b16 %v4780
          %v6323 = vunpack.c.h.b16 %v4780
          %v6324 = vunpack.c.l.b16 %v4781
          %v6325 = vunpack.c.h.b16 %v4781
          %v6326 = vunpack.c.l.b16 %v4782
          %v6327 = vunpack.c.h.b16 %v4782
          %v6328 = vunpack.c.l.b16 %v4783
          %v6329 = vunpack.c.h.b16 %v4783
          %v6330 = vunpack.c.l.b16 %v4784
          %v6331 = vunpack.c.h.b16 %v4784
          %v6332 = vunpack.c.l.b16 %v4785
          %v6333 = vunpack.c.h.b16 %v4785
          %v6334 = vunpack.c.l.b16 %v4786
          %v6335 = vunpack.c.h.b16 %v4786
          %v6336 = vunpack.c.l.b16 %v4787
          %v6337 = vunpack.c.h.b16 %v4787
          %v6338 = vunpack.c.l.b16 %v4788
          %v6339 = vunpack.c.h.b16 %v4788
          %v6340 = vunpack.c.l.b16 %v4789
          %v6341 = vunpack.c.h.b16 %v4789
          %v6342 = vunpack.c.l.b16 %v4790
          %v6343 = vunpack.c.h.b16 %v4790
          %v6344 = vunpack.c.l.b16 %v4791
          %v6345 = vunpack.c.h.b16 %v4791
          %v6346 = vunpack.c.l.b16 %v4792
          %v6347 = vunpack.c.h.b16 %v4792
          %v6348 = vunpack.c.l.b16 %v4793
          %v6349 = vunpack.c.h.b16 %v4793
          %v6350 = vunpack.c.l.b16 %v4794
          %v6351 = vunpack.c.h.b16 %v4794
          %v6352 = vunpack.c.l.b16 %v4795
          %v6353 = vunpack.c.h.b16 %v4795
          %v6354 = vunpack.c.l.b16 %v4796
          %v6355 = vunpack.c.h.b16 %v4796
          %v6356 = vunpack.c.l.b16 %v4797
          %v6357 = vunpack.c.h.b16 %v4797
          %v6358 = vunpack.c.l.b16 %v4798
          %v6359 = vunpack.c.h.b16 %v4798
          %v6360 = vunpack.c.l.b16 %v4799
          %v6361 = vunpack.c.h.b16 %v4799
          %v6362 = vunpack.c.l.b16 %v4800
          %v6363 = vunpack.c.h.b16 %v4800
          %v6364 = vunpack.c.l.b16 %v4801
          %v6365 = vunpack.c.h.b16 %v4801
          %v6366 = vunpack.c.l.b16 %v4802
          %v6367 = vunpack.c.h.b16 %v4802
          %v6368 = vunpack.c.l.b16 %v4803
          %v6369 = vunpack.c.h.b16 %v4803
          %v6370 = vunpack.c.l.b16 %v4804
          %v6371 = vunpack.c.h.b16 %v4804
          %v6372 = vunpack.c.l.b16 %v4805
          %v6373 = vunpack.c.h.b16 %v4805
          %v6374 = vunpack.c.l.b16 %v4806
          %v6375 = vunpack.c.h.b16 %v4806
          %v6376 = vunpack.c.l.b16 %v4807
          %v6377 = vunpack.c.h.b16 %v4807
          %v6378 = vunpack.c.l.b16 %v4808
          %v6379 = vunpack.c.h.b16 %v4808
          %v6380 = vunpack.c.l.b16 %v4809
          %v6381 = vunpack.c.h.b16 %v4809
          %v6382 = vunpack.c.l.b16 %v4810
          %v6383 = vunpack.c.h.b16 %v4810
          %v6384 = vunpack.c.l.b16 %v4811
          %v6385 = vunpack.c.h.b16 %v4811
          %v6386 = vunpack.c.l.b16 %v4812
          %v6387 = vunpack.c.h.b16 %v4812
          %v6388 = vunpack.c.l.b16 %v4813
          %v6389 = vunpack.c.h.b16 %v4813
          %v6390 = vunpack.c.l.b16 %v4814
          %v6391 = vunpack.c.h.b16 %v4814
          %v6392 = vunpack.c.l.b16 %v4815
          %v6393 = vunpack.c.h.b16 %v4815
          %v6394 = vunpack.c.l.b16 %v4816
          %v6395 = vunpack.c.h.b16 %v4816
          %v6396 = vunpack.c.l.b16 %v4817
          %v6397 = vunpack.c.h.b16 %v4817
          %v6398 = vunpack.c.l.b16 %v4818
          %v6399 = vunpack.c.h.b16 %v4818
          %v6400 = vunpack.c.l.b16 %v4819
          %v6401 = vunpack.c.h.b16 %v4819
          %v6402 = vunpack.c.l.b16 %v4820
          %v6403 = vunpack.c.h.b16 %v4820
          %v6404 = vunpack.c.l.b16 %v4821
          %v6405 = vunpack.c.h.b16 %v4821
          %v6406 = vunpack.c.l.b16 %v4822
          %v6407 = vunpack.c.h.b16 %v4822
          %v6408 = vunpack.c.l.b16 %v4823
          %v6409 = vunpack.c.h.b16 %v4823
          %v6410 = vunpack.c.l.b16 %v4824
          %v6411 = vunpack.c.h.b16 %v4824
          %v6412 = vunpack.c.l.b16 %v4825
          %v6413 = vunpack.c.h.b16 %v4825
          %v6414 = vunpack.c.l.b16 %v4826
          %v6415 = vunpack.c.h.b16 %v4826
          %v6416 = vunpack.c.l.b16 %v4827
          %v6417 = vunpack.c.h.b16 %v4827
          %v6418 = vunpack.c.l.b16 %v4828
          %v6419 = vunpack.c.h.b16 %v4828
          %v6420 = vunpack.c.l.b16 %v4829
          %v6421 = vunpack.c.h.b16 %v4829
          %v6422 = vunpack.c.l.b16 %v4830
          %v6423 = vunpack.c.h.b16 %v4830
          %v6424 = vunpack.c.l.b16 %v4831
          %v6425 = vunpack.c.h.b16 %v4831
          %v6426 = vunpack.c.l.b16 %v4832
          %v6427 = vunpack.c.h.b16 %v4832
          %v6428 = vunpack.c.l.b16 %v4833
          %v6429 = vunpack.c.h.b16 %v4833
          %v6430 = vunpack.c.l.b16 %v4834
          %v6431 = vunpack.c.h.b16 %v4834
          %v6432 = vunpack.c.l.b16 %v4835
          %v6433 = vunpack.c.h.b16 %v4835
          %v6434 = vunpack.c.l.b16 %v4836
          %v6435 = vunpack.c.h.b16 %v4836
          %v6436 = vunpack.c.l.b16 %v4837
          %v6437 = vunpack.c.h.b16 %v4837
          %v6438 = vunpack.c.l.b16 %v4838
          %v6439 = vunpack.c.h.b16 %v4838
          %v6440 = vunpack.c.l.b16 %v4839
          %v6441 = vunpack.c.h.b16 %v4839
          %v6442 = vunpack.c.l.b16 %v4840
          %v6443 = vunpack.c.h.b16 %v4840
          %v6444 = vunpack.c.l.b16 %v4841
          %v6445 = vunpack.c.h.b16 %v4841
          %v6446 = vunpack.c.l.b16 %v4842
          %v6447 = vunpack.c.h.b16 %v4842
          %v6448 = vunpack.c.l.b16 %v4843
          %v6449 = vunpack.c.h.b16 %v4843
          %v6450 = vunpack.c.l.b16 %v4844
          %v6451 = vunpack.c.h.b16 %v4844
          %v6452 = vunpack.c.l.b16 %v4845
          %v6453 = vunpack.c.h.b16 %v4845
          %v6454 = vunpack.c.l.b16 %v4846
          %v6455 = vunpack.c.h.b16 %v4846
          %v6456 = vunpack.c.l.b16 %v4847
          %v6457 = vunpack.c.h.b16 %v4847
          %v6458 = vunpack.c.l.b16 %v4848
          %v6459 = vunpack.c.h.b16 %v4848
          %v6460 = vunpack.c.l.b16 %v4849
          %v6461 = vunpack.c.h.b16 %v4849
          %v6462 = vunpack.c.l.b16 %v4850
          %v6463 = vunpack.c.h.b16 %v4850
          %v6464 = vpack.c.b16 %v5448, %v5440
          %v6465 = vpack.c.b16 %v5449, %v5441
          %v6466 = vpack.c.b16 %v5450, %v5442
          %v6467 = vpack.c.b16 %v5451, %v5443
          %v6468 = vpack.c.b16 %v5452, %v5444
          %v6469 = vpack.c.b16 %v5453, %v5445
          %v6470 = vpack.c.b16 %v5454, %v5446
          %v6471 = vpack.c.b16 %v5455, %v5447
          %v6472 = vpack.c.b16 %v5464, %v5456
          %v6473 = vpack.c.b16 %v5465, %v5457
          %v6474 = vpack.c.b16 %v5466, %v5458
          %v6475 = vpack.c.b16 %v5467, %v5459
          %v6476 = vpack.c.b16 %v5468, %v5460
          %v6477 = vpack.c.b16 %v5469, %v5461
          %v6478 = vpack.c.b16 %v5470, %v5462
          %v6479 = vpack.c.b16 %v5471, %v5463
          %v6480 = vpack.c.b16 %v5480, %v5472
          %v6481 = vpack.c.b16 %v5481, %v5473
          %v6482 = vpack.c.b16 %v5482, %v5474
          %v6483 = vpack.c.b16 %v5483, %v5475
          %v6484 = vpack.c.b16 %v5484, %v5476
          %v6485 = vpack.c.b16 %v5485, %v5477
          %v6486 = vpack.c.b16 %v5486, %v5478
          %v6487 = vpack.c.b16 %v5487, %v5479
          %v6488 = vpack.c.b16 %v5496, %v5488
          %v6489 = vpack.c.b16 %v5497, %v5489
          %v6490 = vpack.c.b16 %v5498, %v5490
          %v6491 = vpack.c.b16 %v5499, %v5491
          %v6492 = vpack.c.b16 %v5500, %v5492
          %v6493 = vpack.c.b16 %v5501, %v5493
          %v6494 = vpack.c.b16 %v5502, %v5494
          %v6495 = vpack.c.b16 %v5503, %v5495
          %v6496 = vpack.c.b16 %v5512, %v5504
          %v6497 = vpack.c.b16 %v5513, %v5505
          %v6498 = vpack.c.b16 %v5514, %v5506
          %v6499 = vpack.c.b16 %v5515, %v5507
          %v6500 = vpack.c.b16 %v5516, %v5508
          %v6501 = vpack.c.b16 %v5517, %v5509
          %v6502 = vpack.c.b16 %v5518, %v5510
          %v6503 = vpack.c.b16 %v5519, %v5511
          %v6504 = vpack.c.b16 %v5528, %v5520
          %v6505 = vpack.c.b16 %v5529, %v5521
          %v6506 = vpack.c.b16 %v5530, %v5522
          %v6507 = vpack.c.b16 %v5531, %v5523
          %v6508 = vpack.c.b16 %v5532, %v5524
          %v6509 = vpack.c.b16 %v5533, %v5525
          %v6510 = vpack.c.b16 %v5534, %v5526
          %v6511 = vpack.c.b16 %v5535, %v5527
          %v6512 = vpack.c.b16 %v5544, %v5536
          %v6513 = vpack.c.b16 %v5545, %v5537
          %v6514 = vpack.c.b16 %v5546, %v5538
          %v6515 = vpack.c.b16 %v5547, %v5539
          %v6516 = vpack.c.b16 %v5548, %v5540
          %v6517 = vpack.c.b16 %v5549, %v5541
          %v6518 = vpack.c.b16 %v5550, %v5542
          %v6519 = vpack.c.b16 %v5551, %v5543
          %v6520 = vpack.c.b16 %v5560, %v5552
          %v6521 = vpack.c.b16 %v5561, %v5553
          %v6522 = vpack.c.b16 %v5562, %v5554
          %v6523 = vpack.c.b16 %v5563, %v5555
          %v6524 = vpack.c.b16 %v5564, %v5556
          %v6525 = vpack.c.b16 %v5565, %v5557
          %v6526 = vpack.c.b16 %v5566, %v5558
          %v6527 = vpack.c.b16 %v5567, %v5559
          %v6528 = vpack.c.b16 %v5576, %v5568
          %v6529 = vpack.c.b16 %v5577, %v5569
          %v6530 = vpack.c.b16 %v5578, %v5570
          %v6531 = vpack.c.b16 %v5579, %v5571
          %v6532 = vpack.c.b16 %v5580, %v5572
          %v6533 = vpack.c.b16 %v5581, %v5573
          %v6534 = vpack.c.b16 %v5582, %v5574
          %v6535 = vpack.c.b16 %v5583, %v5575
          %v6536 = vpack.c.b16 %v5592, %v5584
          %v6537 = vpack.c.b16 %v5593, %v5585
          %v6538 = vpack.c.b16 %v5594, %v5586
          %v6539 = vpack.c.b16 %v5595, %v5587
          %v6540 = vpack.c.b16 %v5596, %v5588
          %v6541 = vpack.c.b16 %v5597, %v5589
          %v6542 = vpack.c.b16 %v5598, %v5590
          %v6543 = vpack.c.b16 %v5599, %v5591
          %v6544 = vpack.c.b16 %v5608, %v5600
          %v6545 = vpack.c.b16 %v5609, %v5601
          %v6546 = vpack.c.b16 %v5610, %v5602
          %v6547 = vpack.c.b16 %v5611, %v5603
          %v6548 = vpack.c.b16 %v5612, %v5604
          %v6549 = vpack.c.b16 %v5613, %v5605
          %v6550 = vpack.c.b16 %v5614, %v5606
          %v6551 = vpack.c.b16 %v5615, %v5607
          %v6552 = vpack.c.b16 %v5624, %v5616
          %v6553 = vpack.c.b16 %v5625, %v5617
          %v6554 = vpack.c.b16 %v5626, %v5618
          %v6555 = vpack.c.b16 %v5627, %v5619
          %v6556 = vpack.c.b16 %v5628, %v5620
          %v6557 = vpack.c.b16 %v5629, %v5621
          %v6558 = vpack.c.b16 %v5630, %v5622
          %v6559 = vpack.c.b16 %v5631, %v5623
          %v6560 = vpack.c.b16 %v5640, %v5632
          %v6561 = vpack.c.b16 %v5641, %v5633
          %v6562 = vpack.c.b16 %v5642, %v5634
          %v6563 = vpack.c.b16 %v5643, %v5635
          %v6564 = vpack.c.b16 %v5644, %v5636
          %v6565 = vpack.c.b16 %v5645, %v5637
          %v6566 = vpack.c.b16 %v5646, %v5638
          %v6567 = vpack.c.b16 %v5647, %v5639
          %v6568 = vpack.c.b16 %v5656, %v5648
          %v6569 = vpack.c.b16 %v5657, %v5649
          %v6570 = vpack.c.b16 %v5658, %v5650
          %v6571 = vpack.c.b16 %v5659, %v5651
          %v6572 = vpack.c.b16 %v5660, %v5652
          %v6573 = vpack.c.b16 %v5661, %v5653
          %v6574 = vpack.c.b16 %v5662, %v5654
          %v6575 = vpack.c.b16 %v5663, %v5655
          %v6576 = vpack.c.b16 %v5672, %v5664
          %v6577 = vpack.c.b16 %v5673, %v5665
          %v6578 = vpack.c.b16 %v5674, %v5666
          %v6579 = vpack.c.b16 %v5675, %v5667
          %v6580 = vpack.c.b16 %v5676, %v5668
          %v6581 = vpack.c.b16 %v5677, %v5669
          %v6582 = vpack.c.b16 %v5678, %v5670
          %v6583 = vpack.c.b16 %v5679, %v5671
          %v6584 = vpack.c.b16 %v5688, %v5680
          %v6585 = vpack.c.b16 %v5689, %v5681
          %v6586 = vpack.c.b16 %v5690, %v5682
          %v6587 = vpack.c.b16 %v5691, %v5683
          %v6588 = vpack.c.b16 %v5692, %v5684
          %v6589 = vpack.c.b16 %v5693, %v5685
          %v6590 = vpack.c.b16 %v5694, %v5686
          %v6591 = vpack.c.b16 %v5695, %v5687
          %v6592 = vpack.c.b16 %v5704, %v5696
          %v6593 = vpack.c.b16 %v5705, %v5697
          %v6594 = vpack.c.b16 %v5706, %v5698
          %v6595 = vpack.c.b16 %v5707, %v5699
          %v6596 = vpack.c.b16 %v5708, %v5700
          %v6597 = vpack.c.b16 %v5709, %v5701
          %v6598 = vpack.c.b16 %v5710, %v5702
          %v6599 = vpack.c.b16 %v5711, %v5703
          %v6600 = vpack.c.b16 %v5720, %v5712
          %v6601 = vpack.c.b16 %v5721, %v5713
          %v6602 = vpack.c.b16 %v5722, %v5714
          %v6603 = vpack.c.b16 %v5723, %v5715
          %v6604 = vpack.c.b16 %v5724, %v5716
          %v6605 = vpack.c.b16 %v5725, %v5717
          %v6606 = vpack.c.b16 %v5726, %v5718
          %v6607 = vpack.c.b16 %v5727, %v5719
          %v6608 = vpack.c.b16 %v5736, %v5728
          %v6609 = vpack.c.b16 %v5737, %v5729
          %v6610 = vpack.c.b16 %v5738, %v5730
          %v6611 = vpack.c.b16 %v5739, %v5731
          %v6612 = vpack.c.b16 %v5740, %v5732
          %v6613 = vpack.c.b16 %v5741, %v5733
          %v6614 = vpack.c.b16 %v5742, %v5734
          %v6615 = vpack.c.b16 %v5743, %v5735
          %v6616 = vpack.c.b16 %v5752, %v5744
          %v6617 = vpack.c.b16 %v5753, %v5745
          %v6618 = vpack.c.b16 %v5754, %v5746
          %v6619 = vpack.c.b16 %v5755, %v5747
          %v6620 = vpack.c.b16 %v5756, %v5748
          %v6621 = vpack.c.b16 %v5757, %v5749
          %v6622 = vpack.c.b16 %v5758, %v5750
          %v6623 = vpack.c.b16 %v5759, %v5751
          %v6624 = vpack.c.b16 %v5768, %v5760
          %v6625 = vpack.c.b16 %v5769, %v5761
          %v6626 = vpack.c.b16 %v5770, %v5762
          %v6627 = vpack.c.b16 %v5771, %v5763
          %v6628 = vpack.c.b16 %v5772, %v5764
          %v6629 = vpack.c.b16 %v5773, %v5765
          %v6630 = vpack.c.b16 %v5774, %v5766
          %v6631 = vpack.c.b16 %v5775, %v5767
          %v6632 = vpack.c.b16 %v5784, %v5776
          %v6633 = vpack.c.b16 %v5785, %v5777
          %v6634 = vpack.c.b16 %v5786, %v5778
          %v6635 = vpack.c.b16 %v5787, %v5779
          %v6636 = vpack.c.b16 %v5788, %v5780
          %v6637 = vpack.c.b16 %v5789, %v5781
          %v6638 = vpack.c.b16 %v5790, %v5782
          %v6639 = vpack.c.b16 %v5791, %v5783
          %v6640 = vpack.c.b16 %v5800, %v5792
          %v6641 = vpack.c.b16 %v5801, %v5793
          %v6642 = vpack.c.b16 %v5802, %v5794
          %v6643 = vpack.c.b16 %v5803, %v5795
          %v6644 = vpack.c.b16 %v5804, %v5796
          %v6645 = vpack.c.b16 %v5805, %v5797
          %v6646 = vpack.c.b16 %v5806, %v5798
          %v6647 = vpack.c.b16 %v5807, %v5799
          %v6648 = vpack.c.b16 %v5816, %v5808
          %v6649 = vpack.c.b16 %v5817, %v5809
          %v6650 = vpack.c.b16 %v5818, %v5810
          %v6651 = vpack.c.b16 %v5819, %v5811
          %v6652 = vpack.c.b16 %v5820, %v5812
          %v6653 = vpack.c.b16 %v5821, %v5813
          %v6654 = vpack.c.b16 %v5822, %v5814
          %v6655 = vpack.c.b16 %v5823, %v5815
          %v6656 = vpack.c.b16 %v5832, %v5824
          %v6657 = vpack.c.b16 %v5833, %v5825
          %v6658 = vpack.c.b16 %v5834, %v5826
          %v6659 = vpack.c.b16 %v5835, %v5827
          %v6660 = vpack.c.b16 %v5836, %v5828
          %v6661 = vpack.c.b16 %v5837, %v5829
          %v6662 = vpack.c.b16 %v5838, %v5830
          %v6663 = vpack.c.b16 %v5839, %v5831
          %v6664 = vpack.c.b16 %v5848, %v5840
          %v6665 = vpack.c.b16 %v5849, %v5841
          %v6666 = vpack.c.b16 %v5850, %v5842
          %v6667 = vpack.c.b16 %v5851, %v5843
          %v6668 = vpack.c.b16 %v5852, %v5844
          %v6669 = vpack.c.b16 %v5853, %v5845
          %v6670 = vpack.c.b16 %v5854, %v5846
          %v6671 = vpack.c.b16 %v5855, %v5847
          %v6672 = vpack.c.b16 %v5864, %v5856
          %v6673 = vpack.c.b16 %v5865, %v5857
          %v6674 = vpack.c.b16 %v5866, %v5858
          %v6675 = vpack.c.b16 %v5867, %v5859
          %v6676 = vpack.c.b16 %v5868, %v5860
          %v6677 = vpack.c.b16 %v5869, %v5861
          %v6678 = vpack.c.b16 %v5870, %v5862
          %v6679 = vpack.c.b16 %v5871, %v5863
          %v6680 = vpack.c.b16 %v5880, %v5872
          %v6681 = vpack.c.b16 %v5881, %v5873
          %v6682 = vpack.c.b16 %v5882, %v5874
          %v6683 = vpack.c.b16 %v5883, %v5875
          %v6684 = vpack.c.b16 %v5884, %v5876
          %v6685 = vpack.c.b16 %v5885, %v5877
          %v6686 = vpack.c.b16 %v5886, %v5878
          %v6687 = vpack.c.b16 %v5887, %v5879
          %v6688 = vpack.c.b16 %v5896, %v5888
          %v6689 = vpack.c.b16 %v5897, %v5889
          %v6690 = vpack.c.b16 %v5898, %v5890
          %v6691 = vpack.c.b16 %v5899, %v5891
          %v6692 = vpack.c.b16 %v5900, %v5892
          %v6693 = vpack.c.b16 %v5901, %v5893
          %v6694 = vpack.c.b16 %v5902, %v5894
          %v6695 = vpack.c.b16 %v5903, %v5895
          %v6696 = vpack.c.b16 %v5912, %v5904
          %v6697 = vpack.c.b16 %v5913, %v5905
          %v6698 = vpack.c.b16 %v5914, %v5906
          %v6699 = vpack.c.b16 %v5915, %v5907
          %v6700 = vpack.c.b16 %v5916, %v5908
          %v6701 = vpack.c.b16 %v5917, %v5909
          %v6702 = vpack.c.b16 %v5918, %v5910
          %v6703 = vpack.c.b16 %v5919, %v5911
          %v6704 = vpack.c.b16 %v5928, %v5920
          %v6705 = vpack.c.b16 %v5929, %v5921
          %v6706 = vpack.c.b16 %v5930, %v5922
          %v6707 = vpack.c.b16 %v5931, %v5923
          %v6708 = vpack.c.b16 %v5932, %v5924
          %v6709 = vpack.c.b16 %v5933, %v5925
          %v6710 = vpack.c.b16 %v5934, %v5926
          %v6711 = vpack.c.b16 %v5935, %v5927
          %v6712 = vpack.c.b16 %v5944, %v5936
          %v6713 = vpack.c.b16 %v5945, %v5937
          %v6714 = vpack.c.b16 %v5946, %v5938
          %v6715 = vpack.c.b16 %v5947, %v5939
          %v6716 = vpack.c.b16 %v5948, %v5940
          %v6717 = vpack.c.b16 %v5949, %v5941
          %v6718 = vpack.c.b16 %v5950, %v5942
          %v6719 = vpack.c.b16 %v5951, %v5943
          %v6720 = vpack.c.b16 %v5960, %v5952
          %v6721 = vpack.c.b16 %v5961, %v5953
          %v6722 = vpack.c.b16 %v5962, %v5954
          %v6723 = vpack.c.b16 %v5963, %v5955
          %v6724 = vpack.c.b16 %v5964, %v5956
          %v6725 = vpack.c.b16 %v5965, %v5957
          %v6726 = vpack.c.b16 %v5966, %v5958
          %v6727 = vpack.c.b16 %v5967, %v5959
          %v6728 = vpack.c.b16 %v5976, %v5968
          %v6729 = vpack.c.b16 %v5977, %v5969
          %v6730 = vpack.c.b16 %v5978, %v5970
          %v6731 = vpack.c.b16 %v5979, %v5971
          %v6732 = vpack.c.b16 %v5980, %v5972
          %v6733 = vpack.c.b16 %v5981, %v5973
          %v6734 = vpack.c.b16 %v5982, %v5974
          %v6735 = vpack.c.b16 %v5983, %v5975
          %v6736 = vpack.c.b16 %v5992, %v5984
          %v6737 = vpack.c.b16 %v5993, %v5985
          %v6738 = vpack.c.b16 %v5994, %v5986
          %v6739 = vpack.c.b16 %v5995, %v5987
          %v6740 = vpack.c.b16 %v5996, %v5988
          %v6741 = vpack.c.b16 %v5997, %v5989
          %v6742 = vpack.c.b16 %v5998, %v5990
          %v6743 = vpack.c.b16 %v5999, %v5991
          %v6744 = vpack.c.b16 %v6008, %v6000
          %v6745 = vpack.c.b16 %v6009, %v6001
          %v6746 = vpack.c.b16 %v6010, %v6002
          %v6747 = vpack.c.b16 %v6011, %v6003
          %v6748 = vpack.c.b16 %v6012, %v6004
          %v6749 = vpack.c.b16 %v6013, %v6005
          %v6750 = vpack.c.b16 %v6014, %v6006
          %v6751 = vpack.c.b16 %v6015, %v6007
          %v6752 = vpack.c.b16 %v6024, %v6016
          %v6753 = vpack.c.b16 %v6025, %v6017
          %v6754 = vpack.c.b16 %v6026, %v6018
          %v6755 = vpack.c.b16 %v6027, %v6019
          %v6756 = vpack.c.b16 %v6028, %v6020
          %v6757 = vpack.c.b16 %v6029, %v6021
          %v6758 = vpack.c.b16 %v6030, %v6022
          %v6759 = vpack.c.b16 %v6031, %v6023
          %v6760 = vpack.c.b16 %v6040, %v6032
          %v6761 = vpack.c.b16 %v6041, %v6033
          %v6762 = vpack.c.b16 %v6042, %v6034
          %v6763 = vpack.c.b16 %v6043, %v6035
          %v6764 = vpack.c.b16 %v6044, %v6036
          %v6765 = vpack.c.b16 %v6045, %v6037
          %v6766 = vpack.c.b16 %v6046, %v6038
          %v6767 = vpack.c.b16 %v6047, %v6039
          %v6768 = vpack.c.b16 %v6056, %v6048
          %v6769 = vpack.c.b16 %v6057, %v6049
          %v6770 = vpack.c.b16 %v6058, %v6050
          %v6771 = vpack.c.b16 %v6059, %v6051
          %v6772 = vpack.c.b16 %v6060, %v6052
          %v6773 = vpack.c.b16 %v6061, %v6053
          %v6774 = vpack.c.b16 %v6062, %v6054
          %v6775 = vpack.c.b16 %v6063, %v6055
          %v6776 = vpack.c.b16 %v6072, %v6064
          %v6777 = vpack.c.b16 %v6073, %v6065
          %v6778 = vpack.c.b16 %v6074, %v6066
          %v6779 = vpack.c.b16 %v6075, %v6067
          %v6780 = vpack.c.b16 %v6076, %v6068
          %v6781 = vpack.c.b16 %v6077, %v6069
          %v6782 = vpack.c.b16 %v6078, %v6070
          %v6783 = vpack.c.b16 %v6079, %v6071
          %v6784 = vpack.c.b16 %v6088, %v6080
          %v6785 = vpack.c.b16 %v6089, %v6081
          %v6786 = vpack.c.b16 %v6090, %v6082
          %v6787 = vpack.c.b16 %v6091, %v6083
          %v6788 = vpack.c.b16 %v6092, %v6084
          %v6789 = vpack.c.b16 %v6093, %v6085
          %v6790 = vpack.c.b16 %v6094, %v6086
          %v6791 = vpack.c.b16 %v6095, %v6087
          %v6792 = vpack.c.b16 %v6104, %v6096
          %v6793 = vpack.c.b16 %v6105, %v6097
          %v6794 = vpack.c.b16 %v6106, %v6098
          %v6795 = vpack.c.b16 %v6107, %v6099
          %v6796 = vpack.c.b16 %v6108, %v6100
          %v6797 = vpack.c.b16 %v6109, %v6101
          %v6798 = vpack.c.b16 %v6110, %v6102
          %v6799 = vpack.c.b16 %v6111, %v6103
          %v6800 = vpack.c.b16 %v6120, %v6112
          %v6801 = vpack.c.b16 %v6121, %v6113
          %v6802 = vpack.c.b16 %v6122, %v6114
          %v6803 = vpack.c.b16 %v6123, %v6115
          %v6804 = vpack.c.b16 %v6124, %v6116
          %v6805 = vpack.c.b16 %v6125, %v6117
          %v6806 = vpack.c.b16 %v6126, %v6118
          %v6807 = vpack.c.b16 %v6127, %v6119
          %v6808 = vpack.c.b16 %v6136, %v6128
          %v6809 = vpack.c.b16 %v6137, %v6129
          %v6810 = vpack.c.b16 %v6138, %v6130
          %v6811 = vpack.c.b16 %v6139, %v6131
          %v6812 = vpack.c.b16 %v6140, %v6132
          %v6813 = vpack.c.b16 %v6141, %v6133
          %v6814 = vpack.c.b16 %v6142, %v6134
          %v6815 = vpack.c.b16 %v6143, %v6135
          %v6816 = vpack.c.b16 %v6152, %v6144
          %v6817 = vpack.c.b16 %v6153, %v6145
          %v6818 = vpack.c.b16 %v6154, %v6146
          %v6819 = vpack.c.b16 %v6155, %v6147
          %v6820 = vpack.c.b16 %v6156, %v6148
          %v6821 = vpack.c.b16 %v6157, %v6149
          %v6822 = vpack.c.b16 %v6158, %v6150
          %v6823 = vpack.c.b16 %v6159, %v6151
          %v6824 = vpack.c.b16 %v6168, %v6160
          %v6825 = vpack.c.b16 %v6169, %v6161
          %v6826 = vpack.c.b16 %v6170, %v6162
          %v6827 = vpack.c.b16 %v6171, %v6163
          %v6828 = vpack.c.b16 %v6172, %v6164
          %v6829 = vpack.c.b16 %v6173, %v6165
          %v6830 = vpack.c.b16 %v6174, %v6166
          %v6831 = vpack.c.b16 %v6175, %v6167
          %v6832 = vpack.c.b16 %v6184, %v6176
          %v6833 = vpack.c.b16 %v6185, %v6177
          %v6834 = vpack.c.b16 %v6186, %v6178
          %v6835 = vpack.c.b16 %v6187, %v6179
          %v6836 = vpack.c.b16 %v6188, %v6180
          %v6837 = vpack.c.b16 %v6189, %v6181
          %v6838 = vpack.c.b16 %v6190, %v6182
          %v6839 = vpack.c.b16 %v6191, %v6183
          %v6840 = vpack.c.b16 %v6200, %v6192
          %v6841 = vpack.c.b16 %v6201, %v6193
          %v6842 = vpack.c.b16 %v6202, %v6194
          %v6843 = vpack.c.b16 %v6203, %v6195
          %v6844 = vpack.c.b16 %v6204, %v6196
          %v6845 = vpack.c.b16 %v6205, %v6197
          %v6846 = vpack.c.b16 %v6206, %v6198
          %v6847 = vpack.c.b16 %v6207, %v6199
          %v6848 = vpack.c.b16 %v6216, %v6208
          %v6849 = vpack.c.b16 %v6217, %v6209
          %v6850 = vpack.c.b16 %v6218, %v6210
          %v6851 = vpack.c.b16 %v6219, %v6211
          %v6852 = vpack.c.b16 %v6220, %v6212
          %v6853 = vpack.c.b16 %v6221, %v6213
          %v6854 = vpack.c.b16 %v6222, %v6214
          %v6855 = vpack.c.b16 %v6223, %v6215
          %v6856 = vpack.c.b16 %v6232, %v6224
          %v6857 = vpack.c.b16 %v6233, %v6225
          %v6858 = vpack.c.b16 %v6234, %v6226
          %v6859 = vpack.c.b16 %v6235, %v6227
          %v6860 = vpack.c.b16 %v6236, %v6228
          %v6861 = vpack.c.b16 %v6237, %v6229
          %v6862 = vpack.c.b16 %v6238, %v6230
          %v6863 = vpack.c.b16 %v6239, %v6231
          %v6864 = vpack.c.b16 %v6248, %v6240
          %v6865 = vpack.c.b16 %v6249, %v6241
          %v6866 = vpack.c.b16 %v6250, %v6242
          %v6867 = vpack.c.b16 %v6251, %v6243
          %v6868 = vpack.c.b16 %v6252, %v6244
          %v6869 = vpack.c.b16 %v6253, %v6245
          %v6870 = vpack.c.b16 %v6254, %v6246
          %v6871 = vpack.c.b16 %v6255, %v6247
          %v6872 = vpack.c.b16 %v6264, %v6256
          %v6873 = vpack.c.b16 %v6265, %v6257
          %v6874 = vpack.c.b16 %v6266, %v6258
          %v6875 = vpack.c.b16 %v6267, %v6259
          %v6876 = vpack.c.b16 %v6268, %v6260
          %v6877 = vpack.c.b16 %v6269, %v6261
          %v6878 = vpack.c.b16 %v6270, %v6262
          %v6879 = vpack.c.b16 %v6271, %v6263
          %v6880 = vpack.c.b16 %v6280, %v6272
          %v6881 = vpack.c.b16 %v6281, %v6273
          %v6882 = vpack.c.b16 %v6282, %v6274
          %v6883 = vpack.c.b16 %v6283, %v6275
          %v6884 = vpack.c.b16 %v6284, %v6276
          %v6885 = vpack.c.b16 %v6285, %v6277
          %v6886 = vpack.c.b16 %v6286, %v6278
          %v6887 = vpack.c.b16 %v6287, %v6279
          %v6888 = vpack.c.b16 %v6296, %v6288
          %v6889 = vpack.c.b16 %v6297, %v6289
          %v6890 = vpack.c.b16 %v6298, %v6290
          %v6891 = vpack.c.b16 %v6299, %v6291
          %v6892 = vpack.c.b16 %v6300, %v6292
          %v6893 = vpack.c.b16 %v6301, %v6293
          %v6894 = vpack.c.b16 %v6302, %v6294
          %v6895 = vpack.c.b16 %v6303, %v6295
          %v6896 = vpack.c.b16 %v6312, %v6304
          %v6897 = vpack.c.b16 %v6313, %v6305
          %v6898 = vpack.c.b16 %v6314, %v6306
          %v6899 = vpack.c.b16 %v6315, %v6307
          %v6900 = vpack.c.b16 %v6316, %v6308
          %v6901 = vpack.c.b16 %v6317, %v6309
          %v6902 = vpack.c.b16 %v6318, %v6310
          %v6903 = vpack.c.b16 %v6319, %v6311
          %v6904 = vpack.c.b16 %v6328, %v6320
          %v6905 = vpack.c.b16 %v6329, %v6321
          %v6906 = vpack.c.b16 %v6330, %v6322
          %v6907 = vpack.c.b16 %v6331, %v6323
          %v6908 = vpack.c.b16 %v6332, %v6324
          %v6909 = vpack.c.b16 %v6333, %v6325
          %v6910 = vpack.c.b16 %v6334, %v6326
          %v6911 = vpack.c.b16 %v6335, %v6327
          %v6912 = vpack.c.b16 %v6344, %v6336
          %v6913 = vpack.c.b16 %v6345, %v6337
          %v6914 = vpack.c.b16 %v6346, %v6338
          %v6915 = vpack.c.b16 %v6347, %v6339
          %v6916 = vpack.c.b16 %v6348, %v6340
          %v6917 = vpack.c.b16 %v6349, %v6341
          %v6918 = vpack.c.b16 %v6350, %v6342
          %v6919 = vpack.c.b16 %v6351, %v6343
          %v6920 = vpack.c.b16 %v6360, %v6352
          %v6921 = vpack.c.b16 %v6361, %v6353
          %v6922 = vpack.c.b16 %v6362, %v6354
          %v6923 = vpack.c.b16 %v6363, %v6355
          %v6924 = vpack.c.b16 %v6364, %v6356
          %v6925 = vpack.c.b16 %v6365, %v6357
          %v6926 = vpack.c.b16 %v6366, %v6358
          %v6927 = vpack.c.b16 %v6367, %v6359
          %v6928 = vpack.c.b16 %v6376, %v6368
          %v6929 = vpack.c.b16 %v6377, %v6369
          %v6930 = vpack.c.b16 %v6378, %v6370
          %v6931 = vpack.c.b16 %v6379, %v6371
          %v6932 = vpack.c.b16 %v6380, %v6372
          %v6933 = vpack.c.b16 %v6381, %v6373
          %v6934 = vpack.c.b16 %v6382, %v6374
          %v6935 = vpack.c.b16 %v6383, %v6375
          %v6936 = vpack.c.b16 %v6392, %v6384
          %v6937 = vpack.c.b16 %v6393, %v6385
          %v6938 = vpack.c.b16 %v6394, %v6386
          %v6939 = vpack.c.b16 %v6395, %v6387
          %v6940 = vpack.c.b16 %v6396, %v6388
          %v6941 = vpack.c.b16 %v6397, %v6389
          %v6942 = vpack.c.b16 %v6398, %v6390
          %v6943 = vpack.c.b16 %v6399, %v6391
          %v6944 = vpack.c.b16 %v6408, %v6400
          %v6945 = vpack.c.b16 %v6409, %v6401
          %v6946 = vpack.c.b16 %v6410, %v6402
          %v6947 = vpack.c.b16 %v6411, %v6403
          %v6948 = vpack.c.b16 %v6412, %v6404
          %v6949 = vpack.c.b16 %v6413, %v6405
          %v6950 = vpack.c.b16 %v6414, %v6406
          %v6951 = vpack.c.b16 %v6415, %v6407
          %v6952 = vpack.c.b16 %v6424, %v6416
          %v6953 = vpack.c.b16 %v6425, %v6417
          %v6954 = vpack.c.b16 %v6426, %v6418
          %v6955 = vpack.c.b16 %v6427, %v6419
          %v6956 = vpack.c.b16 %v6428, %v6420
          %v6957 = vpack.c.b16 %v6429, %v6421
          %v6958 = vpack.c.b16 %v6430, %v6422
          %v6959 = vpack.c.b16 %v6431, %v6423
          %v6960 = vpack.c.b16 %v6440, %v6432
          %v6961 = vpack.c.b16 %v6441, %v6433
          %v6962 = vpack.c.b16 %v6442, %v6434
          %v6963 = vpack.c.b16 %v6443, %v6435
          %v6964 = vpack.c.b16 %v6444, %v6436
          %v6965 = vpack.c.b16 %v6445, %v6437
          %v6966 = vpack.c.b16 %v6446, %v6438
          %v6967 = vpack.c.b16 %v6447, %v6439
          %v6968 = vpack.c.b16 %v6456, %v6448
          %v6969 = vpack.c.b16 %v6457, %v6449
          %v6970 = vpack.c.b16 %v6458, %v6450
          %v6971 = vpack.c.b16 %v6459, %v6451
          %v6972 = vpack.c.b16 %v6460, %v6452
          %v6973 = vpack.c.b16 %v6461, %v6453
          %v6974 = vpack.c.b16 %v6462, %v6454
          %v6975 = vpack.c.b16 %v6463, %v6455
          %7488 = vmatprep.subr.bf16.mxu0 %v6465
          %7489 = vmatpush1.bf16.msra.mxu0 %v6464
          %7490 = vmatprep.subr.bf16.mxu0 %v6473
          %7491 = vmatpush1.bf16.msra.mxu0 %v6472
          %7492 = vmatprep.subr.bf16.mxu0 %v6481
          %7493 = vmatpush1.bf16.msra.mxu0 %v6480
          %7494 = vmatprep.subr.bf16.mxu0 %v6489
          %7495 = vmatpush1.bf16.msra.mxu0 %v6488
          %7496 = vmatprep.subr.bf16.mxu0 %v6497
          %7497 = vmatpush1.bf16.msra.mxu0 %v6496
          %7498 = vmatprep.subr.bf16.mxu0 %v6505
          %7499 = vmatpush1.bf16.msra.mxu0 %v6504
          %7500 = vmatprep.subr.bf16.mxu0 %v6513
          %7501 = vmatpush1.bf16.msra.mxu0 %v6512
          %7502 = vmatprep.subr.bf16.mxu0 %v6521
          %7503 = vmatpush1.bf16.msra.mxu0 %v6520
          %7504 = vmatprep.subr.bf16.mxu0 %v6529
          %7505 = vmatpush1.bf16.msra.mxu0 %v6528
          %7506 = vmatprep.subr.bf16.mxu0 %v6537
          %7507 = vmatpush1.bf16.msra.mxu0 %v6536
          %7508 = vmatprep.subr.bf16.mxu0 %v6545
          %7509 = vmatpush1.bf16.msra.mxu0 %v6544
          %7510 = vmatprep.subr.bf16.mxu0 %v6553
          %7511 = vmatpush1.bf16.msra.mxu0 %v6552
          %7512 = vmatprep.subr.bf16.mxu0 %v6561
          %7513 = vmatpush1.bf16.msra.mxu0 %v6560
          %7514 = vmatprep.subr.bf16.mxu0 %v6569
          %7515 = vmatpush1.bf16.msra.mxu0 %v6568
          %7516 = vmatprep.subr.bf16.mxu0 %v6577
          %7517 = vmatpush1.bf16.msra.mxu0 %v6576
          %7518 = vmatprep.subr.bf16.mxu0 %v6585
          %7519 = vmatpush1.bf16.msra.mxu0 %v6584
          %7520 = vmatprep.mubr.bf16.mxu0 %v4332
          %7521 = vmatmul.mubr.bf16.gmra.mrb[0].mxu0 %v4331
          %v7522 = vpop.f32.mrb[0].mxu0
          %v7523 = vadd.f32 %v4899, %v7522
          %v7524 = vpop.f32.mrb[0].mxu0
          %v7525 = vadd.f32 %v4903, %v7524
          %v7526 = vpop.f32.mrb[0].mxu0
          %v7527 = vpop.f32.mrb[0].mxu0
          %7528 = vdwg.mxu0
          %7529 = vmatprep.subr.bf16.mxu0 %v6593
          %7530 = vmatpush1.bf16.msra.mxu0 %v6592
          %7531 = vmatprep.subr.bf16.mxu0 %v6601
          %7532 = vmatpush1.bf16.msra.mxu0 %v6600
          %7533 = vmatprep.subr.bf16.mxu0 %v6609
          %7534 = vmatpush1.bf16.msra.mxu0 %v6608
          %7535 = vmatprep.subr.bf16.mxu0 %v6617
          %7536 = vmatpush1.bf16.msra.mxu0 %v6616
          %7537 = vmatprep.subr.bf16.mxu0 %v6625
          %7538 = vmatpush1.bf16.msra.mxu0 %v6624
          %7539 = vmatprep.subr.bf16.mxu0 %v6633
          %7540 = vmatpush1.bf16.msra.mxu0 %v6632
          %7541 = vmatprep.subr.bf16.mxu0 %v6641
          %7542 = vmatpush1.bf16.msra.mxu0 %v6640
          %7543 = vmatprep.subr.bf16.mxu0 %v6649
          %7544 = vmatpush1.bf16.msra.mxu0 %v6648
          %7545 = vmatprep.subr.bf16.mxu0 %v6657
          %7546 = vmatpush1.bf16.msra.mxu0 %v6656
          %7547 = vmatprep.subr.bf16.mxu0 %v6665
          %7548 = vmatpush1.bf16.msra.mxu0 %v6664
          %7549 = vmatprep.subr.bf16.mxu0 %v6673
          %7550 = vmatpush1.bf16.msra.mxu0 %v6672
          %7551 = vmatprep.subr.bf16.mxu0 %v6681
          %7552 = vmatpush1.bf16.msra.mxu0 %v6680
          %7553 = vmatprep.subr.bf16.mxu0 %v6689
          %7554 = vmatpush1.bf16.msra.mxu0 %v6688
          %7555 = vmatprep.subr.bf16.mxu0 %v6697
          %7556 = vmatpush1.bf16.msra.mxu0 %v6696
          %7557 = vmatprep.subr.bf16.mxu0 %v6705
          %7558 = vmatpush1.bf16.msra.mxu0 %v6704
          %7559 = vmatprep.subr.bf16.mxu0 %v6713
          %7560 = vmatpush1.bf16.msra.mxu0 %v6712
          %7561 = vmatprep.mubr.bf16.mxu0 %v4334
          %7562 = vmatmul.mubr.bf16.gmra.mrb[0].mxu0 %v4333
          %v7563 = vpop.f32.mrb[0].mxu0
          %v7564 = vadd.f32 %v7523, %v7563
          %v7565 = vpop.f32.mrb[0].mxu0
          %v7566 = vadd.f32 %v7525, %v7565
          %v7567 = vpop.f32.mrb[0].mxu0
          %v7568 = vpop.f32.mrb[0].mxu0
          %7569 = vdwg.mxu0
          %7570 = vmatprep.subr.bf16.mxu0 %v6721
          %7571 = vmatpush1.bf16.msra.mxu0 %v6720
          %7572 = vmatprep.subr.bf16.mxu0 %v6729
          %7573 = vmatpush1.bf16.msra.mxu0 %v6728
          %7574 = vmatprep.subr.bf16.mxu0 %v6737
          %7575 = vmatpush1.bf16.msra.mxu0 %v6736
          %7576 = vmatprep.subr.bf16.mxu0 %v6745
          %7577 = vmatpush1.bf16.msra.mxu0 %v6744
          %7578 = vmatprep.subr.bf16.mxu0 %v6753
          %7579 = vmatpush1.bf16.msra.mxu0 %v6752
          %7580 = vmatprep.subr.bf16.mxu0 %v6761
          %7581 = vmatpush1.bf16.msra.mxu0 %v6760
          %7582 = vmatprep.subr.bf16.mxu0 %v6769
          %7583 = vmatpush1.bf16.msra.mxu0 %v6768
          %7584 = vmatprep.subr.bf16.mxu0 %v6777
          %7585 = vmatpush1.bf16.msra.mxu0 %v6776
          %7586 = vmatprep.subr.bf16.mxu0 %v6785
          %7587 = vmatpush1.bf16.msra.mxu0 %v6784
          %7588 = vmatprep.subr.bf16.mxu0 %v6793
          %7589 = vmatpush1.bf16.msra.mxu0 %v6792
          %7590 = vmatprep.subr.bf16.mxu0 %v6801
          %7591 = vmatpush1.bf16.msra.mxu0 %v6800
          %7592 = vmatprep.subr.bf16.mxu0 %v6809
          %7593 = vmatpush1.bf16.msra.mxu0 %v6808
          %7594 = vmatprep.subr.bf16.mxu0 %v6817
          %7595 = vmatpush1.bf16.msra.mxu0 %v6816
          %7596 = vmatprep.subr.bf16.mxu0 %v6825
          %7597 = vmatpush1.bf16.msra.mxu0 %v6824
          %7598 = vmatprep.subr.bf16.mxu0 %v6833
          %7599 = vmatpush1.bf16.msra.mxu0 %v6832
          %7600 = vmatprep.subr.bf16.mxu0 %v6841
          %7601 = vmatpush1.bf16.msra.mxu0 %v6840
          %7602 = vmatprep.mubr.bf16.mxu0 %v4336
          %7603 = vmatmul.mubr.bf16.gmra.mrb[0].mxu0 %v4335
          %v7604 = vpop.f32.mrb[0].mxu0
          %v7605 = vadd.f32 %v7564, %v7604
          %v7606 = vpop.f32.mrb[0].mxu0
          %v7607 = vadd.f32 %v7566, %v7606
          %v7608 = vpop.f32.mrb[0].mxu0
          %v7609 = vpop.f32.mrb[0].mxu0
          %7610 = vdwg.mxu0
          %7611 = vmatprep.subr.bf16.mxu0 %v6849
          %7612 = vmatpush1.bf16.msra.mxu0 %v6848
          %7613 = vmatprep.subr.bf16.mxu0 %v6857
          %7614 = vmatpush1.bf16.msra.mxu0 %v6856
          %7615 = vmatprep.subr.bf16.mxu0 %v6865
          %7616 = vmatpush1.bf16.msra.mxu0 %v6864
          %7617 = vmatprep.subr.bf16.mxu0 %v6873
          %7618 = vmatpush1.bf16.msra.mxu0 %v6872
          %7619 = vmatprep.subr.bf16.mxu0 %v6881
          %7620 = vmatpush1.bf16.msra.mxu0 %v6880
          %7621 = vmatprep.subr.bf16.mxu0 %v6889
          %7622 = vmatpush1.bf16.msra.mxu0 %v6888
          %7623 = vmatprep.subr.bf16.mxu0 %v6897
          %7624 = vmatpush1.bf16.msra.mxu0 %v6896
          %7625 = vmatprep.subr.bf16.mxu0 %v6905
          %7626 = vmatpush1.bf16.msra.mxu0 %v6904
          %7627 = vmatprep.subr.bf16.mxu0 %v6913
          %7628 = vmatpush1.bf16.msra.mxu0 %v6912
          %7629 = vmatprep.subr.bf16.mxu0 %v6921
          %7630 = vmatpush1.bf16.msra.mxu0 %v6920
          %7631 = vmatprep.subr.bf16.mxu0 %v6929
          %7632 = vmatpush1.bf16.msra.mxu0 %v6928
          %7633 = vmatprep.subr.bf16.mxu0 %v6937
          %7634 = vmatpush1.bf16.msra.mxu0 %v6936
          %7635 = vmatprep.subr.bf16.mxu0 %v6945
          %7636 = vmatpush1.bf16.msra.mxu0 %v6944
          %7637 = vmatprep.subr.bf16.mxu0 %v6953
          %7638 = vmatpush1.bf16.msra.mxu0 %v6952
          %7639 = vmatprep.subr.bf16.mxu0 %v6961
          %7640 = vmatpush1.bf16.msra.mxu0 %v6960
          %7641 = vmatprep.subr.bf16.mxu0 %v6969
          %7642 = vmatpush1.bf16.msra.mxu0 %v6968
          %7643 = vmatprep.mubr.bf16.mxu0 %v4338
          %7644 = vmatmul.mubr.bf16.gmra.mrb[0].mxu0 %v4337
          %v7645 = vpop.f32.mrb[0].mxu0
          %v7646 = vadd.f32 %v7605, %v7645
          %v7647 = vpop.f32.mrb[0].mxu0
          %v7648 = vadd.f32 %v7607, %v7647
          %v7649 = vpop.f32.mrb[0].mxu0
          %v7650 = vpop.f32.mrb[0].mxu0
          %7651 = vdwg.mxu0
          %7652 = vmatprep.subr.bf16.mxu0 %v6467
          %7653 = vmatpush1.bf16.msra.mxu0 %v6466
          %7654 = vmatprep.subr.bf16.mxu0 %v6475
          %7655 = vmatpush1.bf16.msra.mxu0 %v6474
          %7656 = vmatprep.subr.bf16.mxu0 %v6483
          %7657 = vmatpush1.bf16.msra.mxu0 %v6482
          %7658 = vmatprep.subr.bf16.mxu0 %v6491
          %7659 = vmatpush1.bf16.msra.mxu0 %v6490
          %7660 = vmatprep.subr.bf16.mxu0 %v6499
          %7661 = vmatpush1.bf16.msra.mxu0 %v6498
          %7662 = vmatprep.subr.bf16.mxu0 %v6507
          %7663 = vmatpush1.bf16.msra.mxu0 %v6506
          %7664 = vmatprep.subr.bf16.mxu0 %v6515
          %7665 = vmatpush1.bf16.msra.mxu0 %v6514
          %7666 = vmatprep.subr.bf16.mxu0 %v6523
          %7667 = vmatpush1.bf16.msra.mxu0 %v6522
          %7668 = vmatprep.subr.bf16.mxu0 %v6531
          %7669 = vmatpush1.bf16.msra.mxu0 %v6530
          %7670 = vmatprep.subr.bf16.mxu0 %v6539
          %7671 = vmatpush1.bf16.msra.mxu0 %v6538
          %7672 = vmatprep.subr.bf16.mxu0 %v6547
          %7673 = vmatpush1.bf16.msra.mxu0 %v6546
          %7674 = vmatprep.subr.bf16.mxu0 %v6555
          %7675 = vmatpush1.bf16.msra.mxu0 %v6554
          %7676 = vmatprep.subr.bf16.mxu0 %v6563
          %7677 = vmatpush1.bf16.msra.mxu0 %v6562
          %7678 = vmatprep.subr.bf16.mxu0 %v6571
          %7679 = vmatpush1.bf16.msra.mxu0 %v6570
          %7680 = vmatprep.subr.bf16.mxu0 %v6579
          %7681 = vmatpush1.bf16.msra.mxu0 %v6578
          %7682 = vmatprep.subr.bf16.mxu0 %v6587
          %7683 = vmatpush1.bf16.msra.mxu0 %v6586
          %7684 = vmatprep.mubr.bf16.mxu0 %v4332
          %7685 = vmatmul.mubr.bf16.gmra.mrb[0].mxu0 %v4331
          %v7686 = vpop.f32.mrb[0].mxu0
          %v7687 = vadd.f32 %v4907, %v7686
          %v7688 = vpop.f32.mrb[0].mxu0
          %v7689 = vadd.f32 %v4911, %v7688
          %v7690 = vpop.f32.mrb[0].mxu0
          %v7691 = vpop.f32.mrb[0].mxu0
          %7692 = vdwg.mxu0
          %7693 = vmatprep.subr.bf16.mxu0 %v6595
          %7694 = vmatpush1.bf16.msra.mxu0 %v6594
          %7695 = vmatprep.subr.bf16.mxu0 %v6603
          %7696 = vmatpush1.bf16.msra.mxu0 %v6602
          %7697 = vmatprep.subr.bf16.mxu0 %v6611
          %7698 = vmatpush1.bf16.msra.mxu0 %v6610
          %7699 = vmatprep.subr.bf16.mxu0 %v6619
          %7700 = vmatpush1.bf16.msra.mxu0 %v6618
          %7701 = vmatprep.subr.bf16.mxu0 %v6627
          %7702 = vmatpush1.bf16.msra.mxu0 %v6626
          %7703 = vmatprep.subr.bf16.mxu0 %v6635
          %7704 = vmatpush1.bf16.msra.mxu0 %v6634
          %7705 = vmatprep.subr.bf16.mxu0 %v6643
          %7706 = vmatpush1.bf16.msra.mxu0 %v6642
          %7707 = vmatprep.subr.bf16.mxu0 %v6651
          %7708 = vmatpush1.bf16.msra.mxu0 %v6650
          %7709 = vmatprep.subr.bf16.mxu0 %v6659
          %7710 = vmatpush1.bf16.msra.mxu0 %v6658
          %7711 = vmatprep.subr.bf16.mxu0 %v6667
          %7712 = vmatpush1.bf16.msra.mxu0 %v6666
          %7713 = vmatprep.subr.bf16.mxu0 %v6675
          %7714 = vmatpush1.bf16.msra.mxu0 %v6674
          %7715 = vmatprep.subr.bf16.mxu0 %v6683
          %7716 = vmatpush1.bf16.msra.mxu0 %v6682
          %7717 = vmatprep.subr.bf16.mxu0 %v6691
          %7718 = vmatpush1.bf16.msra.mxu0 %v6690
          %7719 = vmatprep.subr.bf16.mxu0 %v6699
          %7720 = vmatpush1.bf16.msra.mxu0 %v6698
          %7721 = vmatprep.subr.bf16.mxu0 %v6707
          %7722 = vmatpush1.bf16.msra.mxu0 %v6706
          %7723 = vmatprep.subr.bf16.mxu0 %v6715
          %7724 = vmatpush1.bf16.msra.mxu0 %v6714
          %7725 = vmatprep.mubr.bf16.mxu0 %v4334
          %7726 = vmatmul.mubr.bf16.gmra.mrb[0].mxu0 %v4333
          %v7727 = vpop.f32.mrb[0].mxu0
          %v7728 = vadd.f32 %v7687, %v7727
          %v7729 = vpop.f32.mrb[0].mxu0
          %v7730 = vadd.f32 %v7689, %v7729
          %v7731 = vpop.f32.mrb[0].mxu0
          %v7732 = vpop.f32.mrb[0].mxu0
          %7733 = vdwg.mxu0
          %7734 = vmatprep.subr.bf16.mxu0 %v6723
          %7735 = vmatpush1.bf16.msra.mxu0 %v6722
          %7736 = vmatprep.subr.bf16.mxu0 %v6731
          %7737 = vmatpush1.bf16.msra.mxu0 %v6730
          %7738 = vmatprep.subr.bf16.mxu0 %v6739
          %7739 = vmatpush1.bf16.msra.mxu0 %v6738
          %7740 = vmatprep.subr.bf16.mxu0 %v6747
          %7741 = vmatpush1.bf16.msra.mxu0 %v6746
          %7742 = vmatprep.subr.bf16.mxu0 %v6755
          %7743 = vmatpush1.bf16.msra.mxu0 %v6754
          %7744 = vmatprep.subr.bf16.mxu0 %v6763
          %7745 = vmatpush1.bf16.msra.mxu0 %v6762
          %7746 = vmatprep.subr.bf16.mxu0 %v6771
          %7747 = vmatpush1.bf16.msra.mxu0 %v6770
          %7748 = vmatprep.subr.bf16.mxu0 %v6779
          %7749 = vmatpush1.bf16.msra.mxu0 %v6778
          %7750 = vmatprep.subr.bf16.mxu0 %v6787
          %7751 = vmatpush1.bf16.msra.mxu0 %v6786
          %7752 = vmatprep.subr.bf16.mxu0 %v6795
          %7753 = vmatpush1.bf16.msra.mxu0 %v6794
          %7754 = vmatprep.subr.bf16.mxu0 %v6803
          %7755 = vmatpush1.bf16.msra.mxu0 %v6802
          %7756 = vmatprep.subr.bf16.mxu0 %v6811
          %7757 = vmatpush1.bf16.msra.mxu0 %v6810
          %7758 = vmatprep.subr.bf16.mxu0 %v6819
          %7759 = vmatpush1.bf16.msra.mxu0 %v6818
          %7760 = vmatprep.subr.bf16.mxu0 %v6827
          %7761 = vmatpush1.bf16.msra.mxu0 %v6826
          %7762 = vmatprep.subr.bf16.mxu0 %v6835
          %7763 = vmatpush1.bf16.msra.mxu0 %v6834
          %7764 = vmatprep.subr.bf16.mxu0 %v6843
          %7765 = vmatpush1.bf16.msra.mxu0 %v6842
          %7766 = vmatprep.mubr.bf16.mxu0 %v4336
          %7767 = vmatmul.mubr.bf16.gmra.mrb[0].mxu0 %v4335
          %v7768 = vpop.f32.mrb[0].mxu0
          %v7769 = vadd.f32 %v7728, %v7768
          %v7770 = vpop.f32.mrb[0].mxu0
          %v7771 = vadd.f32 %v7730, %v7770
          %v7772 = vpop.f32.mrb[0].mxu0
          %v7773 = vpop.f32.mrb[0].mxu0
          %7774 = vdwg.mxu0
          %7775 = vmatprep.subr.bf16.mxu0 %v6851
          %7776 = vmatpush1.bf16.msra.mxu0 %v6850
          %7777 = vmatprep.subr.bf16.mxu0 %v6859
          %7778 = vmatpush1.bf16.msra.mxu0 %v6858
          %7779 = vmatprep.subr.bf16.mxu0 %v6867
          %7780 = vmatpush1.bf16.msra.mxu0 %v6866
          %7781 = vmatprep.subr.bf16.mxu0 %v6875
          %7782 = vmatpush1.bf16.msra.mxu0 %v6874
          %7783 = vmatprep.subr.bf16.mxu0 %v6883
          %7784 = vmatpush1.bf16.msra.mxu0 %v6882
          %7785 = vmatprep.subr.bf16.mxu0 %v6891
          %7786 = vmatpush1.bf16.msra.mxu0 %v6890
          %7787 = vmatprep.subr.bf16.mxu0 %v6899
          %7788 = vmatpush1.bf16.msra.mxu0 %v6898
          %7789 = vmatprep.subr.bf16.mxu0 %v6907
          %7790 = vmatpush1.bf16.msra.mxu0 %v6906
          %7791 = vmatprep.subr.bf16.mxu0 %v6915
          %7792 = vmatpush1.bf16.msra.mxu0 %v6914
          %7793 = vmatprep.subr.bf16.mxu0 %v6923
          %7794 = vmatpush1.bf16.msra.mxu0 %v6922
          %7795 = vmatprep.subr.bf16.mxu0 %v6931
          %7796 = vmatpush1.bf16.msra.mxu0 %v6930
          %7797 = vmatprep.subr.bf16.mxu0 %v6939
          %7798 = vmatpush1.bf16.msra.mxu0 %v6938
          %7799 = vmatprep.subr.bf16.mxu0 %v6947
          %7800 = vmatpush1.bf16.msra.mxu0 %v6946
          %7801 = vmatprep.subr.bf16.mxu0 %v6955
          %7802 = vmatpush1.bf16.msra.mxu0 %v6954
          %7803 = vmatprep.subr.bf16.mxu0 %v6963
          %7804 = vmatpush1.bf16.msra.mxu0 %v6962
          %7805 = vmatprep.subr.bf16.mxu0 %v6971
          %7806 = vmatpush1.bf16.msra.mxu0 %v6970
          %7807 = vmatprep.mubr.bf16.mxu0 %v4338
          %7808 = vmatmul.mubr.bf16.gmra.mrb[0].mxu0 %v4337
          %v7809 = vpop.f32.mrb[0].mxu0
          %v7810 = vadd.f32 %v7769, %v7809
          %v7811 = vpop.f32.mrb[0].mxu0
          %v7812 = vadd.f32 %v7771, %v7811
          %v7813 = vpop.f32.mrb[0].mxu0
          %v7814 = vpop.f32.mrb[0].mxu0
          %7815 = vdwg.mxu0
          %7816 = vmatprep.subr.bf16.mxu0 %v6469
          %7817 = vmatpush1.bf16.msra.mxu0 %v6468
          %7818 = vmatprep.subr.bf16.mxu0 %v6477
          %7819 = vmatpush1.bf16.msra.mxu0 %v6476
          %7820 = vmatprep.subr.bf16.mxu0 %v6485
          %7821 = vmatpush1.bf16.msra.mxu0 %v6484
          %7822 = vmatprep.subr.bf16.mxu0 %v6493
          %7823 = vmatpush1.bf16.msra.mxu0 %v6492
          %7824 = vmatprep.subr.bf16.mxu0 %v6501
          %7825 = vmatpush1.bf16.msra.mxu0 %v6500
          %7826 = vmatprep.subr.bf16.mxu0 %v6509
          %7827 = vmatpush1.bf16.msra.mxu0 %v6508
          %7828 = vmatprep.subr.bf16.mxu0 %v6517
          %7829 = vmatpush1.bf16.msra.mxu0 %v6516
          %7830 = vmatprep.subr.bf16.mxu0 %v6525
          %7831 = vmatpush1.bf16.msra.mxu0 %v6524
          %7832 = vmatprep.subr.bf16.mxu0 %v6533
          %7833 = vmatpush1.bf16.msra.mxu0 %v6532
          %7834 = vmatprep.subr.bf16.mxu0 %v6541
          %7835 = vmatpush1.bf16.msra.mxu0 %v6540
          %7836 = vmatprep.subr.bf16.mxu0 %v6549
          %7837 = vmatpush1.bf16.msra.mxu0 %v6548
          %7838 = vmatprep.subr.bf16.mxu0 %v6557
          %7839 = vmatpush1.bf16.msra.mxu0 %v6556
          %7840 = vmatprep.subr.bf16.mxu0 %v6565
          %7841 = vmatpush1.bf16.msra.mxu0 %v6564
          %7842 = vmatprep.subr.bf16.mxu0 %v6573
          %7843 = vmatpush1.bf16.msra.mxu0 %v6572
          %7844 = vmatprep.subr.bf16.mxu0 %v6581
          %7845 = vmatpush1.bf16.msra.mxu0 %v6580
          %7846 = vmatprep.subr.bf16.mxu0 %v6589
          %7847 = vmatpush1.bf16.msra.mxu0 %v6588
          %7848 = vmatprep.mubr.bf16.mxu0 %v4332
          %7849 = vmatmul.mubr.bf16.gmra.mrb[0].mxu0 %v4331
          %v7850 = vpop.f32.mrb[0].mxu0
          %v7851 = vadd.f32 %v4915, %v7850
          %v7852 = vpop.f32.mrb[0].mxu0
          %v7853 = vadd.f32 %v4919, %v7852
          %v7854 = vpop.f32.mrb[0].mxu0
          %v7855 = vpop.f32.mrb[0].mxu0
          %7856 = vdwg.mxu0
          %7857 = vmatprep.subr.bf16.mxu0 %v6597
          %7858 = vmatpush1.bf16.msra.mxu0 %v6596
          %7859 = vmatprep.subr.bf16.mxu0 %v6605
          %7860 = vmatpush1.bf16.msra.mxu0 %v6604
          %7861 = vmatprep.subr.bf16.mxu0 %v6613
          %7862 = vmatpush1.bf16.msra.mxu0 %v6612
          %7863 = vmatprep.subr.bf16.mxu0 %v6621
          %7864 = vmatpush1.bf16.msra.mxu0 %v6620
          %7865 = vmatprep.subr.bf16.mxu0 %v6629
          %7866 = vmatpush1.bf16.msra.mxu0 %v6628
          %7867 = vmatprep.subr.bf16.mxu0 %v6637
          %7868 = vmatpush1.bf16.msra.mxu0 %v6636
          %7869 = vmatprep.subr.bf16.mxu0 %v6645
          %7870 = vmatpush1.bf16.msra.mxu0 %v6644
          %7871 = vmatprep.subr.bf16.mxu0 %v6653
          %7872 = vmatpush1.bf16.msra.mxu0 %v6652
          %7873 = vmatprep.subr.bf16.mxu0 %v6661
          %7874 = vmatpush1.bf16.msra.mxu0 %v6660
          %7875 = vmatprep.subr.bf16.mxu0 %v6669
          %7876 = vmatpush1.bf16.msra.mxu0 %v6668
          %7877 = vmatprep.subr.bf16.mxu0 %v6677
          %7878 = vmatpush1.bf16.msra.mxu0 %v6676
          %7879 = vmatprep.subr.bf16.mxu0 %v6685
          %7880 = vmatpush1.bf16.msra.mxu0 %v6684
          %7881 = vmatprep.subr.bf16.mxu0 %v6693
          %7882 = vmatpush1.bf16.msra.mxu0 %v6692
          %7883 = vmatprep.subr.bf16.mxu0 %v6701
          %7884 = vmatpush1.bf16.msra.mxu0 %v6700
          %7885 = vmatprep.subr.bf16.mxu0 %v6709
          %7886 = vmatpush1.bf16.msra.mxu0 %v6708
          %7887 = vmatprep.subr.bf16.mxu0 %v6717
          %7888 = vmatpush1.bf16.msra.mxu0 %v6716
          %7889 = vmatprep.mubr.bf16.mxu0 %v4334
          %7890 = vmatmul.mubr.bf16.gmra.mrb[0].mxu0 %v4333
          %v7891 = vpop.f32.mrb[0].mxu0
          %v7892 = vadd.f32 %v7851, %v7891
          %v7893 = vpop.f32.mrb[0].mxu0
          %v7894 = vadd.f32 %v7853, %v7893
          %v7895 = vpop.f32.mrb[0].mxu0
          %v7896 = vpop.f32.mrb[0].mxu0
          %7897 = vdwg.mxu0
          %7898 = vmatprep.subr.bf16.mxu0 %v6725
          %7899 = vmatpush1.bf16.msra.mxu0 %v6724
          %7900 = vmatprep.subr.bf16.mxu0 %v6733
          %7901 = vmatpush1.bf16.msra.mxu0 %v6732
          %7902 = vmatprep.subr.bf16.mxu0 %v6741
          %7903 = vmatpush1.bf16.msra.mxu0 %v6740
          %7904 = vmatprep.subr.bf16.mxu0 %v6749
          %7905 = vmatpush1.bf16.msra.mxu0 %v6748
          %7906 = vmatprep.subr.bf16.mxu0 %v6757
          %7907 = vmatpush1.bf16.msra.mxu0 %v6756
          %7908 = vmatprep.subr.bf16.mxu0 %v6765
          %7909 = vmatpush1.bf16.msra.mxu0 %v6764
          %7910 = vmatprep.subr.bf16.mxu0 %v6773
          %7911 = vmatpush1.bf16.msra.mxu0 %v6772
          %7912 = vmatprep.subr.bf16.mxu0 %v6781
          %7913 = vmatpush1.bf16.msra.mxu0 %v6780
          %7914 = vmatprep.subr.bf16.mxu0 %v6789
          %7915 = vmatpush1.bf16.msra.mxu0 %v6788
          %7916 = vmatprep.subr.bf16.mxu0 %v6797
          %7917 = vmatpush1.bf16.msra.mxu0 %v6796
          %7918 = vmatprep.subr.bf16.mxu0 %v6805
          %7919 = vmatpush1.bf16.msra.mxu0 %v6804
          %7920 = vmatprep.subr.bf16.mxu0 %v6813
          %7921 = vmatpush1.bf16.msra.mxu0 %v6812
          %7922 = vmatprep.subr.bf16.mxu0 %v6821
          %7923 = vmatpush1.bf16.msra.mxu0 %v6820
          %7924 = vmatprep.subr.bf16.mxu0 %v6829
          %7925 = vmatpush1.bf16.msra.mxu0 %v6828
          %7926 = vmatprep.subr.bf16.mxu0 %v6837
          %7927 = vmatpush1.bf16.msra.mxu0 %v6836
          %7928 = vmatprep.subr.bf16.mxu0 %v6845
          %7929 = vmatpush1.bf16.msra.mxu0 %v6844
          %7930 = vmatprep.mubr.bf16.mxu0 %v4336
          %7931 = vmatmul.mubr.bf16.gmra.mrb[0].mxu0 %v4335
          %v7932 = vpop.f32.mrb[0].mxu0
          %v7933 = vadd.f32 %v7892, %v7932
          %v7934 = vpop.f32.mrb[0].mxu0
          %v7935 = vadd.f32 %v7894, %v7934
          %v7936 = vpop.f32.mrb[0].mxu0
          %v7937 = vpop.f32.mrb[0].mxu0
          %7938 = vdwg.mxu0
          %7939 = vmatprep.subr.bf16.mxu0 %v6853
          %7940 = vmatpush1.bf16.msra.mxu0 %v6852
          %7941 = vmatprep.subr.bf16.mxu0 %v6861
          %7942 = vmatpush1.bf16.msra.mxu0 %v6860
          %7943 = vmatprep.subr.bf16.mxu0 %v6869
          %7944 = vmatpush1.bf16.msra.mxu0 %v6868
          %7945 = vmatprep.subr.bf16.mxu0 %v6877
          %7946 = vmatpush1.bf16.msra.mxu0 %v6876
          %7947 = vmatprep.subr.bf16.mxu0 %v6885
          %7948 = vmatpush1.bf16.msra.mxu0 %v6884
          %7949 = vmatprep.subr.bf16.mxu0 %v6893
          %7950 = vmatpush1.bf16.msra.mxu0 %v6892
          %7951 = vmatprep.subr.bf16.mxu0 %v6901
          %7952 = vmatpush1.bf16.msra.mxu0 %v6900
          %7953 = vmatprep.subr.bf16.mxu0 %v6909
          %7954 = vmatpush1.bf16.msra.mxu0 %v6908
          %7955 = vmatprep.subr.bf16.mxu0 %v6917
          %7956 = vmatpush1.bf16.msra.mxu0 %v6916
          %7957 = vmatprep.subr.bf16.mxu0 %v6925
          %7958 = vmatpush1.bf16.msra.mxu0 %v6924
          %7959 = vmatprep.subr.bf16.mxu0 %v6933
          %7960 = vmatpush1.bf16.msra.mxu0 %v6932
          %7961 = vmatprep.subr.bf16.mxu0 %v6941
          %7962 = vmatpush1.bf16.msra.mxu0 %v6940
          %7963 = vmatprep.subr.bf16.mxu0 %v6949
          %7964 = vmatpush1.bf16.msra.mxu0 %v6948
          %7965 = vmatprep.subr.bf16.mxu0 %v6957
          %7966 = vmatpush1.bf16.msra.mxu0 %v6956
          %7967 = vmatprep.subr.bf16.mxu0 %v6965
          %7968 = vmatpush1.bf16.msra.mxu0 %v6964
          %7969 = vmatprep.subr.bf16.mxu0 %v6973
          %7970 = vmatpush1.bf16.msra.mxu0 %v6972
          %7971 = vmatprep.mubr.bf16.mxu0 %v4338
          %7972 = vmatmul.mubr.bf16.gmra.mrb[0].mxu0 %v4337
          %v7973 = vpop.f32.mrb[0].mxu0
          %v7974 = vadd.f32 %v7933, %v7973
          %v7975 = vpop.f32.mrb[0].mxu0
          %v7976 = vadd.f32 %v7935, %v7975
          %v7977 = vpop.f32.mrb[0].mxu0
          %v7978 = vpop.f32.mrb[0].mxu0
          %7979 = vdwg.mxu0
          %7980 = vmatprep.subr.bf16.mxu0 %v6471
          %7981 = vmatpush1.bf16.msra.mxu0 %v6470
          %7982 = vmatprep.subr.bf16.mxu0 %v6479
          %7983 = vmatpush1.bf16.msra.mxu0 %v6478
          %7984 = vmatprep.subr.bf16.mxu0 %v6487
          %7985 = vmatpush1.bf16.msra.mxu0 %v6486
          %7986 = vmatprep.subr.bf16.mxu0 %v6495
          %7987 = vmatpush1.bf16.msra.mxu0 %v6494
          %7988 = vmatprep.subr.bf16.mxu0 %v6503
          %7989 = vmatpush1.bf16.msra.mxu0 %v6502
          %7990 = vmatprep.subr.bf16.mxu0 %v6511
          %7991 = vmatpush1.bf16.msra.mxu0 %v6510
          %7992 = vmatprep.subr.bf16.mxu0 %v6519
          %7993 = vmatpush1.bf16.msra.mxu0 %v6518
          %7994 = vmatprep.subr.bf16.mxu0 %v6527
          %7995 = vmatpush1.bf16.msra.mxu0 %v6526
          %7996 = vmatprep.subr.bf16.mxu0 %v6535
          %7997 = vmatpush1.bf16.msra.mxu0 %v6534
          %7998 = vmatprep.subr.bf16.mxu0 %v6543
          %7999 = vmatpush1.bf16.msra.mxu0 %v6542
          %8000 = vmatprep.subr.bf16.mxu0 %v6551
          %8001 = vmatpush1.bf16.msra.mxu0 %v6550
          %8002 = vmatprep.subr.bf16.mxu0 %v6559
          %8003 = vmatpush1.bf16.msra.mxu0 %v6558
          %8004 = vmatprep.subr.bf16.mxu0 %v6567
          %8005 = vmatpush1.bf16.msra.mxu0 %v6566
          %8006 = vmatprep.subr.bf16.mxu0 %v6575
          %8007 = vmatpush1.bf16.msra.mxu0 %v6574
          %8008 = vmatprep.subr.bf16.mxu0 %v6583
          %8009 = vmatpush1.bf16.msra.mxu0 %v6582
          %8010 = vmatprep.subr.bf16.mxu0 %v6591
          %8011 = vmatpush1.bf16.msra.mxu0 %v6590
          %8012 = vmatprep.mubr.bf16.mxu0 %v4332
          %8013 = vmatmul.mubr.bf16.gmra.mrb[0].mxu0 %v4331
          %v8014 = vpop.f32.mrb[0].mxu0
          %v8015 = vadd.f32 %v4923, %v8014
          %v8016 = vpop.f32.mrb[0].mxu0
          %v8017 = vadd.f32 %v4927, %v8016
          %v8018 = vpop.f32.mrb[0].mxu0
          %v8019 = vpop.f32.mrb[0].mxu0
          %8020 = vdwg.mxu0
          %8021 = vmatprep.subr.bf16.mxu0 %v6599
          %8022 = vmatpush1.bf16.msra.mxu0 %v6598
          %8023 = vmatprep.subr.bf16.mxu0 %v6607
          %8024 = vmatpush1.bf16.msra.mxu0 %v6606
          %8025 = vmatprep.subr.bf16.mxu0 %v6615
          %8026 = vmatpush1.bf16.msra.mxu0 %v6614
          %8027 = vmatprep.subr.bf16.mxu0 %v6623
          %8028 = vmatpush1.bf16.msra.mxu0 %v6622
          %8029 = vmatprep.subr.bf16.mxu0 %v6631
          %8030 = vmatpush1.bf16.msra.mxu0 %v6630
          %8031 = vmatprep.subr.bf16.mxu0 %v6639
          %8032 = vmatpush1.bf16.msra.mxu0 %v6638
          %8033 = vmatprep.subr.bf16.mxu0 %v6647
          %8034 = vmatpush1.bf16.msra.mxu0 %v6646
          %8035 = vmatprep.subr.bf16.mxu0 %v6655
          %8036 = vmatpush1.bf16.msra.mxu0 %v6654
          %8037 = vmatprep.subr.bf16.mxu0 %v6663
          %8038 = vmatpush1.bf16.msra.mxu0 %v6662
          %8039 = vmatprep.subr.bf16.mxu0 %v6671
          %8040 = vmatpush1.bf16.msra.mxu0 %v6670
          %8041 = vmatprep.subr.bf16.mxu0 %v6679
          %8042 = vmatpush1.bf16.msra.mxu0 %v6678
          %8043 = vmatprep.subr.bf16.mxu0 %v6687
          %8044 = vmatpush1.bf16.msra.mxu0 %v6686
          %8045 = vmatprep.subr.bf16.mxu0 %v6695
          %8046 = vmatpush1.bf16.msra.mxu0 %v6694
          %8047 = vmatprep.subr.bf16.mxu0 %v6703
          %8048 = vmatpush1.bf16.msra.mxu0 %v6702
          %8049 = vmatprep.subr.bf16.mxu0 %v6711
          %8050 = vmatpush1.bf16.msra.mxu0 %v6710
          %8051 = vmatprep.subr.bf16.mxu0 %v6719
          %8052 = vmatpush1.bf16.msra.mxu0 %v6718
          %8053 = vmatprep.mubr.bf16.mxu0 %v4334
          %8054 = vmatmul.mubr.bf16.gmra.mrb[0].mxu0 %v4333
          %v8055 = vpop.f32.mrb[0].mxu0
          %v8056 = vadd.f32 %v8015, %v8055
          %v8057 = vpop.f32.mrb[0].mxu0
          %v8058 = vadd.f32 %v8017, %v8057
          %v8059 = vpop.f32.mrb[0].mxu0
          %v8060 = vpop.f32.mrb[0].mxu0
          %8061 = vdwg.mxu0
          %8062 = vmatprep.subr.bf16.mxu0 %v6727
          %8063 = vmatpush1.bf16.msra.mxu0 %v6726
          %8064 = vmatprep.subr.bf16.mxu0 %v6735
          %8065 = vmatpush1.bf16.msra.mxu0 %v6734
          %8066 = vmatprep.subr.bf16.mxu0 %v6743
          %8067 = vmatpush1.bf16.msra.mxu0 %v6742
          %8068 = vmatprep.subr.bf16.mxu0 %v6751
          %8069 = vmatpush1.bf16.msra.mxu0 %v6750
          %8070 = vmatprep.subr.bf16.mxu0 %v6759
          %8071 = vmatpush1.bf16.msra.mxu0 %v6758
          %8072 = vmatprep.subr.bf16.mxu0 %v6767
          %8073 = vmatpush1.bf16.msra.mxu0 %v6766
          %8074 = vmatprep.subr.bf16.mxu0 %v6775
          %8075 = vmatpush1.bf16.msra.mxu0 %v6774
          %8076 = vmatprep.subr.bf16.mxu0 %v6783
          %8077 = vmatpush1.bf16.msra.mxu0 %v6782
          %8078 = vmatprep.subr.bf16.mxu0 %v6791
          %8079 = vmatpush1.bf16.msra.mxu0 %v6790
          %8080 = vmatprep.subr.bf16.mxu0 %v6799
          %8081 = vmatpush1.bf16.msra.mxu0 %v6798
          %8082 = vmatprep.subr.bf16.mxu0 %v6807
          %8083 = vmatpush1.bf16.msra.mxu0 %v6806
          %8084 = vmatprep.subr.bf16.mxu0 %v6815
          %8085 = vmatpush1.bf16.msra.mxu0 %v6814
          %8086 = vmatprep.subr.bf16.mxu0 %v6823
          %8087 = vmatpush1.bf16.msra.mxu0 %v6822
          %8088 = vmatprep.subr.bf16.mxu0 %v6831
          %8089 = vmatpush1.bf16.msra.mxu0 %v6830
          %8090 = vmatprep.subr.bf16.mxu0 %v6839
          %8091 = vmatpush1.bf16.msra.mxu0 %v6838
          %8092 = vmatprep.subr.bf16.mxu0 %v6847
          %8093 = vmatpush1.bf16.msra.mxu0 %v6846
          %8094 = vmatprep.mubr.bf16.mxu0 %v4336
          %8095 = vmatmul.mubr.bf16.gmra.mrb[0].mxu0 %v4335
          %v8096 = vpop.f32.mrb[0].mxu0
          %v8097 = vadd.f32 %v8056, %v8096
          %v8098 = vpop.f32.mrb[0].mxu0
          %v8099 = vadd.f32 %v8058, %v8098
          %v8100 = vpop.f32.mrb[0].mxu0
          %v8101 = vpop.f32.mrb[0].mxu0
          %8102 = vdwg.mxu0
          %8103 = vmatprep.subr.bf16.mxu0 %v6855
          %8104 = vmatpush1.bf16.msra.mxu0 %v6854
          %8105 = vmatprep.subr.bf16.mxu0 %v6863
          %8106 = vmatpush1.bf16.msra.mxu0 %v6862
          %8107 = vmatprep.subr.bf16.mxu0 %v6871
          %8108 = vmatpush1.bf16.msra.mxu0 %v6870
          %8109 = vmatprep.subr.bf16.mxu0 %v6879
          %8110 = vmatpush1.bf16.msra.mxu0 %v6878
          %8111 = vmatprep.subr.bf16.mxu0 %v6887
          %8112 = vmatpush1.bf16.msra.mxu0 %v6886
          %8113 = vmatprep.subr.bf16.mxu0 %v6895
          %8114 = vmatpush1.bf16.msra.mxu0 %v6894
          %8115 = vmatprep.subr.bf16.mxu0 %v6903
          %8116 = vmatpush1.bf16.msra.mxu0 %v6902
          %8117 = vmatprep.subr.bf16.mxu0 %v6911
          %8118 = vmatpush1.bf16.msra.mxu0 %v6910
          %8119 = vmatprep.subr.bf16.mxu0 %v6919
          %8120 = vmatpush1.bf16.msra.mxu0 %v6918
          %8121 = vmatprep.subr.bf16.mxu0 %v6927
          %8122 = vmatpush1.bf16.msra.mxu0 %v6926
          %8123 = vmatprep.subr.bf16.mxu0 %v6935
          %8124 = vmatpush1.bf16.msra.mxu0 %v6934
          %8125 = vmatprep.subr.bf16.mxu0 %v6943
          %8126 = vmatpush1.bf16.msra.mxu0 %v6942
          %8127 = vmatprep.subr.bf16.mxu0 %v6951
          %8128 = vmatpush1.bf16.msra.mxu0 %v6950
          %8129 = vmatprep.subr.bf16.mxu0 %v6959
          %8130 = vmatpush1.bf16.msra.mxu0 %v6958
          %8131 = vmatprep.subr.bf16.mxu0 %v6967
          %8132 = vmatpush1.bf16.msra.mxu0 %v6966
          %8133 = vmatprep.subr.bf16.mxu0 %v6975
          %8134 = vmatpush1.bf16.msra.mxu0 %v6974
          %8135 = vmatprep.mubr.bf16.mxu0 %v4338
          %8136 = vmatmul.mubr.bf16.gmra.mrb[0].mxu0 %v4337
          %v8137 = vpop.f32.mrb[0].mxu0
          %v8138 = vadd.f32 %v8097, %v8137
          %v8139 = vpop.f32.mrb[0].mxu0
          %v8140 = vadd.f32 %v8099, %v8139
          %v8141 = vpop.f32.mrb[0].mxu0
          %v8142 = vpop.f32.mrb[0].mxu0
          %8143 = vdwg.mxu0
          %v8144 = vmax.f32 %v7646, 0.0
          %v8145 = vmax.f32 %v7648, 0.0
          %v8146 = vmax.f32 %v7810, 0.0
          %v8147 = vmax.f32 %v7812, 0.0
          %v8148 = vmax.f32 %v7974, 0.0
          %v8149 = vmax.f32 %v7976, 0.0
          %v8150 = vmax.f32 %v8138, 0.0
          %v8151 = vmax.f32 %v8140, 0.0
          %v8152 = vpack.c.bf16 %v8144, %v8144
          %v8153 = vpack.c.bf16 %v8145, %v8145
          %v8154 = vpack.c.bf16 %v8146, %v8146
          %v8155 = vpack.c.bf16 %v8147, %v8147
          %v8156 = vpack.c.bf16 %v8148, %v8148
          %v8157 = vpack.c.bf16 %v8149, %v8149
          %v8158 = vpack.c.bf16 %v8150, %v8150
          %v8159 = vpack.c.bf16 %v8151, %v8151
          %v8160 = vld [vmem:[#allocation26] sm:$0xff]
          %v8161 = vld [vmem:[#allocation26 + $0x8] sm:$0xff]
          %v8162 = vld [vmem:[#allocation26 + $0x10] sm:$0xff]
          %v8163 = vld [vmem:[#allocation26 + $0x18] sm:$0xff]
          %v8164 = vld [vmem:[#allocation26 + $0x20] sm:$0xff]
          %v8165 = vld [vmem:[#allocation26 + $0x28] sm:$0xff]
          %v8166 = vld [vmem:[#allocation26 + $0x30] sm:$0xff]
          %v8167 = vld [vmem:[#allocation26 + $0x38] sm:$0xff]
          %v8168 = vld [vmem:[#allocation26 + $0x40] sm:$0xff]
          %v8169 = vld [vmem:[#allocation26 + $0x48] sm:$0xff]
          %v8170 = vld [vmem:[#allocation26 + $0x50] sm:$0xff]
          %v8171 = vld [vmem:[#allocation26 + $0x58] sm:$0xff]
          %v8172 = vld [vmem:[#allocation26 + $0x60] sm:$0xff]
          %v8173 = vld [vmem:[#allocation26 + $0x68] sm:$0xff]
          %v8174 = vld [vmem:[#allocation26 + $0x70] sm:$0xff]
          %v8175 = vld [vmem:[#allocation26 + $0x78] sm:$0xff]
          %v8176 = vld [vmem:[#allocation26 + $0x80] sm:$0xff]
          %v8177 = vld [vmem:[#allocation26 + $0x88] sm:$0xff]
          %v8178 = vld [vmem:[#allocation26 + $0x90] sm:$0xff]
          %v8179 = vld [vmem:[#allocation26 + $0x98] sm:$0xff]
          %v8180 = vld [vmem:[#allocation26 + $0xa0] sm:$0xff]
          %v8181 = vld [vmem:[#allocation26 + $0xa8] sm:$0xff]
          %v8182 = vld [vmem:[#allocation26 + $0xb0] sm:$0xff]
          %v8183 = vld [vmem:[#allocation26 + $0xb8] sm:$0xff]
          %v8184 = vld [vmem:[#allocation26 + $0xc0] sm:$0xff]
          %v8185 = vld [vmem:[#allocation26 + $0xc8] sm:$0xff]
          %v8186 = vld [vmem:[#allocation26 + $0xd0] sm:$0xff]
          %v8187 = vld [vmem:[#allocation26 + $0xd8] sm:$0xff]
          %v8188 = vld [vmem:[#allocation26 + $0xe0] sm:$0xff]
          %v8189 = vld [vmem:[#allocation26 + $0xe8] sm:$0xff]
          %v8190 = vld [vmem:[#allocation26 + $0xf0] sm:$0xff]
          %v8191 = vld [vmem:[#allocation26 + $0xf8] sm:$0xff]
          %v8192 = vld [vmem:[#allocation26 + $0x100] sm:$0xff]
          %v8193 = vld [vmem:[#allocation26 + $0x108] sm:$0xff]
          %v8194 = vld [vmem:[#allocation26 + $0x110] sm:$0xff]
          %v8195 = vld [vmem:[#allocation26 + $0x118] sm:$0xff]
          %v8196 = vld [vmem:[#allocation26 + $0x120] sm:$0xff]
          %v8197 = vld [vmem:[#allocation26 + $0x128] sm:$0xff]
          %v8198 = vld [vmem:[#allocation26 + $0x130] sm:$0xff]
          %v8199 = vld [vmem:[#allocation26 + $0x138] sm:$0xff]
          %v8200 = vld [vmem:[#allocation26 + $0x140] sm:$0xff]
          %v8201 = vld [vmem:[#allocation26 + $0x148] sm:$0xff]
          %v8202 = vld [vmem:[#allocation26 + $0x150] sm:$0xff]
          %v8203 = vld [vmem:[#allocation26 + $0x158] sm:$0xff]
          %v8204 = vld [vmem:[#allocation26 + $0x160] sm:$0xff]
          %v8205 = vld [vmem:[#allocation26 + $0x168] sm:$0xff]
          %v8206 = vld [vmem:[#allocation26 + $0x170] sm:$0xff]
          %v8207 = vld [vmem:[#allocation26 + $0x178] sm:$0xff]
          %v8208 = vld [vmem:[#allocation26 + $0x180] sm:$0xff]
          %v8209 = vld [vmem:[#allocation26 + $0x188] sm:$0xff]
          %v8210 = vld [vmem:[#allocation26 + $0x190] sm:$0xff]
          %v8211 = vld [vmem:[#allocation26 + $0x198] sm:$0xff]
          %v8212 = vld [vmem:[#allocation26 + $0x1a0] sm:$0xff]
          %v8213 = vld [vmem:[#allocation26 + $0x1a8] sm:$0xff]
          %v8214 = vld [vmem:[#allocation26 + $0x1b0] sm:$0xff]
          %v8215 = vld [vmem:[#allocation26 + $0x1b8] sm:$0xff]
          %v8216 = vld [vmem:[#allocation26 + $0x1c0] sm:$0xff]
          %v8217 = vld [vmem:[#allocation26 + $0x1c8] sm:$0xff]
          %v8218 = vld [vmem:[#allocation26 + $0x1d0] sm:$0xff]
          %v8219 = vld [vmem:[#allocation26 + $0x1d8] sm:$0xff]
          %v8220 = vld [vmem:[#allocation26 + $0x1e0] sm:$0xff]
          %v8221 = vld [vmem:[#allocation26 + $0x1e8] sm:$0xff]
          %v8222 = vld [vmem:[#allocation26 + $0x1f0] sm:$0xff]
          %v8223 = vld [vmem:[#allocation26 + $0x1f8] sm:$0xff]
          %v8224 = vld [vmem:[#allocation26 + $0x200] sm:$0xff]
          %v8225 = vld [vmem:[#allocation26 + $0x208] sm:$0xff]
          %v8226 = vld [vmem:[#allocation26 + $0x210] sm:$0xff]
          %v8227 = vld [vmem:[#allocation26 + $0x218] sm:$0xff]
          %v8228 = vld [vmem:[#allocation26 + $0x220] sm:$0xff]
          %v8229 = vld [vmem:[#allocation26 + $0x228] sm:$0xff]
          %v8230 = vld [vmem:[#allocation26 + $0x230] sm:$0xff]
          %v8231 = vld [vmem:[#allocation26 + $0x238] sm:$0xff]
          %v8232 = vld [vmem:[#allocation26 + $0x240] sm:$0xff]
          %v8233 = vld [vmem:[#allocation26 + $0x248] sm:$0xff]
          %v8234 = vld [vmem:[#allocation26 + $0x250] sm:$0xff]
          %v8235 = vld [vmem:[#allocation26 + $0x258] sm:$0xff]
          %v8236 = vld [vmem:[#allocation26 + $0x260] sm:$0xff]
          %v8237 = vld [vmem:[#allocation26 + $0x268] sm:$0xff]
          %v8238 = vld [vmem:[#allocation26 + $0x270] sm:$0xff]
          %v8239 = vld [vmem:[#allocation26 + $0x278] sm:$0xff]
          %v8240 = vld [vmem:[#allocation26 + $0x280] sm:$0xff]
          %v8241 = vld [vmem:[#allocation26 + $0x288] sm:$0xff]
          %v8242 = vld [vmem:[#allocation26 + $0x290] sm:$0xff]
          %v8243 = vld [vmem:[#allocation26 + $0x298] sm:$0xff]
          %v8244 = vld [vmem:[#allocation26 + $0x2a0] sm:$0xff]
          %v8245 = vld [vmem:[#allocation26 + $0x2a8] sm:$0xff]
          %v8246 = vld [vmem:[#allocation26 + $0x2b0] sm:$0xff]
          %v8247 = vld [vmem:[#allocation26 + $0x2b8] sm:$0xff]
          %v8248 = vld [vmem:[#allocation26 + $0x2c0] sm:$0xff]
          %v8249 = vld [vmem:[#allocation26 + $0x2c8] sm:$0xff]
          %v8250 = vld [vmem:[#allocation26 + $0x2d0] sm:$0xff]
          %v8251 = vld [vmem:[#allocation26 + $0x2d8] sm:$0xff]
          %v8252 = vld [vmem:[#allocation26 + $0x2e0] sm:$0xff]
          %v8253 = vld [vmem:[#allocation26 + $0x2e8] sm:$0xff]
          %v8254 = vld [vmem:[#allocation26 + $0x2f0] sm:$0xff]
          %v8255 = vld [vmem:[#allocation26 + $0x2f8] sm:$0xff]
          %v8256 = vld [vmem:[#allocation26 + $0x300] sm:$0xff]
          %v8257 = vld [vmem:[#allocation26 + $0x308] sm:$0xff]
          %v8258 = vld [vmem:[#allocation26 + $0x310] sm:$0xff]
          %v8259 = vld [vmem:[#allocation26 + $0x318] sm:$0xff]
          %v8260 = vld [vmem:[#allocation26 + $0x320] sm:$0xff]
          %v8261 = vld [vmem:[#allocation26 + $0x328] sm:$0xff]
          %v8262 = vld [vmem:[#allocation26 + $0x330] sm:$0xff]
          %v8263 = vld [vmem:[#allocation26 + $0x338] sm:$0xff]
          %v8264 = vld [vmem:[#allocation26 + $0x340] sm:$0xff]
          %v8265 = vld [vmem:[#allocation26 + $0x348] sm:$0xff]
          %v8266 = vld [vmem:[#allocation26 + $0x350] sm:$0xff]
          %v8267 = vld [vmem:[#allocation26 + $0x358] sm:$0xff]
          %v8268 = vld [vmem:[#allocation26 + $0x360] sm:$0xff]
          %v8269 = vld [vmem:[#allocation26 + $0x368] sm:$0xff]
          %v8270 = vld [vmem:[#allocation26 + $0x370] sm:$0xff]
          %v8271 = vld [vmem:[#allocation26 + $0x378] sm:$0xff]
          %v8272 = vld [vmem:[#allocation26 + $0x380] sm:$0xff]
          %v8273 = vld [vmem:[#allocation26 + $0x388] sm:$0xff]
          %v8274 = vld [vmem:[#allocation26 + $0x390] sm:$0xff]
          %v8275 = vld [vmem:[#allocation26 + $0x398] sm:$0xff]
          %v8276 = vld [vmem:[#allocation26 + $0x3a0] sm:$0xff]
          %v8277 = vld [vmem:[#allocation26 + $0x3a8] sm:$0xff]
          %v8278 = vld [vmem:[#allocation26 + $0x3b0] sm:$0xff]
          %v8279 = vld [vmem:[#allocation26 + $0x3b8] sm:$0xff]
          %v8280 = vld [vmem:[#allocation26 + $0x3c0] sm:$0xff]
          %v8281 = vld [vmem:[#allocation26 + $0x3c8] sm:$0xff]
          %v8282 = vld [vmem:[#allocation26 + $0x3d0] sm:$0xff]
          %v8283 = vld [vmem:[#allocation26 + $0x3d8] sm:$0xff]
          %v8284 = vld [vmem:[#allocation26 + $0x3e0] sm:$0xff]
          %v8285 = vld [vmem:[#allocation26 + $0x3e8] sm:$0xff]
          %v8286 = vld [vmem:[#allocation26 + $0x3f0] sm:$0xff]
          %v8287 = vld [vmem:[#allocation26 + $0x3f8] sm:$0xff]
          %v8288 = vld [vmem:[#allocation26 + $0x400] sm:$0xff]
          %v8289 = vld [vmem:[#allocation26 + $0x408] sm:$0xff]
          %v8290 = vld [vmem:[#allocation26 + $0x410] sm:$0xff]
          %v8291 = vld [vmem:[#allocation26 + $0x418] sm:$0xff]
          %v8292 = vld [vmem:[#allocation26 + $0x420] sm:$0xff]
          %v8293 = vld [vmem:[#allocation26 + $0x428] sm:$0xff]
          %v8294 = vld [vmem:[#allocation26 + $0x430] sm:$0xff]
          %v8295 = vld [vmem:[#allocation26 + $0x438] sm:$0xff]
          %v8296 = vld [vmem:[#allocation26 + $0x440] sm:$0xff]
          %v8297 = vld [vmem:[#allocation26 + $0x448] sm:$0xff]
          %v8298 = vld [vmem:[#allocation26 + $0x450] sm:$0xff]
          %v8299 = vld [vmem:[#allocation26 + $0x458] sm:$0xff]
          %v8300 = vld [vmem:[#allocation26 + $0x460] sm:$0xff]
          %v8301 = vld [vmem:[#allocation26 + $0x468] sm:$0xff]
          %v8302 = vld [vmem:[#allocation26 + $0x470] sm:$0xff]
          %v8303 = vld [vmem:[#allocation26 + $0x478] sm:$0xff]
          %v8304 = vld [vmem:[#allocation26 + $0x480] sm:$0xff]
          %v8305 = vld [vmem:[#allocation26 + $0x488] sm:$0xff]
          %v8306 = vld [vmem:[#allocation26 + $0x490] sm:$0xff]
          %v8307 = vld [vmem:[#allocation26 + $0x498] sm:$0xff]
          %v8308 = vld [vmem:[#allocation26 + $0x4a0] sm:$0xff]
          %v8309 = vld [vmem:[#allocation26 + $0x4a8] sm:$0xff]
          %v8310 = vld [vmem:[#allocation26 + $0x4b0] sm:$0xff]
          %v8311 = vld [vmem:[#allocation26 + $0x4b8] sm:$0xff]
          %v8312 = vld [vmem:[#allocation26 + $0x4c0] sm:$0xff]
          %v8313 = vld [vmem:[#allocation26 + $0x4c8] sm:$0xff]
          %v8314 = vld [vmem:[#allocation26 + $0x4d0] sm:$0xff]
          %v8315 = vld [vmem:[#allocation26 + $0x4d8] sm:$0xff]
          %v8316 = vld [vmem:[#allocation26 + $0x4e0] sm:$0xff]
          %v8317 = vld [vmem:[#allocation26 + $0x4e8] sm:$0xff]
          %v8318 = vld [vmem:[#allocation26 + $0x4f0] sm:$0xff]
          %v8319 = vld [vmem:[#allocation26 + $0x4f8] sm:$0xff]
          %v8320 = vld [vmem:[#allocation26 + $0x500] sm:$0xff]
          %v8321 = vld [vmem:[#allocation26 + $0x508] sm:$0xff]
          %v8322 = vld [vmem:[#allocation26 + $0x510] sm:$0xff]
          %v8323 = vld [vmem:[#allocation26 + $0x518] sm:$0xff]
          %v8324 = vld [vmem:[#allocation26 + $0x520] sm:$0xff]
          %v8325 = vld [vmem:[#allocation26 + $0x528] sm:$0xff]
          %v8326 = vld [vmem:[#allocation26 + $0x530] sm:$0xff]
          %v8327 = vld [vmem:[#allocation26 + $0x538] sm:$0xff]
          %v8328 = vld [vmem:[#allocation26 + $0x540] sm:$0xff]
          %v8329 = vld [vmem:[#allocation26 + $0x548] sm:$0xff]
          %v8330 = vld [vmem:[#allocation26 + $0x550] sm:$0xff]
          %v8331 = vld [vmem:[#allocation26 + $0x558] sm:$0xff]
          %v8332 = vld [vmem:[#allocation26 + $0x560] sm:$0xff]
          %v8333 = vld [vmem:[#allocation26 + $0x568] sm:$0xff]
          %v8334 = vld [vmem:[#allocation26 + $0x570] sm:$0xff]
          %v8335 = vld [vmem:[#allocation26 + $0x578] sm:$0xff]
          %v8336 = vld [vmem:[#allocation26 + $0x580] sm:$0xff]
          %v8337 = vld [vmem:[#allocation26 + $0x588] sm:$0xff]
          %v8338 = vld [vmem:[#allocation26 + $0x590] sm:$0xff]
          %v8339 = vld [vmem:[#allocation26 + $0x598] sm:$0xff]
          %v8340 = vld [vmem:[#allocation26 + $0x5a0] sm:$0xff]
          %v8341 = vld [vmem:[#allocation26 + $0x5a8] sm:$0xff]
          %v8342 = vld [vmem:[#allocation26 + $0x5b0] sm:$0xff]
          %v8343 = vld [vmem:[#allocation26 + $0x5b8] sm:$0xff]
          %v8344 = vld [vmem:[#allocation26 + $0x5c0] sm:$0xff]
          %v8345 = vld [vmem:[#allocation26 + $0x5c8] sm:$0xff]
          %v8346 = vld [vmem:[#allocation26 + $0x5d0] sm:$0xff]
          %v8347 = vld [vmem:[#allocation26 + $0x5d8] sm:$0xff]
          %v8348 = vld [vmem:[#allocation26 + $0x5e0] sm:$0xff]
          %v8349 = vld [vmem:[#allocation26 + $0x5e8] sm:$0xff]
          %v8350 = vld [vmem:[#allocation26 + $0x5f0] sm:$0xff]
          %v8351 = vld [vmem:[#allocation26 + $0x5f8] sm:$0xff]
          %v8352 = vld [vmem:[#allocation26 + $0x600] sm:$0xff]
          %v8353 = vld [vmem:[#allocation26 + $0x608] sm:$0xff]
          %v8354 = vld [vmem:[#allocation26 + $0x610] sm:$0xff]
          %v8355 = vld [vmem:[#allocation26 + $0x618] sm:$0xff]
          %v8356 = vld [vmem:[#allocation26 + $0x620] sm:$0xff]
          %v8357 = vld [vmem:[#allocation26 + $0x628] sm:$0xff]
          %v8358 = vld [vmem:[#allocation26 + $0x630] sm:$0xff]
          %v8359 = vld [vmem:[#allocation26 + $0x638] sm:$0xff]
          %v8360 = vld [vmem:[#allocation26 + $0x640] sm:$0xff]
          %v8361 = vld [vmem:[#allocation26 + $0x648] sm:$0xff]
          %v8362 = vld [vmem:[#allocation26 + $0x650] sm:$0xff]
          %v8363 = vld [vmem:[#allocation26 + $0x658] sm:$0xff]
          %v8364 = vld [vmem:[#allocation26 + $0x660] sm:$0xff]
          %v8365 = vld [vmem:[#allocation26 + $0x668] sm:$0xff]
          %v8366 = vld [vmem:[#allocation26 + $0x670] sm:$0xff]
          %v8367 = vld [vmem:[#allocation26 + $0x678] sm:$0xff]
          %v8368 = vld [vmem:[#allocation26 + $0x680] sm:$0xff]
          %v8369 = vld [vmem:[#allocation26 + $0x688] sm:$0xff]
          %v8370 = vld [vmem:[#allocation26 + $0x690] sm:$0xff]
          %v8371 = vld [vmem:[#allocation26 + $0x698] sm:$0xff]
          %v8372 = vld [vmem:[#allocation26 + $0x6a0] sm:$0xff]
          %v8373 = vld [vmem:[#allocation26 + $0x6a8] sm:$0xff]
          %v8374 = vld [vmem:[#allocation26 + $0x6b0] sm:$0xff]
          %v8375 = vld [vmem:[#allocation26 + $0x6b8] sm:$0xff]
          %v8376 = vld [vmem:[#allocation26 + $0x6c0] sm:$0xff]
          %v8377 = vld [vmem:[#allocation26 + $0x6c8] sm:$0xff]
          %v8378 = vld [vmem:[#allocation26 + $0x6d0] sm:$0xff]
          %v8379 = vld [vmem:[#allocation26 + $0x6d8] sm:$0xff]
          %v8380 = vld [vmem:[#allocation26 + $0x6e0] sm:$0xff]
          %v8381 = vld [vmem:[#allocation26 + $0x6e8] sm:$0xff]
          %v8382 = vld [vmem:[#allocation26 + $0x6f0] sm:$0xff]
          %v8383 = vld [vmem:[#allocation26 + $0x6f8] sm:$0xff]
          %v8384 = vld [vmem:[#allocation26 + $0x700] sm:$0xff]
          %v8385 = vld [vmem:[#allocation26 + $0x708] sm:$0xff]
          %v8386 = vld [vmem:[#allocation26 + $0x710] sm:$0xff]
          %v8387 = vld [vmem:[#allocation26 + $0x718] sm:$0xff]
          %v8388 = vld [vmem:[#allocation26 + $0x720] sm:$0xff]
          %v8389 = vld [vmem:[#allocation26 + $0x728] sm:$0xff]
          %v8390 = vld [vmem:[#allocation26 + $0x730] sm:$0xff]
          %v8391 = vld [vmem:[#allocation26 + $0x738] sm:$0xff]
          %v8392 = vld [vmem:[#allocation26 + $0x740] sm:$0xff]
          %v8393 = vld [vmem:[#allocation26 + $0x748] sm:$0xff]
          %v8394 = vld [vmem:[#allocation26 + $0x750] sm:$0xff]
          %v8395 = vld [vmem:[#allocation26 + $0x758] sm:$0xff]
          %v8396 = vld [vmem:[#allocation26 + $0x760] sm:$0xff]
          %v8397 = vld [vmem:[#allocation26 + $0x768] sm:$0xff]
          %v8398 = vld [vmem:[#allocation26 + $0x770] sm:$0xff]
          %v8399 = vld [vmem:[#allocation26 + $0x778] sm:$0xff]
          %v8400 = vld [vmem:[#allocation26 + $0x780] sm:$0xff]
          %v8401 = vld [vmem:[#allocation26 + $0x788] sm:$0xff]
          %v8402 = vld [vmem:[#allocation26 + $0x790] sm:$0xff]
          %v8403 = vld [vmem:[#allocation26 + $0x798] sm:$0xff]
          %v8404 = vld [vmem:[#allocation26 + $0x7a0] sm:$0xff]
          %v8405 = vld [vmem:[#allocation26 + $0x7a8] sm:$0xff]
          %v8406 = vld [vmem:[#allocation26 + $0x7b0] sm:$0xff]
          %v8407 = vld [vmem:[#allocation26 + $0x7b8] sm:$0xff]
          %v8408 = vld [vmem:[#allocation26 + $0x7c0] sm:$0xff]
          %v8409 = vld [vmem:[#allocation26 + $0x7c8] sm:$0xff]
          %v8410 = vld [vmem:[#allocation26 + $0x7d0] sm:$0xff]
          %v8411 = vld [vmem:[#allocation26 + $0x7d8] sm:$0xff]
          %v8412 = vld [vmem:[#allocation26 + $0x7e0] sm:$0xff]
          %v8413 = vld [vmem:[#allocation26 + $0x7e8] sm:$0xff]
          %v8414 = vld [vmem:[#allocation26 + $0x7f0] sm:$0xff]
          %v8415 = vld [vmem:[#allocation26 + $0x7f8] sm:$0xff]
          %v8416 = vld [vmem:[#allocation27] sm:$0xf]
          %v8417 = vunpack.c.l.bf16 %v8416
          %v8419 = vlaneseq
          %v8420 = vshrl.u32 %v8419, 7
          %v8421 = vsub.s32 0, %v8420
          %v8422 = vrot.slane %v8417, %v8421
          %v8423 = vlaneseq
          %v8424 = vshrl.u32 %v8423, 7
          %v8425 = vsub.s32 2, %v8424
          %v8426 = vrot.slane %v8417, %v8425
          %v8427 = vlaneseq
          %v8428 = vshrl.u32 %v8427, 7
          %v8429 = vsub.s32 4, %v8428
          %v8430 = vrot.slane %v8417, %v8429
          %v8431 = vlaneseq
          %v8432 = vshrl.u32 %v8431, 7
          %v8433 = vsub.s32 6, %v8432
          %v8434 = vrot.slane %v8417, %v8433
          %v8439 = vlaneseq
          %v8440 = vshrl.u32 %v8439, 7
          %v8441 = vsub.s32 0, %v8440
          %v8442 = vrot.slane %v8422, %v8441
          %v8443 = vlaneseq
          %v8444 = vshrl.u32 %v8443, 7
          %v8445 = vsub.s32 0, %v8444
          %v8446 = vrot.slane %v8426, %v8445
          %v8447 = vlaneseq
          %v8448 = vshrl.u32 %v8447, 7
          %v8449 = vsub.s32 0, %v8448
          %v8450 = vrot.slane %v8430, %v8449
          %v8451 = vlaneseq
          %v8452 = vshrl.u32 %v8451, 7
          %v8453 = vsub.s32 0, %v8452
          %v8454 = vrot.slane %v8434, %v8453
          %v8711 = vunpack.c.l.b16 %v8160
          %v8712 = vunpack.c.h.b16 %v8160
          %v8713 = vunpack.c.l.b16 %v8161
          %v8714 = vunpack.c.h.b16 %v8161
          %v8715 = vunpack.c.l.b16 %v8162
          %v8716 = vunpack.c.h.b16 %v8162
          %v8717 = vunpack.c.l.b16 %v8163
          %v8718 = vunpack.c.h.b16 %v8163
          %v8719 = vunpack.c.l.b16 %v8164
          %v8720 = vunpack.c.h.b16 %v8164
          %v8721 = vunpack.c.l.b16 %v8165
          %v8722 = vunpack.c.h.b16 %v8165
          %v8723 = vunpack.c.l.b16 %v8166
          %v8724 = vunpack.c.h.b16 %v8166
          %v8725 = vunpack.c.l.b16 %v8167
          %v8726 = vunpack.c.h.b16 %v8167
          %v8727 = vunpack.c.l.b16 %v8168
          %v8728 = vunpack.c.h.b16 %v8168
          %v8729 = vunpack.c.l.b16 %v8169
          %v8730 = vunpack.c.h.b16 %v8169
          %v8731 = vunpack.c.l.b16 %v8170
          %v8732 = vunpack.c.h.b16 %v8170
          %v8733 = vunpack.c.l.b16 %v8171
          %v8734 = vunpack.c.h.b16 %v8171
          %v8735 = vunpack.c.l.b16 %v8172
          %v8736 = vunpack.c.h.b16 %v8172
          %v8737 = vunpack.c.l.b16 %v8173
          %v8738 = vunpack.c.h.b16 %v8173
          %v8739 = vunpack.c.l.b16 %v8174
          %v8740 = vunpack.c.h.b16 %v8174
          %v8741 = vunpack.c.l.b16 %v8175
          %v8742 = vunpack.c.h.b16 %v8175
          %v8743 = vunpack.c.l.b16 %v8176
          %v8744 = vunpack.c.h.b16 %v8176
          %v8745 = vunpack.c.l.b16 %v8177
          %v8746 = vunpack.c.h.b16 %v8177
          %v8747 = vunpack.c.l.b16 %v8178
          %v8748 = vunpack.c.h.b16 %v8178
          %v8749 = vunpack.c.l.b16 %v8179
          %v8750 = vunpack.c.h.b16 %v8179
          %v8751 = vunpack.c.l.b16 %v8180
          %v8752 = vunpack.c.h.b16 %v8180
          %v8753 = vunpack.c.l.b16 %v8181
          %v8754 = vunpack.c.h.b16 %v8181
          %v8755 = vunpack.c.l.b16 %v8182
          %v8756 = vunpack.c.h.b16 %v8182
          %v8757 = vunpack.c.l.b16 %v8183
          %v8758 = vunpack.c.h.b16 %v8183
          %v8759 = vunpack.c.l.b16 %v8184
          %v8760 = vunpack.c.h.b16 %v8184
          %v8761 = vunpack.c.l.b16 %v8185
          %v8762 = vunpack.c.h.b16 %v8185
          %v8763 = vunpack.c.l.b16 %v8186
          %v8764 = vunpack.c.h.b16 %v8186
          %v8765 = vunpack.c.l.b16 %v8187
          %v8766 = vunpack.c.h.b16 %v8187
          %v8767 = vunpack.c.l.b16 %v8188
          %v8768 = vunpack.c.h.b16 %v8188
          %v8769 = vunpack.c.l.b16 %v8189
          %v8770 = vunpack.c.h.b16 %v8189
          %v8771 = vunpack.c.l.b16 %v8190
          %v8772 = vunpack.c.h.b16 %v8190
          %v8773 = vunpack.c.l.b16 %v8191
          %v8774 = vunpack.c.h.b16 %v8191
          %v8775 = vunpack.c.l.b16 %v8192
          %v8776 = vunpack.c.h.b16 %v8192
          %v8777 = vunpack.c.l.b16 %v8193
          %v8778 = vunpack.c.h.b16 %v8193
          %v8779 = vunpack.c.l.b16 %v8194
          %v8780 = vunpack.c.h.b16 %v8194
          %v8781 = vunpack.c.l.b16 %v8195
          %v8782 = vunpack.c.h.b16 %v8195
          %v8783 = vunpack.c.l.b16 %v8196
          %v8784 = vunpack.c.h.b16 %v8196
          %v8785 = vunpack.c.l.b16 %v8197
          %v8786 = vunpack.c.h.b16 %v8197
          %v8787 = vunpack.c.l.b16 %v8198
          %v8788 = vunpack.c.h.b16 %v8198
          %v8789 = vunpack.c.l.b16 %v8199
          %v8790 = vunpack.c.h.b16 %v8199
          %v8791 = vunpack.c.l.b16 %v8200
          %v8792 = vunpack.c.h.b16 %v8200
          %v8793 = vunpack.c.l.b16 %v8201
          %v8794 = vunpack.c.h.b16 %v8201
          %v8795 = vunpack.c.l.b16 %v8202
          %v8796 = vunpack.c.h.b16 %v8202
          %v8797 = vunpack.c.l.b16 %v8203
          %v8798 = vunpack.c.h.b16 %v8203
          %v8799 = vunpack.c.l.b16 %v8204
          %v8800 = vunpack.c.h.b16 %v8204
          %v8801 = vunpack.c.l.b16 %v8205
          %v8802 = vunpack.c.h.b16 %v8205
          %v8803 = vunpack.c.l.b16 %v8206
          %v8804 = vunpack.c.h.b16 %v8206
          %v8805 = vunpack.c.l.b16 %v8207
          %v8806 = vunpack.c.h.b16 %v8207
          %v8807 = vunpack.c.l.b16 %v8208
          %v8808 = vunpack.c.h.b16 %v8208
          %v8809 = vunpack.c.l.b16 %v8209
          %v8810 = vunpack.c.h.b16 %v8209
          %v8811 = vunpack.c.l.b16 %v8210
          %v8812 = vunpack.c.h.b16 %v8210
          %v8813 = vunpack.c.l.b16 %v8211
          %v8814 = vunpack.c.h.b16 %v8211
          %v8815 = vunpack.c.l.b16 %v8212
          %v8816 = vunpack.c.h.b16 %v8212
          %v8817 = vunpack.c.l.b16 %v8213
          %v8818 = vunpack.c.h.b16 %v8213
          %v8819 = vunpack.c.l.b16 %v8214
          %v8820 = vunpack.c.h.b16 %v8214
          %v8821 = vunpack.c.l.b16 %v8215
          %v8822 = vunpack.c.h.b16 %v8215
          %v8823 = vunpack.c.l.b16 %v8216
          %v8824 = vunpack.c.h.b16 %v8216
          %v8825 = vunpack.c.l.b16 %v8217
          %v8826 = vunpack.c.h.b16 %v8217
          %v8827 = vunpack.c.l.b16 %v8218
          %v8828 = vunpack.c.h.b16 %v8218
          %v8829 = vunpack.c.l.b16 %v8219
          %v8830 = vunpack.c.h.b16 %v8219
          %v8831 = vunpack.c.l.b16 %v8220
          %v8832 = vunpack.c.h.b16 %v8220
          %v8833 = vunpack.c.l.b16 %v8221
          %v8834 = vunpack.c.h.b16 %v8221
          %v8835 = vunpack.c.l.b16 %v8222
          %v8836 = vunpack.c.h.b16 %v8222
          %v8837 = vunpack.c.l.b16 %v8223
          %v8838 = vunpack.c.h.b16 %v8223
          %v8839 = vunpack.c.l.b16 %v8224
          %v8840 = vunpack.c.h.b16 %v8224
          %v8841 = vunpack.c.l.b16 %v8225
          %v8842 = vunpack.c.h.b16 %v8225
          %v8843 = vunpack.c.l.b16 %v8226
          %v8844 = vunpack.c.h.b16 %v8226
          %v8845 = vunpack.c.l.b16 %v8227
          %v8846 = vunpack.c.h.b16 %v8227
          %v8847 = vunpack.c.l.b16 %v8228
          %v8848 = vunpack.c.h.b16 %v8228
          %v8849 = vunpack.c.l.b16 %v8229
          %v8850 = vunpack.c.h.b16 %v8229
          %v8851 = vunpack.c.l.b16 %v8230
          %v8852 = vunpack.c.h.b16 %v8230
          %v8853 = vunpack.c.l.b16 %v8231
          %v8854 = vunpack.c.h.b16 %v8231
          %v8855 = vunpack.c.l.b16 %v8232
          %v8856 = vunpack.c.h.b16 %v8232
          %v8857 = vunpack.c.l.b16 %v8233
          %v8858 = vunpack.c.h.b16 %v8233
          %v8859 = vunpack.c.l.b16 %v8234
          %v8860 = vunpack.c.h.b16 %v8234
          %v8861 = vunpack.c.l.b16 %v8235
          %v8862 = vunpack.c.h.b16 %v8235
          %v8863 = vunpack.c.l.b16 %v8236
          %v8864 = vunpack.c.h.b16 %v8236
          %v8865 = vunpack.c.l.b16 %v8237
          %v8866 = vunpack.c.h.b16 %v8237
          %v8867 = vunpack.c.l.b16 %v8238
          %v8868 = vunpack.c.h.b16 %v8238
          %v8869 = vunpack.c.l.b16 %v8239
          %v8870 = vunpack.c.h.b16 %v8239
          %v8871 = vunpack.c.l.b16 %v8240
          %v8872 = vunpack.c.h.b16 %v8240
          %v8873 = vunpack.c.l.b16 %v8241
          %v8874 = vunpack.c.h.b16 %v8241
          %v8875 = vunpack.c.l.b16 %v8242
          %v8876 = vunpack.c.h.b16 %v8242
          %v8877 = vunpack.c.l.b16 %v8243
          %v8878 = vunpack.c.h.b16 %v8243
          %v8879 = vunpack.c.l.b16 %v8244
          %v8880 = vunpack.c.h.b16 %v8244
          %v8881 = vunpack.c.l.b16 %v8245
          %v8882 = vunpack.c.h.b16 %v8245
          %v8883 = vunpack.c.l.b16 %v8246
          %v8884 = vunpack.c.h.b16 %v8246
          %v8885 = vunpack.c.l.b16 %v8247
          %v8886 = vunpack.c.h.b16 %v8247
          %v8887 = vunpack.c.l.b16 %v8248
          %v8888 = vunpack.c.h.b16 %v8248
          %v8889 = vunpack.c.l.b16 %v8249
          %v8890 = vunpack.c.h.b16 %v8249
          %v8891 = vunpack.c.l.b16 %v8250
          %v8892 = vunpack.c.h.b16 %v8250
          %v8893 = vunpack.c.l.b16 %v8251
          %v8894 = vunpack.c.h.b16 %v8251
          %v8895 = vunpack.c.l.b16 %v8252
          %v8896 = vunpack.c.h.b16 %v8252
          %v8897 = vunpack.c.l.b16 %v8253
          %v8898 = vunpack.c.h.b16 %v8253
          %v8899 = vunpack.c.l.b16 %v8254
          %v8900 = vunpack.c.h.b16 %v8254
          %v8901 = vunpack.c.l.b16 %v8255
          %v8902 = vunpack.c.h.b16 %v8255
          %v8903 = vunpack.c.l.b16 %v8256
          %v8904 = vunpack.c.h.b16 %v8256
          %v8905 = vunpack.c.l.b16 %v8257
          %v8906 = vunpack.c.h.b16 %v8257
          %v8907 = vunpack.c.l.b16 %v8258
          %v8908 = vunpack.c.h.b16 %v8258
          %v8909 = vunpack.c.l.b16 %v8259
          %v8910 = vunpack.c.h.b16 %v8259
          %v8911 = vunpack.c.l.b16 %v8260
          %v8912 = vunpack.c.h.b16 %v8260
          %v8913 = vunpack.c.l.b16 %v8261
          %v8914 = vunpack.c.h.b16 %v8261
          %v8915 = vunpack.c.l.b16 %v8262
          %v8916 = vunpack.c.h.b16 %v8262
          %v8917 = vunpack.c.l.b16 %v8263
          %v8918 = vunpack.c.h.b16 %v8263
          %v8919 = vunpack.c.l.b16 %v8264
          %v8920 = vunpack.c.h.b16 %v8264
          %v8921 = vunpack.c.l.b16 %v8265
          %v8922 = vunpack.c.h.b16 %v8265
          %v8923 = vunpack.c.l.b16 %v8266
          %v8924 = vunpack.c.h.b16 %v8266
          %v8925 = vunpack.c.l.b16 %v8267
          %v8926 = vunpack.c.h.b16 %v8267
          %v8927 = vunpack.c.l.b16 %v8268
          %v8928 = vunpack.c.h.b16 %v8268
          %v8929 = vunpack.c.l.b16 %v8269
          %v8930 = vunpack.c.h.b16 %v8269
          %v8931 = vunpack.c.l.b16 %v8270
          %v8932 = vunpack.c.h.b16 %v8270
          %v8933 = vunpack.c.l.b16 %v8271
          %v8934 = vunpack.c.h.b16 %v8271
          %v8935 = vunpack.c.l.b16 %v8272
          %v8936 = vunpack.c.h.b16 %v8272
          %v8937 = vunpack.c.l.b16 %v8273
          %v8938 = vunpack.c.h.b16 %v8273
          %v8939 = vunpack.c.l.b16 %v8274
          %v8940 = vunpack.c.h.b16 %v8274
          %v8941 = vunpack.c.l.b16 %v8275
          %v8942 = vunpack.c.h.b16 %v8275
          %v8943 = vunpack.c.l.b16 %v8276
          %v8944 = vunpack.c.h.b16 %v8276
          %v8945 = vunpack.c.l.b16 %v8277
          %v8946 = vunpack.c.h.b16 %v8277
          %v8947 = vunpack.c.l.b16 %v8278
          %v8948 = vunpack.c.h.b16 %v8278
          %v8949 = vunpack.c.l.b16 %v8279
          %v8950 = vunpack.c.h.b16 %v8279
          %v8951 = vunpack.c.l.b16 %v8280
          %v8952 = vunpack.c.h.b16 %v8280
          %v8953 = vunpack.c.l.b16 %v8281
          %v8954 = vunpack.c.h.b16 %v8281
          %v8955 = vunpack.c.l.b16 %v8282
          %v8956 = vunpack.c.h.b16 %v8282
          %v8957 = vunpack.c.l.b16 %v8283
          %v8958 = vunpack.c.h.b16 %v8283
          %v8959 = vunpack.c.l.b16 %v8284
          %v8960 = vunpack.c.h.b16 %v8284
          %v8961 = vunpack.c.l.b16 %v8285
          %v8962 = vunpack.c.h.b16 %v8285
          %v8963 = vunpack.c.l.b16 %v8286
          %v8964 = vunpack.c.h.b16 %v8286
          %v8965 = vunpack.c.l.b16 %v8287
          %v8966 = vunpack.c.h.b16 %v8287
          %v8967 = vunpack.c.l.b16 %v8288
          %v8968 = vunpack.c.h.b16 %v8288
          %v8969 = vunpack.c.l.b16 %v8289
          %v8970 = vunpack.c.h.b16 %v8289
          %v8971 = vunpack.c.l.b16 %v8290
          %v8972 = vunpack.c.h.b16 %v8290
          %v8973 = vunpack.c.l.b16 %v8291
          %v8974 = vunpack.c.h.b16 %v8291
          %v8975 = vunpack.c.l.b16 %v8292
          %v8976 = vunpack.c.h.b16 %v8292
          %v8977 = vunpack.c.l.b16 %v8293
          %v8978 = vunpack.c.h.b16 %v8293
          %v8979 = vunpack.c.l.b16 %v8294
          %v8980 = vunpack.c.h.b16 %v8294
          %v8981 = vunpack.c.l.b16 %v8295
          %v8982 = vunpack.c.h.b16 %v8295
          %v8983 = vunpack.c.l.b16 %v8296
          %v8984 = vunpack.c.h.b16 %v8296
          %v8985 = vunpack.c.l.b16 %v8297
          %v8986 = vunpack.c.h.b16 %v8297
          %v8987 = vunpack.c.l.b16 %v8298
          %v8988 = vunpack.c.h.b16 %v8298
          %v8989 = vunpack.c.l.b16 %v8299
          %v8990 = vunpack.c.h.b16 %v8299
          %v8991 = vunpack.c.l.b16 %v8300
          %v8992 = vunpack.c.h.b16 %v8300
          %v8993 = vunpack.c.l.b16 %v8301
          %v8994 = vunpack.c.h.b16 %v8301
          %v8995 = vunpack.c.l.b16 %v8302
          %v8996 = vunpack.c.h.b16 %v8302
          %v8997 = vunpack.c.l.b16 %v8303
          %v8998 = vunpack.c.h.b16 %v8303
          %v8999 = vunpack.c.l.b16 %v8304
          %v9000 = vunpack.c.h.b16 %v8304
          %v9001 = vunpack.c.l.b16 %v8305
          %v9002 = vunpack.c.h.b16 %v8305
          %v9003 = vunpack.c.l.b16 %v8306
          %v9004 = vunpack.c.h.b16 %v8306
          %v9005 = vunpack.c.l.b16 %v8307
          %v9006 = vunpack.c.h.b16 %v8307
          %v9007 = vunpack.c.l.b16 %v8308
          %v9008 = vunpack.c.h.b16 %v8308
          %v9009 = vunpack.c.l.b16 %v8309
          %v9010 = vunpack.c.h.b16 %v8309
          %v9011 = vunpack.c.l.b16 %v8310
          %v9012 = vunpack.c.h.b16 %v8310
          %v9013 = vunpack.c.l.b16 %v8311
          %v9014 = vunpack.c.h.b16 %v8311
          %v9015 = vunpack.c.l.b16 %v8312
          %v9016 = vunpack.c.h.b16 %v8312
          %v9017 = vunpack.c.l.b16 %v8313
          %v9018 = vunpack.c.h.b16 %v8313
          %v9019 = vunpack.c.l.b16 %v8314
          %v9020 = vunpack.c.h.b16 %v8314
          %v9021 = vunpack.c.l.b16 %v8315
          %v9022 = vunpack.c.h.b16 %v8315
          %v9023 = vunpack.c.l.b16 %v8316
          %v9024 = vunpack.c.h.b16 %v8316
          %v9025 = vunpack.c.l.b16 %v8317
          %v9026 = vunpack.c.h.b16 %v8317
          %v9027 = vunpack.c.l.b16 %v8318
          %v9028 = vunpack.c.h.b16 %v8318
          %v9029 = vunpack.c.l.b16 %v8319
          %v9030 = vunpack.c.h.b16 %v8319
          %v9031 = vunpack.c.l.b16 %v8320
          %v9032 = vunpack.c.h.b16 %v8320
          %v9033 = vunpack.c.l.b16 %v8321
          %v9034 = vunpack.c.h.b16 %v8321
          %v9035 = vunpack.c.l.b16 %v8322
          %v9036 = vunpack.c.h.b16 %v8322
          %v9037 = vunpack.c.l.b16 %v8323
          %v9038 = vunpack.c.h.b16 %v8323
          %v9039 = vunpack.c.l.b16 %v8324
          %v9040 = vunpack.c.h.b16 %v8324
          %v9041 = vunpack.c.l.b16 %v8325
          %v9042 = vunpack.c.h.b16 %v8325
          %v9043 = vunpack.c.l.b16 %v8326
          %v9044 = vunpack.c.h.b16 %v8326
          %v9045 = vunpack.c.l.b16 %v8327
          %v9046 = vunpack.c.h.b16 %v8327
          %v9047 = vunpack.c.l.b16 %v8328
          %v9048 = vunpack.c.h.b16 %v8328
          %v9049 = vunpack.c.l.b16 %v8329
          %v9050 = vunpack.c.h.b16 %v8329
          %v9051 = vunpack.c.l.b16 %v8330
          %v9052 = vunpack.c.h.b16 %v8330
          %v9053 = vunpack.c.l.b16 %v8331
          %v9054 = vunpack.c.h.b16 %v8331
          %v9055 = vunpack.c.l.b16 %v8332
          %v9056 = vunpack.c.h.b16 %v8332
          %v9057 = vunpack.c.l.b16 %v8333
          %v9058 = vunpack.c.h.b16 %v8333
          %v9059 = vunpack.c.l.b16 %v8334
          %v9060 = vunpack.c.h.b16 %v8334
          %v9061 = vunpack.c.l.b16 %v8335
          %v9062 = vunpack.c.h.b16 %v8335
          %v9063 = vunpack.c.l.b16 %v8336
          %v9064 = vunpack.c.h.b16 %v8336
          %v9065 = vunpack.c.l.b16 %v8337
          %v9066 = vunpack.c.h.b16 %v8337
          %v9067 = vunpack.c.l.b16 %v8338
          %v9068 = vunpack.c.h.b16 %v8338
          %v9069 = vunpack.c.l.b16 %v8339
          %v9070 = vunpack.c.h.b16 %v8339
          %v9071 = vunpack.c.l.b16 %v8340
          %v9072 = vunpack.c.h.b16 %v8340
          %v9073 = vunpack.c.l.b16 %v8341
          %v9074 = vunpack.c.h.b16 %v8341
          %v9075 = vunpack.c.l.b16 %v8342
          %v9076 = vunpack.c.h.b16 %v8342
          %v9077 = vunpack.c.l.b16 %v8343
          %v9078 = vunpack.c.h.b16 %v8343
          %v9079 = vunpack.c.l.b16 %v8344
          %v9080 = vunpack.c.h.b16 %v8344
          %v9081 = vunpack.c.l.b16 %v8345
          %v9082 = vunpack.c.h.b16 %v8345
          %v9083 = vunpack.c.l.b16 %v8346
          %v9084 = vunpack.c.h.b16 %v8346
          %v9085 = vunpack.c.l.b16 %v8347
          %v9086 = vunpack.c.h.b16 %v8347
          %v9087 = vunpack.c.l.b16 %v8348
          %v9088 = vunpack.c.h.b16 %v8348
          %v9089 = vunpack.c.l.b16 %v8349
          %v9090 = vunpack.c.h.b16 %v8349
          %v9091 = vunpack.c.l.b16 %v8350
          %v9092 = vunpack.c.h.b16 %v8350
          %v9093 = vunpack.c.l.b16 %v8351
          %v9094 = vunpack.c.h.b16 %v8351
          %v9095 = vunpack.c.l.b16 %v8352
          %v9096 = vunpack.c.h.b16 %v8352
          %v9097 = vunpack.c.l.b16 %v8353
          %v9098 = vunpack.c.h.b16 %v8353
          %v9099 = vunpack.c.l.b16 %v8354
          %v9100 = vunpack.c.h.b16 %v8354
          %v9101 = vunpack.c.l.b16 %v8355
          %v9102 = vunpack.c.h.b16 %v8355
          %v9103 = vunpack.c.l.b16 %v8356
          %v9104 = vunpack.c.h.b16 %v8356
          %v9105 = vunpack.c.l.b16 %v8357
          %v9106 = vunpack.c.h.b16 %v8357
          %v9107 = vunpack.c.l.b16 %v8358
          %v9108 = vunpack.c.h.b16 %v8358
          %v9109 = vunpack.c.l.b16 %v8359
          %v9110 = vunpack.c.h.b16 %v8359
          %v9111 = vunpack.c.l.b16 %v8360
          %v9112 = vunpack.c.h.b16 %v8360
          %v9113 = vunpack.c.l.b16 %v8361
          %v9114 = vunpack.c.h.b16 %v8361
          %v9115 = vunpack.c.l.b16 %v8362
          %v9116 = vunpack.c.h.b16 %v8362
          %v9117 = vunpack.c.l.b16 %v8363
          %v9118 = vunpack.c.h.b16 %v8363
          %v9119 = vunpack.c.l.b16 %v8364
          %v9120 = vunpack.c.h.b16 %v8364
          %v9121 = vunpack.c.l.b16 %v8365
          %v9122 = vunpack.c.h.b16 %v8365
          %v9123 = vunpack.c.l.b16 %v8366
          %v9124 = vunpack.c.h.b16 %v8366
          %v9125 = vunpack.c.l.b16 %v8367
          %v9126 = vunpack.c.h.b16 %v8367
          %v9127 = vunpack.c.l.b16 %v8368
          %v9128 = vunpack.c.h.b16 %v8368
          %v9129 = vunpack.c.l.b16 %v8369
          %v9130 = vunpack.c.h.b16 %v8369
          %v9131 = vunpack.c.l.b16 %v8370
          %v9132 = vunpack.c.h.b16 %v8370
          %v9133 = vunpack.c.l.b16 %v8371
          %v9134 = vunpack.c.h.b16 %v8371
          %v9135 = vunpack.c.l.b16 %v8372
          %v9136 = vunpack.c.h.b16 %v8372
          %v9137 = vunpack.c.l.b16 %v8373
          %v9138 = vunpack.c.h.b16 %v8373
          %v9139 = vunpack.c.l.b16 %v8374
          %v9140 = vunpack.c.h.b16 %v8374
          %v9141 = vunpack.c.l.b16 %v8375
          %v9142 = vunpack.c.h.b16 %v8375
          %v9143 = vunpack.c.l.b16 %v8376
          %v9144 = vunpack.c.h.b16 %v8376
          %v9145 = vunpack.c.l.b16 %v8377
          %v9146 = vunpack.c.h.b16 %v8377
          %v9147 = vunpack.c.l.b16 %v8378
          %v9148 = vunpack.c.h.b16 %v8378
          %v9149 = vunpack.c.l.b16 %v8379
          %v9150 = vunpack.c.h.b16 %v8379
          %v9151 = vunpack.c.l.b16 %v8380
          %v9152 = vunpack.c.h.b16 %v8380
          %v9153 = vunpack.c.l.b16 %v8381
          %v9154 = vunpack.c.h.b16 %v8381
          %v9155 = vunpack.c.l.b16 %v8382
          %v9156 = vunpack.c.h.b16 %v8382
          %v9157 = vunpack.c.l.b16 %v8383
          %v9158 = vunpack.c.h.b16 %v8383
          %v9159 = vunpack.c.l.b16 %v8384
          %v9160 = vunpack.c.h.b16 %v8384
          %v9161 = vunpack.c.l.b16 %v8385
          %v9162 = vunpack.c.h.b16 %v8385
          %v9163 = vunpack.c.l.b16 %v8386
          %v9164 = vunpack.c.h.b16 %v8386
          %v9165 = vunpack.c.l.b16 %v8387
          %v9166 = vunpack.c.h.b16 %v8387
          %v9167 = vunpack.c.l.b16 %v8388
          %v9168 = vunpack.c.h.b16 %v8388
          %v9169 = vunpack.c.l.b16 %v8389
          %v9170 = vunpack.c.h.b16 %v8389
          %v9171 = vunpack.c.l.b16 %v8390
          %v9172 = vunpack.c.h.b16 %v8390
          %v9173 = vunpack.c.l.b16 %v8391
          %v9174 = vunpack.c.h.b16 %v8391
          %v9175 = vunpack.c.l.b16 %v8392
          %v9176 = vunpack.c.h.b16 %v8392
          %v9177 = vunpack.c.l.b16 %v8393
          %v9178 = vunpack.c.h.b16 %v8393
          %v9179 = vunpack.c.l.b16 %v8394
          %v9180 = vunpack.c.h.b16 %v8394
          %v9181 = vunpack.c.l.b16 %v8395
          %v9182 = vunpack.c.h.b16 %v8395
          %v9183 = vunpack.c.l.b16 %v8396
          %v9184 = vunpack.c.h.b16 %v8396
          %v9185 = vunpack.c.l.b16 %v8397
          %v9186 = vunpack.c.h.b16 %v8397
          %v9187 = vunpack.c.l.b16 %v8398
          %v9188 = vunpack.c.h.b16 %v8398
          %v9189 = vunpack.c.l.b16 %v8399
          %v9190 = vunpack.c.h.b16 %v8399
          %v9191 = vunpack.c.l.b16 %v8400
          %v9192 = vunpack.c.h.b16 %v8400
          %v9193 = vunpack.c.l.b16 %v8401
          %v9194 = vunpack.c.h.b16 %v8401
          %v9195 = vunpack.c.l.b16 %v8402
          %v9196 = vunpack.c.h.b16 %v8402
          %v9197 = vunpack.c.l.b16 %v8403
          %v9198 = vunpack.c.h.b16 %v8403
          %v9199 = vunpack.c.l.b16 %v8404
          %v9200 = vunpack.c.h.b16 %v8404
          %v9201 = vunpack.c.l.b16 %v8405
          %v9202 = vunpack.c.h.b16 %v8405
          %v9203 = vunpack.c.l.b16 %v8406
          %v9204 = vunpack.c.h.b16 %v8406
          %v9205 = vunpack.c.l.b16 %v8407
          %v9206 = vunpack.c.h.b16 %v8407
          %v9207 = vunpack.c.l.b16 %v8408
          %v9208 = vunpack.c.h.b16 %v8408
          %v9209 = vunpack.c.l.b16 %v8409
          %v9210 = vunpack.c.h.b16 %v8409
          %v9211 = vunpack.c.l.b16 %v8410
          %v9212 = vunpack.c.h.b16 %v8410
          %v9213 = vunpack.c.l.b16 %v8411
          %v9214 = vunpack.c.h.b16 %v8411
          %v9215 = vunpack.c.l.b16 %v8412
          %v9216 = vunpack.c.h.b16 %v8412
          %v9217 = vunpack.c.l.b16 %v8413
          %v9218 = vunpack.c.h.b16 %v8413
          %v9219 = vunpack.c.l.b16 %v8414
          %v9220 = vunpack.c.h.b16 %v8414
          %v9221 = vunpack.c.l.b16 %v8415
          %v9222 = vunpack.c.h.b16 %v8415
          %v9223 = vpack.c.b16 %v8715, %v8711
          %v9224 = vpack.c.b16 %v8716, %v8712
          %v9225 = vpack.c.b16 %v8717, %v8713
          %v9226 = vpack.c.b16 %v8718, %v8714
          %v9227 = vpack.c.b16 %v8723, %v8719
          %v9228 = vpack.c.b16 %v8724, %v8720
          %v9229 = vpack.c.b16 %v8725, %v8721
          %v9230 = vpack.c.b16 %v8726, %v8722
          %v9231 = vpack.c.b16 %v8731, %v8727
          %v9232 = vpack.c.b16 %v8732, %v8728
          %v9233 = vpack.c.b16 %v8733, %v8729
          %v9234 = vpack.c.b16 %v8734, %v8730
          %v9235 = vpack.c.b16 %v8739, %v8735
          %v9236 = vpack.c.b16 %v8740, %v8736
          %v9237 = vpack.c.b16 %v8741, %v8737
          %v9238 = vpack.c.b16 %v8742, %v8738
          %v9239 = vpack.c.b16 %v8747, %v8743
          %v9240 = vpack.c.b16 %v8748, %v8744
          %v9241 = vpack.c.b16 %v8749, %v8745
          %v9242 = vpack.c.b16 %v8750, %v8746
          %v9243 = vpack.c.b16 %v8755, %v8751
          %v9244 = vpack.c.b16 %v8756, %v8752
          %v9245 = vpack.c.b16 %v8757, %v8753
          %v9246 = vpack.c.b16 %v8758, %v8754
          %v9247 = vpack.c.b16 %v8763, %v8759
          %v9248 = vpack.c.b16 %v8764, %v8760
          %v9249 = vpack.c.b16 %v8765, %v8761
          %v9250 = vpack.c.b16 %v8766, %v8762
          %v9251 = vpack.c.b16 %v8771, %v8767
          %v9252 = vpack.c.b16 %v8772, %v8768
          %v9253 = vpack.c.b16 %v8773, %v8769
          %v9254 = vpack.c.b16 %v8774, %v8770
          %v9255 = vpack.c.b16 %v8779, %v8775
          %v9256 = vpack.c.b16 %v8780, %v8776
          %v9257 = vpack.c.b16 %v8781, %v8777
          %v9258 = vpack.c.b16 %v8782, %v8778
          %v9259 = vpack.c.b16 %v8787, %v8783
          %v9260 = vpack.c.b16 %v8788, %v8784
          %v9261 = vpack.c.b16 %v8789, %v8785
          %v9262 = vpack.c.b16 %v8790, %v8786
          %v9263 = vpack.c.b16 %v8795, %v8791
          %v9264 = vpack.c.b16 %v8796, %v8792
          %v9265 = vpack.c.b16 %v8797, %v8793
          %v9266 = vpack.c.b16 %v8798, %v8794
          %v9267 = vpack.c.b16 %v8803, %v8799
          %v9268 = vpack.c.b16 %v8804, %v8800
          %v9269 = vpack.c.b16 %v8805, %v8801
          %v9270 = vpack.c.b16 %v8806, %v8802
          %v9271 = vpack.c.b16 %v8811, %v8807
          %v9272 = vpack.c.b16 %v8812, %v8808
          %v9273 = vpack.c.b16 %v8813, %v8809
          %v9274 = vpack.c.b16 %v8814, %v8810
          %v9275 = vpack.c.b16 %v8819, %v8815
          %v9276 = vpack.c.b16 %v8820, %v8816
          %v9277 = vpack.c.b16 %v8821, %v8817
          %v9278 = vpack.c.b16 %v8822, %v8818
          %v9279 = vpack.c.b16 %v8827, %v8823
          %v9280 = vpack.c.b16 %v8828, %v8824
          %v9281 = vpack.c.b16 %v8829, %v8825
          %v9282 = vpack.c.b16 %v8830, %v8826
          %v9283 = vpack.c.b16 %v8835, %v8831
          %v9284 = vpack.c.b16 %v8836, %v8832
          %v9285 = vpack.c.b16 %v8837, %v8833
          %v9286 = vpack.c.b16 %v8838, %v8834
          %v9287 = vpack.c.b16 %v8843, %v8839
          %v9288 = vpack.c.b16 %v8844, %v8840
          %v9289 = vpack.c.b16 %v8845, %v8841
          %v9290 = vpack.c.b16 %v8846, %v8842
          %v9291 = vpack.c.b16 %v8851, %v8847
          %v9292 = vpack.c.b16 %v8852, %v8848
          %v9293 = vpack.c.b16 %v8853, %v8849
          %v9294 = vpack.c.b16 %v8854, %v8850
          %v9295 = vpack.c.b16 %v8859, %v8855
          %v9296 = vpack.c.b16 %v8860, %v8856
          %v9297 = vpack.c.b16 %v8861, %v8857
          %v9298 = vpack.c.b16 %v8862, %v8858
          %v9299 = vpack.c.b16 %v8867, %v8863
          %v9300 = vpack.c.b16 %v8868, %v8864
          %v9301 = vpack.c.b16 %v8869, %v8865
          %v9302 = vpack.c.b16 %v8870, %v8866
          %v9303 = vpack.c.b16 %v8875, %v8871
          %v9304 = vpack.c.b16 %v8876, %v8872
          %v9305 = vpack.c.b16 %v8877, %v8873
          %v9306 = vpack.c.b16 %v8878, %v8874
          %v9307 = vpack.c.b16 %v8883, %v8879
          %v9308 = vpack.c.b16 %v8884, %v8880
          %v9309 = vpack.c.b16 %v8885, %v8881
          %v9310 = vpack.c.b16 %v8886, %v8882
          %v9311 = vpack.c.b16 %v8891, %v8887
          %v9312 = vpack.c.b16 %v8892, %v8888
          %v9313 = vpack.c.b16 %v8893, %v8889
          %v9314 = vpack.c.b16 %v8894, %v8890
          %v9315 = vpack.c.b16 %v8899, %v8895
          %v9316 = vpack.c.b16 %v8900, %v8896
          %v9317 = vpack.c.b16 %v8901, %v8897
          %v9318 = vpack.c.b16 %v8902, %v8898
          %v9319 = vpack.c.b16 %v8907, %v8903
          %v9320 = vpack.c.b16 %v8908, %v8904
          %v9321 = vpack.c.b16 %v8909, %v8905
          %v9322 = vpack.c.b16 %v8910, %v8906
          %v9323 = vpack.c.b16 %v8915, %v8911
          %v9324 = vpack.c.b16 %v8916, %v8912
          %v9325 = vpack.c.b16 %v8917, %v8913
          %v9326 = vpack.c.b16 %v8918, %v8914
          %v9327 = vpack.c.b16 %v8923, %v8919
          %v9328 = vpack.c.b16 %v8924, %v8920
          %v9329 = vpack.c.b16 %v8925, %v8921
          %v9330 = vpack.c.b16 %v8926, %v8922
          %v9331 = vpack.c.b16 %v8931, %v8927
          %v9332 = vpack.c.b16 %v8932, %v8928
          %v9333 = vpack.c.b16 %v8933, %v8929
          %v9334 = vpack.c.b16 %v8934, %v8930
          %v9335 = vpack.c.b16 %v8939, %v8935
          %v9336 = vpack.c.b16 %v8940, %v8936
          %v9337 = vpack.c.b16 %v8941, %v8937
          %v9338 = vpack.c.b16 %v8942, %v8938
          %v9339 = vpack.c.b16 %v8947, %v8943
          %v9340 = vpack.c.b16 %v8948, %v8944
          %v9341 = vpack.c.b16 %v8949, %v8945
          %v9342 = vpack.c.b16 %v8950, %v8946
          %v9343 = vpack.c.b16 %v8955, %v8951
          %v9344 = vpack.c.b16 %v8956, %v8952
          %v9345 = vpack.c.b16 %v8957, %v8953
          %v9346 = vpack.c.b16 %v8958, %v8954
          %v9347 = vpack.c.b16 %v8963, %v8959
          %v9348 = vpack.c.b16 %v8964, %v8960
          %v9349 = vpack.c.b16 %v8965, %v8961
          %v9350 = vpack.c.b16 %v8966, %v8962
          %v9351 = vpack.c.b16 %v8971, %v8967
          %v9352 = vpack.c.b16 %v8972, %v8968
          %v9353 = vpack.c.b16 %v8973, %v8969
          %v9354 = vpack.c.b16 %v8974, %v8970
          %v9355 = vpack.c.b16 %v8979, %v8975
          %v9356 = vpack.c.b16 %v8980, %v8976
          %v9357 = vpack.c.b16 %v8981, %v8977
          %v9358 = vpack.c.b16 %v8982, %v8978
          %v9359 = vpack.c.b16 %v8987, %v8983
          %v9360 = vpack.c.b16 %v8988, %v8984
          %v9361 = vpack.c.b16 %v8989, %v8985
          %v9362 = vpack.c.b16 %v8990, %v8986
          %v9363 = vpack.c.b16 %v8995, %v8991
          %v9364 = vpack.c.b16 %v8996, %v8992
          %v9365 = vpack.c.b16 %v8997, %v8993
          %v9366 = vpack.c.b16 %v8998, %v8994
          %v9367 = vpack.c.b16 %v9003, %v8999
          %v9368 = vpack.c.b16 %v9004, %v9000
          %v9369 = vpack.c.b16 %v9005, %v9001
          %v9370 = vpack.c.b16 %v9006, %v9002
          %v9371 = vpack.c.b16 %v9011, %v9007
          %v9372 = vpack.c.b16 %v9012, %v9008
          %v9373 = vpack.c.b16 %v9013, %v9009
          %v9374 = vpack.c.b16 %v9014, %v9010
          %v9375 = vpack.c.b16 %v9019, %v9015
          %v9376 = vpack.c.b16 %v9020, %v9016
          %v9377 = vpack.c.b16 %v9021, %v9017
          %v9378 = vpack.c.b16 %v9022, %v9018
          %v9379 = vpack.c.b16 %v9027, %v9023
          %v9380 = vpack.c.b16 %v9028, %v9024
          %v9381 = vpack.c.b16 %v9029, %v9025
          %v9382 = vpack.c.b16 %v9030, %v9026
          %v9383 = vpack.c.b16 %v9035, %v9031
          %v9384 = vpack.c.b16 %v9036, %v9032
          %v9385 = vpack.c.b16 %v9037, %v9033
          %v9386 = vpack.c.b16 %v9038, %v9034
          %v9387 = vpack.c.b16 %v9043, %v9039
          %v9388 = vpack.c.b16 %v9044, %v9040
          %v9389 = vpack.c.b16 %v9045, %v9041
          %v9390 = vpack.c.b16 %v9046, %v9042
          %v9391 = vpack.c.b16 %v9051, %v9047
          %v9392 = vpack.c.b16 %v9052, %v9048
          %v9393 = vpack.c.b16 %v9053, %v9049
          %v9394 = vpack.c.b16 %v9054, %v9050
          %v9395 = vpack.c.b16 %v9059, %v9055
          %v9396 = vpack.c.b16 %v9060, %v9056
          %v9397 = vpack.c.b16 %v9061, %v9057
          %v9398 = vpack.c.b16 %v9062, %v9058
          %v9399 = vpack.c.b16 %v9067, %v9063
          %v9400 = vpack.c.b16 %v9068, %v9064
          %v9401 = vpack.c.b16 %v9069, %v9065
          %v9402 = vpack.c.b16 %v9070, %v9066
          %v9403 = vpack.c.b16 %v9075, %v9071
          %v9404 = vpack.c.b16 %v9076, %v9072
          %v9405 = vpack.c.b16 %v9077, %v9073
          %v9406 = vpack.c.b16 %v9078, %v9074
          %v9407 = vpack.c.b16 %v9083, %v9079
          %v9408 = vpack.c.b16 %v9084, %v9080
          %v9409 = vpack.c.b16 %v9085, %v9081
          %v9410 = vpack.c.b16 %v9086, %v9082
          %v9411 = vpack.c.b16 %v9091, %v9087
          %v9412 = vpack.c.b16 %v9092, %v9088
          %v9413 = vpack.c.b16 %v9093, %v9089
          %v9414 = vpack.c.b16 %v9094, %v9090
          %v9415 = vpack.c.b16 %v9099, %v9095
          %v9416 = vpack.c.b16 %v9100, %v9096
          %v9417 = vpack.c.b16 %v9101, %v9097
          %v9418 = vpack.c.b16 %v9102, %v9098
          %v9419 = vpack.c.b16 %v9107, %v9103
          %v9420 = vpack.c.b16 %v9108, %v9104
          %v9421 = vpack.c.b16 %v9109, %v9105
          %v9422 = vpack.c.b16 %v9110, %v9106
          %v9423 = vpack.c.b16 %v9115, %v9111
          %v9424 = vpack.c.b16 %v9116, %v9112
          %v9425 = vpack.c.b16 %v9117, %v9113
          %v9426 = vpack.c.b16 %v9118, %v9114
          %v9427 = vpack.c.b16 %v9123, %v9119
          %v9428 = vpack.c.b16 %v9124, %v9120
          %v9429 = vpack.c.b16 %v9125, %v9121
          %v9430 = vpack.c.b16 %v9126, %v9122
          %v9431 = vpack.c.b16 %v9131, %v9127
          %v9432 = vpack.c.b16 %v9132, %v9128
          %v9433 = vpack.c.b16 %v9133, %v9129
          %v9434 = vpack.c.b16 %v9134, %v9130
          %v9435 = vpack.c.b16 %v9139, %v9135
          %v9436 = vpack.c.b16 %v9140, %v9136
          %v9437 = vpack.c.b16 %v9141, %v9137
          %v9438 = vpack.c.b16 %v9142, %v9138
          %v9439 = vpack.c.b16 %v9147, %v9143
          %v9440 = vpack.c.b16 %v9148, %v9144
          %v9441 = vpack.c.b16 %v9149, %v9145
          %v9442 = vpack.c.b16 %v9150, %v9146
          %v9443 = vpack.c.b16 %v9155, %v9151
          %v9444 = vpack.c.b16 %v9156, %v9152
          %v9445 = vpack.c.b16 %v9157, %v9153
          %v9446 = vpack.c.b16 %v9158, %v9154
          %v9447 = vpack.c.b16 %v9163, %v9159
          %v9448 = vpack.c.b16 %v9164, %v9160
          %v9449 = vpack.c.b16 %v9165, %v9161
          %v9450 = vpack.c.b16 %v9166, %v9162
          %v9451 = vpack.c.b16 %v9171, %v9167
          %v9452 = vpack.c.b16 %v9172, %v9168
          %v9453 = vpack.c.b16 %v9173, %v9169
          %v9454 = vpack.c.b16 %v9174, %v9170
          %v9455 = vpack.c.b16 %v9179, %v9175
          %v9456 = vpack.c.b16 %v9180, %v9176
          %v9457 = vpack.c.b16 %v9181, %v9177
          %v9458 = vpack.c.b16 %v9182, %v9178
          %v9459 = vpack.c.b16 %v9187, %v9183
          %v9460 = vpack.c.b16 %v9188, %v9184
          %v9461 = vpack.c.b16 %v9189, %v9185
          %v9462 = vpack.c.b16 %v9190, %v9186
          %v9463 = vpack.c.b16 %v9195, %v9191
          %v9464 = vpack.c.b16 %v9196, %v9192
          %v9465 = vpack.c.b16 %v9197, %v9193
          %v9466 = vpack.c.b16 %v9198, %v9194
          %v9467 = vpack.c.b16 %v9203, %v9199
          %v9468 = vpack.c.b16 %v9204, %v9200
          %v9469 = vpack.c.b16 %v9205, %v9201
          %v9470 = vpack.c.b16 %v9206, %v9202
          %v9471 = vpack.c.b16 %v9211, %v9207
          %v9472 = vpack.c.b16 %v9212, %v9208
          %v9473 = vpack.c.b16 %v9213, %v9209
          %v9474 = vpack.c.b16 %v9214, %v9210
          %v9475 = vpack.c.b16 %v9219, %v9215
          %v9476 = vpack.c.b16 %v9220, %v9216
          %v9477 = vpack.c.b16 %v9221, %v9217
          %v9478 = vpack.c.b16 %v9222, %v9218
          %9735 = vmatprep.subr.bf16.mxu0 %v9224
          %9736 = vmatpush1.bf16.msra.mxu0 %v9223
          %9737 = vmatprep.subr.bf16.mxu0 %v9228
          %9738 = vmatpush1.bf16.msra.mxu0 %v9227
          %9739 = vmatprep.subr.bf16.mxu0 %v9232
          %9740 = vmatpush1.bf16.msra.mxu0 %v9231
          %9741 = vmatprep.subr.bf16.mxu0 %v9236
          %9742 = vmatpush1.bf16.msra.mxu0 %v9235
          %9743 = vmatprep.subr.bf16.mxu0 %v9240
          %9744 = vmatpush1.bf16.msra.mxu0 %v9239
          %9745 = vmatprep.subr.bf16.mxu0 %v9244
          %9746 = vmatpush1.bf16.msra.mxu0 %v9243
          %9747 = vmatprep.subr.bf16.mxu0 %v9248
          %9748 = vmatpush1.bf16.msra.mxu0 %v9247
          %9749 = vmatprep.subr.bf16.mxu0 %v9252
          %9750 = vmatpush1.bf16.msra.mxu0 %v9251
          %9751 = vmatprep.subr.bf16.mxu0 %v9256
          %9752 = vmatpush1.bf16.msra.mxu0 %v9255
          %9753 = vmatprep.subr.bf16.mxu0 %v9260
          %9754 = vmatpush1.bf16.msra.mxu0 %v9259
          %9755 = vmatprep.subr.bf16.mxu0 %v9264
          %9756 = vmatpush1.bf16.msra.mxu0 %v9263
          %9757 = vmatprep.subr.bf16.mxu0 %v9268
          %9758 = vmatpush1.bf16.msra.mxu0 %v9267
          %9759 = vmatprep.subr.bf16.mxu0 %v9272
          %9760 = vmatpush1.bf16.msra.mxu0 %v9271
          %9761 = vmatprep.subr.bf16.mxu0 %v9276
          %9762 = vmatpush1.bf16.msra.mxu0 %v9275
          %9763 = vmatprep.subr.bf16.mxu0 %v9280
          %9764 = vmatpush1.bf16.msra.mxu0 %v9279
          %9765 = vmatprep.subr.bf16.mxu0 %v9284
          %9766 = vmatpush1.bf16.msra.mxu0 %v9283
          %9767 = vmatprep.mubr.bf16.mxu0 %v8153
          %9768 = vmatmul.mubr.bf16.gmra.mrb[0].mxu0 %v8152
          %v9769 = vpop.f32.mrb[0].mxu0
          %v9770 = vadd.f32 %v8442, %v9769
          %v9771 = vpop.f32.mrb[0].mxu0
          %v9772 = vadd.f32 %v8446, %v9771
          %v9773 = vpop.f32.mrb[0].mxu0
          %v9774 = vpop.f32.mrb[0].mxu0
          %9775 = vdwg.mxu0
          %9776 = vmatprep.subr.bf16.mxu0 %v9288
          %9777 = vmatpush1.bf16.msra.mxu0 %v9287
          %9778 = vmatprep.subr.bf16.mxu0 %v9292
          %9779 = vmatpush1.bf16.msra.mxu0 %v9291
          %9780 = vmatprep.subr.bf16.mxu0 %v9296
          %9781 = vmatpush1.bf16.msra.mxu0 %v9295
          %9782 = vmatprep.subr.bf16.mxu0 %v9300
          %9783 = vmatpush1.bf16.msra.mxu0 %v9299
          %9784 = vmatprep.subr.bf16.mxu0 %v9304
          %9785 = vmatpush1.bf16.msra.mxu0 %v9303
          %9786 = vmatprep.subr.bf16.mxu0 %v9308
          %9787 = vmatpush1.bf16.msra.mxu0 %v9307
          %9788 = vmatprep.subr.bf16.mxu0 %v9312
          %9789 = vmatpush1.bf16.msra.mxu0 %v9311
          %9790 = vmatprep.subr.bf16.mxu0 %v9316
          %9791 = vmatpush1.bf16.msra.mxu0 %v9315
          %9792 = vmatprep.subr.bf16.mxu0 %v9320
          %9793 = vmatpush1.bf16.msra.mxu0 %v9319
          %9794 = vmatprep.subr.bf16.mxu0 %v9324
          %9795 = vmatpush1.bf16.msra.mxu0 %v9323
          %9796 = vmatprep.subr.bf16.mxu0 %v9328
          %9797 = vmatpush1.bf16.msra.mxu0 %v9327
          %9798 = vmatprep.subr.bf16.mxu0 %v9332
          %9799 = vmatpush1.bf16.msra.mxu0 %v9331
          %9800 = vmatprep.subr.bf16.mxu0 %v9336
          %9801 = vmatpush1.bf16.msra.mxu0 %v9335
          %9802 = vmatprep.subr.bf16.mxu0 %v9340
          %9803 = vmatpush1.bf16.msra.mxu0 %v9339
          %9804 = vmatprep.subr.bf16.mxu0 %v9344
          %9805 = vmatpush1.bf16.msra.mxu0 %v9343
          %9806 = vmatprep.subr.bf16.mxu0 %v9348
          %9807 = vmatpush1.bf16.msra.mxu0 %v9347
          %9808 = vmatprep.mubr.bf16.mxu0 %v8155
          %9809 = vmatmul.mubr.bf16.gmra.mrb[0].mxu0 %v8154
          %v9810 = vpop.f32.mrb[0].mxu0
          %v9811 = vadd.f32 %v9770, %v9810
          %v9812 = vpop.f32.mrb[0].mxu0
          %v9813 = vadd.f32 %v9772, %v9812
          %v9814 = vpop.f32.mrb[0].mxu0
          %v9815 = vpop.f32.mrb[0].mxu0
          %9816 = vdwg.mxu0
          %9817 = vmatprep.subr.bf16.mxu0 %v9352
          %9818 = vmatpush1.bf16.msra.mxu0 %v9351
          %9819 = vmatprep.subr.bf16.mxu0 %v9356
          %9820 = vmatpush1.bf16.msra.mxu0 %v9355
          %9821 = vmatprep.subr.bf16.mxu0 %v9360
          %9822 = vmatpush1.bf16.msra.mxu0 %v9359
          %9823 = vmatprep.subr.bf16.mxu0 %v9364
          %9824 = vmatpush1.bf16.msra.mxu0 %v9363
          %9825 = vmatprep.subr.bf16.mxu0 %v9368
          %9826 = vmatpush1.bf16.msra.mxu0 %v9367
          %9827 = vmatprep.subr.bf16.mxu0 %v9372
          %9828 = vmatpush1.bf16.msra.mxu0 %v9371
          %9829 = vmatprep.subr.bf16.mxu0 %v9376
          %9830 = vmatpush1.bf16.msra.mxu0 %v9375
          %9831 = vmatprep.subr.bf16.mxu0 %v9380
          %9832 = vmatpush1.bf16.msra.mxu0 %v9379
          %9833 = vmatprep.subr.bf16.mxu0 %v9384
          %9834 = vmatpush1.bf16.msra.mxu0 %v9383
          %9835 = vmatprep.subr.bf16.mxu0 %v9388
          %9836 = vmatpush1.bf16.msra.mxu0 %v9387
          %9837 = vmatprep.subr.bf16.mxu0 %v9392
          %9838 = vmatpush1.bf16.msra.mxu0 %v9391
          %9839 = vmatprep.subr.bf16.mxu0 %v9396
          %9840 = vmatpush1.bf16.msra.mxu0 %v9395
          %9841 = vmatprep.subr.bf16.mxu0 %v9400
          %9842 = vmatpush1.bf16.msra.mxu0 %v9399
          %9843 = vmatprep.subr.bf16.mxu0 %v9404
          %9844 = vmatpush1.bf16.msra.mxu0 %v9403
          %9845 = vmatprep.subr.bf16.mxu0 %v9408
          %9846 = vmatpush1.bf16.msra.mxu0 %v9407
          %9847 = vmatprep.subr.bf16.mxu0 %v9412
          %9848 = vmatpush1.bf16.msra.mxu0 %v9411
          %9849 = vmatprep.mubr.bf16.mxu0 %v8157
          %9850 = vmatmul.mubr.bf16.gmra.mrb[0].mxu0 %v8156
          %v9851 = vpop.f32.mrb[0].mxu0
          %v9852 = vadd.f32 %v9811, %v9851
          %v9853 = vpop.f32.mrb[0].mxu0
          %v9854 = vadd.f32 %v9813, %v9853
          %v9855 = vpop.f32.mrb[0].mxu0
          %v9856 = vpop.f32.mrb[0].mxu0
          %9857 = vdwg.mxu0
          %9858 = vmatprep.subr.bf16.mxu0 %v9416
          %9859 = vmatpush1.bf16.msra.mxu0 %v9415
          %9860 = vmatprep.subr.bf16.mxu0 %v9420
          %9861 = vmatpush1.bf16.msra.mxu0 %v9419
          %9862 = vmatprep.subr.bf16.mxu0 %v9424
          %9863 = vmatpush1.bf16.msra.mxu0 %v9423
          %9864 = vmatprep.subr.bf16.mxu0 %v9428
          %9865 = vmatpush1.bf16.msra.mxu0 %v9427
          %9866 = vmatprep.subr.bf16.mxu0 %v9432
          %9867 = vmatpush1.bf16.msra.mxu0 %v9431
          %9868 = vmatprep.subr.bf16.mxu0 %v9436
          %9869 = vmatpush1.bf16.msra.mxu0 %v9435
          %9870 = vmatprep.subr.bf16.mxu0 %v9440
          %9871 = vmatpush1.bf16.msra.mxu0 %v9439
          %9872 = vmatprep.subr.bf16.mxu0 %v9444
          %9873 = vmatpush1.bf16.msra.mxu0 %v9443
          %9874 = vmatprep.subr.bf16.mxu0 %v9448
          %9875 = vmatpush1.bf16.msra.mxu0 %v9447
          %9876 = vmatprep.subr.bf16.mxu0 %v9452
          %9877 = vmatpush1.bf16.msra.mxu0 %v9451
          %9878 = vmatprep.subr.bf16.mxu0 %v9456
          %9879 = vmatpush1.bf16.msra.mxu0 %v9455
          %9880 = vmatprep.subr.bf16.mxu0 %v9460
          %9881 = vmatpush1.bf16.msra.mxu0 %v9459
          %9882 = vmatprep.subr.bf16.mxu0 %v9464
          %9883 = vmatpush1.bf16.msra.mxu0 %v9463
          %9884 = vmatprep.subr.bf16.mxu0 %v9468
          %9885 = vmatpush1.bf16.msra.mxu0 %v9467
          %9886 = vmatprep.subr.bf16.mxu0 %v9472
          %9887 = vmatpush1.bf16.msra.mxu0 %v9471
          %9888 = vmatprep.subr.bf16.mxu0 %v9476
          %9889 = vmatpush1.bf16.msra.mxu0 %v9475
          %9890 = vmatprep.mubr.bf16.mxu0 %v8159
          %9891 = vmatmul.mubr.bf16.gmra.mrb[0].mxu0 %v8158
          %v9892 = vpop.f32.mrb[0].mxu0
          %v9893 = vadd.f32 %v9852, %v9892
          %v9894 = vpop.f32.mrb[0].mxu0
          %v9895 = vadd.f32 %v9854, %v9894
          %v9896 = vpop.f32.mrb[0].mxu0
          %v9897 = vpop.f32.mrb[0].mxu0
          %9898 = vdwg.mxu0
          %9899 = vmatprep.subr.bf16.mxu0 %v9226
          %9900 = vmatpush1.bf16.msra.mxu0 %v9225
          %9901 = vmatprep.subr.bf16.mxu0 %v9230
          %9902 = vmatpush1.bf16.msra.mxu0 %v9229
          %9903 = vmatprep.subr.bf16.mxu0 %v9234
          %9904 = vmatpush1.bf16.msra.mxu0 %v9233
          %9905 = vmatprep.subr.bf16.mxu0 %v9238
          %9906 = vmatpush1.bf16.msra.mxu0 %v9237
          %9907 = vmatprep.subr.bf16.mxu0 %v9242
          %9908 = vmatpush1.bf16.msra.mxu0 %v9241
          %9909 = vmatprep.subr.bf16.mxu0 %v9246
          %9910 = vmatpush1.bf16.msra.mxu0 %v9245
          %9911 = vmatprep.subr.bf16.mxu0 %v9250
          %9912 = vmatpush1.bf16.msra.mxu0 %v9249
          %9913 = vmatprep.subr.bf16.mxu0 %v9254
          %9914 = vmatpush1.bf16.msra.mxu0 %v9253
          %9915 = vmatprep.subr.bf16.mxu0 %v9258
          %9916 = vmatpush1.bf16.msra.mxu0 %v9257
          %9917 = vmatprep.subr.bf16.mxu0 %v9262
          %9918 = vmatpush1.bf16.msra.mxu0 %v9261
          %9919 = vmatprep.subr.bf16.mxu0 %v9266
          %9920 = vmatpush1.bf16.msra.mxu0 %v9265
          %9921 = vmatprep.subr.bf16.mxu0 %v9270
          %9922 = vmatpush1.bf16.msra.mxu0 %v9269
          %9923 = vmatprep.subr.bf16.mxu0 %v9274
          %9924 = vmatpush1.bf16.msra.mxu0 %v9273
          %9925 = vmatprep.subr.bf16.mxu0 %v9278
          %9926 = vmatpush1.bf16.msra.mxu0 %v9277
          %9927 = vmatprep.subr.bf16.mxu0 %v9282
          %9928 = vmatpush1.bf16.msra.mxu0 %v9281
          %9929 = vmatprep.subr.bf16.mxu0 %v9286
          %9930 = vmatpush1.bf16.msra.mxu0 %v9285
          %9931 = vmatprep.mubr.bf16.mxu0 %v8153
          %9932 = vmatmul.mubr.bf16.gmra.mrb[0].mxu0 %v8152
          %v9933 = vpop.f32.mrb[0].mxu0
          %v9934 = vadd.f32 %v8450, %v9933
          %v9935 = vpop.f32.mrb[0].mxu0
          %v9936 = vadd.f32 %v8454, %v9935
          %v9937 = vpop.f32.mrb[0].mxu0
          %v9938 = vpop.f32.mrb[0].mxu0
          %9939 = vdwg.mxu0
          %9940 = vmatprep.subr.bf16.mxu0 %v9290
          %9941 = vmatpush1.bf16.msra.mxu0 %v9289
          %9942 = vmatprep.subr.bf16.mxu0 %v9294
          %9943 = vmatpush1.bf16.msra.mxu0 %v9293
          %9944 = vmatprep.subr.bf16.mxu0 %v9298
          %9945 = vmatpush1.bf16.msra.mxu0 %v9297
          %9946 = vmatprep.subr.bf16.mxu0 %v9302
          %9947 = vmatpush1.bf16.msra.mxu0 %v9301
          %9948 = vmatprep.subr.bf16.mxu0 %v9306
          %9949 = vmatpush1.bf16.msra.mxu0 %v9305
          %9950 = vmatprep.subr.bf16.mxu0 %v9310
          %9951 = vmatpush1.bf16.msra.mxu0 %v9309
          %9952 = vmatprep.subr.bf16.mxu0 %v9314
          %9953 = vmatpush1.bf16.msra.mxu0 %v9313
          %9954 = vmatprep.subr.bf16.mxu0 %v9318
          %9955 = vmatpush1.bf16.msra.mxu0 %v9317
          %9956 = vmatprep.subr.bf16.mxu0 %v9322
          %9957 = vmatpush1.bf16.msra.mxu0 %v9321
          %9958 = vmatprep.subr.bf16.mxu0 %v9326
          %9959 = vmatpush1.bf16.msra.mxu0 %v9325
          %9960 = vmatprep.subr.bf16.mxu0 %v9330
          %9961 = vmatpush1.bf16.msra.mxu0 %v9329
          %9962 = vmatprep.subr.bf16.mxu0 %v9334
          %9963 = vmatpush1.bf16.msra.mxu0 %v9333
          %9964 = vmatprep.subr.bf16.mxu0 %v9338
          %9965 = vmatpush1.bf16.msra.mxu0 %v9337
          %9966 = vmatprep.subr.bf16.mxu0 %v9342
          %9967 = vmatpush1.bf16.msra.mxu0 %v9341
          %9968 = vmatprep.subr.bf16.mxu0 %v9346
          %9969 = vmatpush1.bf16.msra.mxu0 %v9345
          %9970 = vmatprep.subr.bf16.mxu0 %v9350
          %9971 = vmatpush1.bf16.msra.mxu0 %v9349
          %9972 = vmatprep.mubr.bf16.mxu0 %v8155
          %9973 = vmatmul.mubr.bf16.gmra.mrb[0].mxu0 %v8154
          %v9974 = vpop.f32.mrb[0].mxu0
          %v9975 = vadd.f32 %v9934, %v9974
          %v9976 = vpop.f32.mrb[0].mxu0
          %v9977 = vadd.f32 %v9936, %v9976
          %v9978 = vpop.f32.mrb[0].mxu0
          %v9979 = vpop.f32.mrb[0].mxu0
          %9980 = vdwg.mxu0
          %9981 = vmatprep.subr.bf16.mxu0 %v9354
          %9982 = vmatpush1.bf16.msra.mxu0 %v9353
          %9983 = vmatprep.subr.bf16.mxu0 %v9358
          %9984 = vmatpush1.bf16.msra.mxu0 %v9357
          %9985 = vmatprep.subr.bf16.mxu0 %v9362
          %9986 = vmatpush1.bf16.msra.mxu0 %v9361
          %9987 = vmatprep.subr.bf16.mxu0 %v9366
          %9988 = vmatpush1.bf16.msra.mxu0 %v9365
          %9989 = vmatprep.subr.bf16.mxu0 %v9370
          %9990 = vmatpush1.bf16.msra.mxu0 %v9369
          %9991 = vmatprep.subr.bf16.mxu0 %v9374
          %9992 = vmatpush1.bf16.msra.mxu0 %v9373
          %9993 = vmatprep.subr.bf16.mxu0 %v9378
          %9994 = vmatpush1.bf16.msra.mxu0 %v9377
          %9995 = vmatprep.subr.bf16.mxu0 %v9382
          %9996 = vmatpush1.bf16.msra.mxu0 %v9381
          %9997 = vmatprep.subr.bf16.mxu0 %v9386
          %9998 = vmatpush1.bf16.msra.mxu0 %v9385
          %9999 = vmatprep.subr.bf16.mxu0 %v9390
          %10000 = vmatpush1.bf16.msra.mxu0 %v9389
          %10001 = vmatprep.subr.bf16.mxu0 %v9394
          %10002 = vmatpush1.bf16.msra.mxu0 %v9393
          %10003 = vmatprep.subr.bf16.mxu0 %v9398
          %10004 = vmatpush1.bf16.msra.mxu0 %v9397
          %10005 = vmatprep.subr.bf16.mxu0 %v9402
          %10006 = vmatpush1.bf16.msra.mxu0 %v9401
          %10007 = vmatprep.subr.bf16.mxu0 %v9406
          %10008 = vmatpush1.bf16.msra.mxu0 %v9405
          %10009 = vmatprep.subr.bf16.mxu0 %v9410
          %10010 = vmatpush1.bf16.msra.mxu0 %v9409
          %10011 = vmatprep.subr.bf16.mxu0 %v9414
          %10012 = vmatpush1.bf16.msra.mxu0 %v9413
          %10013 = vmatprep.mubr.bf16.mxu0 %v8157
          %10014 = vmatmul.mubr.bf16.gmra.mrb[0].mxu0 %v8156
          %v10015 = vpop.f32.mrb[0].mxu0
          %v10016 = vadd.f32 %v9975, %v10015
          %v10017 = vpop.f32.mrb[0].mxu0
          %v10018 = vadd.f32 %v9977, %v10017
          %v10019 = vpop.f32.mrb[0].mxu0
          %v10020 = vpop.f32.mrb[0].mxu0
          %10021 = vdwg.mxu0
          %10022 = vmatprep.subr.bf16.mxu0 %v9418
          %10023 = vmatpush1.bf16.msra.mxu0 %v9417
          %10024 = vmatprep.subr.bf16.mxu0 %v9422
          %10025 = vmatpush1.bf16.msra.mxu0 %v9421
          %10026 = vmatprep.subr.bf16.mxu0 %v9426
          %10027 = vmatpush1.bf16.msra.mxu0 %v9425
          %10028 = vmatprep.subr.bf16.mxu0 %v9430
          %10029 = vmatpush1.bf16.msra.mxu0 %v9429
          %10030 = vmatprep.subr.bf16.mxu0 %v9434
          %10031 = vmatpush1.bf16.msra.mxu0 %v9433
          %10032 = vmatprep.subr.bf16.mxu0 %v9438
          %10033 = vmatpush1.bf16.msra.mxu0 %v9437
          %10034 = vmatprep.subr.bf16.mxu0 %v9442
          %10035 = vmatpush1.bf16.msra.mxu0 %v9441
          %10036 = vmatprep.subr.bf16.mxu0 %v9446
          %10037 = vmatpush1.bf16.msra.mxu0 %v9445
          %10038 = vmatprep.subr.bf16.mxu0 %v9450
          %10039 = vmatpush1.bf16.msra.mxu0 %v9449
          %10040 = vmatprep.subr.bf16.mxu0 %v9454
          %10041 = vmatpush1.bf16.msra.mxu0 %v9453
          %10042 = vmatprep.subr.bf16.mxu0 %v9458
          %10043 = vmatpush1.bf16.msra.mxu0 %v9457
          %10044 = vmatprep.subr.bf16.mxu0 %v9462
          %10045 = vmatpush1.bf16.msra.mxu0 %v9461
          %10046 = vmatprep.subr.bf16.mxu0 %v9466
          %10047 = vmatpush1.bf16.msra.mxu0 %v9465
          %10048 = vmatprep.subr.bf16.mxu0 %v9470
          %10049 = vmatpush1.bf16.msra.mxu0 %v9469
          %10050 = vmatprep.subr.bf16.mxu0 %v9474
          %10051 = vmatpush1.bf16.msra.mxu0 %v9473
          %10052 = vmatprep.subr.bf16.mxu0 %v9478
          %10053 = vmatpush1.bf16.msra.mxu0 %v9477
          %10054 = vmatprep.mubr.bf16.mxu0 %v8159
          %10055 = vmatmul.mubr.bf16.gmra.mrb[0].mxu0 %v8158
          %v10056 = vpop.f32.mrb[0].mxu0
          %v10057 = vadd.f32 %v10016, %v10056
          %v10058 = vpop.f32.mrb[0].mxu0
          %v10059 = vadd.f32 %v10018, %v10058
          %v10060 = vpop.f32.mrb[0].mxu0
          %v10061 = vpop.f32.mrb[0].mxu0
          %10062 = vdwg.mxu0
          %v10063 = vmax.f32 %v9893, 0.0
          %v10064 = vmax.f32 %v9895, 0.0
          %v10065 = vmax.f32 %v10057, 0.0
          %v10066 = vmax.f32 %v10059, 0.0
          %v10067 = vpack.c.bf16 %v10063, %v10063
          %v10068 = vpack.c.bf16 %v10064, %v10064
          %v10069 = vpack.c.bf16 %v10065, %v10065
          %v10070 = vpack.c.bf16 %v10066, %v10066
          %v10071 = vld [vmem:[#allocation29] sm:$0xff]
          %v10072 = vld [vmem:[#allocation29 + $0x8] sm:$0xff]
          %v10073 = vld [vmem:[#allocation29 + $0x10] sm:$0xff]
          %v10074 = vld [vmem:[#allocation29 + $0x18] sm:$0xff]
          %v10075 = vld [vmem:[#allocation29 + $0x20] sm:$0xff]
          %v10076 = vld [vmem:[#allocation29 + $0x28] sm:$0xff]
          %v10077 = vld [vmem:[#allocation29 + $0x30] sm:$0xff]
          %v10078 = vld [vmem:[#allocation29 + $0x38] sm:$0xff]
          %v10079 = vld [vmem:[#allocation29 + $0x40] sm:$0xff]
          %v10080 = vld [vmem:[#allocation29 + $0x48] sm:$0xff]
          %v10081 = vld [vmem:[#allocation29 + $0x50] sm:$0xff]
          %v10082 = vld [vmem:[#allocation29 + $0x58] sm:$0xff]
          %v10083 = vld [vmem:[#allocation29 + $0x60] sm:$0xff]
          %v10084 = vld [vmem:[#allocation29 + $0x68] sm:$0xff]
          %v10085 = vld [vmem:[#allocation29 + $0x70] sm:$0xff]
          %v10086 = vld [vmem:[#allocation29 + $0x78] sm:$0xff]
          %v10087 = vld [vmem:[#allocation29 + $0x80] sm:$0xff]
          %v10088 = vld [vmem:[#allocation29 + $0x88] sm:$0xff]
          %v10089 = vld [vmem:[#allocation29 + $0x90] sm:$0xff]
          %v10090 = vld [vmem:[#allocation29 + $0x98] sm:$0xff]
          %v10091 = vld [vmem:[#allocation29 + $0xa0] sm:$0xff]
          %v10092 = vld [vmem:[#allocation29 + $0xa8] sm:$0xff]
          %v10093 = vld [vmem:[#allocation29 + $0xb0] sm:$0xff]
          %v10094 = vld [vmem:[#allocation29 + $0xb8] sm:$0xff]
          %v10095 = vld [vmem:[#allocation29 + $0xc0] sm:$0xff]
          %v10096 = vld [vmem:[#allocation29 + $0xc8] sm:$0xff]
          %v10097 = vld [vmem:[#allocation29 + $0xd0] sm:$0xff]
          %v10098 = vld [vmem:[#allocation29 + $0xd8] sm:$0xff]
          %v10099 = vld [vmem:[#allocation29 + $0xe0] sm:$0xff]
          %v10100 = vld [vmem:[#allocation29 + $0xe8] sm:$0xff]
          %v10101 = vld [vmem:[#allocation29 + $0xf0] sm:$0xff]
          %v10102 = vld [vmem:[#allocation29 + $0xf8] sm:$0xff]
          %v10103 = vld [vmem:[#allocation29 + $0x100] sm:$0xff]
          %v10104 = vld [vmem:[#allocation29 + $0x108] sm:$0xff]
          %v10105 = vld [vmem:[#allocation29 + $0x110] sm:$0xff]
          %v10106 = vld [vmem:[#allocation29 + $0x118] sm:$0xff]
          %v10107 = vld [vmem:[#allocation29 + $0x120] sm:$0xff]
          %v10108 = vld [vmem:[#allocation29 + $0x128] sm:$0xff]
          %v10109 = vld [vmem:[#allocation29 + $0x130] sm:$0xff]
          %v10110 = vld [vmem:[#allocation29 + $0x138] sm:$0xff]
          %v10111 = vld [vmem:[#allocation29 + $0x140] sm:$0xff]
          %v10112 = vld [vmem:[#allocation29 + $0x148] sm:$0xff]
          %v10113 = vld [vmem:[#allocation29 + $0x150] sm:$0xff]
          %v10114 = vld [vmem:[#allocation29 + $0x158] sm:$0xff]
          %v10115 = vld [vmem:[#allocation29 + $0x160] sm:$0xff]
          %v10116 = vld [vmem:[#allocation29 + $0x168] sm:$0xff]
          %v10117 = vld [vmem:[#allocation29 + $0x170] sm:$0xff]
          %v10118 = vld [vmem:[#allocation29 + $0x178] sm:$0xff]
          %v10119 = vld [vmem:[#allocation29 + $0x180] sm:$0xff]
          %v10120 = vld [vmem:[#allocation29 + $0x188] sm:$0xff]
          %v10121 = vld [vmem:[#allocation29 + $0x190] sm:$0xff]
          %v10122 = vld [vmem:[#allocation29 + $0x198] sm:$0xff]
          %v10123 = vld [vmem:[#allocation29 + $0x1a0] sm:$0xff]
          %v10124 = vld [vmem:[#allocation29 + $0x1a8] sm:$0xff]
          %v10125 = vld [vmem:[#allocation29 + $0x1b0] sm:$0xff]
          %v10126 = vld [vmem:[#allocation29 + $0x1b8] sm:$0xff]
          %v10127 = vld [vmem:[#allocation29 + $0x1c0] sm:$0xff]
          %v10128 = vld [vmem:[#allocation29 + $0x1c8] sm:$0xff]
          %v10129 = vld [vmem:[#allocation29 + $0x1d0] sm:$0xff]
          %v10130 = vld [vmem:[#allocation29 + $0x1d8] sm:$0xff]
          %v10131 = vld [vmem:[#allocation29 + $0x1e0] sm:$0xff]
          %v10132 = vld [vmem:[#allocation29 + $0x1e8] sm:$0xff]
          %v10133 = vld [vmem:[#allocation29 + $0x1f0] sm:$0xff]
          %v10134 = vld [vmem:[#allocation29 + $0x1f8] sm:$0xff]
          %v10135 = vld [vmem:[#allocation29 + $0x200] sm:$0xff]
          %v10136 = vld [vmem:[#allocation29 + $0x208] sm:$0xff]
          %v10137 = vld [vmem:[#allocation29 + $0x210] sm:$0xff]
          %v10138 = vld [vmem:[#allocation29 + $0x218] sm:$0xff]
          %v10139 = vld [vmem:[#allocation29 + $0x220] sm:$0xff]
          %v10140 = vld [vmem:[#allocation29 + $0x228] sm:$0xff]
          %v10141 = vld [vmem:[#allocation29 + $0x230] sm:$0xff]
          %v10142 = vld [vmem:[#allocation29 + $0x238] sm:$0xff]
          %v10143 = vld [vmem:[#allocation29 + $0x240] sm:$0xff]
          %v10144 = vld [vmem:[#allocation29 + $0x248] sm:$0xff]
          %v10145 = vld [vmem:[#allocation29 + $0x250] sm:$0xff]
          %v10146 = vld [vmem:[#allocation29 + $0x258] sm:$0xff]
          %v10147 = vld [vmem:[#allocation29 + $0x260] sm:$0xff]
          %v10148 = vld [vmem:[#allocation29 + $0x268] sm:$0xff]
          %v10149 = vld [vmem:[#allocation29 + $0x270] sm:$0xff]
          %v10150 = vld [vmem:[#allocation29 + $0x278] sm:$0xff]
          %v10151 = vld [vmem:[#allocation29 + $0x280] sm:$0xff]
          %v10152 = vld [vmem:[#allocation29 + $0x288] sm:$0xff]
          %v10153 = vld [vmem:[#allocation29 + $0x290] sm:$0xff]
          %v10154 = vld [vmem:[#allocation29 + $0x298] sm:$0xff]
          %v10155 = vld [vmem:[#allocation29 + $0x2a0] sm:$0xff]
          %v10156 = vld [vmem:[#allocation29 + $0x2a8] sm:$0xff]
          %v10157 = vld [vmem:[#allocation29 + $0x2b0] sm:$0xff]
          %v10158 = vld [vmem:[#allocation29 + $0x2b8] sm:$0xff]
          %v10159 = vld [vmem:[#allocation29 + $0x2c0] sm:$0xff]
          %v10160 = vld [vmem:[#allocation29 + $0x2c8] sm:$0xff]
          %v10161 = vld [vmem:[#allocation29 + $0x2d0] sm:$0xff]
          %v10162 = vld [vmem:[#allocation29 + $0x2d8] sm:$0xff]
          %v10163 = vld [vmem:[#allocation29 + $0x2e0] sm:$0xff]
          %v10164 = vld [vmem:[#allocation29 + $0x2e8] sm:$0xff]
          %v10165 = vld [vmem:[#allocation29 + $0x2f0] sm:$0xff]
          %v10166 = vld [vmem:[#allocation29 + $0x2f8] sm:$0xff]
          %v10167 = vld [vmem:[#allocation29 + $0x300] sm:$0xff]
          %v10168 = vld [vmem:[#allocation29 + $0x308] sm:$0xff]
          %v10169 = vld [vmem:[#allocation29 + $0x310] sm:$0xff]
          %v10170 = vld [vmem:[#allocation29 + $0x318] sm:$0xff]
          %v10171 = vld [vmem:[#allocation29 + $0x320] sm:$0xff]
          %v10172 = vld [vmem:[#allocation29 + $0x328] sm:$0xff]
          %v10173 = vld [vmem:[#allocation29 + $0x330] sm:$0xff]
          %v10174 = vld [vmem:[#allocation29 + $0x338] sm:$0xff]
          %v10175 = vld [vmem:[#allocation29 + $0x340] sm:$0xff]
          %v10176 = vld [vmem:[#allocation29 + $0x348] sm:$0xff]
          %v10177 = vld [vmem:[#allocation29 + $0x350] sm:$0xff]
          %v10178 = vld [vmem:[#allocation29 + $0x358] sm:$0xff]
          %v10179 = vld [vmem:[#allocation29 + $0x360] sm:$0xff]
          %v10180 = vld [vmem:[#allocation29 + $0x368] sm:$0xff]
          %v10181 = vld [vmem:[#allocation29 + $0x370] sm:$0xff]
          %v10182 = vld [vmem:[#allocation29 + $0x378] sm:$0xff]
          %v10183 = vld [vmem:[#allocation29 + $0x380] sm:$0xff]
          %v10184 = vld [vmem:[#allocation29 + $0x388] sm:$0xff]
          %v10185 = vld [vmem:[#allocation29 + $0x390] sm:$0xff]
          %v10186 = vld [vmem:[#allocation29 + $0x398] sm:$0xff]
          %v10187 = vld [vmem:[#allocation29 + $0x3a0] sm:$0xff]
          %v10188 = vld [vmem:[#allocation29 + $0x3a8] sm:$0xff]
          %v10189 = vld [vmem:[#allocation29 + $0x3b0] sm:$0xff]
          %v10190 = vld [vmem:[#allocation29 + $0x3b8] sm:$0xff]
          %v10191 = vld [vmem:[#allocation29 + $0x3c0] sm:$0xff]
          %v10192 = vld [vmem:[#allocation29 + $0x3c8] sm:$0xff]
          %v10193 = vld [vmem:[#allocation29 + $0x3d0] sm:$0xff]
          %v10194 = vld [vmem:[#allocation29 + $0x3d8] sm:$0xff]
          %v10195 = vld [vmem:[#allocation29 + $0x3e0] sm:$0xff]
          %v10196 = vld [vmem:[#allocation29 + $0x3e8] sm:$0xff]
          %v10197 = vld [vmem:[#allocation29 + $0x3f0] sm:$0xff]
          %v10198 = vld [vmem:[#allocation29 + $0x3f8] sm:$0xff]
          %v10199 = vld [vmem:[#allocation30] sm:$0xf]
          %v10200 = vunpack.c.l.bf16 %v10199
          %v10202 = vlaneseq
          %v10203 = vshrl.u32 %v10202, 7
          %v10204 = vsub.s32 0, %v10203
          %v10205 = vrot.slane %v10200, %v10204
          %v10206 = vlaneseq
          %v10207 = vshrl.u32 %v10206, 7
          %v10208 = vsub.s32 2, %v10207
          %v10209 = vrot.slane %v10200, %v10208
          %v10210 = vlaneseq
          %v10211 = vshrl.u32 %v10210, 7
          %v10212 = vsub.s32 4, %v10211
          %v10213 = vrot.slane %v10200, %v10212
          %v10214 = vlaneseq
          %v10215 = vshrl.u32 %v10214, 7
          %v10216 = vsub.s32 6, %v10215
          %v10217 = vrot.slane %v10200, %v10216
          %v10222 = vlaneseq
          %v10223 = vshrl.u32 %v10222, 7
          %v10224 = vsub.s32 0, %v10223
          %v10225 = vrot.slane %v10205, %v10224
          %v10226 = vlaneseq
          %v10227 = vshrl.u32 %v10226, 7
          %v10228 = vsub.s32 0, %v10227
          %v10229 = vrot.slane %v10209, %v10228
          %v10230 = vlaneseq
          %v10231 = vshrl.u32 %v10230, 7
          %v10232 = vsub.s32 0, %v10231
          %v10233 = vrot.slane %v10213, %v10232
          %v10234 = vlaneseq
          %v10235 = vshrl.u32 %v10234, 7
          %v10236 = vsub.s32 0, %v10235
          %v10237 = vrot.slane %v10217, %v10236
          %v10366 = vunpack.c.l.b16 %v10071
          %v10367 = vunpack.c.h.b16 %v10071
          %v10368 = vunpack.c.l.b16 %v10072
          %v10369 = vunpack.c.h.b16 %v10072
          %v10370 = vunpack.c.l.b16 %v10073
          %v10371 = vunpack.c.h.b16 %v10073
          %v10372 = vunpack.c.l.b16 %v10074
          %v10373 = vunpack.c.h.b16 %v10074
          %v10374 = vunpack.c.l.b16 %v10075
          %v10375 = vunpack.c.h.b16 %v10075
          %v10376 = vunpack.c.l.b16 %v10076
          %v10377 = vunpack.c.h.b16 %v10076
          %v10378 = vunpack.c.l.b16 %v10077
          %v10379 = vunpack.c.h.b16 %v10077
          %v10380 = vunpack.c.l.b16 %v10078
          %v10381 = vunpack.c.h.b16 %v10078
          %v10382 = vunpack.c.l.b16 %v10079
          %v10383 = vunpack.c.h.b16 %v10079
          %v10384 = vunpack.c.l.b16 %v10080
          %v10385 = vunpack.c.h.b16 %v10080
          %v10386 = vunpack.c.l.b16 %v10081
          %v10387 = vunpack.c.h.b16 %v10081
          %v10388 = vunpack.c.l.b16 %v10082
          %v10389 = vunpack.c.h.b16 %v10082
          %v10390 = vunpack.c.l.b16 %v10083
          %v10391 = vunpack.c.h.b16 %v10083
          %v10392 = vunpack.c.l.b16 %v10084
          %v10393 = vunpack.c.h.b16 %v10084
          %v10394 = vunpack.c.l.b16 %v10085
          %v10395 = vunpack.c.h.b16 %v10085
          %v10396 = vunpack.c.l.b16 %v10086
          %v10397 = vunpack.c.h.b16 %v10086
          %v10398 = vunpack.c.l.b16 %v10087
          %v10399 = vunpack.c.h.b16 %v10087
          %v10400 = vunpack.c.l.b16 %v10088
          %v10401 = vunpack.c.h.b16 %v10088
          %v10402 = vunpack.c.l.b16 %v10089
          %v10403 = vunpack.c.h.b16 %v10089
          %v10404 = vunpack.c.l.b16 %v10090
          %v10405 = vunpack.c.h.b16 %v10090
          %v10406 = vunpack.c.l.b16 %v10091
          %v10407 = vunpack.c.h.b16 %v10091
          %v10408 = vunpack.c.l.b16 %v10092
          %v10409 = vunpack.c.h.b16 %v10092
          %v10410 = vunpack.c.l.b16 %v10093
          %v10411 = vunpack.c.h.b16 %v10093
          %v10412 = vunpack.c.l.b16 %v10094
          %v10413 = vunpack.c.h.b16 %v10094
          %v10414 = vunpack.c.l.b16 %v10095
          %v10415 = vunpack.c.h.b16 %v10095
          %v10416 = vunpack.c.l.b16 %v10096
          %v10417 = vunpack.c.h.b16 %v10096
          %v10418 = vunpack.c.l.b16 %v10097
          %v10419 = vunpack.c.h.b16 %v10097
          %v10420 = vunpack.c.l.b16 %v10098
          %v10421 = vunpack.c.h.b16 %v10098
          %v10422 = vunpack.c.l.b16 %v10099
          %v10423 = vunpack.c.h.b16 %v10099
          %v10424 = vunpack.c.l.b16 %v10100
          %v10425 = vunpack.c.h.b16 %v10100
          %v10426 = vunpack.c.l.b16 %v10101
          %v10427 = vunpack.c.h.b16 %v10101
          %v10428 = vunpack.c.l.b16 %v10102
          %v10429 = vunpack.c.h.b16 %v10102
          %v10430 = vunpack.c.l.b16 %v10103
          %v10431 = vunpack.c.h.b16 %v10103
          %v10432 = vunpack.c.l.b16 %v10104
          %v10433 = vunpack.c.h.b16 %v10104
          %v10434 = vunpack.c.l.b16 %v10105
          %v10435 = vunpack.c.h.b16 %v10105
          %v10436 = vunpack.c.l.b16 %v10106
          %v10437 = vunpack.c.h.b16 %v10106
          %v10438 = vunpack.c.l.b16 %v10107
          %v10439 = vunpack.c.h.b16 %v10107
          %v10440 = vunpack.c.l.b16 %v10108
          %v10441 = vunpack.c.h.b16 %v10108
          %v10442 = vunpack.c.l.b16 %v10109
          %v10443 = vunpack.c.h.b16 %v10109
          %v10444 = vunpack.c.l.b16 %v10110
          %v10445 = vunpack.c.h.b16 %v10110
          %v10446 = vunpack.c.l.b16 %v10111
          %v10447 = vunpack.c.h.b16 %v10111
          %v10448 = vunpack.c.l.b16 %v10112
          %v10449 = vunpack.c.h.b16 %v10112
          %v10450 = vunpack.c.l.b16 %v10113
          %v10451 = vunpack.c.h.b16 %v10113
          %v10452 = vunpack.c.l.b16 %v10114
          %v10453 = vunpack.c.h.b16 %v10114
          %v10454 = vunpack.c.l.b16 %v10115
          %v10455 = vunpack.c.h.b16 %v10115
          %v10456 = vunpack.c.l.b16 %v10116
          %v10457 = vunpack.c.h.b16 %v10116
          %v10458 = vunpack.c.l.b16 %v10117
          %v10459 = vunpack.c.h.b16 %v10117
          %v10460 = vunpack.c.l.b16 %v10118
          %v10461 = vunpack.c.h.b16 %v10118
          %v10462 = vunpack.c.l.b16 %v10119
          %v10463 = vunpack.c.h.b16 %v10119
          %v10464 = vunpack.c.l.b16 %v10120
          %v10465 = vunpack.c.h.b16 %v10120
          %v10466 = vunpack.c.l.b16 %v10121
          %v10467 = vunpack.c.h.b16 %v10121
          %v10468 = vunpack.c.l.b16 %v10122
          %v10469 = vunpack.c.h.b16 %v10122
          %v10470 = vunpack.c.l.b16 %v10123
          %v10471 = vunpack.c.h.b16 %v10123
          %v10472 = vunpack.c.l.b16 %v10124
          %v10473 = vunpack.c.h.b16 %v10124
          %v10474 = vunpack.c.l.b16 %v10125
          %v10475 = vunpack.c.h.b16 %v10125
          %v10476 = vunpack.c.l.b16 %v10126
          %v10477 = vunpack.c.h.b16 %v10126
          %v10478 = vunpack.c.l.b16 %v10127
          %v10479 = vunpack.c.h.b16 %v10127
          %v10480 = vunpack.c.l.b16 %v10128
          %v10481 = vunpack.c.h.b16 %v10128
          %v10482 = vunpack.c.l.b16 %v10129
          %v10483 = vunpack.c.h.b16 %v10129
          %v10484 = vunpack.c.l.b16 %v10130
          %v10485 = vunpack.c.h.b16 %v10130
          %v10486 = vunpack.c.l.b16 %v10131
          %v10487 = vunpack.c.h.b16 %v10131
          %v10488 = vunpack.c.l.b16 %v10132
          %v10489 = vunpack.c.h.b16 %v10132
          %v10490 = vunpack.c.l.b16 %v10133
          %v10491 = vunpack.c.h.b16 %v10133
          %v10492 = vunpack.c.l.b16 %v10134
          %v10493 = vunpack.c.h.b16 %v10134
          %v10494 = vunpack.c.l.b16 %v10135
          %v10495 = vunpack.c.h.b16 %v10135
          %v10496 = vunpack.c.l.b16 %v10136
          %v10497 = vunpack.c.h.b16 %v10136
          %v10498 = vunpack.c.l.b16 %v10137
          %v10499 = vunpack.c.h.b16 %v10137
          %v10500 = vunpack.c.l.b16 %v10138
          %v10501 = vunpack.c.h.b16 %v10138
          %v10502 = vunpack.c.l.b16 %v10139
          %v10503 = vunpack.c.h.b16 %v10139
          %v10504 = vunpack.c.l.b16 %v10140
          %v10505 = vunpack.c.h.b16 %v10140
          %v10506 = vunpack.c.l.b16 %v10141
          %v10507 = vunpack.c.h.b16 %v10141
          %v10508 = vunpack.c.l.b16 %v10142
          %v10509 = vunpack.c.h.b16 %v10142
          %v10510 = vunpack.c.l.b16 %v10143
          %v10511 = vunpack.c.h.b16 %v10143
          %v10512 = vunpack.c.l.b16 %v10144
          %v10513 = vunpack.c.h.b16 %v10144
          %v10514 = vunpack.c.l.b16 %v10145
          %v10515 = vunpack.c.h.b16 %v10145
          %v10516 = vunpack.c.l.b16 %v10146
          %v10517 = vunpack.c.h.b16 %v10146
          %v10518 = vunpack.c.l.b16 %v10147
          %v10519 = vunpack.c.h.b16 %v10147
          %v10520 = vunpack.c.l.b16 %v10148
          %v10521 = vunpack.c.h.b16 %v10148
          %v10522 = vunpack.c.l.b16 %v10149
          %v10523 = vunpack.c.h.b16 %v10149
          %v10524 = vunpack.c.l.b16 %v10150
          %v10525 = vunpack.c.h.b16 %v10150
          %v10526 = vunpack.c.l.b16 %v10151
          %v10527 = vunpack.c.h.b16 %v10151
          %v10528 = vunpack.c.l.b16 %v10152
          %v10529 = vunpack.c.h.b16 %v10152
          %v10530 = vunpack.c.l.b16 %v10153
          %v10531 = vunpack.c.h.b16 %v10153
          %v10532 = vunpack.c.l.b16 %v10154
          %v10533 = vunpack.c.h.b16 %v10154
          %v10534 = vunpack.c.l.b16 %v10155
          %v10535 = vunpack.c.h.b16 %v10155
          %v10536 = vunpack.c.l.b16 %v10156
          %v10537 = vunpack.c.h.b16 %v10156
          %v10538 = vunpack.c.l.b16 %v10157
          %v10539 = vunpack.c.h.b16 %v10157
          %v10540 = vunpack.c.l.b16 %v10158
          %v10541 = vunpack.c.h.b16 %v10158
          %v10542 = vunpack.c.l.b16 %v10159
          %v10543 = vunpack.c.h.b16 %v10159
          %v10544 = vunpack.c.l.b16 %v10160
          %v10545 = vunpack.c.h.b16 %v10160
          %v10546 = vunpack.c.l.b16 %v10161
          %v10547 = vunpack.c.h.b16 %v10161
          %v10548 = vunpack.c.l.b16 %v10162
          %v10549 = vunpack.c.h.b16 %v10162
          %v10550 = vunpack.c.l.b16 %v10163
          %v10551 = vunpack.c.h.b16 %v10163
          %v10552 = vunpack.c.l.b16 %v10164
          %v10553 = vunpack.c.h.b16 %v10164
          %v10554 = vunpack.c.l.b16 %v10165
          %v10555 = vunpack.c.h.b16 %v10165
          %v10556 = vunpack.c.l.b16 %v10166
          %v10557 = vunpack.c.h.b16 %v10166
          %v10558 = vunpack.c.l.b16 %v10167
          %v10559 = vunpack.c.h.b16 %v10167
          %v10560 = vunpack.c.l.b16 %v10168
          %v10561 = vunpack.c.h.b16 %v10168
          %v10562 = vunpack.c.l.b16 %v10169
          %v10563 = vunpack.c.h.b16 %v10169
          %v10564 = vunpack.c.l.b16 %v10170
          %v10565 = vunpack.c.h.b16 %v10170
          %v10566 = vunpack.c.l.b16 %v10171
          %v10567 = vunpack.c.h.b16 %v10171
          %v10568 = vunpack.c.l.b16 %v10172
          %v10569 = vunpack.c.h.b16 %v10172
          %v10570 = vunpack.c.l.b16 %v10173
          %v10571 = vunpack.c.h.b16 %v10173
          %v10572 = vunpack.c.l.b16 %v10174
          %v10573 = vunpack.c.h.b16 %v10174
          %v10574 = vunpack.c.l.b16 %v10175
          %v10575 = vunpack.c.h.b16 %v10175
          %v10576 = vunpack.c.l.b16 %v10176
          %v10577 = vunpack.c.h.b16 %v10176
          %v10578 = vunpack.c.l.b16 %v10177
          %v10579 = vunpack.c.h.b16 %v10177
          %v10580 = vunpack.c.l.b16 %v10178
          %v10581 = vunpack.c.h.b16 %v10178
          %v10582 = vunpack.c.l.b16 %v10179
          %v10583 = vunpack.c.h.b16 %v10179
          %v10584 = vunpack.c.l.b16 %v10180
          %v10585 = vunpack.c.h.b16 %v10180
          %v10586 = vunpack.c.l.b16 %v10181
          %v10587 = vunpack.c.h.b16 %v10181
          %v10588 = vunpack.c.l.b16 %v10182
          %v10589 = vunpack.c.h.b16 %v10182
          %v10590 = vunpack.c.l.b16 %v10183
          %v10591 = vunpack.c.h.b16 %v10183
          %v10592 = vunpack.c.l.b16 %v10184
          %v10593 = vunpack.c.h.b16 %v10184
          %v10594 = vunpack.c.l.b16 %v10185
          %v10595 = vunpack.c.h.b16 %v10185
          %v10596 = vunpack.c.l.b16 %v10186
          %v10597 = vunpack.c.h.b16 %v10186
          %v10598 = vunpack.c.l.b16 %v10187
          %v10599 = vunpack.c.h.b16 %v10187
          %v10600 = vunpack.c.l.b16 %v10188
          %v10601 = vunpack.c.h.b16 %v10188
          %v10602 = vunpack.c.l.b16 %v10189
          %v10603 = vunpack.c.h.b16 %v10189
          %v10604 = vunpack.c.l.b16 %v10190
          %v10605 = vunpack.c.h.b16 %v10190
          %v10606 = vunpack.c.l.b16 %v10191
          %v10607 = vunpack.c.h.b16 %v10191
          %v10608 = vunpack.c.l.b16 %v10192
          %v10609 = vunpack.c.h.b16 %v10192
          %v10610 = vunpack.c.l.b16 %v10193
          %v10611 = vunpack.c.h.b16 %v10193
          %v10612 = vunpack.c.l.b16 %v10194
          %v10613 = vunpack.c.h.b16 %v10194
          %v10614 = vunpack.c.l.b16 %v10195
          %v10615 = vunpack.c.h.b16 %v10195
          %v10616 = vunpack.c.l.b16 %v10196
          %v10617 = vunpack.c.h.b16 %v10196
          %v10618 = vunpack.c.l.b16 %v10197
          %v10619 = vunpack.c.h.b16 %v10197
          %v10620 = vunpack.c.l.b16 %v10198
          %v10621 = vunpack.c.h.b16 %v10198
          %v10622 = vpack.c.b16 %v10370, %v10366
          %v10623 = vpack.c.b16 %v10371, %v10367
          %v10624 = vpack.c.b16 %v10372, %v10368
          %v10625 = vpack.c.b16 %v10373, %v10369
          %v10626 = vpack.c.b16 %v10378, %v10374
          %v10627 = vpack.c.b16 %v10379, %v10375
          %v10628 = vpack.c.b16 %v10380, %v10376
          %v10629 = vpack.c.b16 %v10381, %v10377
          %v10630 = vpack.c.b16 %v10386, %v10382
          %v10631 = vpack.c.b16 %v10387, %v10383
          %v10632 = vpack.c.b16 %v10388, %v10384
          %v10633 = vpack.c.b16 %v10389, %v10385
          %v10634 = vpack.c.b16 %v10394, %v10390
          %v10635 = vpack.c.b16 %v10395, %v10391
          %v10636 = vpack.c.b16 %v10396, %v10392
          %v10637 = vpack.c.b16 %v10397, %v10393
          %v10638 = vpack.c.b16 %v10402, %v10398
          %v10639 = vpack.c.b16 %v10403, %v10399
          %v10640 = vpack.c.b16 %v10404, %v10400
          %v10641 = vpack.c.b16 %v10405, %v10401
          %v10642 = vpack.c.b16 %v10410, %v10406
          %v10643 = vpack.c.b16 %v10411, %v10407
          %v10644 = vpack.c.b16 %v10412, %v10408
          %v10645 = vpack.c.b16 %v10413, %v10409
          %v10646 = vpack.c.b16 %v10418, %v10414
          %v10647 = vpack.c.b16 %v10419, %v10415
          %v10648 = vpack.c.b16 %v10420, %v10416
          %v10649 = vpack.c.b16 %v10421, %v10417
          %v10650 = vpack.c.b16 %v10426, %v10422
          %v10651 = vpack.c.b16 %v10427, %v10423
          %v10652 = vpack.c.b16 %v10428, %v10424
          %v10653 = vpack.c.b16 %v10429, %v10425
          %v10654 = vpack.c.b16 %v10434, %v10430
          %v10655 = vpack.c.b16 %v10435, %v10431
          %v10656 = vpack.c.b16 %v10436, %v10432
          %v10657 = vpack.c.b16 %v10437, %v10433
          %v10658 = vpack.c.b16 %v10442, %v10438
          %v10659 = vpack.c.b16 %v10443, %v10439
          %v10660 = vpack.c.b16 %v10444, %v10440
          %v10661 = vpack.c.b16 %v10445, %v10441
          %v10662 = vpack.c.b16 %v10450, %v10446
          %v10663 = vpack.c.b16 %v10451, %v10447
          %v10664 = vpack.c.b16 %v10452, %v10448
          %v10665 = vpack.c.b16 %v10453, %v10449
          %v10666 = vpack.c.b16 %v10458, %v10454
          %v10667 = vpack.c.b16 %v10459, %v10455
          %v10668 = vpack.c.b16 %v10460, %v10456
          %v10669 = vpack.c.b16 %v10461, %v10457
          %v10670 = vpack.c.b16 %v10466, %v10462
          %v10671 = vpack.c.b16 %v10467, %v10463
          %v10672 = vpack.c.b16 %v10468, %v10464
          %v10673 = vpack.c.b16 %v10469, %v10465
          %v10674 = vpack.c.b16 %v10474, %v10470
          %v10675 = vpack.c.b16 %v10475, %v10471
          %v10676 = vpack.c.b16 %v10476, %v10472
          %v10677 = vpack.c.b16 %v10477, %v10473
          %v10678 = vpack.c.b16 %v10482, %v10478
          %v10679 = vpack.c.b16 %v10483, %v10479
          %v10680 = vpack.c.b16 %v10484, %v10480
          %v10681 = vpack.c.b16 %v10485, %v10481
          %v10682 = vpack.c.b16 %v10490, %v10486
          %v10683 = vpack.c.b16 %v10491, %v10487
          %v10684 = vpack.c.b16 %v10492, %v10488
          %v10685 = vpack.c.b16 %v10493, %v10489
          %v10686 = vpack.c.b16 %v10498, %v10494
          %v10687 = vpack.c.b16 %v10499, %v10495
          %v10688 = vpack.c.b16 %v10500, %v10496
          %v10689 = vpack.c.b16 %v10501, %v10497
          %v10690 = vpack.c.b16 %v10506, %v10502
          %v10691 = vpack.c.b16 %v10507, %v10503
          %v10692 = vpack.c.b16 %v10508, %v10504
          %v10693 = vpack.c.b16 %v10509, %v10505
          %v10694 = vpack.c.b16 %v10514, %v10510
          %v10695 = vpack.c.b16 %v10515, %v10511
          %v10696 = vpack.c.b16 %v10516, %v10512
          %v10697 = vpack.c.b16 %v10517, %v10513
          %v10698 = vpack.c.b16 %v10522, %v10518
          %v10699 = vpack.c.b16 %v10523, %v10519
          %v10700 = vpack.c.b16 %v10524, %v10520
          %v10701 = vpack.c.b16 %v10525, %v10521
          %v10702 = vpack.c.b16 %v10530, %v10526
          %v10703 = vpack.c.b16 %v10531, %v10527
          %v10704 = vpack.c.b16 %v10532, %v10528
          %v10705 = vpack.c.b16 %v10533, %v10529
          %v10706 = vpack.c.b16 %v10538, %v10534
          %v10707 = vpack.c.b16 %v10539, %v10535
          %v10708 = vpack.c.b16 %v10540, %v10536
          %v10709 = vpack.c.b16 %v10541, %v10537
          %v10710 = vpack.c.b16 %v10546, %v10542
          %v10711 = vpack.c.b16 %v10547, %v10543
          %v10712 = vpack.c.b16 %v10548, %v10544
          %v10713 = vpack.c.b16 %v10549, %v10545
          %v10714 = vpack.c.b16 %v10554, %v10550
          %v10715 = vpack.c.b16 %v10555, %v10551
          %v10716 = vpack.c.b16 %v10556, %v10552
          %v10717 = vpack.c.b16 %v10557, %v10553
          %v10718 = vpack.c.b16 %v10562, %v10558
          %v10719 = vpack.c.b16 %v10563, %v10559
          %v10720 = vpack.c.b16 %v10564, %v10560
          %v10721 = vpack.c.b16 %v10565, %v10561
          %v10722 = vpack.c.b16 %v10570, %v10566
          %v10723 = vpack.c.b16 %v10571, %v10567
          %v10724 = vpack.c.b16 %v10572, %v10568
          %v10725 = vpack.c.b16 %v10573, %v10569
          %v10726 = vpack.c.b16 %v10578, %v10574
          %v10727 = vpack.c.b16 %v10579, %v10575
          %v10728 = vpack.c.b16 %v10580, %v10576
          %v10729 = vpack.c.b16 %v10581, %v10577
          %v10730 = vpack.c.b16 %v10586, %v10582
          %v10731 = vpack.c.b16 %v10587, %v10583
          %v10732 = vpack.c.b16 %v10588, %v10584
          %v10733 = vpack.c.b16 %v10589, %v10585
          %v10734 = vpack.c.b16 %v10594, %v10590
          %v10735 = vpack.c.b16 %v10595, %v10591
          %v10736 = vpack.c.b16 %v10596, %v10592
          %v10737 = vpack.c.b16 %v10597, %v10593
          %v10738 = vpack.c.b16 %v10602, %v10598
          %v10739 = vpack.c.b16 %v10603, %v10599
          %v10740 = vpack.c.b16 %v10604, %v10600
          %v10741 = vpack.c.b16 %v10605, %v10601
          %v10742 = vpack.c.b16 %v10610, %v10606
          %v10743 = vpack.c.b16 %v10611, %v10607
          %v10744 = vpack.c.b16 %v10612, %v10608
          %v10745 = vpack.c.b16 %v10613, %v10609
          %v10746 = vpack.c.b16 %v10618, %v10614
          %v10747 = vpack.c.b16 %v10619, %v10615
          %v10748 = vpack.c.b16 %v10620, %v10616
          %v10749 = vpack.c.b16 %v10621, %v10617
          %10878 = vmatprep.subr.bf16.mxu0 %v10623
          %10879 = vmatpush1.bf16.msra.mxu0 %v10622
          %10880 = vmatprep.subr.bf16.mxu0 %v10627
          %10881 = vmatpush1.bf16.msra.mxu0 %v10626
          %10882 = vmatprep.subr.bf16.mxu0 %v10631
          %10883 = vmatpush1.bf16.msra.mxu0 %v10630
          %10884 = vmatprep.subr.bf16.mxu0 %v10635
          %10885 = vmatpush1.bf16.msra.mxu0 %v10634
          %10886 = vmatprep.subr.bf16.mxu0 %v10639
          %10887 = vmatpush1.bf16.msra.mxu0 %v10638
          %10888 = vmatprep.subr.bf16.mxu0 %v10643
          %10889 = vmatpush1.bf16.msra.mxu0 %v10642
          %10890 = vmatprep.subr.bf16.mxu0 %v10647
          %10891 = vmatpush1.bf16.msra.mxu0 %v10646
          %10892 = vmatprep.subr.bf16.mxu0 %v10651
          %10893 = vmatpush1.bf16.msra.mxu0 %v10650
          %10894 = vmatprep.subr.bf16.mxu0 %v10655
          %10895 = vmatpush1.bf16.msra.mxu0 %v10654
          %10896 = vmatprep.subr.bf16.mxu0 %v10659
          %10897 = vmatpush1.bf16.msra.mxu0 %v10658
          %10898 = vmatprep.subr.bf16.mxu0 %v10663
          %10899 = vmatpush1.bf16.msra.mxu0 %v10662
          %10900 = vmatprep.subr.bf16.mxu0 %v10667
          %10901 = vmatpush1.bf16.msra.mxu0 %v10666
          %10902 = vmatprep.subr.bf16.mxu0 %v10671
          %10903 = vmatpush1.bf16.msra.mxu0 %v10670
          %10904 = vmatprep.subr.bf16.mxu0 %v10675
          %10905 = vmatpush1.bf16.msra.mxu0 %v10674
          %10906 = vmatprep.subr.bf16.mxu0 %v10679
          %10907 = vmatpush1.bf16.msra.mxu0 %v10678
          %10908 = vmatprep.subr.bf16.mxu0 %v10683
          %10909 = vmatpush1.bf16.msra.mxu0 %v10682
          %10910 = vmatprep.mubr.bf16.mxu0 %v10068
          %10911 = vmatmul.mubr.bf16.gmra.mrb[0].mxu0 %v10067
          %v10912 = vpop.f32.mrb[0].mxu0
          %v10913 = vadd.f32 %v10225, %v10912
          %v10914 = vpop.f32.mrb[0].mxu0
          %v10915 = vadd.f32 %v10229, %v10914
          %v10916 = vpop.f32.mrb[0].mxu0
          %v10917 = vpop.f32.mrb[0].mxu0
          %10918 = vdwg.mxu0
          %10919 = vmatprep.subr.bf16.mxu0 %v10687
          %10920 = vmatpush1.bf16.msra.mxu0 %v10686
          %10921 = vmatprep.subr.bf16.mxu0 %v10691
          %10922 = vmatpush1.bf16.msra.mxu0 %v10690
          %10923 = vmatprep.subr.bf16.mxu0 %v10695
          %10924 = vmatpush1.bf16.msra.mxu0 %v10694
          %10925 = vmatprep.subr.bf16.mxu0 %v10699
          %10926 = vmatpush1.bf16.msra.mxu0 %v10698
          %10927 = vmatprep.subr.bf16.mxu0 %v10703
          %10928 = vmatpush1.bf16.msra.mxu0 %v10702
          %10929 = vmatprep.subr.bf16.mxu0 %v10707
          %10930 = vmatpush1.bf16.msra.mxu0 %v10706
          %10931 = vmatprep.subr.bf16.mxu0 %v10711
          %10932 = vmatpush1.bf16.msra.mxu0 %v10710
          %10933 = vmatprep.subr.bf16.mxu0 %v10715
          %10934 = vmatpush1.bf16.msra.mxu0 %v10714
          %10935 = vmatprep.subr.bf16.mxu0 %v10719
          %10936 = vmatpush1.bf16.msra.mxu0 %v10718
          %10937 = vmatprep.subr.bf16.mxu0 %v10723
          %10938 = vmatpush1.bf16.msra.mxu0 %v10722
          %10939 = vmatprep.subr.bf16.mxu0 %v10727
          %10940 = vmatpush1.bf16.msra.mxu0 %v10726
          %10941 = vmatprep.subr.bf16.mxu0 %v10731
          %10942 = vmatpush1.bf16.msra.mxu0 %v10730
          %10943 = vmatprep.subr.bf16.mxu0 %v10735
          %10944 = vmatpush1.bf16.msra.mxu0 %v10734
          %10945 = vmatprep.subr.bf16.mxu0 %v10739
          %10946 = vmatpush1.bf16.msra.mxu0 %v10738
          %10947 = vmatprep.subr.bf16.mxu0 %v10743
          %10948 = vmatpush1.bf16.msra.mxu0 %v10742
          %10949 = vmatprep.subr.bf16.mxu0 %v10747
          %10950 = vmatpush1.bf16.msra.mxu0 %v10746
          %10951 = vmatprep.mubr.bf16.mxu0 %v10070
          %10952 = vmatmul.mubr.bf16.gmra.mrb[0].mxu0 %v10069
          %v10953 = vpop.f32.mrb[0].mxu0
          %v10954 = vadd.f32 %v10913, %v10953
          %v10955 = vpop.f32.mrb[0].mxu0
          %v10956 = vadd.f32 %v10915, %v10955
          %v10957 = vpop.f32.mrb[0].mxu0
          %v10958 = vpop.f32.mrb[0].mxu0
          %10959 = vdwg.mxu0
          %10960 = vmatprep.subr.bf16.mxu0 %v10625
          %10961 = vmatpush1.bf16.msra.mxu0 %v10624
          %10962 = vmatprep.subr.bf16.mxu0 %v10629
          %10963 = vmatpush1.bf16.msra.mxu0 %v10628
          %10964 = vmatprep.subr.bf16.mxu0 %v10633
          %10965 = vmatpush1.bf16.msra.mxu0 %v10632
          %10966 = vmatprep.subr.bf16.mxu0 %v10637
          %10967 = vmatpush1.bf16.msra.mxu0 %v10636
          %10968 = vmatprep.subr.bf16.mxu0 %v10641
          %10969 = vmatpush1.bf16.msra.mxu0 %v10640
          %10970 = vmatprep.subr.bf16.mxu0 %v10645
          %10971 = vmatpush1.bf16.msra.mxu0 %v10644
          %10972 = vmatprep.subr.bf16.mxu0 %v10649
          %10973 = vmatpush1.bf16.msra.mxu0 %v10648
          %10974 = vmatprep.subr.bf16.mxu0 %v10653
          %10975 = vmatpush1.bf16.msra.mxu0 %v10652
          %10976 = vmatprep.subr.bf16.mxu0 %v10657
          %10977 = vmatpush1.bf16.msra.mxu0 %v10656
          %10978 = vmatprep.subr.bf16.mxu0 %v10661
          %10979 = vmatpush1.bf16.msra.mxu0 %v10660
          %10980 = vmatprep.subr.bf16.mxu0 %v10665
          %10981 = vmatpush1.bf16.msra.mxu0 %v10664
          %10982 = vmatprep.subr.bf16.mxu0 %v10669
          %10983 = vmatpush1.bf16.msra.mxu0 %v10668
          %10984 = vmatprep.subr.bf16.mxu0 %v10673
          %10985 = vmatpush1.bf16.msra.mxu0 %v10672
          %10986 = vmatprep.subr.bf16.mxu0 %v10677
          %10987 = vmatpush1.bf16.msra.mxu0 %v10676
          %10988 = vmatprep.subr.bf16.mxu0 %v10681
          %10989 = vmatpush1.bf16.msra.mxu0 %v10680
          %10990 = vmatprep.subr.bf16.mxu0 %v10685
          %10991 = vmatpush1.bf16.msra.mxu0 %v10684
          %10992 = vmatprep.mubr.bf16.mxu0 %v10068
          %10993 = vmatmul.mubr.bf16.gmra.mrb[0].mxu0 %v10067
          %v10994 = vpop.f32.mrb[0].mxu0
          %v10995 = vadd.f32 %v10233, %v10994
          %v10996 = vpop.f32.mrb[0].mxu0
          %v10997 = vadd.f32 %v10237, %v10996
          %v10998 = vpop.f32.mrb[0].mxu0
          %v10999 = vpop.f32.mrb[0].mxu0
          %11000 = vdwg.mxu0
          %11001 = vmatprep.subr.bf16.mxu0 %v10689
          %11002 = vmatpush1.bf16.msra.mxu0 %v10688
          %11003 = vmatprep.subr.bf16.mxu0 %v10693
          %11004 = vmatpush1.bf16.msra.mxu0 %v10692
          %11005 = vmatprep.subr.bf16.mxu0 %v10697
          %11006 = vmatpush1.bf16.msra.mxu0 %v10696
          %11007 = vmatprep.subr.bf16.mxu0 %v10701
          %11008 = vmatpush1.bf16.msra.mxu0 %v10700
          %11009 = vmatprep.subr.bf16.mxu0 %v10705
          %11010 = vmatpush1.bf16.msra.mxu0 %v10704
          %11011 = vmatprep.subr.bf16.mxu0 %v10709
          %11012 = vmatpush1.bf16.msra.mxu0 %v10708
          %11013 = vmatprep.subr.bf16.mxu0 %v10713
          %11014 = vmatpush1.bf16.msra.mxu0 %v10712
          %11015 = vmatprep.subr.bf16.mxu0 %v10717
          %11016 = vmatpush1.bf16.msra.mxu0 %v10716
          %11017 = vmatprep.subr.bf16.mxu0 %v10721
          %11018 = vmatpush1.bf16.msra.mxu0 %v10720
          %11019 = vmatprep.subr.bf16.mxu0 %v10725
          %11020 = vmatpush1.bf16.msra.mxu0 %v10724
          %11021 = vmatprep.subr.bf16.mxu0 %v10729
          %11022 = vmatpush1.bf16.msra.mxu0 %v10728
          %11023 = vmatprep.subr.bf16.mxu0 %v10733
          %11024 = vmatpush1.bf16.msra.mxu0 %v10732
          %11025 = vmatprep.subr.bf16.mxu0 %v10737
          %11026 = vmatpush1.bf16.msra.mxu0 %v10736
          %11027 = vmatprep.subr.bf16.mxu0 %v10741
          %11028 = vmatpush1.bf16.msra.mxu0 %v10740
          %11029 = vmatprep.subr.bf16.mxu0 %v10745
          %11030 = vmatpush1.bf16.msra.mxu0 %v10744
          %11031 = vmatprep.subr.bf16.mxu0 %v10749
          %11032 = vmatpush1.bf16.msra.mxu0 %v10748
          %11033 = vmatprep.mubr.bf16.mxu0 %v10070
          %11034 = vmatmul.mubr.bf16.gmra.mrb[0].mxu0 %v10069
          %v11035 = vpop.f32.mrb[0].mxu0
          %v11036 = vadd.f32 %v10995, %v11035
          %v11037 = vpop.f32.mrb[0].mxu0
          %v11038 = vadd.f32 %v10997, %v11037
          %v11039 = vpop.f32.mrb[0].mxu0
          %v11040 = vpop.f32.mrb[0].mxu0
          %11041 = vdwg.mxu0
          %v11042 = vmax.f32 %v10954, 0.0
          %v11043 = vmax.f32 %v10956, 0.0
          %v11044 = vmax.f32 %v11036, 0.0
          %v11045 = vmax.f32 %v11038, 0.0
          %v11046 = vpack.c.bf16 %v11042, %v11042
          %v11047 = vpack.c.bf16 %v11043, %v11043
          %v11048 = vpack.c.bf16 %v11044, %v11044
          %v11049 = vpack.c.bf16 %v11045, %v11045
          %v11050 = vld [vmem:[#allocation32] sm:$0xff]
          %v11051 = vld [vmem:[#allocation32 + $0x8] sm:$0xff]
          %v11052 = vld [vmem:[#allocation32 + $0x10] sm:$0xff]
          %v11053 = vld [vmem:[#allocation32 + $0x18] sm:$0xff]
          %v11054 = vld [vmem:[#allocation32 + $0x20] sm:$0xff]
          %v11055 = vld [vmem:[#allocation32 + $0x28] sm:$0xff]
          %v11056 = vld [vmem:[#allocation32 + $0x30] sm:$0xff]
          %v11057 = vld [vmem:[#allocation32 + $0x38] sm:$0xff]
          %v11058 = vld [vmem:[#allocation32 + $0x40] sm:$0xff]
          %v11059 = vld [vmem:[#allocation32 + $0x48] sm:$0xff]
          %v11060 = vld [vmem:[#allocation32 + $0x50] sm:$0xff]
          %v11061 = vld [vmem:[#allocation32 + $0x58] sm:$0xff]
          %v11062 = vld [vmem:[#allocation32 + $0x60] sm:$0xff]
          %v11063 = vld [vmem:[#allocation32 + $0x68] sm:$0xff]
          %v11064 = vld [vmem:[#allocation32 + $0x70] sm:$0xff]
          %v11065 = vld [vmem:[#allocation32 + $0x78] sm:$0xff]
          %v11066 = vld [vmem:[#allocation32 + $0x80] sm:$0xff]
          %v11067 = vld [vmem:[#allocation32 + $0x88] sm:$0xff]
          %v11068 = vld [vmem:[#allocation32 + $0x90] sm:$0xff]
          %v11069 = vld [vmem:[#allocation32 + $0x98] sm:$0xff]
          %v11070 = vld [vmem:[#allocation32 + $0xa0] sm:$0xff]
          %v11071 = vld [vmem:[#allocation32 + $0xa8] sm:$0xff]
          %v11072 = vld [vmem:[#allocation32 + $0xb0] sm:$0xff]
          %v11073 = vld [vmem:[#allocation32 + $0xb8] sm:$0xff]
          %v11074 = vld [vmem:[#allocation32 + $0xc0] sm:$0xff]
          %v11075 = vld [vmem:[#allocation32 + $0xc8] sm:$0xff]
          %v11076 = vld [vmem:[#allocation32 + $0xd0] sm:$0xff]
          %v11077 = vld [vmem:[#allocation32 + $0xd8] sm:$0xff]
          %v11078 = vld [vmem:[#allocation32 + $0xe0] sm:$0xff]
          %v11079 = vld [vmem:[#allocation32 + $0xe8] sm:$0xff]
          %v11080 = vld [vmem:[#allocation32 + $0xf0] sm:$0xff]
          %v11081 = vld [vmem:[#allocation32 + $0xf8] sm:$0xff]
          %v11082 = vld [vmem:[#allocation32 + $0x100] sm:$0xff]
          %v11083 = vld [vmem:[#allocation32 + $0x108] sm:$0xff]
          %v11084 = vld [vmem:[#allocation32 + $0x110] sm:$0xff]
          %v11085 = vld [vmem:[#allocation32 + $0x118] sm:$0xff]
          %v11086 = vld [vmem:[#allocation32 + $0x120] sm:$0xff]
          %v11087 = vld [vmem:[#allocation32 + $0x128] sm:$0xff]
          %v11088 = vld [vmem:[#allocation32 + $0x130] sm:$0xff]
          %v11089 = vld [vmem:[#allocation32 + $0x138] sm:$0xff]
          %v11090 = vld [vmem:[#allocation32 + $0x140] sm:$0xff]
          %v11091 = vld [vmem:[#allocation32 + $0x148] sm:$0xff]
          %v11092 = vld [vmem:[#allocation32 + $0x150] sm:$0xff]
          %v11093 = vld [vmem:[#allocation32 + $0x158] sm:$0xff]
          %v11094 = vld [vmem:[#allocation32 + $0x160] sm:$0xff]
          %v11095 = vld [vmem:[#allocation32 + $0x168] sm:$0xff]
          %v11096 = vld [vmem:[#allocation32 + $0x170] sm:$0xff]
          %v11097 = vld [vmem:[#allocation32 + $0x178] sm:$0xff]
          %v11098 = vld [vmem:[#allocation32 + $0x180] sm:$0xff]
          %v11099 = vld [vmem:[#allocation32 + $0x188] sm:$0xff]
          %v11100 = vld [vmem:[#allocation32 + $0x190] sm:$0xff]
          %v11101 = vld [vmem:[#allocation32 + $0x198] sm:$0xff]
          %v11102 = vld [vmem:[#allocation32 + $0x1a0] sm:$0xff]
          %v11103 = vld [vmem:[#allocation32 + $0x1a8] sm:$0xff]
          %v11104 = vld [vmem:[#allocation32 + $0x1b0] sm:$0xff]
          %v11105 = vld [vmem:[#allocation32 + $0x1b8] sm:$0xff]
          %v11106 = vld [vmem:[#allocation32 + $0x1c0] sm:$0xff]
          %v11107 = vld [vmem:[#allocation32 + $0x1c8] sm:$0xff]
          %v11108 = vld [vmem:[#allocation32 + $0x1d0] sm:$0xff]
          %v11109 = vld [vmem:[#allocation32 + $0x1d8] sm:$0xff]
          %v11110 = vld [vmem:[#allocation32 + $0x1e0] sm:$0xff]
          %v11111 = vld [vmem:[#allocation32 + $0x1e8] sm:$0xff]
          %v11112 = vld [vmem:[#allocation32 + $0x1f0] sm:$0xff]
          %v11113 = vld [vmem:[#allocation32 + $0x1f8] sm:$0xff]
          %v11114 = vld [vmem:[#allocation33] sm:$0x3]
          %v11115 = vunpack.c.l.bf16 %v11114
          %v11117 = vlaneseq
          %v11118 = vshrl.u32 %v11117, 7
          %v11119 = vsub.s32 0, %v11118
          %v11120 = vrot.slane %v11115, %v11119
          %v11121 = vlaneseq
          %v11122 = vshrl.u32 %v11121, 7
          %v11123 = vsub.s32 2, %v11122
          %v11124 = vrot.slane %v11115, %v11123
          %v11127 = vlaneseq
          %v11128 = vshrl.u32 %v11127, 7
          %v11129 = vsub.s32 0, %v11128
          %v11130 = vrot.slane %v11120, %v11129
          %v11131 = vlaneseq
          %v11132 = vshrl.u32 %v11131, 7
          %v11133 = vsub.s32 0, %v11132
          %v11134 = vrot.slane %v11124, %v11133
          %v11199 = vunpack.c.l.b16 %v11050
          %v11200 = vunpack.c.h.b16 %v11050
          %v11201 = vunpack.c.l.b16 %v11051
          %v11202 = vunpack.c.h.b16 %v11051
          %v11203 = vunpack.c.l.b16 %v11052
          %v11204 = vunpack.c.h.b16 %v11052
          %v11205 = vunpack.c.l.b16 %v11053
          %v11206 = vunpack.c.h.b16 %v11053
          %v11207 = vunpack.c.l.b16 %v11054
          %v11208 = vunpack.c.h.b16 %v11054
          %v11209 = vunpack.c.l.b16 %v11055
          %v11210 = vunpack.c.h.b16 %v11055
          %v11211 = vunpack.c.l.b16 %v11056
          %v11212 = vunpack.c.h.b16 %v11056
          %v11213 = vunpack.c.l.b16 %v11057
          %v11214 = vunpack.c.h.b16 %v11057
          %v11215 = vunpack.c.l.b16 %v11058
          %v11216 = vunpack.c.h.b16 %v11058
          %v11217 = vunpack.c.l.b16 %v11059
          %v11218 = vunpack.c.h.b16 %v11059
          %v11219 = vunpack.c.l.b16 %v11060
          %v11220 = vunpack.c.h.b16 %v11060
          %v11221 = vunpack.c.l.b16 %v11061
          %v11222 = vunpack.c.h.b16 %v11061
          %v11223 = vunpack.c.l.b16 %v11062
          %v11224 = vunpack.c.h.b16 %v11062
          %v11225 = vunpack.c.l.b16 %v11063
          %v11226 = vunpack.c.h.b16 %v11063
          %v11227 = vunpack.c.l.b16 %v11064
          %v11228 = vunpack.c.h.b16 %v11064
          %v11229 = vunpack.c.l.b16 %v11065
          %v11230 = vunpack.c.h.b16 %v11065
          %v11231 = vunpack.c.l.b16 %v11066
          %v11232 = vunpack.c.h.b16 %v11066
          %v11233 = vunpack.c.l.b16 %v11067
          %v11234 = vunpack.c.h.b16 %v11067
          %v11235 = vunpack.c.l.b16 %v11068
          %v11236 = vunpack.c.h.b16 %v11068
          %v11237 = vunpack.c.l.b16 %v11069
          %v11238 = vunpack.c.h.b16 %v11069
          %v11239 = vunpack.c.l.b16 %v11070
          %v11240 = vunpack.c.h.b16 %v11070
          %v11241 = vunpack.c.l.b16 %v11071
          %v11242 = vunpack.c.h.b16 %v11071
          %v11243 = vunpack.c.l.b16 %v11072
          %v11244 = vunpack.c.h.b16 %v11072
          %v11245 = vunpack.c.l.b16 %v11073
          %v11246 = vunpack.c.h.b16 %v11073
          %v11247 = vunpack.c.l.b16 %v11074
          %v11248 = vunpack.c.h.b16 %v11074
          %v11249 = vunpack.c.l.b16 %v11075
          %v11250 = vunpack.c.h.b16 %v11075
          %v11251 = vunpack.c.l.b16 %v11076
          %v11252 = vunpack.c.h.b16 %v11076
          %v11253 = vunpack.c.l.b16 %v11077
          %v11254 = vunpack.c.h.b16 %v11077
          %v11255 = vunpack.c.l.b16 %v11078
          %v11256 = vunpack.c.h.b16 %v11078
          %v11257 = vunpack.c.l.b16 %v11079
          %v11258 = vunpack.c.h.b16 %v11079
          %v11259 = vunpack.c.l.b16 %v11080
          %v11260 = vunpack.c.h.b16 %v11080
          %v11261 = vunpack.c.l.b16 %v11081
          %v11262 = vunpack.c.h.b16 %v11081
          %v11263 = vunpack.c.l.b16 %v11082
          %v11264 = vunpack.c.h.b16 %v11082
          %v11265 = vunpack.c.l.b16 %v11083
          %v11266 = vunpack.c.h.b16 %v11083
          %v11267 = vunpack.c.l.b16 %v11084
          %v11268 = vunpack.c.h.b16 %v11084
          %v11269 = vunpack.c.l.b16 %v11085
          %v11270 = vunpack.c.h.b16 %v11085
          %v11271 = vunpack.c.l.b16 %v11086
          %v11272 = vunpack.c.h.b16 %v11086
          %v11273 = vunpack.c.l.b16 %v11087
          %v11274 = vunpack.c.h.b16 %v11087
          %v11275 = vunpack.c.l.b16 %v11088
          %v11276 = vunpack.c.h.b16 %v11088
          %v11277 = vunpack.c.l.b16 %v11089
          %v11278 = vunpack.c.h.b16 %v11089
          %v11279 = vunpack.c.l.b16 %v11090
          %v11280 = vunpack.c.h.b16 %v11090
          %v11281 = vunpack.c.l.b16 %v11091
          %v11282 = vunpack.c.h.b16 %v11091
          %v11283 = vunpack.c.l.b16 %v11092
          %v11284 = vunpack.c.h.b16 %v11092
          %v11285 = vunpack.c.l.b16 %v11093
          %v11286 = vunpack.c.h.b16 %v11093
          %v11287 = vunpack.c.l.b16 %v11094
          %v11288 = vunpack.c.h.b16 %v11094
          %v11289 = vunpack.c.l.b16 %v11095
          %v11290 = vunpack.c.h.b16 %v11095
          %v11291 = vunpack.c.l.b16 %v11096
          %v11292 = vunpack.c.h.b16 %v11096
          %v11293 = vunpack.c.l.b16 %v11097
          %v11294 = vunpack.c.h.b16 %v11097
          %v11295 = vunpack.c.l.b16 %v11098
          %v11296 = vunpack.c.h.b16 %v11098
          %v11297 = vunpack.c.l.b16 %v11099
          %v11298 = vunpack.c.h.b16 %v11099
          %v11299 = vunpack.c.l.b16 %v11100
          %v11300 = vunpack.c.h.b16 %v11100
          %v11301 = vunpack.c.l.b16 %v11101
          %v11302 = vunpack.c.h.b16 %v11101
          %v11303 = vunpack.c.l.b16 %v11102
          %v11304 = vunpack.c.h.b16 %v11102
          %v11305 = vunpack.c.l.b16 %v11103
          %v11306 = vunpack.c.h.b16 %v11103
          %v11307 = vunpack.c.l.b16 %v11104
          %v11308 = vunpack.c.h.b16 %v11104
          %v11309 = vunpack.c.l.b16 %v11105
          %v11310 = vunpack.c.h.b16 %v11105
          %v11311 = vunpack.c.l.b16 %v11106
          %v11312 = vunpack.c.h.b16 %v11106
          %v11313 = vunpack.c.l.b16 %v11107
          %v11314 = vunpack.c.h.b16 %v11107
          %v11315 = vunpack.c.l.b16 %v11108
          %v11316 = vunpack.c.h.b16 %v11108
          %v11317 = vunpack.c.l.b16 %v11109
          %v11318 = vunpack.c.h.b16 %v11109
          %v11319 = vunpack.c.l.b16 %v11110
          %v11320 = vunpack.c.h.b16 %v11110
          %v11321 = vunpack.c.l.b16 %v11111
          %v11322 = vunpack.c.h.b16 %v11111
          %v11323 = vunpack.c.l.b16 %v11112
          %v11324 = vunpack.c.h.b16 %v11112
          %v11325 = vunpack.c.l.b16 %v11113
          %v11326 = vunpack.c.h.b16 %v11113
          %v11327 = vpack.c.b16 %v11201, %v11199
          %v11328 = vpack.c.b16 %v11202, %v11200
          %v11329 = vpack.c.b16 %v11205, %v11203
          %v11330 = vpack.c.b16 %v11206, %v11204
          %v11331 = vpack.c.b16 %v11209, %v11207
          %v11332 = vpack.c.b16 %v11210, %v11208
          %v11333 = vpack.c.b16 %v11213, %v11211
          %v11334 = vpack.c.b16 %v11214, %v11212
          %v11335 = vpack.c.b16 %v11217, %v11215
          %v11336 = vpack.c.b16 %v11218, %v11216
          %v11337 = vpack.c.b16 %v11221, %v11219
          %v11338 = vpack.c.b16 %v11222, %v11220
          %v11339 = vpack.c.b16 %v11225, %v11223
          %v11340 = vpack.c.b16 %v11226, %v11224
          %v11341 = vpack.c.b16 %v11229, %v11227
          %v11342 = vpack.c.b16 %v11230, %v11228
          %v11343 = vpack.c.b16 %v11233, %v11231
          %v11344 = vpack.c.b16 %v11234, %v11232
          %v11345 = vpack.c.b16 %v11237, %v11235
          %v11346 = vpack.c.b16 %v11238, %v11236
          %v11347 = vpack.c.b16 %v11241, %v11239
          %v11348 = vpack.c.b16 %v11242, %v11240
          %v11349 = vpack.c.b16 %v11245, %v11243
          %v11350 = vpack.c.b16 %v11246, %v11244
          %v11351 = vpack.c.b16 %v11249, %v11247
          %v11352 = vpack.c.b16 %v11250, %v11248
          %v11353 = vpack.c.b16 %v11253, %v11251
          %v11354 = vpack.c.b16 %v11254, %v11252
          %v11355 = vpack.c.b16 %v11257, %v11255
          %v11356 = vpack.c.b16 %v11258, %v11256
          %v11357 = vpack.c.b16 %v11261, %v11259
          %v11358 = vpack.c.b16 %v11262, %v11260
          %v11359 = vpack.c.b16 %v11265, %v11263
          %v11360 = vpack.c.b16 %v11266, %v11264
          %v11361 = vpack.c.b16 %v11269, %v11267
          %v11362 = vpack.c.b16 %v11270, %v11268
          %v11363 = vpack.c.b16 %v11273, %v11271
          %v11364 = vpack.c.b16 %v11274, %v11272
          %v11365 = vpack.c.b16 %v11277, %v11275
          %v11366 = vpack.c.b16 %v11278, %v11276
          %v11367 = vpack.c.b16 %v11281, %v11279
          %v11368 = vpack.c.b16 %v11282, %v11280
          %v11369 = vpack.c.b16 %v11285, %v11283
          %v11370 = vpack.c.b16 %v11286, %v11284
          %v11371 = vpack.c.b16 %v11289, %v11287
          %v11372 = vpack.c.b16 %v11290, %v11288
          %v11373 = vpack.c.b16 %v11293, %v11291
          %v11374 = vpack.c.b16 %v11294, %v11292
          %v11375 = vpack.c.b16 %v11297, %v11295
          %v11376 = vpack.c.b16 %v11298, %v11296
          %v11377 = vpack.c.b16 %v11301, %v11299
          %v11378 = vpack.c.b16 %v11302, %v11300
          %v11379 = vpack.c.b16 %v11305, %v11303
          %v11380 = vpack.c.b16 %v11306, %v11304
          %v11381 = vpack.c.b16 %v11309, %v11307
          %v11382 = vpack.c.b16 %v11310, %v11308
          %v11383 = vpack.c.b16 %v11313, %v11311
          %v11384 = vpack.c.b16 %v11314, %v11312
          %v11385 = vpack.c.b16 %v11317, %v11315
          %v11386 = vpack.c.b16 %v11318, %v11316
          %v11387 = vpack.c.b16 %v11321, %v11319
          %v11388 = vpack.c.b16 %v11322, %v11320
          %v11389 = vpack.c.b16 %v11325, %v11323
          %v11390 = vpack.c.b16 %v11326, %v11324
          %11455 = vmatprep.subr.bf16.mxu0 %v11328
          %11456 = vmatpush1.bf16.msra.mxu0 %v11327
          %11457 = vmatprep.subr.bf16.mxu0 %v11330
          %11458 = vmatpush1.bf16.msra.mxu0 %v11329
          %11459 = vmatprep.subr.bf16.mxu0 %v11332
          %11460 = vmatpush1.bf16.msra.mxu0 %v11331
          %11461 = vmatprep.subr.bf16.mxu0 %v11334
          %11462 = vmatpush1.bf16.msra.mxu0 %v11333
          %11463 = vmatprep.subr.bf16.mxu0 %v11336
          %11464 = vmatpush1.bf16.msra.mxu0 %v11335
          %11465 = vmatprep.subr.bf16.mxu0 %v11338
          %11466 = vmatpush1.bf16.msra.mxu0 %v11337
          %11467 = vmatprep.subr.bf16.mxu0 %v11340
          %11468 = vmatpush1.bf16.msra.mxu0 %v11339
          %11469 = vmatprep.subr.bf16.mxu0 %v11342
          %11470 = vmatpush1.bf16.msra.mxu0 %v11341
          %11471 = vmatprep.subr.bf16.mxu0 %v11344
          %11472 = vmatpush1.bf16.msra.mxu0 %v11343
          %11473 = vmatprep.subr.bf16.mxu0 %v11346
          %11474 = vmatpush1.bf16.msra.mxu0 %v11345
          %11475 = vmatprep.subr.bf16.mxu0 %v11348
          %11476 = vmatpush1.bf16.msra.mxu0 %v11347
          %11477 = vmatprep.subr.bf16.mxu0 %v11350
          %11478 = vmatpush1.bf16.msra.mxu0 %v11349
          %11479 = vmatprep.subr.bf16.mxu0 %v11352
          %11480 = vmatpush1.bf16.msra.mxu0 %v11351
          %11481 = vmatprep.subr.bf16.mxu0 %v11354
          %11482 = vmatpush1.bf16.msra.mxu0 %v11353
          %11483 = vmatprep.subr.bf16.mxu0 %v11356
          %11484 = vmatpush1.bf16.msra.mxu0 %v11355
          %11485 = vmatprep.subr.bf16.mxu0 %v11358
          %11486 = vmatpush1.bf16.msra.mxu0 %v11357
          %11487 = vmatprep.mubr.bf16.mxu0 %v11047
          %11488 = vmatmul.mubr.bf16.gmra.mrb[0].mxu0 %v11046
          %v11489 = vpop.f32.mrb[0].mxu0
          %v11490 = vadd.f32 %v11130, %v11489
          %v11491 = vpop.f32.mrb[0].mxu0
          %v11492 = vadd.f32 %v11134, %v11491
          %v11493 = vpop.f32.mrb[0].mxu0
          %v11494 = vpop.f32.mrb[0].mxu0
          %11495 = vdwg.mxu0
          %11496 = vmatprep.subr.bf16.mxu0 %v11360
          %11497 = vmatpush1.bf16.msra.mxu0 %v11359
          %11498 = vmatprep.subr.bf16.mxu0 %v11362
          %11499 = vmatpush1.bf16.msra.mxu0 %v11361
          %11500 = vmatprep.subr.bf16.mxu0 %v11364
          %11501 = vmatpush1.bf16.msra.mxu0 %v11363
          %11502 = vmatprep.subr.bf16.mxu0 %v11366
          %11503 = vmatpush1.bf16.msra.mxu0 %v11365
          %11504 = vmatprep.subr.bf16.mxu0 %v11368
          %11505 = vmatpush1.bf16.msra.mxu0 %v11367
          %11506 = vmatprep.subr.bf16.mxu0 %v11370
          %11507 = vmatpush1.bf16.msra.mxu0 %v11369
          %11508 = vmatprep.subr.bf16.mxu0 %v11372
          %11509 = vmatpush1.bf16.msra.mxu0 %v11371
          %11510 = vmatprep.subr.bf16.mxu0 %v11374
          %11511 = vmatpush1.bf16.msra.mxu0 %v11373
          %11512 = vmatprep.subr.bf16.mxu0 %v11376
          %11513 = vmatpush1.bf16.msra.mxu0 %v11375
          %11514 = vmatprep.subr.bf16.mxu0 %v11378
          %11515 = vmatpush1.bf16.msra.mxu0 %v11377
          %11516 = vmatprep.subr.bf16.mxu0 %v11380
          %11517 = vmatpush1.bf16.msra.mxu0 %v11379
          %11518 = vmatprep.subr.bf16.mxu0 %v11382
          %11519 = vmatpush1.bf16.msra.mxu0 %v11381
          %11520 = vmatprep.subr.bf16.mxu0 %v11384
          %11521 = vmatpush1.bf16.msra.mxu0 %v11383
          %11522 = vmatprep.subr.bf16.mxu0 %v11386
          %11523 = vmatpush1.bf16.msra.mxu0 %v11385
          %11524 = vmatprep.subr.bf16.mxu0 %v11388
          %11525 = vmatpush1.bf16.msra.mxu0 %v11387
          %11526 = vmatprep.subr.bf16.mxu0 %v11390
          %11527 = vmatpush1.bf16.msra.mxu0 %v11389
          %11528 = vmatprep.mubr.bf16.mxu0 %v11049
          %11529 = vmatmul.mubr.bf16.gmra.mrb[0].mxu0 %v11048
          %v11530 = vpop.f32.mrb[0].mxu0
          %v11531 = vadd.f32 %v11490, %v11530
          %v11532 = vpop.f32.mrb[0].mxu0
          %v11533 = vadd.f32 %v11492, %v11532
          %v11534 = vpop.f32.mrb[0].mxu0
          %v11535 = vpop.f32.mrb[0].mxu0
          %11536 = vdwg.mxu0
          %v11537 = vmax.f32 %v11531, 0.0
          %v11538 = vmax.f32 %v11533, 0.0
          %v11539 = vpack.c.bf16 %v11537, %v11537
          %v11540 = vpack.c.bf16 %v11538, %v11538
          %v11541 = vld [vmem:[%s21] sm:$0xf]
          %v11542 = vld [vmem:[%s21 + $0x4] sm:$0xf]
          %v11543 = vld [vmem:[%s21 + $0x8] sm:$0xf]
          %v11544 = vld [vmem:[%s21 + $0xc] sm:$0xf]
          %v11545 = vld [vmem:[%s21 + $0x10] sm:$0xf]
          %v11546 = vld [vmem:[%s21 + $0x14] sm:$0xf]
          %v11547 = vld [vmem:[%s21 + $0x18] sm:$0xf]
          %v11548 = vld [vmem:[%s21 + $0x1c] sm:$0xf]
          %v11549 = vld [vmem:[%s21 + $0x20] sm:$0xf]
          %v11550 = vld [vmem:[%s21 + $0x24] sm:$0xf]
          %v11551 = vld [vmem:[%s21 + $0x28] sm:$0xf]
          %v11552 = vld [vmem:[%s21 + $0x2c] sm:$0xf]
          %v11553 = vld [vmem:[%s21 + $0x30] sm:$0xf]
          %v11554 = vld [vmem:[%s21 + $0x34] sm:$0xf]
          %v11555 = vld [vmem:[%s21 + $0x38] sm:$0xf]
          %v11556 = vld [vmem:[%s21 + $0x3c] sm:$0xf]
          %v11557 = vld [vmem:[%s21 + $0x40] sm:$0xf]
          %v11558 = vld [vmem:[%s21 + $0x44] sm:$0xf]
          %v11559 = vld [vmem:[%s21 + $0x48] sm:$0xf]
          %v11560 = vld [vmem:[%s21 + $0x4c] sm:$0xf]
          %v11561 = vld [vmem:[%s21 + $0x50] sm:$0xf]
          %v11562 = vld [vmem:[%s21 + $0x54] sm:$0xf]
          %v11563 = vld [vmem:[%s21 + $0x58] sm:$0xf]
          %v11564 = vld [vmem:[%s21 + $0x5c] sm:$0xf]
          %v11565 = vld [vmem:[%s21 + $0x60] sm:$0xf]
          %v11566 = vld [vmem:[%s21 + $0x64] sm:$0xf]
          %v11567 = vld [vmem:[%s21 + $0x68] sm:$0xf]
          %v11568 = vld [vmem:[%s21 + $0x6c] sm:$0xf]
          %v11569 = vld [vmem:[%s21 + $0x70] sm:$0xf]
          %v11570 = vld [vmem:[%s21 + $0x74] sm:$0xf]
          %v11571 = vld [vmem:[%s21 + $0x78] sm:$0xf]
          %v11572 = vld [vmem:[%s21 + $0x7c] sm:$0xf]
          %v11573 = vld [vmem:[#allocation35] sm:$0x1]
          %v11574 = vunpack.c.l.bf16 %v11573
          %v11575 = vlaneseq
          %v11576 = vshrl.u32 %v11575, 7
          %v11577 = vsub.s32 0, %v11576
          %v11578 = vrot.slane %v11574, %v11577
          %v11611 = vunpack.c.l.b16 %v11541
          %v11612 = vunpack.c.l.b16 %v11542
          %v11613 = vunpack.c.l.b16 %v11543
          %v11614 = vunpack.c.l.b16 %v11544
          %v11615 = vunpack.c.l.b16 %v11545
          %v11616 = vunpack.c.l.b16 %v11546
          %v11617 = vunpack.c.l.b16 %v11547
          %v11618 = vunpack.c.l.b16 %v11548
          %v11619 = vunpack.c.l.b16 %v11549
          %v11620 = vunpack.c.l.b16 %v11550
          %v11621 = vunpack.c.l.b16 %v11551
          %v11622 = vunpack.c.l.b16 %v11552
          %v11623 = vunpack.c.l.b16 %v11553
          %v11624 = vunpack.c.l.b16 %v11554
          %v11625 = vunpack.c.l.b16 %v11555
          %v11626 = vunpack.c.l.b16 %v11556
          %v11627 = vunpack.c.l.b16 %v11557
          %v11628 = vunpack.c.l.b16 %v11558
          %v11629 = vunpack.c.l.b16 %v11559
          %v11630 = vunpack.c.l.b16 %v11560
          %v11631 = vunpack.c.l.b16 %v11561
          %v11632 = vunpack.c.l.b16 %v11562
          %v11633 = vunpack.c.l.b16 %v11563
          %v11634 = vunpack.c.l.b16 %v11564
          %v11635 = vunpack.c.l.b16 %v11565
          %v11636 = vunpack.c.l.b16 %v11566
          %v11637 = vunpack.c.l.b16 %v11567
          %v11638 = vunpack.c.l.b16 %v11568
          %v11639 = vunpack.c.l.b16 %v11569
          %v11640 = vunpack.c.l.b16 %v11570
          %v11641 = vunpack.c.l.b16 %v11571
          %v11642 = vunpack.c.l.b16 %v11572
          %v11643 = vpack.c.b16 %v11612, %v11611
          %v11644 = vpack.c.b16 %v11614, %v11613
          %v11645 = vpack.c.b16 %v11616, %v11615
          %v11646 = vpack.c.b16 %v11618, %v11617
          %v11647 = vpack.c.b16 %v11620, %v11619
          %v11648 = vpack.c.b16 %v11622, %v11621
          %v11649 = vpack.c.b16 %v11624, %v11623
          %v11650 = vpack.c.b16 %v11626, %v11625
          %v11651 = vpack.c.b16 %v11628, %v11627
          %v11652 = vpack.c.b16 %v11630, %v11629
          %v11653 = vpack.c.b16 %v11632, %v11631
          %v11654 = vpack.c.b16 %v11634, %v11633
          %v11655 = vpack.c.b16 %v11636, %v11635
          %v11656 = vpack.c.b16 %v11638, %v11637
          %v11657 = vpack.c.b16 %v11640, %v11639
          %v11658 = vpack.c.b16 %v11642, %v11641
          %11675 = vmatprep.subr.bf16.mxu0 0
          %11676 = vmatpush1.bf16.msra.mxu0 %v11643
          %11677 = vmatprep.subr.bf16.mxu0 0
          %11678 = vmatpush1.bf16.msra.mxu0 %v11644
          %11679 = vmatprep.subr.bf16.mxu0 0
          %11680 = vmatpush1.bf16.msra.mxu0 %v11645
          %11681 = vmatprep.subr.bf16.mxu0 0
          %11682 = vmatpush1.bf16.msra.mxu0 %v11646
          %11683 = vmatprep.subr.bf16.mxu0 0
          %11684 = vmatpush1.bf16.msra.mxu0 %v11647
          %11685 = vmatprep.subr.bf16.mxu0 0
          %11686 = vmatpush1.bf16.msra.mxu0 %v11648
          %11687 = vmatprep.subr.bf16.mxu0 0
          %11688 = vmatpush1.bf16.msra.mxu0 %v11649
          %11689 = vmatprep.subr.bf16.mxu0 0
          %11690 = vmatpush1.bf16.msra.mxu0 %v11650
          %11691 = vmatprep.subr.bf16.mxu0 0
          %11692 = vmatpush1.bf16.msra.mxu0 %v11651
          %11693 = vmatprep.subr.bf16.mxu0 0
          %11694 = vmatpush1.bf16.msra.mxu0 %v11652
          %11695 = vmatprep.subr.bf16.mxu0 0
          %11696 = vmatpush1.bf16.msra.mxu0 %v11653
          %11697 = vmatprep.subr.bf16.mxu0 0
          %11698 = vmatpush1.bf16.msra.mxu0 %v11654
          %11699 = vmatprep.subr.bf16.mxu0 0
          %11700 = vmatpush1.bf16.msra.mxu0 %v11655
          %11701 = vmatprep.subr.bf16.mxu0 0
          %11702 = vmatpush1.bf16.msra.mxu0 %v11656
          %11703 = vmatprep.subr.bf16.mxu0 0
          %11704 = vmatpush1.bf16.msra.mxu0 %v11657
          %11705 = vmatprep.subr.bf16.mxu0 0
          %11706 = vmatpush1.bf16.msra.mxu0 %v11658
          %11707 = vmatprep.mubr.bf16.mxu0 %v11540
          %11708 = vmatmul.mubr.bf16.gmra.mrb[0].mxu0 %v11539
          %v11709 = vpop.f32.mrb[0].mxu0
          %v11710 = vadd.f32 %v11578, %v11709
          %v11711 = vpop.f32.mrb[0].mxu0
          %v11712 = vpop.f32.mrb[0].mxu0
          %v11713 = vpop.f32.mrb[0].mxu0
          %11714 = vdwg.mxu0
          %v11715 = vmul.f32 %v11710, %v11710
          %vm11716 = vcmask 25600
          %v11717 = vsel %vm11716, %v11715, 0.0
          %11718 = vadd.xlane.f32.xlu0 %v11717
          %v11719 = vpop.xlane.xlu0 %11718
          %v11720 = vrsqrt.pop %v11719
          %v11721 = vmul.f32 %v11719, %v11720
          %vm11722 = vcmp.eq.f32.partialorder %v11719, inf
          %v11723 = vsel %vm11722, %v11719, %v11721
          %vm11724 = vcmp.eq.f32.partialorder %v11719, 0.0
          %v11725 = vand.u32 %v11719, 2147483648
          %v11726 = vsel %vm11724, %v11725, %v11723
          %v11727 = vmax.f32 %v11726, 1e-12
          %v11728 = vrcp.pop %v11727
          %v11729 = vmul.f32 %v11710, %v11728
          %11731 = vrot.lane.b32.xlu0 %v11710, 7
          %v11732 = vpop.permute.xlu0 %11731
          %vm11734 = vcmask 31744
          %v11735 = vsel %vm11734, %v11729, %v11710
          %vm11736 = vcmask 56320
          %v11737 = vsel %vm11736, %v11735, %v11732
          %vm11738 = vcmask 82944
          %11739 = vst.msk [vmem:[%s23] sm:$0x3] %vm11738, %v11737
        $region242: #{ipcrnet_forward.1} parent=145 // pred_fallthru
          _
        // Predicated region
        $region243: #{ipcrnet_forward.1} parent=145 // pred_check
          %p11740 = pneg %p546
        $region244: #{ipcrnet_forward.1} parent=145 // pred_check_branch
          %11742 = sbr.rel (%p11740) target = $region246
        $region245: #{ipcrnet_forward.1} parent=145 // pred_region
          _
        $region246: #{ipcrnet_forward.1} parent=145 // pred_fallthru
          _
        // Predicated region
        $region247: #{ipcrnet_forward.1} parent=145 // pred_check
          %p11743 = pneg %p546
        $region248: #{ipcrnet_forward.1} parent=145 // pred_check_branch
          %11745 = sbr.rel (%p11743) target = $region250
        $region249: #{ipcrnet_forward.1} parent=145 // pred_region
          _
        $region250: #{ipcrnet_forward.1} parent=145 // pred_fallthru
          _
      $region146: #{ipcrnet_forward.1} parent=5 // pred_fallthru
        _
      %p11746 = scmp.le.s32.totalorder 2, %s40
      // Predicated region
      $region251: #{ipcrnet_forward.1} parent=5 // pred_check
        %p11747 = pneg %p11746
      $region252: #{ipcrnet_forward.1} parent=5 // pred_check_branch
        %11749 = sbr.rel (%p11747) target = $region254
      $region253: #{ipcrnet_forward.1} parent=5 // pred_region
        %s11750 = ssub.s32 %s40, 2
      $region254: #{ipcrnet_forward.1} parent=5 // pred_fallthru
        _
    $region6: #{ipcrnet_forward.1} parent=1 // loop_footer
      %s44 = sadd.s32 1, %s40
    $region7: #{ipcrnet_forward.1} parent=1 // loop_footer_branch
      %39 = sbr.rel target = $region3
    $region8: #{ipcrnet_forward.1} parent=1 // loop_exit
      _
    %11751 = vsyncpa [#allocation5], 1
    %s11752 = scalar_lea.sflag [#allocation5], 1
    %11753 = vsyncpa %s11752, 1
    %11754 = vsyncpa [#allocation7], 1
    %11755 = vsyncpa [#allocation10], 1
    %11756 = vsyncpa [#allocation13], 1
    %11757 = vsyncpa [#allocation16], 1
    %11758 = vsyncpa [#allocation19], 1
    %11759 = vsyncpa [#allocation22], 1
    %11760 = vsyncpa [#allocation25], 1
    %11761 = vsyncpa [#allocation28], 1
    %11762 = vsyncpa [#allocation31], 1
    %11763 = vsyncpa [#allocation34], 1

</llo_original>
